<compile_context>
chip_gen: v7x
topology: tpu7x:2x2x1
jax: 0.10.0
libtpu: 0.0.40
codegen_flags: <defaults>
</compile_context>

<pallas_src>
import functools

import jax
import jax.numpy as jnp
from jax import lax
from jax.experimental import pallas as pl
from jax.experimental.pallas import tpu as pltpu

D_MODEL = 256
NHEAD = 8
D_FF = 512
N_LAYERS = 4


def _round_up(x, m):
    return (x + m - 1) // m * m


# ------------------------------------------------------------------
# Fused single-block GEMM: out = A @ B + bias (+ ReLU).  No grid: at these
# shapes everything fits in VMEM and grid machinery is pure overhead.
# ------------------------------------------------------------------
def _mm_bias_kernel(a_ref, b_ref, bias_ref, o_ref, *, relu):
    y = jnp.dot(a_ref[...], b_ref[...], preferred_element_type=jnp.float32)
    y = y + bias_ref[...]
    if relu:
        y = jnp.maximum(y, 0.0)
    o_ref[...] = y.astype(o_ref.dtype)


def matmul_bias(a, b, bias, relu=False):
    """(M,K) @ (K,N) + (N,) [+ReLU]; whole operands resident in VMEM."""
    M, K = a.shape
    N = b.shape[1]
    Kp = _round_up(K, 128)
    if Kp != K:  # zero-pad contraction dim only (benign, keeps MXU happy)
        a = jnp.pad(a, ((0, 0), (0, Kp - K)))
        b = jnp.pad(b, ((0, Kp - K), (0, 0)))
    return pl.pallas_call(
        functools.partial(_mm_bias_kernel, relu=relu),
        out_shape=jax.ShapeDtypeStruct((M, N), jnp.float32),
    )(a, b, bias.reshape(1, N))


# ------------------------------------------------------------------
# Conv / pool / up-conv layers
# ------------------------------------------------------------------
def conv3x3_relu(x, w, b):
    # x: (B,H,W,Cin) NHWC; w: (Cout,Cin,3,3) (PyTorch layout); b: (Cout,)
    B, H, W, Cin = x.shape
    Cout = w.shape[0]
    xp = jnp.pad(x, ((0, 0), (1, 1), (1, 1), (0, 0)))
    cols = [xp[:, dh:dh + H, dw:dw + W, :] for dh in range(3) for dw in range(3)]
    patches = jnp.concatenate(cols, axis=-1).reshape(B * H * W, 9 * Cin)
    w_mat = jnp.transpose(w, (2, 3, 1, 0)).reshape(9 * Cin, Cout)
    y = matmul_bias(patches, w_mat, b, relu=True)
    return y.reshape(B, H, W, Cout)


def maxpool2x2(x):
    # Plain XLA: a Pallas launch for a tensor this small is pure overhead.
    B, H, W, C = x.shape
    return x.reshape(B, H // 2, 2, W // 2, 2, C).max(axis=(2, 4))


def upconv2x2_relu(x, w, b):
    # ConvTranspose2d(kernel=2, stride=2) + ReLU; non-overlapping taps, so all
    # 4 taps are fused into one GEMM with a lane-dense (Cin, 4*Cout) weight.
    # x: (B,H,W,Cin); w: (Cin,Cout,2,2) (PyTorch ConvTranspose2d layout)
    B, H, W, Cin = x.shape
    Cout = w.shape[1]
    w_mat = jnp.transpose(w, (0, 2, 3, 1)).reshape(Cin, 4 * Cout)  # (ci)->(di,dj,co)
    b4 = jnp.tile(b, 4)
    y = matmul_bias(x.reshape(-1, Cin), w_mat, b4, relu=True)      # (BHW, 4*Cout)
    y = y.reshape(B, H, W, 2, 2, Cout)
    y = jnp.transpose(y, (0, 1, 3, 2, 4, 5)).reshape(B, 2 * H, 2 * W, Cout)
    return y


# ------------------------------------------------------------------
# Fused final 1x1 conv + head 1x1 conv (two back-to-back GEMMs, one launch)
# ------------------------------------------------------------------
def _final_head_kernel(x_ref, w1_ref, b1_ref, w2_ref, b2_ref, o_ref):
    f = jnp.dot(x_ref[...], w1_ref[...], preferred_element_type=jnp.float32)
    f = f + b1_ref[...]
    y = jnp.dot(f, w2_ref[...], preferred_element_type=jnp.float32) + b2_ref[...]
    o_ref[...] = y.astype(o_ref.dtype)


def final_head(x, w1, b1, w2, b2):
    M = x.shape[0]
    N = w2.shape[1]
    return pl.pallas_call(
        _final_head_kernel,
        out_shape=jax.ShapeDtypeStruct((M, N), jnp.float32),
    )(x, w1, b1.reshape(1, -1), w2, b2.reshape(1, -1))


# ------------------------------------------------------------------
# Whole transformer encoder stack as a single pallas_call (grid over layers)
# ------------------------------------------------------------------
def _layernorm(x, g, b, eps):
    mu = jnp.mean(x, axis=-1, keepdims=True)
    var = jnp.mean((x - mu) ** 2, axis=-1, keepdims=True)
    return (x - mu) * lax.rsqrt(var + eps) * g + b


_TRANS_B = (((1,), (1,)), ((), ()))   # contract last dims: q @ k^T (no explicit .T)


def _transformer_stack_kernel(x_ref,
                              w_qkv_ref, b_qkv_ref, w_out_ref, b_out_ref,
                              ln1_g_ref, ln1_b_ref,
                              w_ff1_ref, b_ff1_ref, w_ff2_ref, b_ff2_ref,
                              ln2_g_ref, ln2_b_ref,
                              o_ref,
                              x_scr, qkv_scr, attn_scr,
                              *, S, B, H, eps):
    # Layer 0: load the (batch-major) token rows into the carried scratch.
    @pl.when(pl.program_id(0) == 0)
    def _():
        x_scr[...] = x_ref[...]

    x = x_scr[...]                      # (B*S, D)
    D = x.shape[-1]
    dh = D // H
    scale = float(dh) ** -0.5

    # --- Multi-head self-attention (post-norm, ReLU FFN, eval/no-dropout) ---
    qkv = jnp.dot(x, w_qkv_ref[...], preferred_element_type=jnp.float32)
    qkv_scr[...] = qkv + b_qkv_ref[...]                       # (B*S, 3D)

    for bi in range(B):                 # static per-(batch, head) blocks
        r0 = bi * S
        for hi in range(H):
            c0 = hi * dh
            q = qkv_scr[r0:r0 + S, c0:c0 + dh] * scale
            k = qkv_scr[r0:r0 + S, D + c0:D + c0 + dh]
            v = qkv_scr[r0:r0 + S, 2 * D + c0:2 * D + c0 + dh]
            s = lax.dot_general(q, k, _TRANS_B,
                                preferred_element_type=jnp.float32)   # (S, S)
            s = s - jnp.max(s, axis=-1, keepdims=True)
            p = jnp.exp(s)
            p = p / jnp.sum(p, axis=-1, keepdims=True)
            attn_scr[r0:r0 + S, c0:c0 + dh] = jnp.dot(
                p, v, preferred_element_type=jnp.float32)

    o = jnp.dot(attn_scr[...], w_out_ref[...],
                preferred_element_type=jnp.float32) + b_out_ref[...]
    x = _layernorm(x + o, ln1_g_ref[...], ln1_b_ref[...], eps)

    # --- Feed-forward ---
    h1 = jnp.dot(x, w_ff1_ref[...], preferred_element_type=jnp.float32)
    h1 = jnp.maximum(h1 + b_ff1_ref[...], 0.0)
    h2 = jnp.dot(h1, w_ff2_ref[...], preferred_element_type=jnp.float32)
    h2 = h2 + b_ff2_ref[...]
    x = _layernorm(x + h2, ln2_g_ref[...], ln2_b_ref[...], eps)

    x_scr[...] = x
    o_ref[...] = x


def transformer_stack(t, tp, S, B):
    R, D = t.shape
    L = tp['w_qkv'].shape[0]
    F = tp['w_ff1'].shape[-1]

    def full(shape):
        return pl.BlockSpec(shape, lambda l: (0, 0))

    def per_layer(shape):
        nd = len(shape)
        return pl.BlockSpec((None,) + shape, lambda l, _nd=nd: (l,) + (0,) * _nd)

    grid_spec = pltpu.PrefetchScalarGridSpec(
        num_scalar_prefetch=0,
        grid=(L,),
        in_specs=[
            full((R, D)),
            per_layer((D, 3 * D)), per_layer((1, 3 * D)),
            per_layer((D, D)),     per_layer((1, D)),
            per_layer((1, D)),     per_layer((1, D)),
            per_layer((D, F)),     per_layer((1, F)),
            per_layer((F, D)),     per_layer((1, D)),
            per_layer((1, D)),     per_layer((1, D)),
        ],
        out_specs=full((R, D)),
        scratch_shapes=[pltpu.VMEM((R, D), jnp.float32),
                        pltpu.VMEM((R, 3 * D), jnp.float32),
                        pltpu.VMEM((R, D), jnp.float32)],
    )
    return pl.pallas_call(
        functools.partial(_transformer_stack_kernel,
                          S=S, B=B, H=NHEAD, eps=1e-5),
        out_shape=jax.ShapeDtypeStruct((R, D), jnp.float32),
        grid_spec=grid_spec,
        compiler_params=pltpu.CompilerParams(
            dimension_semantics=("arbitrary",)),
    )(t, tp['w_qkv'], tp['b_qkv'], tp['w_out'], tp['b_out'],
      tp['ln1_g'], tp['ln1_b'],
      tp['w_ff1'], tp['b_ff1'], tp['w_ff2'], tp['b_ff2'],
      tp['ln2_g'], tp['ln2_b'])


# ------------------------------------------------------------------
# Full PromptEncoder forward
# ------------------------------------------------------------------
@jax.jit
def prompt_encoder(x_nchw, params):
    x = jnp.transpose(x_nchw, (0, 2, 3, 1)).astype(jnp.float32)    # NCHW -> NHWC

    x1 = conv3x3_relu(x, params['conv1_w'], params['conv1_b'])     # (B,16,16,64)
    x2 = conv3x3_relu(maxpool2x2(x1), params['conv2_w'], params['conv2_b'])
    x3 = conv3x3_relu(maxpool2x2(x2), params['conv3_w'], params['conv3_b'])

    B, h, w, C = x3.shape
    S = h * w
    # Batch-major token rows (B*S, C): per-token math is identical to PyTorch's
    # (S, B, C) ordering; attention for batch b is the contiguous rows b*S:(b+1)*S.
    t = x3.reshape(B * S, C)
    t = transformer_stack(t, params['tfm'], S, B)
    x3_out = t.reshape(B, h, w, C)

    u1 = upconv2x2_relu(x3_out, params['up1_w'], params['up1_b'])  # (B,8,8,128)
    u2 = upconv2x2_relu(u1, params['up2_w'], params['up2_b'])      # (B,16,16,64)

    Bo, Ho, Wo, Co = u2.shape
    w_final = params['final_w'].reshape(params['final_w'].shape[0], Co).T   # (64,256)
    w_head = params['head_w'].reshape(params['head_w'].shape[0],
                                      params['head_w'].shape[1]).T          # (256,256)
    y = final_head(u2.reshape(-1, Co), w_final, params['final_b'],
                   w_head, params['head_b'])                                # (BHW,256)
    out = y.reshape(Bo, Ho, Wo, -1)
    return jnp.transpose(out, (0, 3, 1, 2))                        # NHWC -> NCHW


# ------------------------------------------------------------------
# Deterministic synthetic parameters (PyTorch-layout shapes; transformer
# weights pre-stacked along a leading num_layers axis for the fused kernel)
# ------------------------------------------------------------------
def init_params(key):
    keys = iter(jax.random.split(key, 64))

    def nrm(shape, scale=0.05):
        return scale * jax.random.normal(next(keys), shape, dtype=jnp.float32)

    L, D, F = N_LAYERS, D_MODEL, D_FF
    return {
        'conv1_w': nrm((64, 3, 3, 3)),    'conv1_b': nrm((64,)),
        'conv2_w': nrm((128, 64, 3, 3)),  'conv2_b': nrm((128,)),
        'conv3_w': nrm((256, 128, 3, 3)), 'conv3_b': nrm((256,)),
        'tfm': {
            'w_qkv': nrm((L, D, 3 * D)), 'b_qkv': nrm((L, 1, 3 * D)),
            'w_out': nrm((L, D, D)),     'b_out': nrm((L, 1, D)),
            'ln1_g': jnp.ones((L, 1, D), jnp.float32),
            'ln1_b': jnp.zeros((L, 1, D), jnp.float32),
            'w_ff1': nrm((L, D, F)),     'b_ff1': nrm((L, 1, F)),
            'w_ff2': nrm((L, F, D)),     'b_ff2': nrm((L, 1, D)),
            'ln2_g': jnp.ones((L, 1, D), jnp.float32),
            'ln2_b': jnp.zeros((L, 1, D), jnp.float32),
        },
        'up1_w': nrm((256, 128, 2, 2)),  'up1_b': nrm((128,)),
        'up2_w': nrm((128, 64, 2, 2)),   'up2_b': nrm((64,)),
        'final_w': nrm((256, 64, 1, 1)), 'final_b': nrm((256,)),
        'head_w': nrm((256, 256, 1, 1)), 'head_b': nrm((256,)),
    }


if __name__ == "__main__":
    key = jax.random.PRNGKey(0)
    k_params, k_x = jax.random.split(key)
    params = init_params(k_params)
    x = jax.random.normal(k_x, (2, 3, 16, 16), dtype=jnp.float32)  # NCHW like PyTorch

    out = prompt_encoder(x, params)
    out = jax.block_until_ready(out)
    assert out.shape == (2, 256, 16, 16), out.shape
    assert bool(jnp.all(jnp.isfinite(out)))
    print("KERNEL_OK")
</pallas_src>

<mosaic_0001>
module attributes {stable_mosaic.version = 11 : i64} {
  func.func @_mm_bias_kernel(%arg0: memref<512x128xf32, #tpu.memory_space<vmem>>, %arg1: memref<128x64xf32, #tpu.memory_space<vmem>>, %arg2: memref<1x64xf32, #tpu.memory_space<vmem>>, %arg3: memref<512x64xf32, #tpu.memory_space<vmem>>) attributes {dimension_semantics = [], scalar_prefetch = 0 : i64, scratch_operands = 0 : i64, tpu.core_type = #tpu.core_type<tc>} {
    %c0 = arith.constant 0 : index
    %c0_0 = arith.constant 0 : index
    %0 = vector.load %arg0[%c0, %c0_0] : memref<512x128xf32, #tpu.memory_space<vmem>>, vector<512x128xf32>
    %c0_1 = arith.constant 0 : index
    %c0_2 = arith.constant 0 : index
    %1 = vector.load %arg1[%c0_1, %c0_2] : memref<128x64xf32, #tpu.memory_space<vmem>>, vector<128x64xf32>
    %cst = arith.constant dense<0.000000e+00> : vector<512x64xf32>
    %2 = tpu.matmul %0, %1, %cst {dimension_numbers = #tpu.dot_dimension_numbers<[1], [0], [0], [1], [0, 0, 1, 1], [], []>} : vector<512x128xf32>, vector<128x64xf32>, vector<512x64xf32> -> vector<512x64xf32>
    %c0_3 = arith.constant 0 : index
    %c0_4 = arith.constant 0 : index
    %3 = vector.load %arg2[%c0_3, %c0_4] : memref<1x64xf32, #tpu.memory_space<vmem>>, vector<1x64xf32>
    %4 = vector.broadcast %3 : vector<1x64xf32> to vector<512x64xf32>
    %5 = arith.addf %2, %4 : vector<512x64xf32>
    %cst_5 = arith.constant 0.000000e+00 : f32
    %6 = vector.broadcast %cst_5 : f32 to vector<512x64xf32>
    %7 = arith.maximumf %5, %6 : vector<512x64xf32>
    %c0_6 = arith.constant 0 : index
    %c0_7 = arith.constant 0 : index
    %8 = vector.load %arg3[%c0_6, %c0_7] : memref<512x64xf32, #tpu.memory_space<vmem>>, vector<512x64xf32>
    tpu.vector_store %arg3[%c0_6, %c0_7], %7 {strides = array<i32>} : memref<512x64xf32, #tpu.memory_space<vmem>>, vector<512x64xf32>,
    return
  }
}

module attributes {stable_mosaic.version = 11 : i64} {
  func.func @_mm_bias_kernel(%arg0: memref<128x640xf32, #tpu.memory_space<vmem>>, %arg1: memref<640x128xf32, #tpu.memory_space<vmem>>, %arg2: memref<1x128xf32, #tpu.memory_space<vmem>>, %arg3: memref<128x128xf32, #tpu.memory_space<vmem>>) attributes {dimension_semantics = [], scalar_prefetch = 0 : i64, scratch_operands = 0 : i64, tpu.core_type = #tpu.core_type<tc>} {
    %c0 = arith.constant 0 : index
    %c0_0 = arith.constant 0 : index
    %0 = vector.load %arg0[%c0, %c0_0] : memref<128x640xf32, #tpu.memory_space<vmem>>, vector<128x640xf32>
    %c0_1 = arith.constant 0 : index
    %c0_2 = arith.constant 0 : index
    %1 = vector.load %arg1[%c0_1, %c0_2] : memref<640x128xf32, #tpu.memory_space<vmem>>, vector<640x128xf32>
    %cst = arith.constant dense<0.000000e+00> : vector<128x128xf32>
    %2 = tpu.matmul %0, %1, %cst {dimension_numbers = #tpu.dot_dimension_numbers<[1], [0], [0], [1], [0, 0, 1, 1], [], []>} : vector<128x640xf32>, vector<640x128xf32>, vector<128x128xf32> -> vector<128x128xf32>
    %c0_3 = arith.constant 0 : index
    %c0_4 = arith.constant 0 : index
    %3 = vector.load %arg2[%c0_3, %c0_4] : memref<1x128xf32, #tpu.memory_space<vmem>>, vector<1x128xf32>
    %4 = vector.broadcast %3 : vector<1x128xf32> to vector<128x128xf32>
    %5 = arith.addf %2, %4 : vector<128x128xf32>
    %cst_5 = arith.constant 0.000000e+00 : f32
    %6 = vector.broadcast %cst_5 : f32 to vector<128x128xf32>
    %7 = arith.maximumf %5, %6 : vector<128x128xf32>
    %c0_6 = arith.constant 0 : index
    %c0_7 = arith.constant 0 : index
    %8 = vector.load %arg3[%c0_6, %c0_7] : memref<128x128xf32, #tpu.memory_space<vmem>>, vector<128x128xf32>
    tpu.vector_store %arg3[%c0_6, %c0_7], %7 {strides = array<i32>} : memref<128x128xf32, #tpu.memory_space<vmem>>, vector<128x128xf32>,
    return
  }
}

module attributes {stable_mosaic.version = 11 : i64} {
  func.func @_mm_bias_kernel(%arg0: memref<32x1152xf32, #tpu.memory_space<vmem>>, %arg1: memref<1152x256xf32, #tpu.memory_space<vmem>>, %arg2: memref<1x256xf32, #tpu.memory_space<vmem>>, %arg3: memref<32x256xf32, #tpu.memory_space<vmem>>) attributes {dimension_semantics = [], scalar_prefetch = 0 : i64, scratch_operands = 0 : i64, tpu.core_type = #tpu.core_type<tc>} {
    %c0 = arith.constant 0 : index
    %c0_0 = arith.constant 0 : index
    %0 = vector.load %arg0[%c0, %c0_0] : memref<32x1152xf32, #tpu.memory_space<vmem>>, vector<32x1152xf32>
    %c0_1 = arith.constant 0 : index
    %c0_2 = arith.constant 0 : index
    %1 = vector.load %arg1[%c0_1, %c0_2] : memref<1152x256xf32, #tpu.memory_space<vmem>>, vector<1152x256xf32>
    %cst = arith.constant dense<0.000000e+00> : vector<32x256xf32>
    %2 = tpu.matmul %0, %1, %cst {dimension_numbers = #tpu.dot_dimension_numbers<[1], [0], [0], [1], [0, 0, 1, 1], [], []>} : vector<32x1152xf32>, vector<1152x256xf32>, vector<32x256xf32> -> vector<32x256xf32>
    %c0_3 = arith.constant 0 : index
    %c0_4 = arith.constant 0 : index
    %3 = vector.load %arg2[%c0_3, %c0_4] : memref<1x256xf32, #tpu.memory_space<vmem>>, vector<1x256xf32>
    %4 = vector.broadcast %3 : vector<1x256xf32> to vector<32x256xf32>
    %5 = arith.addf %2, %4 : vector<32x256xf32>
    %cst_5 = arith.constant 0.000000e+00 : f32
    %6 = vector.broadcast %cst_5 : f32 to vector<32x256xf32>
    %7 = arith.maximumf %5, %6 : vector<32x256xf32>
    %c0_6 = arith.constant 0 : index
    %c0_7 = arith.constant 0 : index
    %8 = vector.load %arg3[%c0_6, %c0_7] : memref<32x256xf32, #tpu.memory_space<vmem>>, vector<32x256xf32>
    tpu.vector_store %arg3[%c0_6, %c0_7], %7 {strides = array<i32>} : memref<32x256xf32, #tpu.memory_space<vmem>>, vector<32x256xf32>,
    return
  }
}

module attributes {stable_mosaic.version = 11 : i64} {
  func.func @_transformer_stack_kernel(%arg0: i32, %arg1: memref<32x256xf32, #tpu.memory_space<vmem>>, %arg2: memref<1x256x768xf32, #tpu.memory_space<vmem>>, %arg3: memref<1x1x768xf32, #tpu.memory_space<vmem>>, %arg4: memref<1x256x256xf32, #tpu.memory_space<vmem>>, %arg5: memref<1x1x256xf32, #tpu.memory_space<vmem>>, %arg6: memref<1x1x256xf32, #tpu.memory_space<vmem>>, %arg7: memref<1x1x256xf32, #tpu.memory_space<vmem>>, %arg8: memref<1x256x512xf32, #tpu.memory_space<vmem>>, %arg9: memref<1x1x512xf32, #tpu.memory_space<vmem>>, %arg10: memref<1x512x256xf32, #tpu.memory_space<vmem>>, %arg11: memref<1x1x256xf32, #tpu.memory_space<vmem>>, %arg12: memref<1x1x256xf32, #tpu.memory_space<vmem>>, %arg13: memref<1x1x256xf32, #tpu.memory_space<vmem>>, %arg14: memref<32x256xf32, #tpu.memory_space<vmem>>, %arg15: memref<32x256xf32, #tpu.memory_space<vmem>>, %arg16: memref<32x768xf32, #tpu.memory_space<vmem>>, %arg17: memref<32x256xf32, #tpu.memory_space<vmem>>) attributes {dimension_semantics = [#tpu.dimension_semantics<arbitrary>], iteration_bounds = array<i64: 4>, scalar_prefetch = 0 : i64, scratch_operands = 3 : i64, tpu.core_type = #tpu.core_type<tc>, window_params = [{pipeline_mode = #tpu.pipeline_mode<synchronous>, transform_indices = @transform_0, window_bounds = array<i64: 32, 256>}, {transform_indices = @transform_1, window_bounds = array<i64: 1, 256, 768>}, {transform_indices = @transform_2, window_bounds = array<i64: 1, 1, 768>}, {transform_indices = @transform_3, window_bounds = array<i64: 1, 256, 256>}, {transform_indices = @transform_4, window_bounds = array<i64: 1, 1, 256>}, {transform_indices = @transform_5, window_bounds = array<i64: 1, 1, 256>}, {transform_indices = @transform_6, window_bounds = array<i64: 1, 1, 256>}, {transform_indices = @transform_7, window_bounds = array<i64: 1, 256, 512>}, {transform_indices = @transform_8, window_bounds = array<i64: 1, 1, 512>}, {transform_indices = @transform_9, window_bounds = array<i64: 1, 512, 256>}, {transform_indices = @transform_10, window_bounds = array<i64: 1, 1, 256>}, {transform_indices = @transform_11, window_bounds = array<i64: 1, 1, 256>}, {transform_indices = @transform_12, window_bounds = array<i64: 1, 1, 256>}, {pipeline_mode = #tpu.pipeline_mode<synchronous>, transform_indices = @transform_13, window_bounds = array<i64: 32, 256>}]} {
    %c0_i32 = arith.constant 0 : i32
    %0 = arith.cmpi eq, %arg0, %c0_i32 : i32
    %1 = arith.extui %0 : i1 to i32
    %c0_i32_0 = arith.constant 0 : i32
    %2 = arith.cmpi ne, %1, %c0_i32_0 : i32
    scf.if %2 {
      %c0_244 = arith.constant 0 : index
      %c0_245 = arith.constant 0 : index
      %364 = vector.load %arg1[%c0_244, %c0_245] : memref<32x256xf32, #tpu.memory_space<vmem>>, vector<32x256xf32>
      %c0_246 = arith.constant 0 : index
      %c0_247 = arith.constant 0 : index
      %365 = vector.load %arg15[%c0_246, %c0_247] : memref<32x256xf32, #tpu.memory_space<vmem>>, vector<32x256xf32>
      tpu.vector_store %arg15[%c0_246, %c0_247], %364 {strides = array<i32>} : memref<32x256xf32, #tpu.memory_space<vmem>>, vector<32x256xf32>,
    } else {
    }
    %c0 = arith.constant 0 : index
    %c0_1 = arith.constant 0 : index
    %3 = vector.load %arg15[%c0, %c0_1] : memref<32x256xf32, #tpu.memory_space<vmem>>, vector<32x256xf32>
    %c0_2 = arith.constant 0 : index
    %c0_3 = arith.constant 0 : index
    %c0_4 = arith.constant 0 : index
    %4 = vector.load %arg2[%c0_2, %c0_3, %c0_4] : memref<1x256x768xf32, #tpu.memory_space<vmem>>, vector<1x256x768xf32>
    %5 = vector.shape_cast %4 : vector<1x256x768xf32> to vector<256x768xf32>
    %cst = arith.constant dense<0.000000e+00> : vector<32x768xf32>
    %6 = tpu.matmul %3, %5, %cst {dimension_numbers = #tpu.dot_dimension_numbers<[1], [0], [0], [1], [0, 0, 1, 1], [], []>} : vector<32x256xf32>, vector<256x768xf32>, vector<32x768xf32> -> vector<32x768xf32>
    %c0_5 = arith.constant 0 : index
    %c0_6 = arith.constant 0 : index
    %c0_7 = arith.constant 0 : index
    %7 = vector.load %arg3[%c0_5, %c0_6, %c0_7] : memref<1x1x768xf32, #tpu.memory_space<vmem>>, vector<1x1x768xf32>
    %8 = vector.shape_cast %7 : vector<1x1x768xf32> to vector<1x768xf32>
    %9 = vector.broadcast %8 : vector<1x768xf32> to vector<32x768xf32>
    %10 = arith.addf %6, %9 : vector<32x768xf32>
    %c0_8 = arith.constant 0 : index
    %c0_9 = arith.constant 0 : index
    %11 = vector.load %arg16[%c0_8, %c0_9] : memref<32x768xf32, #tpu.memory_space<vmem>>, vector<32x768xf32>
    tpu.vector_store %arg16[%c0_8, %c0_9], %10 {strides = array<i32>} : memref<32x768xf32, #tpu.memory_space<vmem>>, vector<32x768xf32>,
    %c0_10 = arith.constant 0 : index
    %c0_11 = arith.constant 0 : index
    %12 = vector.load %arg16[%c0_10, %c0_11] : memref<32x768xf32, #tpu.memory_space<vmem>>, vector<16x32xf32>
    %cst_12 = arith.constant 0.176776692 : f32
    %13 = vector.broadcast %cst_12 : f32 to vector<16x32xf32>
    %14 = arith.mulf %12, %13 : vector<16x32xf32>
    %c0_13 = arith.constant 0 : index
    %c256 = arith.constant 256 : index
    %15 = vector.load %arg16[%c0_13, %c256] : memref<32x768xf32, #tpu.memory_space<vmem>>, vector<16x32xf32>
    %c0_14 = arith.constant 0 : index
    %c512 = arith.constant 512 : index
    %16 = vector.load %arg16[%c0_14, %c512] : memref<32x768xf32, #tpu.memory_space<vmem>>, vector<16x32xf32>
    %cst_15 = arith.constant dense<0.000000e+00> : vector<16x16xf32>
    %17 = tpu.matmul %14, %15, %cst_15 {dimension_numbers = #tpu.dot_dimension_numbers<[1], [1], [0], [0], [0, 0, 1, 0], [], []>} : vector<16x32xf32>, vector<16x32xf32>, vector<16x16xf32> -> vector<16x16xf32>
    %cst_16 = arith.constant dense<0xFF800000> : vector<16xf32>
    %18 = vector.multi_reduction <maximumf>, %17, %cst_16 [1] : vector<16x16xf32> to vector<16xf32>
    %19 = vector.shape_cast %18 : vector<16xf32> to vector<16x1xf32>
    %20 = vector.broadcast %19 : vector<16x1xf32> to vector<16x16xf32>
    %21 = arith.subf %17, %20 : vector<16x16xf32>
    %22 = math.exp %21 : vector<16x16xf32>
    %cst_17 = arith.constant dense<0.000000e+00> : vector<16xf32>
    %23 = vector.multi_reduction <add>, %22, %cst_17 [1] : vector<16x16xf32> to vector<16xf32>
    %24 = vector.shape_cast %23 : vector<16xf32> to vector<16x1xf32>
    %25 = vector.broadcast %24 : vector<16x1xf32> to vector<16x16xf32>
    %26 = arith.divf %22, %25 : vector<16x16xf32>
    %cst_18 = arith.constant dense<0.000000e+00> : vector<16x32xf32>
    %27 = tpu.matmul %26, %16, %cst_18 {dimension_numbers = #tpu.dot_dimension_numbers<[1], [0], [0], [1], [0, 0, 1, 1], [], []>} : vector<16x16xf32>, vector<16x32xf32>, vector<16x32xf32> -> vector<16x32xf32>
    %c0_19 = arith.constant 0 : index
    %c0_20 = arith.constant 0 : index
    %28 = vector.load %arg17[%c0_19, %c0_20] : memref<32x256xf32, #tpu.memory_space<vmem>>, vector<16x32xf32>
    tpu.vector_store %arg17[%c0_19, %c0_20], %27 {strides = array<i32>} : memref<32x256xf32, #tpu.memory_space<vmem>>, vector<16x32xf32>,
    %c0_21 = arith.constant 0 : index
    %c32 = arith.constant 32 : index
    %29 = vector.load %arg16[%c0_21, %c32] : memref<32x768xf32, #tpu.memory_space<vmem>>, vector<16x32xf32>
    %cst_22 = arith.constant 0.176776692 : f32
    %30 = vector.broadcast %cst_22 : f32 to vector<16x32xf32>
    %31 = arith.mulf %29, %30 : vector<16x32xf32>
    %c0_23 = arith.constant 0 : index
    %c288 = arith.constant 288 : index
    %32 = vector.load %arg16[%c0_23, %c288] : memref<32x768xf32, #tpu.memory_space<vmem>>, vector<16x32xf32>
    %c0_24 = arith.constant 0 : index
    %c544 = arith.constant 544 : index
    %33 = vector.load %arg16[%c0_24, %c544] : memref<32x768xf32, #tpu.memory_space<vmem>>, vector<16x32xf32>
    %cst_25 = arith.constant dense<0.000000e+00> : vector<16x16xf32>
    %34 = tpu.matmul %31, %32, %cst_25 {dimension_numbers = #tpu.dot_dimension_numbers<[1], [1], [0], [0], [0, 0, 1, 0], [], []>} : vector<16x32xf32>, vector<16x32xf32>, vector<16x16xf32> -> vector<16x16xf32>
    %cst_26 = arith.constant dense<0xFF800000> : vector<16xf32>
    %35 = vector.multi_reduction <maximumf>, %34, %cst_26 [1] : vector<16x16xf32> to vector<16xf32>
    %36 = vector.shape_cast %35 : vector<16xf32> to vector<16x1xf32>
    %37 = vector.broadcast %36 : vector<16x1xf32> to vector<16x16xf32>
    %38 = arith.subf %34, %37 : vector<16x16xf32>
    %39 = math.exp %38 : vector<16x16xf32>
    %cst_27 = arith.constant dense<0.000000e+00> : vector<16xf32>
    %40 = vector.multi_reduction <add>, %39, %cst_27 [1] : vector<16x16xf32> to vector<16xf32>
    %41 = vector.shape_cast %40 : vector<16xf32> to vector<16x1xf32>
    %42 = vector.broadcast %41 : vector<16x1xf32> to vector<16x16xf32>
    %43 = arith.divf %39, %42 : vector<16x16xf32>
    %cst_28 = arith.constant dense<0.000000e+00> : vector<16x32xf32>
    %44 = tpu.matmul %43, %33, %cst_28 {dimension_numbers = #tpu.dot_dimension_numbers<[1], [0], [0], [1], [0, 0, 1, 1], [], []>} : vector<16x16xf32>, vector<16x32xf32>, vector<16x32xf32> -> vector<16x32xf32>
    %c0_29 = arith.constant 0 : index
    %c32_30 = arith.constant 32 : index
    %45 = vector.load %arg17[%c0_29, %c32_30] : memref<32x256xf32, #tpu.memory_space<vmem>>, vector<16x32xf32>
    tpu.vector_store %arg17[%c0_29, %c32_30], %44 {strides = array<i32>} : memref<32x256xf32, #tpu.memory_space<vmem>>, vector<16x32xf32>,
    %c0_31 = arith.constant 0 : index
    %c64 = arith.constant 64 : index
    %46 = vector.load %arg16[%c0_31, %c64] : memref<32x768xf32, #tpu.memory_space<vmem>>, vector<16x32xf32>
    %cst_32 = arith.constant 0.176776692 : f32
    %47 = vector.broadcast %cst_32 : f32 to vector<16x32xf32>
    %48 = arith.mulf %46, %47 : vector<16x32xf32>
    %c0_33 = arith.constant 0 : index
    %c320 = arith.constant 320 : index
    %49 = vector.load %arg16[%c0_33, %c320] : memref<32x768xf32, #tpu.memory_space<vmem>>, vector<16x32xf32>
    %c0_34 = arith.constant 0 : index
    %c576 = arith.constant 576 : index
    %50 = vector.load %arg16[%c0_34, %c576] : memref<32x768xf32, #tpu.memory_space<vmem>>, vector<16x32xf32>
    %cst_35 = arith.constant dense<0.000000e+00> : vector<16x16xf32>
    %51 = tpu.matmul %48, %49, %cst_35 {dimension_numbers = #tpu.dot_dimension_numbers<[1], [1], [0], [0], [0, 0, 1, 0], [], []>} : vector<16x32xf32>, vector<16x32xf32>, vector<16x16xf32> -> vector<16x16xf32>
    %cst_36 = arith.constant dense<0xFF800000> : vector<16xf32>
    %52 = vector.multi_reduction <maximumf>, %51, %cst_36 [1] : vector<16x16xf32> to vector<16xf32>
    %53 = vector.shape_cast %52 : vector<16xf32> to vector<16x1xf32>
    %54 = vector.broadcast %53 : vector<16x1xf32> to vector<16x16xf32>
    %55 = arith.subf %51, %54 : vector<16x16xf32>
    %56 = math.exp %55 : vector<16x16xf32>
    %cst_37 = arith.constant dense<0.000000e+00> : vector<16xf32>
    %57 = vector.multi_reduction <add>, %56, %cst_37 [1] : vector<16x16xf32> to vector<16xf32>
    %58 = vector.shape_cast %57 : vector<16xf32> to vector<16x1xf32>
    %59 = vector.broadcast %58 : vector<16x1xf32> to vector<16x16xf32>
    %60 = arith.divf %56, %59 : vector<16x16xf32>
    %cst_38 = arith.constant dense<0.000000e+00> : vector<16x32xf32>
    %61 = tpu.matmul %60, %50, %cst_38 {dimension_numbers = #tpu.dot_dimension_numbers<[1], [0], [0], [1], [0, 0, 1, 1], [], []>} : vector<16x16xf32>, vector<16x32xf32>, vector<16x32xf32> -> vector<16x32xf32>
    %c0_39 = arith.constant 0 : index
    %c64_40 = arith.constant 64 : index
    %62 = vector.load %arg17[%c0_39, %c64_40] : memref<32x256xf32, #tpu.memory_space<vmem>>, vector<16x32xf32>
    tpu.vector_store %arg17[%c0_39, %c64_40], %61 {strides = array<i32>} : memref<32x256xf32, #tpu.memory_space<vmem>>, vector<16x32xf32>,
    %c0_41 = arith.constant 0 : index
    %c96 = arith.constant 96 : index
    %63 = vector.load %arg16[%c0_41, %c96] : memref<32x768xf32, #tpu.memory_space<vmem>>, vector<16x32xf32>
    %cst_42 = arith.constant 0.176776692 : f32
    %64 = vector.broadcast %cst_42 : f32 to vector<16x32xf32>
    %65 = arith.mulf %63, %64 : vector<16x32xf32>
    %c0_43 = arith.constant 0 : index
    %c352 = arith.constant 352 : index
    %66 = vector.load %arg16[%c0_43, %c352] : memref<32x768xf32, #tpu.memory_space<vmem>>, vector<16x32xf32>
    %c0_44 = arith.constant 0 : index
    %c608 = arith.constant 608 : index
    %67 = vector.load %arg16[%c0_44, %c608] : memref<32x768xf32, #tpu.memory_space<vmem>>, vector<16x32xf32>
    %cst_45 = arith.constant dense<0.000000e+00> : vector<16x16xf32>
    %68 = tpu.matmul %65, %66, %cst_45 {dimension_numbers = #tpu.dot_dimension_numbers<[1], [1], [0], [0], [0, 0, 1, 0], [], []>} : vector<16x32xf32>, vector<16x32xf32>, vector<16x16xf32> -> vector<16x16xf32>
    %cst_46 = arith.constant dense<0xFF800000> : vector<16xf32>
    %69 = vector.multi_reduction <maximumf>, %68, %cst_46 [1] : vector<16x16xf32> to vector<16xf32>
    %70 = vector.shape_cast %69 : vector<16xf32> to vector<16x1xf32>
    %71 = vector.broadcast %70 : vector<16x1xf32> to vector<16x16xf32>
    %72 = arith.subf %68, %71 : vector<16x16xf32>
    %73 = math.exp %72 : vector<16x16xf32>
    %cst_47 = arith.constant dense<0.000000e+00> : vector<16xf32>
    %74 = vector.multi_reduction <add>, %73, %cst_47 [1] : vector<16x16xf32> to vector<16xf32>
    %75 = vector.shape_cast %74 : vector<16xf32> to vector<16x1xf32>
    %76 = vector.broadcast %75 : vector<16x1xf32> to vector<16x16xf32>
    %77 = arith.divf %73, %76 : vector<16x16xf32>
    %cst_48 = arith.constant dense<0.000000e+00> : vector<16x32xf32>
    %78 = tpu.matmul %77, %67, %cst_48 {dimension_numbers = #tpu.dot_dimension_numbers<[1], [0], [0], [1], [0, 0, 1, 1], [], []>} : vector<16x16xf32>, vector<16x32xf32>, vector<16x32xf32> -> vector<16x32xf32>
    %c0_49 = arith.constant 0 : index
    %c96_50 = arith.constant 96 : index
    %79 = vector.load %arg17[%c0_49, %c96_50] : memref<32x256xf32, #tpu.memory_space<vmem>>, vector<16x32xf32>
    tpu.vector_store %arg17[%c0_49, %c96_50], %78 {strides = array<i32>} : memref<32x256xf32, #tpu.memory_space<vmem>>, vector<16x32xf32>,
    %c0_51 = arith.constant 0 : index
    %c128 = arith.constant 128 : index
    %80 = vector.load %arg16[%c0_51, %c128] : memref<32x768xf32, #tpu.memory_space<vmem>>, vector<16x32xf32>
    %cst_52 = arith.constant 0.176776692 : f32
    %81 = vector.broadcast %cst_52 : f32 to vector<16x32xf32>
    %82 = arith.mulf %80, %81 : vector<16x32xf32>
    %c0_53 = arith.constant 0 : index
    %c384 = arith.constant 384 : index
    %83 = vector.load %arg16[%c0_53, %c384] : memref<32x768xf32, #tpu.memory_space<vmem>>, vector<16x32xf32>
    %c0_54 = arith.constant 0 : index
    %c640 = arith.constant 640 : index
    %84 = vector.load %arg16[%c0_54, %c640] : memref<32x768xf32, #tpu.memory_space<vmem>>, vector<16x32xf32>
    %cst_55 = arith.constant dense<0.000000e+00> : vector<16x16xf32>
    %85 = tpu.matmul %82, %83, %cst_55 {dimension_numbers = #tpu.dot_dimension_numbers<[1], [1], [0], [0], [0, 0, 1, 0], [], []>} : vector<16x32xf32>, vector<16x32xf32>, vector<16x16xf32> -> vector<16x16xf32>
    %cst_56 = arith.constant dense<0xFF800000> : vector<16xf32>
    %86 = vector.multi_reduction <maximumf>, %85, %cst_56 [1] : vector<16x16xf32> to vector<16xf32>
    %87 = vector.shape_cast %86 : vector<16xf32> to vector<16x1xf32>
    %88 = vector.broadcast %87 : vector<16x1xf32> to vector<16x16xf32>
    %89 = arith.subf %85, %88 : vector<16x16xf32>
    %90 = math.exp %89 : vector<16x16xf32>
    %cst_57 = arith.constant dense<0.000000e+00> : vector<16xf32>
    %91 = vector.multi_reduction <add>, %90, %cst_57 [1] : vector<16x16xf32> to vector<16xf32>
    %92 = vector.shape_cast %91 : vector<16xf32> to vector<16x1xf32>
    %93 = vector.broadcast %92 : vector<16x1xf32> to vector<16x16xf32>
    %94 = arith.divf %90, %93 : vector<16x16xf32>
    %cst_58 = arith.constant dense<0.000000e+00> : vector<16x32xf32>
    %95 = tpu.matmul %94, %84, %cst_58 {dimension_numbers = #tpu.dot_dimension_numbers<[1], [0], [0], [1], [0, 0, 1, 1], [], []>} : vector<16x16xf32>, vector<16x32xf32>, vector<16x32xf32> -> vector<16x32xf32>
    %c0_59 = arith.constant 0 : index
    %c128_60 = arith.constant 128 : index
    %96 = vector.load %arg17[%c0_59, %c128_60] : memref<32x256xf32, #tpu.memory_space<vmem>>, vector<16x32xf32>
    tpu.vector_store %arg17[%c0_59, %c128_60], %95 {strides = array<i32>} : memref<32x256xf32, #tpu.memory_space<vmem>>, vector<16x32xf32>,
    %c0_61 = arith.constant 0 : index
    %c160 = arith.constant 160 : index
    %97 = vector.load %arg16[%c0_61, %c160] : memref<32x768xf32, #tpu.memory_space<vmem>>, vector<16x32xf32>
    %cst_62 = arith.constant 0.176776692 : f32
    %98 = vector.broadcast %cst_62 : f32 to vector<16x32xf32>
    %99 = arith.mulf %97, %98 : vector<16x32xf32>
    %c0_63 = arith.constant 0 : index
    %c416 = arith.constant 416 : index
    %100 = vector.load %arg16[%c0_63, %c416] : memref<32x768xf32, #tpu.memory_space<vmem>>, vector<16x32xf32>
    %c0_64 = arith.constant 0 : index
    %c672 = arith.constant 672 : index
    %101 = vector.load %arg16[%c0_64, %c672] : memref<32x768xf32, #tpu.memory_space<vmem>>, vector<16x32xf32>
    %cst_65 = arith.constant dense<0.000000e+00> : vector<16x16xf32>
    %102 = tpu.matmul %99, %100, %cst_65 {dimension_numbers = #tpu.dot_dimension_numbers<[1], [1], [0], [0], [0, 0, 1, 0], [], []>} : vector<16x32xf32>, vector<16x32xf32>, vector<16x16xf32> -> vector<16x16xf32>
    %cst_66 = arith.constant dense<0xFF800000> : vector<16xf32>
    %103 = vector.multi_reduction <maximumf>, %102, %cst_66 [1] : vector<16x16xf32> to vector<16xf32>
    %104 = vector.shape_cast %103 : vector<16xf32> to vector<16x1xf32>
    %105 = vector.broadcast %104 : vector<16x1xf32> to vector<16x16xf32>
    %106 = arith.subf %102, %105 : vector<16x16xf32>
    %107 = math.exp %106 : vector<16x16xf32>
    %cst_67 = arith.constant dense<0.000000e+00> : vector<16xf32>
    %108 = vector.multi_reduction <add>, %107, %cst_67 [1] : vector<16x16xf32> to vector<16xf32>
    %109 = vector.shape_cast %108 : vector<16xf32> to vector<16x1xf32>
    %110 = vector.broadcast %109 : vector<16x1xf32> to vector<16x16xf32>
    %111 = arith.divf %107, %110 : vector<16x16xf32>
    %cst_68 = arith.constant dense<0.000000e+00> : vector<16x32xf32>
    %112 = tpu.matmul %111, %101, %cst_68 {dimension_numbers = #tpu.dot_dimension_numbers<[1], [0], [0], [1], [0, 0, 1, 1], [], []>} : vector<16x16xf32>, vector<16x32xf32>, vector<16x32xf32> -> vector<16x32xf32>
    %c0_69 = arith.constant 0 : index
    %c160_70 = arith.constant 160 : index
    %113 = vector.load %arg17[%c0_69, %c160_70] : memref<32x256xf32, #tpu.memory_space<vmem>>, vector<16x32xf32>
    tpu.vector_store %arg17[%c0_69, %c160_70], %112 {strides = array<i32>} : memref<32x256xf32, #tpu.memory_space<vmem>>, vector<16x32xf32>,
    %c0_71 = arith.constant 0 : index
    %c192 = arith.constant 192 : index
    %114 = vector.load %arg16[%c0_71, %c192] : memref<32x768xf32, #tpu.memory_space<vmem>>, vector<16x32xf32>
    %cst_72 = arith.constant 0.176776692 : f32
    %115 = vector.broadcast %cst_72 : f32 to vector<16x32xf32>
    %116 = arith.mulf %114, %115 : vector<16x32xf32>
    %c0_73 = arith.constant 0 : index
    %c448 = arith.constant 448 : index
    %117 = vector.load %arg16[%c0_73, %c448] : memref<32x768xf32, #tpu.memory_space<vmem>>, vector<16x32xf32>
    %c0_74 = arith.constant 0 : index
    %c704 = arith.constant 704 : index
    %118 = vector.load %arg16[%c0_74, %c704] : memref<32x768xf32, #tpu.memory_space<vmem>>, vector<16x32xf32>
    %cst_75 = arith.constant dense<0.000000e+00> : vector<16x16xf32>
    %119 = tpu.matmul %116, %117, %cst_75 {dimension_numbers = #tpu.dot_dimension_numbers<[1], [1], [0], [0], [0, 0, 1, 0], [], []>} : vector<16x32xf32>, vector<16x32xf32>, vector<16x16xf32> -> vector<16x16xf32>
    %cst_76 = arith.constant dense<0xFF800000> : vector<16xf32>
    %120 = vector.multi_reduction <maximumf>, %119, %cst_76 [1] : vector<16x16xf32> to vector<16xf32>
    %121 = vector.shape_cast %120 : vector<16xf32> to vector<16x1xf32>
    %122 = vector.broadcast %121 : vector<16x1xf32> to vector<16x16xf32>
    %123 = arith.subf %119, %122 : vector<16x16xf32>
    %124 = math.exp %123 : vector<16x16xf32>
    %cst_77 = arith.constant dense<0.000000e+00> : vector<16xf32>
    %125 = vector.multi_reduction <add>, %124, %cst_77 [1] : vector<16x16xf32> to vector<16xf32>
    %126 = vector.shape_cast %125 : vector<16xf32> to vector<16x1xf32>
    %127 = vector.broadcast %126 : vector<16x1xf32> to vector<16x16xf32>
    %128 = arith.divf %124, %127 : vector<16x16xf32>
    %cst_78 = arith.constant dense<0.000000e+00> : vector<16x32xf32>
    %129 = tpu.matmul %128, %118, %cst_78 {dimension_numbers = #tpu.dot_dimension_numbers<[1], [0], [0], [1], [0, 0, 1, 1], [], []>} : vector<16x16xf32>, vector<16x32xf32>, vector<16x32xf32> -> vector<16x32xf32>
    %c0_79 = arith.constant 0 : index
    %c192_80 = arith.constant 192 : index
    %130 = vector.load %arg17[%c0_79, %c192_80] : memref<32x256xf32, #tpu.memory_space<vmem>>, vector<16x32xf32>
    tpu.vector_store %arg17[%c0_79, %c192_80], %129 {strides = array<i32>} : memref<32x256xf32, #tpu.memory_space<vmem>>, vector<16x32xf32>,
    %c0_81 = arith.constant 0 : index
    %c224 = arith.constant 224 : index
    %131 = vector.load %arg16[%c0_81, %c224] : memref<32x768xf32, #tpu.memory_space<vmem>>, vector<16x32xf32>
    %cst_82 = arith.constant 0.176776692 : f32
    %132 = vector.broadcast %cst_82 : f32 to vector<16x32xf32>
    %133 = arith.mulf %131, %132 : vector<16x32xf32>
    %c0_83 = arith.constant 0 : index
    %c480 = arith.constant 480 : index
    %134 = vector.load %arg16[%c0_83, %c480] : memref<32x768xf32, #tpu.memory_space<vmem>>, vector<16x32xf32>
    %c0_84 = arith.constant 0 : index
    %c736 = arith.constant 736 : index
    %135 = vector.load %arg16[%c0_84, %c736] : memref<32x768xf32, #tpu.memory_space<vmem>>, vector<16x32xf32>
    %cst_85 = arith.constant dense<0.000000e+00> : vector<16x16xf32>
    %136 = tpu.matmul %133, %134, %cst_85 {dimension_numbers = #tpu.dot_dimension_numbers<[1], [1], [0], [0], [0, 0, 1, 0], [], []>} : vector<16x32xf32>, vector<16x32xf32>, vector<16x16xf32> -> vector<16x16xf32>
    %cst_86 = arith.constant dense<0xFF800000> : vector<16xf32>
    %137 = vector.multi_reduction <maximumf>, %136, %cst_86 [1] : vector<16x16xf32> to vector<16xf32>
    %138 = vector.shape_cast %137 : vector<16xf32> to vector<16x1xf32>
    %139 = vector.broadcast %138 : vector<16x1xf32> to vector<16x16xf32>
    %140 = arith.subf %136, %139 : vector<16x16xf32>
    %141 = math.exp %140 : vector<16x16xf32>
    %cst_87 = arith.constant dense<0.000000e+00> : vector<16xf32>
    %142 = vector.multi_reduction <add>, %141, %cst_87 [1] : vector<16x16xf32> to vector<16xf32>
    %143 = vector.shape_cast %142 : vector<16xf32> to vector<16x1xf32>
    %144 = vector.broadcast %143 : vector<16x1xf32> to vector<16x16xf32>
    %145 = arith.divf %141, %144 : vector<16x16xf32>
    %cst_88 = arith.constant dense<0.000000e+00> : vector<16x32xf32>
    %146 = tpu.matmul %145, %135, %cst_88 {dimension_numbers = #tpu.dot_dimension_numbers<[1], [0], [0], [1], [0, 0, 1, 1], [], []>} : vector<16x16xf32>, vector<16x32xf32>, vector<16x32xf32> -> vector<16x32xf32>
    %c0_89 = arith.constant 0 : index
    %c224_90 = arith.constant 224 : index
    %147 = vector.load %arg17[%c0_89, %c224_90] : memref<32x256xf32, #tpu.memory_space<vmem>>, vector<16x32xf32>
    tpu.vector_store %arg17[%c0_89, %c224_90], %146 {strides = array<i32>} : memref<32x256xf32, #tpu.memory_space<vmem>>, vector<16x32xf32>,
    %c16 = arith.constant 16 : index
    %c0_91 = arith.constant 0 : index
    %148 = vector.load %arg16[%c16, %c0_91] : memref<32x768xf32, #tpu.memory_space<vmem>>, vector<16x32xf32>
    %cst_92 = arith.constant 0.176776692 : f32
    %149 = vector.broadcast %cst_92 : f32 to vector<16x32xf32>
    %150 = arith.mulf %148, %149 : vector<16x32xf32>
    %c16_93 = arith.constant 16 : index
    %c256_94 = arith.constant 256 : index
    %151 = vector.load %arg16[%c16_93, %c256_94] : memref<32x768xf32, #tpu.memory_space<vmem>>, vector<16x32xf32>
    %c16_95 = arith.constant 16 : index
    %c512_96 = arith.constant 512 : index
    %152 = vector.load %arg16[%c16_95, %c512_96] : memref<32x768xf32, #tpu.memory_space<vmem>>, vector<16x32xf32>
    %cst_97 = arith.constant dense<0.000000e+00> : vector<16x16xf32>
    %153 = tpu.matmul %150, %151, %cst_97 {dimension_numbers = #tpu.dot_dimension_numbers<[1], [1], [0], [0], [0, 0, 1, 0], [], []>} : vector<16x32xf32>, vector<16x32xf32>, vector<16x16xf32> -> vector<16x16xf32>
    %cst_98 = arith.constant dense<0xFF800000> : vector<16xf32>
    %154 = vector.multi_reduction <maximumf>, %153, %cst_98 [1] : vector<16x16xf32> to vector<16xf32>
    %155 = vector.shape_cast %154 : vector<16xf32> to vector<16x1xf32>
    %156 = vector.broadcast %155 : vector<16x1xf32> to vector<16x16xf32>
    %157 = arith.subf %153, %156 : vector<16x16xf32>
    %158 = math.exp %157 : vector<16x16xf32>
    %cst_99 = arith.constant dense<0.000000e+00> : vector<16xf32>
    %159 = vector.multi_reduction <add>, %158, %cst_99 [1] : vector<16x16xf32> to vector<16xf32>
    %160 = vector.shape_cast %159 : vector<16xf32> to vector<16x1xf32>
    %161 = vector.broadcast %160 : vector<16x1xf32> to vector<16x16xf32>
    %162 = arith.divf %158, %161 : vector<16x16xf32>
    %cst_100 = arith.constant dense<0.000000e+00> : vector<16x32xf32>
    %163 = tpu.matmul %162, %152, %cst_100 {dimension_numbers = #tpu.dot_dimension_numbers<[1], [0], [0], [1], [0, 0, 1, 1], [], []>} : vector<16x16xf32>, vector<16x32xf32>, vector<16x32xf32> -> vector<16x32xf32>
    %c16_101 = arith.constant 16 : index
    %c0_102 = arith.constant 0 : index
    %164 = vector.load %arg17[%c16_101, %c0_102] : memref<32x256xf32, #tpu.memory_space<vmem>>, vector<16x32xf32>
    tpu.vector_store %arg17[%c16_101, %c0_102], %163 {strides = array<i32>} : memref<32x256xf32, #tpu.memory_space<vmem>>, vector<16x32xf32>,
    %c16_103 = arith.constant 16 : index
    %c32_104 = arith.constant 32 : index
    %165 = vector.load %arg16[%c16_103, %c32_104] : memref<32x768xf32, #tpu.memory_space<vmem>>, vector<16x32xf32>
    %cst_105 = arith.constant 0.176776692 : f32
    %166 = vector.broadcast %cst_105 : f32 to vector<16x32xf32>
    %167 = arith.mulf %165, %166 : vector<16x32xf32>
    %c16_106 = arith.constant 16 : index
    %c288_107 = arith.constant 288 : index
    %168 = vector.load %arg16[%c16_106, %c288_107] : memref<32x768xf32, #tpu.memory_space<vmem>>, vector<16x32xf32>
    %c16_108 = arith.constant 16 : index
    %c544_109 = arith.constant 544 : index
    %169 = vector.load %arg16[%c16_108, %c544_109] : memref<32x768xf32, #tpu.memory_space<vmem>>, vector<16x32xf32>
    %cst_110 = arith.constant dense<0.000000e+00> : vector<16x16xf32>
    %170 = tpu.matmul %167, %168, %cst_110 {dimension_numbers = #tpu.dot_dimension_numbers<[1], [1], [0], [0], [0, 0, 1, 0], [], []>} : vector<16x32xf32>, vector<16x32xf32>, vector<16x16xf32> -> vector<16x16xf32>
    %cst_111 = arith.constant dense<0xFF800000> : vector<16xf32>
    %171 = vector.multi_reduction <maximumf>, %170, %cst_111 [1] : vector<16x16xf32> to vector<16xf32>
    %172 = vector.shape_cast %171 : vector<16xf32> to vector<16x1xf32>
    %173 = vector.broadcast %172 : vector<16x1xf32> to vector<16x16xf32>
    %174 = arith.subf %170, %173 : vector<16x16xf32>
    %175 = math.exp %174 : vector<16x16xf32>
    %cst_112 = arith.constant dense<0.000000e+00> : vector<16xf32>
    %176 = vector.multi_reduction <add>, %175, %cst_112 [1] : vector<16x16xf32> to vector<16xf32>
    %177 = vector.shape_cast %176 : vector<16xf32> to vector<16x1xf32>
    %178 = vector.broadcast %177 : vector<16x1xf32> to vector<16x16xf32>
    %179 = arith.divf %175, %178 : vector<16x16xf32>
    %cst_113 = arith.constant dense<0.000000e+00> : vector<16x32xf32>
    %180 = tpu.matmul %179, %169, %cst_113 {dimension_numbers = #tpu.dot_dimension_numbers<[1], [0], [0], [1], [0, 0, 1, 1], [], []>} : vector<16x16xf32>, vector<16x32xf32>, vector<16x32xf32> -> vector<16x32xf32>
    %c16_114 = arith.constant 16 : index
    %c32_115 = arith.constant 32 : index
    %181 = vector.load %arg17[%c16_114, %c32_115] : memref<32x256xf32, #tpu.memory_space<vmem>>, vector<16x32xf32>
    tpu.vector_store %arg17[%c16_114, %c32_115], %180 {strides = array<i32>} : memref<32x256xf32, #tpu.memory_space<vmem>>, vector<16x32xf32>,
    %c16_116 = arith.constant 16 : index
    %c64_117 = arith.constant 64 : index
    %182 = vector.load %arg16[%c16_116, %c64_117] : memref<32x768xf32, #tpu.memory_space<vmem>>, vector<16x32xf32>
    %cst_118 = arith.constant 0.176776692 : f32
    %183 = vector.broadcast %cst_118 : f32 to vector<16x32xf32>
    %184 = arith.mulf %182, %183 : vector<16x32xf32>
    %c16_119 = arith.constant 16 : index
    %c320_120 = arith.constant 320 : index
    %185 = vector.load %arg16[%c16_119, %c320_120] : memref<32x768xf32, #tpu.memory_space<vmem>>, vector<16x32xf32>
    %c16_121 = arith.constant 16 : index
    %c576_122 = arith.constant 576 : index
    %186 = vector.load %arg16[%c16_121, %c576_122] : memref<32x768xf32, #tpu.memory_space<vmem>>, vector<16x32xf32>
    %cst_123 = arith.constant dense<0.000000e+00> : vector<16x16xf32>
    %187 = tpu.matmul %184, %185, %cst_123 {dimension_numbers = #tpu.dot_dimension_numbers<[1], [1], [0], [0], [0, 0, 1, 0], [], []>} : vector<16x32xf32>, vector<16x32xf32>, vector<16x16xf32> -> vector<16x16xf32>
    %cst_124 = arith.constant dense<0xFF800000> : vector<16xf32>
    %188 = vector.multi_reduction <maximumf>, %187, %cst_124 [1] : vector<16x16xf32> to vector<16xf32>
    %189 = vector.shape_cast %188 : vector<16xf32> to vector<16x1xf32>
    %190 = vector.broadcast %189 : vector<16x1xf32> to vector<16x16xf32>
    %191 = arith.subf %187, %190 : vector<16x16xf32>
    %192 = math.exp %191 : vector<16x16xf32>
    %cst_125 = arith.constant dense<0.000000e+00> : vector<16xf32>
    %193 = vector.multi_reduction <add>, %192, %cst_125 [1] : vector<16x16xf32> to vector<16xf32>
    %194 = vector.shape_cast %193 : vector<16xf32> to vector<16x1xf32>
    %195 = vector.broadcast %194 : vector<16x1xf32> to vector<16x16xf32>
    %196 = arith.divf %192, %195 : vector<16x16xf32>
    %cst_126 = arith.constant dense<0.000000e+00> : vector<16x32xf32>
    %197 = tpu.matmul %196, %186, %cst_126 {dimension_numbers = #tpu.dot_dimension_numbers<[1], [0], [0], [1], [0, 0, 1, 1], [], []>} : vector<16x16xf32>, vector<16x32xf32>, vector<16x32xf32> -> vector<16x32xf32>
    %c16_127 = arith.constant 16 : index
    %c64_128 = arith.constant 64 : index
    %198 = vector.load %arg17[%c16_127, %c64_128] : memref<32x256xf32, #tpu.memory_space<vmem>>, vector<16x32xf32>
    tpu.vector_store %arg17[%c16_127, %c64_128], %197 {strides = array<i32>} : memref<32x256xf32, #tpu.memory_space<vmem>>, vector<16x32xf32>,
    %c16_129 = arith.constant 16 : index
    %c96_130 = arith.constant 96 : index
    %199 = vector.load %arg16[%c16_129, %c96_130] : memref<32x768xf32, #tpu.memory_space<vmem>>, vector<16x32xf32>
    %cst_131 = arith.constant 0.176776692 : f32
    %200 = vector.broadcast %cst_131 : f32 to vector<16x32xf32>
    %201 = arith.mulf %199, %200 : vector<16x32xf32>
    %c16_132 = arith.constant 16 : index
    %c352_133 = arith.constant 352 : index
    %202 = vector.load %arg16[%c16_132, %c352_133] : memref<32x768xf32, #tpu.memory_space<vmem>>, vector<16x32xf32>
    %c16_134 = arith.constant 16 : index
    %c608_135 = arith.constant 608 : index
    %203 = vector.load %arg16[%c16_134, %c608_135] : memref<32x768xf32, #tpu.memory_space<vmem>>, vector<16x32xf32>
    %cst_136 = arith.constant dense<0.000000e+00> : vector<16x16xf32>
    %204 = tpu.matmul %201, %202, %cst_136 {dimension_numbers = #tpu.dot_dimension_numbers<[1], [1], [0], [0], [0, 0, 1, 0], [], []>} : vector<16x32xf32>, vector<16x32xf32>, vector<16x16xf32> -> vector<16x16xf32>
    %cst_137 = arith.constant dense<0xFF800000> : vector<16xf32>
    %205 = vector.multi_reduction <maximumf>, %204, %cst_137 [1] : vector<16x16xf32> to vector<16xf32>
    %206 = vector.shape_cast %205 : vector<16xf32> to vector<16x1xf32>
    %207 = vector.broadcast %206 : vector<16x1xf32> to vector<16x16xf32>
    %208 = arith.subf %204, %207 : vector<16x16xf32>
    %209 = math.exp %208 : vector<16x16xf32>
    %cst_138 = arith.constant dense<0.000000e+00> : vector<16xf32>
    %210 = vector.multi_reduction <add>, %209, %cst_138 [1] : vector<16x16xf32> to vector<16xf32>
    %211 = vector.shape_cast %210 : vector<16xf32> to vector<16x1xf32>
    %212 = vector.broadcast %211 : vector<16x1xf32> to vector<16x16xf32>
    %213 = arith.divf %209, %212 : vector<16x16xf32>
    %cst_139 = arith.constant dense<0.000000e+00> : vector<16x32xf32>
    %214 = tpu.matmul %213, %203, %cst_139 {dimension_numbers = #tpu.dot_dimension_numbers<[1], [0], [0], [1], [0, 0, 1, 1], [], []>} : vector<16x16xf32>, vector<16x32xf32>, vector<16x32xf32> -> vector<16x32xf32>
    %c16_140 = arith.constant 16 : index
    %c96_141 = arith.constant 96 : index
    %215 = vector.load %arg17[%c16_140, %c96_141] : memref<32x256xf32, #tpu.memory_space<vmem>>, vector<16x32xf32>
    tpu.vector_store %arg17[%c16_140, %c96_141], %214 {strides = array<i32>} : memref<32x256xf32, #tpu.memory_space<vmem>>, vector<16x32xf32>,
    %c16_142 = arith.constant 16 : index
    %c128_143 = arith.constant 128 : index
    %216 = vector.load %arg16[%c16_142, %c128_143] : memref<32x768xf32, #tpu.memory_space<vmem>>, vector<16x32xf32>
    %cst_144 = arith.constant 0.176776692 : f32
    %217 = vector.broadcast %cst_144 : f32 to vector<16x32xf32>
    %218 = arith.mulf %216, %217 : vector<16x32xf32>
    %c16_145 = arith.constant 16 : index
    %c384_146 = arith.constant 384 : index
    %219 = vector.load %arg16[%c16_145, %c384_146] : memref<32x768xf32, #tpu.memory_space<vmem>>, vector<16x32xf32>
    %c16_147 = arith.constant 16 : index
    %c640_148 = arith.constant 640 : index
    %220 = vector.load %arg16[%c16_147, %c640_148] : memref<32x768xf32, #tpu.memory_space<vmem>>, vector<16x32xf32>
    %cst_149 = arith.constant dense<0.000000e+00> : vector<16x16xf32>
    %221 = tpu.matmul %218, %219, %cst_149 {dimension_numbers = #tpu.dot_dimension_numbers<[1], [1], [0], [0], [0, 0, 1, 0], [], []>} : vector<16x32xf32>, vector<16x32xf32>, vector<16x16xf32> -> vector<16x16xf32>
    %cst_150 = arith.constant dense<0xFF800000> : vector<16xf32>
    %222 = vector.multi_reduction <maximumf>, %221, %cst_150 [1] : vector<16x16xf32> to vector<16xf32>
    %223 = vector.shape_cast %222 : vector<16xf32> to vector<16x1xf32>
    %224 = vector.broadcast %223 : vector<16x1xf32> to vector<16x16xf32>
    %225 = arith.subf %221, %224 : vector<16x16xf32>
    %226 = math.exp %225 : vector<16x16xf32>
    %cst_151 = arith.constant dense<0.000000e+00> : vector<16xf32>
    %227 = vector.multi_reduction <add>, %226, %cst_151 [1] : vector<16x16xf32> to vector<16xf32>
    %228 = vector.shape_cast %227 : vector<16xf32> to vector<16x1xf32>
    %229 = vector.broadcast %228 : vector<16x1xf32> to vector<16x16xf32>
    %230 = arith.divf %226, %229 : vector<16x16xf32>
    %cst_152 = arith.constant dense<0.000000e+00> : vector<16x32xf32>
    %231 = tpu.matmul %230, %220, %cst_152 {dimension_numbers = #tpu.dot_dimension_numbers<[1], [0], [0], [1], [0, 0, 1, 1], [], []>} : vector<16x16xf32>, vector<16x32xf32>, vector<16x32xf32> -> vector<16x32xf32>
    %c16_153 = arith.constant 16 : index
    %c128_154 = arith.constant 128 : index
    %232 = vector.load %arg17[%c16_153, %c128_154] : memref<32x256xf32, #tpu.memory_space<vmem>>, vector<16x32xf32>
    tpu.vector_store %arg17[%c16_153, %c128_154], %231 {strides = array<i32>} : memref<32x256xf32, #tpu.memory_space<vmem>>, vector<16x32xf32>,
    %c16_155 = arith.constant 16 : index
    %c160_156 = arith.constant 160 : index
    %233 = vector.load %arg16[%c16_155, %c160_156] : memref<32x768xf32, #tpu.memory_space<vmem>>, vector<16x32xf32>
    %cst_157 = arith.constant 0.176776692 : f32
    %234 = vector.broadcast %cst_157 : f32 to vector<16x32xf32>
    %235 = arith.mulf %233, %234 : vector<16x32xf32>
    %c16_158 = arith.constant 16 : index
    %c416_159 = arith.constant 416 : index
    %236 = vector.load %arg16[%c16_158, %c416_159] : memref<32x768xf32, #tpu.memory_space<vmem>>, vector<16x32xf32>
    %c16_160 = arith.constant 16 : index
    %c672_161 = arith.constant 672 : index
    %237 = vector.load %arg16[%c16_160, %c672_161] : memref<32x768xf32, #tpu.memory_space<vmem>>, vector<16x32xf32>
    %cst_162 = arith.constant dense<0.000000e+00> : vector<16x16xf32>
    %238 = tpu.matmul %235, %236, %cst_162 {dimension_numbers = #tpu.dot_dimension_numbers<[1], [1], [0], [0], [0, 0, 1, 0], [], []>} : vector<16x32xf32>, vector<16x32xf32>, vector<16x16xf32> -> vector<16x16xf32>
    %cst_163 = arith.constant dense<0xFF800000> : vector<16xf32>
    %239 = vector.multi_reduction <maximumf>, %238, %cst_163 [1] : vector<16x16xf32> to vector<16xf32>
    %240 = vector.shape_cast %239 : vector<16xf32> to vector<16x1xf32>
    %241 = vector.broadcast %240 : vector<16x1xf32> to vector<16x16xf32>
    %242 = arith.subf %238, %241 : vector<16x16xf32>
    %243 = math.exp %242 : vector<16x16xf32>
    %cst_164 = arith.constant dense<0.000000e+00> : vector<16xf32>
    %244 = vector.multi_reduction <add>, %243, %cst_164 [1] : vector<16x16xf32> to vector<16xf32>
    %245 = vector.shape_cast %244 : vector<16xf32> to vector<16x1xf32>
    %246 = vector.broadcast %245 : vector<16x1xf32> to vector<16x16xf32>
    %247 = arith.divf %243, %246 : vector<16x16xf32>
    %cst_165 = arith.constant dense<0.000000e+00> : vector<16x32xf32>
    %248 = tpu.matmul %247, %237, %cst_165 {dimension_numbers = #tpu.dot_dimension_numbers<[1], [0], [0], [1], [0, 0, 1, 1], [], []>} : vector<16x16xf32>, vector<16x32xf32>, vector<16x32xf32> -> vector<16x32xf32>
    %c16_166 = arith.constant 16 : index
    %c160_167 = arith.constant 160 : index
    %249 = vector.load %arg17[%c16_166, %c160_167] : memref<32x256xf32, #tpu.memory_space<vmem>>, vector<16x32xf32>
    tpu.vector_store %arg17[%c16_166, %c160_167], %248 {strides = array<i32>} : memref<32x256xf32, #tpu.memory_space<vmem>>, vector<16x32xf32>,
    %c16_168 = arith.constant 16 : index
    %c192_169 = arith.constant 192 : index
    %250 = vector.load %arg16[%c16_168, %c192_169] : memref<32x768xf32, #tpu.memory_space<vmem>>, vector<16x32xf32>
    %cst_170 = arith.constant 0.176776692 : f32
    %251 = vector.broadcast %cst_170 : f32 to vector<16x32xf32>
    %252 = arith.mulf %250, %251 : vector<16x32xf32>
    %c16_171 = arith.constant 16 : index
    %c448_172 = arith.constant 448 : index
    %253 = vector.load %arg16[%c16_171, %c448_172] : memref<32x768xf32, #tpu.memory_space<vmem>>, vector<16x32xf32>
    %c16_173 = arith.constant 16 : index
    %c704_174 = arith.constant 704 : index
    %254 = vector.load %arg16[%c16_173, %c704_174] : memref<32x768xf32, #tpu.memory_space<vmem>>, vector<16x32xf32>
    %cst_175 = arith.constant dense<0.000000e+00> : vector<16x16xf32>
    %255 = tpu.matmul %252, %253, %cst_175 {dimension_numbers = #tpu.dot_dimension_numbers<[1], [1], [0], [0], [0, 0, 1, 0], [], []>} : vector<16x32xf32>, vector<16x32xf32>, vector<16x16xf32> -> vector<16x16xf32>
    %cst_176 = arith.constant dense<0xFF800000> : vector<16xf32>
    %256 = vector.multi_reduction <maximumf>, %255, %cst_176 [1] : vector<16x16xf32> to vector<16xf32>
    %257 = vector.shape_cast %256 : vector<16xf32> to vector<16x1xf32>
    %258 = vector.broadcast %257 : vector<16x1xf32> to vector<16x16xf32>
    %259 = arith.subf %255, %258 : vector<16x16xf32>
    %260 = math.exp %259 : vector<16x16xf32>
    %cst_177 = arith.constant dense<0.000000e+00> : vector<16xf32>
    %261 = vector.multi_reduction <add>, %260, %cst_177 [1] : vector<16x16xf32> to vector<16xf32>
    %262 = vector.shape_cast %261 : vector<16xf32> to vector<16x1xf32>
    %263 = vector.broadcast %262 : vector<16x1xf32> to vector<16x16xf32>
    %264 = arith.divf %260, %263 : vector<16x16xf32>
    %cst_178 = arith.constant dense<0.000000e+00> : vector<16x32xf32>
    %265 = tpu.matmul %264, %254, %cst_178 {dimension_numbers = #tpu.dot_dimension_numbers<[1], [0], [0], [1], [0, 0, 1, 1], [], []>} : vector<16x16xf32>, vector<16x32xf32>, vector<16x32xf32> -> vector<16x32xf32>
    %c16_179 = arith.constant 16 : index
    %c192_180 = arith.constant 192 : index
    %266 = vector.load %arg17[%c16_179, %c192_180] : memref<32x256xf32, #tpu.memory_space<vmem>>, vector<16x32xf32>
    tpu.vector_store %arg17[%c16_179, %c192_180], %265 {strides = array<i32>} : memref<32x256xf32, #tpu.memory_space<vmem>>, vector<16x32xf32>,
    %c16_181 = arith.constant 16 : index
    %c224_182 = arith.constant 224 : index
    %267 = vector.load %arg16[%c16_181, %c224_182] : memref<32x768xf32, #tpu.memory_space<vmem>>, vector<16x32xf32>
    %cst_183 = arith.constant 0.176776692 : f32
    %268 = vector.broadcast %cst_183 : f32 to vector<16x32xf32>
    %269 = arith.mulf %267, %268 : vector<16x32xf32>
    %c16_184 = arith.constant 16 : index
    %c480_185 = arith.constant 480 : index
    %270 = vector.load %arg16[%c16_184, %c480_185] : memref<32x768xf32, #tpu.memory_space<vmem>>, vector<16x32xf32>
    %c16_186 = arith.constant 16 : index
    %c736_187 = arith.constant 736 : index
    %271 = vector.load %arg16[%c16_186, %c736_187] : memref<32x768xf32, #tpu.memory_space<vmem>>, vector<16x32xf32>
    %cst_188 = arith.constant dense<0.000000e+00> : vector<16x16xf32>
    %272 = tpu.matmul %269, %270, %cst_188 {dimension_numbers = #tpu.dot_dimension_numbers<[1], [1], [0], [0], [0, 0, 1, 0], [], []>} : vector<16x32xf32>, vector<16x32xf32>, vector<16x16xf32> -> vector<16x16xf32>
    %cst_189 = arith.constant dense<0xFF800000> : vector<16xf32>
    %273 = vector.multi_reduction <maximumf>, %272, %cst_189 [1] : vector<16x16xf32> to vector<16xf32>
    %274 = vector.shape_cast %273 : vector<16xf32> to vector<16x1xf32>
    %275 = vector.broadcast %274 : vector<16x1xf32> to vector<16x16xf32>
    %276 = arith.subf %272, %275 : vector<16x16xf32>
    %277 = math.exp %276 : vector<16x16xf32>
    %cst_190 = arith.constant dense<0.000000e+00> : vector<16xf32>
    %278 = vector.multi_reduction <add>, %277, %cst_190 [1] : vector<16x16xf32> to vector<16xf32>
    %279 = vector.shape_cast %278 : vector<16xf32> to vector<16x1xf32>
    %280 = vector.broadcast %279 : vector<16x1xf32> to vector<16x16xf32>
    %281 = arith.divf %277, %280 : vector<16x16xf32>
    %cst_191 = arith.constant dense<0.000000e+00> : vector<16x32xf32>
    %282 = tpu.matmul %281, %271, %cst_191 {dimension_numbers = #tpu.dot_dimension_numbers<[1], [0], [0], [1], [0, 0, 1, 1], [], []>} : vector<16x16xf32>, vector<16x32xf32>, vector<16x32xf32> -> vector<16x32xf32>
    %c16_192 = arith.constant 16 : index
    %c224_193 = arith.constant 224 : index
    %283 = vector.load %arg17[%c16_192, %c224_193] : memref<32x256xf32, #tpu.memory_space<vmem>>, vector<16x32xf32>
    tpu.vector_store %arg17[%c16_192, %c224_193], %282 {strides = array<i32>} : memref<32x256xf32, #tpu.memory_space<vmem>>, vector<16x32xf32>,
    %c0_194 = arith.constant 0 : index
    %c0_195 = arith.constant 0 : index
    %284 = vector.load %arg17[%c0_194, %c0_195] : memref<32x256xf32, #tpu.memory_space<vmem>>, vector<32x256xf32>
    %c0_196 = arith.constant 0 : index
    %c0_197 = arith.constant 0 : index
    %c0_198 = arith.constant 0 : index
    %285 = vector.load %arg4[%c0_196, %c0_197, %c0_198] : memref<1x256x256xf32, #tpu.memory_space<vmem>>, vector<1x256x256xf32>
    %286 = vector.shape_cast %285 : vector<1x256x256xf32> to vector<256x256xf32>
    %cst_199 = arith.constant dense<0.000000e+00> : vector<32x256xf32>
    %287 = tpu.matmul %284, %286, %cst_199 {dimension_numbers = #tpu.dot_dimension_numbers<[1], [0], [0], [1], [0, 0, 1, 1], [], []>} : vector<32x256xf32>, vector<256x256xf32>, vector<32x256xf32> -> vector<32x256xf32>
    %c0_200 = arith.constant 0 : index
    %c0_201 = arith.constant 0 : index
    %c0_202 = arith.constant 0 : index
    %288 = vector.load %arg5[%c0_200, %c0_201, %c0_202] : memref<1x1x256xf32, #tpu.memory_space<vmem>>, vector<1x1x256xf32>
    %289 = vector.shape_cast %288 : vector<1x1x256xf32> to vector<1x256xf32>
    %290 = vector.broadcast %289 : vector<1x256xf32> to vector<32x256xf32>
    %291 = arith.addf %287, %290 : vector<32x256xf32>
    %292 = arith.addf %3, %291 : vector<32x256xf32>
    %c0_203 = arith.constant 0 : index
    %c0_204 = arith.constant 0 : index
    %c0_205 = arith.constant 0 : index
    %293 = vector.load %arg6[%c0_203, %c0_204, %c0_205] : memref<1x1x256xf32, #tpu.memory_space<vmem>>, vector<1x1x256xf32>
    %294 = vector.shape_cast %293 : vector<1x1x256xf32> to vector<1x256xf32>
    %c0_206 = arith.constant 0 : index
    %c0_207 = arith.constant 0 : index
    %c0_208 = arith.constant 0 : index
    %295 = vector.load %arg7[%c0_206, %c0_207, %c0_208] : memref<1x1x256xf32, #tpu.memory_space<vmem>>, vector<1x1x256xf32>
    %296 = vector.shape_cast %295 : vector<1x1x256xf32> to vector<1x256xf32>
    %cst_209 = arith.constant dense<0.000000e+00> : vector<32xf32>
    %297 = vector.multi_reduction <add>, %292, %cst_209 [1] : vector<32x256xf32> to vector<32xf32>
    %298 = vector.shape_cast %297 : vector<32xf32> to vector<32x1xf32>
    %cst_210 = arith.constant 2.560000e+02 : f32
    %299 = vector.broadcast %cst_210 : f32 to vector<32x1xf32>
    %300 = arith.divf %298, %299 : vector<32x1xf32>
    %301 = vector.broadcast %300 : vector<32x1xf32> to vector<32x256xf32>
    %302 = arith.subf %292, %301 : vector<32x256xf32>
    %303 = arith.mulf %302, %302 : vector<32x256xf32>
    %cst_211 = arith.constant dense<0.000000e+00> : vector<32xf32>
    %304 = vector.multi_reduction <add>, %303, %cst_211 [1] : vector<32x256xf32> to vector<32xf32>
    %305 = vector.shape_cast %304 : vector<32xf32> to vector<32x1xf32>
    %cst_212 = arith.constant 2.560000e+02 : f32
    %306 = vector.broadcast %cst_212 : f32 to vector<32x1xf32>
    %307 = arith.divf %305, %306 : vector<32x1xf32>
    %308 = vector.broadcast %300 : vector<32x1xf32> to vector<32x256xf32>
    %309 = arith.subf %292, %308 : vector<32x256xf32>
    %cst_213 = arith.constant 9.99999974E-6 : f32
    %310 = vector.broadcast %cst_213 : f32 to vector<32x1xf32>
    %311 = arith.addf %307, %310 : vector<32x1xf32>
    %312 = math.rsqrt %311 : vector<32x1xf32>
    %313 = vector.broadcast %312 : vector<32x1xf32> to vector<32x256xf32>
    %314 = arith.mulf %309, %313 : vector<32x256xf32>
    %315 = vector.broadcast %294 : vector<1x256xf32> to vector<32x256xf32>
    %316 = arith.mulf %314, %315 : vector<32x256xf32>
    %317 = vector.broadcast %296 : vector<1x256xf32> to vector<32x256xf32>
    %318 = arith.addf %316, %317 : vector<32x256xf32>
    %c0_214 = arith.constant 0 : index
    %c0_215 = arith.constant 0 : index
    %c0_216 = arith.constant 0 : index
    %319 = vector.load %arg8[%c0_214, %c0_215, %c0_216] : memref<1x256x512xf32, #tpu.memory_space<vmem>>, vector<1x256x512xf32>
    %320 = vector.shape_cast %319 : vector<1x256x512xf32> to vector<256x512xf32>
    %cst_217 = arith.constant dense<0.000000e+00> : vector<32x512xf32>
    %321 = tpu.matmul %318, %320, %cst_217 {dimension_numbers = #tpu.dot_dimension_numbers<[1], [0], [0], [1], [0, 0, 1, 1], [], []>} : vector<32x256xf32>, vector<256x512xf32>, vector<32x512xf32> -> vector<32x512xf32>
    %c0_218 = arith.constant 0 : index
    %c0_219 = arith.constant 0 : index
    %c0_220 = arith.constant 0 : index
    %322 = vector.load %arg9[%c0_218, %c0_219, %c0_220] : memref<1x1x512xf32, #tpu.memory_space<vmem>>, vector<1x1x512xf32>
    %323 = vector.shape_cast %322 : vector<1x1x512xf32> to vector<1x512xf32>
    %324 = vector.broadcast %323 : vector<1x512xf32> to vector<32x512xf32>
    %325 = arith.addf %321, %324 : vector<32x512xf32>
    %cst_221 = arith.constant 0.000000e+00 : f32
    %326 = vector.broadcast %cst_221 : f32 to vector<32x512xf32>
    %327 = arith.maximumf %325, %326 : vector<32x512xf32>
    %c0_222 = arith.constant 0 : index
    %c0_223 = arith.constant 0 : index
    %c0_224 = arith.constant 0 : index
    %328 = vector.load %arg10[%c0_222, %c0_223, %c0_224] : memref<1x512x256xf32, #tpu.memory_space<vmem>>, vector<1x512x256xf32>
    %329 = vector.shape_cast %328 : vector<1x512x256xf32> to vector<512x256xf32>
    %cst_225 = arith.constant dense<0.000000e+00> : vector<32x256xf32>
    %330 = tpu.matmul %327, %329, %cst_225 {dimension_numbers = #tpu.dot_dimension_numbers<[1], [0], [0], [1], [0, 0, 1, 1], [], []>} : vector<32x512xf32>, vector<512x256xf32>, vector<32x256xf32> -> vector<32x256xf32>
    %c0_226 = arith.constant 0 : index
    %c0_227 = arith.constant 0 : index
    %c0_228 = arith.constant 0 : index
    %331 = vector.load %arg11[%c0_226, %c0_227, %c0_228] : memref<1x1x256xf32, #tpu.memory_space<vmem>>, vector<1x1x256xf32>
    %332 = vector.shape_cast %331 : vector<1x1x256xf32> to vector<1x256xf32>
    %333 = vector.broadcast %332 : vector<1x256xf32> to vector<32x256xf32>
    %334 = arith.addf %330, %333 : vector<32x256xf32>
    %335 = arith.addf %318, %334 : vector<32x256xf32>
    %c0_229 = arith.constant 0 : index
    %c0_230 = arith.constant 0 : index
    %c0_231 = arith.constant 0 : index
    %336 = vector.load %arg12[%c0_229, %c0_230, %c0_231] : memref<1x1x256xf32, #tpu.memory_space<vmem>>, vector<1x1x256xf32>
    %337 = vector.shape_cast %336 : vector<1x1x256xf32> to vector<1x256xf32>
    %c0_232 = arith.constant 0 : index
    %c0_233 = arith.constant 0 : index
    %c0_234 = arith.constant 0 : index
    %338 = vector.load %arg13[%c0_232, %c0_233, %c0_234] : memref<1x1x256xf32, #tpu.memory_space<vmem>>, vector<1x1x256xf32>
    %339 = vector.shape_cast %338 : vector<1x1x256xf32> to vector<1x256xf32>
    %cst_235 = arith.constant dense<0.000000e+00> : vector<32xf32>
    %340 = vector.multi_reduction <add>, %335, %cst_235 [1] : vector<32x256xf32> to vector<32xf32>
    %341 = vector.shape_cast %340 : vector<32xf32> to vector<32x1xf32>
    %cst_236 = arith.constant 2.560000e+02 : f32
    %342 = vector.broadcast %cst_236 : f32 to vector<32x1xf32>
    %343 = arith.divf %341, %342 : vector<32x1xf32>
    %344 = vector.broadcast %343 : vector<32x1xf32> to vector<32x256xf32>
    %345 = arith.subf %335, %344 : vector<32x256xf32>
    %346 = arith.mulf %345, %345 : vector<32x256xf32>
    %cst_237 = arith.constant dense<0.000000e+00> : vector<32xf32>
    %347 = vector.multi_reduction <add>, %346, %cst_237 [1] : vector<32x256xf32> to vector<32xf32>
    %348 = vector.shape_cast %347 : vector<32xf32> to vector<32x1xf32>
    %cst_238 = arith.constant 2.560000e+02 : f32
    %349 = vector.broadcast %cst_238 : f32 to vector<32x1xf32>
    %350 = arith.divf %348, %349 : vector<32x1xf32>
    %351 = vector.broadcast %343 : vector<32x1xf32> to vector<32x256xf32>
    %352 = arith.subf %335, %351 : vector<32x256xf32>
    %cst_239 = arith.constant 9.99999974E-6 : f32
    %353 = vector.broadcast %cst_239 : f32 to vector<32x1xf32>
    %354 = arith.addf %350, %353 : vector<32x1xf32>
    %355 = math.rsqrt %354 : vector<32x1xf32>
    %356 = vector.broadcast %355 : vector<32x1xf32> to vector<32x256xf32>
    %357 = arith.mulf %352, %356 : vector<32x256xf32>
    %358 = vector.broadcast %337 : vector<1x256xf32> to vector<32x256xf32>
    %359 = arith.mulf %357, %358 : vector<32x256xf32>
    %360 = vector.broadcast %339 : vector<1x256xf32> to vector<32x256xf32>
    %361 = arith.addf %359, %360 : vector<32x256xf32>
    %c0_240 = arith.constant 0 : index
    %c0_241 = arith.constant 0 : index
    %362 = vector.load %arg15[%c0_240, %c0_241] : memref<32x256xf32, #tpu.memory_space<vmem>>, vector<32x256xf32>
    tpu.vector_store %arg15[%c0_240, %c0_241], %361 {strides = array<i32>} : memref<32x256xf32, #tpu.memory_space<vmem>>, vector<32x256xf32>,
    %c0_242 = arith.constant 0 : index
    %c0_243 = arith.constant 0 : index
    %363 = vector.load %arg14[%c0_242, %c0_243] : memref<32x256xf32, #tpu.memory_space<vmem>>, vector<32x256xf32>
    tpu.vector_store %arg14[%c0_242, %c0_243], %361 {strides = array<i32>} : memref<32x256xf32, #tpu.memory_space<vmem>>, vector<32x256xf32>,
    return
  }
  func.func @transform_0(%arg0: i32) -> (i32, i32) {
    %c0_i32 = arith.constant 0 : i32
    %c0_i32_0 = arith.constant 0 : i32
    %c0_i32_1 = arith.constant 0 : i32
    return %c0_i32, %c0_i32_0 : i32, i32
  }
  func.func @transform_1(%arg0: i32) -> (i32, i32, i32) {
    %c0_i32 = arith.constant 0 : i32
    %c0_i32_0 = arith.constant 0 : i32
    %c0_i32_1 = arith.constant 0 : i32
    return %arg0, %c0_i32, %c0_i32_0 : i32, i32, i32
  }
  func.func @transform_2(%arg0: i32) -> (i32, i32, i32) {
    %c0_i32 = arith.constant 0 : i32
    %c0_i32_0 = arith.constant 0 : i32
    %c0_i32_1 = arith.constant 0 : i32
    return %arg0, %c0_i32, %c0_i32_0 : i32, i32, i32
  }
  func.func @transform_3(%arg0: i32) -> (i32, i32, i32) {
    %c0_i32 = arith.constant 0 : i32
    %c0_i32_0 = arith.constant 0 : i32
    %c0_i32_1 = arith.constant 0 : i32
    return %arg0, %c0_i32, %c0_i32_0 : i32, i32, i32
  }
  func.func @transform_4(%arg0: i32) -> (i32, i32, i32) {
    %c0_i32 = arith.constant 0 : i32
    %c0_i32_0 = arith.constant 0 : i32
    %c0_i32_1 = arith.constant 0 : i32
    return %arg0, %c0_i32, %c0_i32_0 : i32, i32, i32
  }
  func.func @transform_5(%arg0: i32) -> (i32, i32, i32) {
    %c0_i32 = arith.constant 0 : i32
    %c0_i32_0 = arith.constant 0 : i32
    %c0_i32_1 = arith.constant 0 : i32
    return %arg0, %c0_i32, %c0_i32_0 : i32, i32, i32
  }
  func.func @transform_6(%arg0: i32) -> (i32, i32, i32) {
    %c0_i32 = arith.constant 0 : i32
    %c0_i32_0 = arith.constant 0 : i32
    %c0_i32_1 = arith.constant 0 : i32
    return %arg0, %c0_i32, %c0_i32_0 : i32, i32, i32
  }
  func.func @transform_7(%arg0: i32) -> (i32, i32, i32) {
    %c0_i32 = arith.constant 0 : i32
    %c0_i32_0 = arith.constant 0 : i32
    %c0_i32_1 = arith.constant 0 : i32
    return %arg0, %c0_i32, %c0_i32_0 : i32, i32, i32
  }
  func.func @transform_8(%arg0: i32) -> (i32, i32, i32) {
    %c0_i32 = arith.constant 0 : i32
    %c0_i32_0 = arith.constant 0 : i32
    %c0_i32_1 = arith.constant 0 : i32
    return %arg0, %c0_i32, %c0_i32_0 : i32, i32, i32
  }
  func.func @transform_9(%arg0: i32) -> (i32, i32, i32) {
    %c0_i32 = arith.constant 0 : i32
    %c0_i32_0 = arith.constant 0 : i32
    %c0_i32_1 = arith.constant 0 : i32
    return %arg0, %c0_i32, %c0_i32_0 : i32, i32, i32
  }
  func.func @transform_10(%arg0: i32) -> (i32, i32, i32) {
    %c0_i32 = arith.constant 0 : i32
    %c0_i32_0 = arith.constant 0 : i32
    %c0_i32_1 = arith.constant 0 : i32
    return %arg0, %c0_i32, %c0_i32_0 : i32, i32, i32
  }
  func.func @transform_11(%arg0: i32) -> (i32, i32, i32) {
    %c0_i32 = arith.constant 0 : i32
    %c0_i32_0 = arith.constant 0 : i32
    %c0_i32_1 = arith.constant 0 : i32
    return %arg0, %c0_i32, %c0_i32_0 : i32, i32, i32
  }
  func.func @transform_12(%arg0: i32) -> (i32, i32, i32) {
    %c0_i32 = arith.constant 0 : i32
    %c0_i32_0 = arith.constant 0 : i32
    %c0_i32_1 = arith.constant 0 : i32
    return %arg0, %c0_i32, %c0_i32_0 : i32, i32, i32
  }
  func.func @transform_13(%arg0: i32) -> (i32, i32) {
    %c0_i32 = arith.constant 0 : i32
    %c0_i32_0 = arith.constant 0 : i32
    %c0_i32_1 = arith.constant 0 : i32
    return %c0_i32, %c0_i32_0 : i32, i32
  }
}

module attributes {stable_mosaic.version = 11 : i64} {
  func.func @_mm_bias_kernel(%arg0: memref<32x256xf32, #tpu.memory_space<vmem>>, %arg1: memref<256x512xf32, #tpu.memory_space<vmem>>, %arg2: memref<1x512xf32, #tpu.memory_space<vmem>>, %arg3: memref<32x512xf32, #tpu.memory_space<vmem>>) attributes {dimension_semantics = [], scalar_prefetch = 0 : i64, scratch_operands = 0 : i64, tpu.core_type = #tpu.core_type<tc>} {
    %c0 = arith.constant 0 : index
    %c0_0 = arith.constant 0 : index
    %0 = vector.load %arg0[%c0, %c0_0] : memref<32x256xf32, #tpu.memory_space<vmem>>, vector<32x256xf32>
    %c0_1 = arith.constant 0 : index
    %c0_2 = arith.constant 0 : index
    %1 = vector.load %arg1[%c0_1, %c0_2] : memref<256x512xf32, #tpu.memory_space<vmem>>, vector<256x512xf32>
    %cst = arith.constant dense<0.000000e+00> : vector<32x512xf32>
    %2 = tpu.matmul %0, %1, %cst {dimension_numbers = #tpu.dot_dimension_numbers<[1], [0], [0], [1], [0, 0, 1, 1], [], []>} : vector<32x256xf32>, vector<256x512xf32>, vector<32x512xf32> -> vector<32x512xf32>
    %c0_3 = arith.constant 0 : index
    %c0_4 = arith.constant 0 : index
    %3 = vector.load %arg2[%c0_3, %c0_4] : memref<1x512xf32, #tpu.memory_space<vmem>>, vector<1x512xf32>
    %4 = vector.broadcast %3 : vector<1x512xf32> to vector<32x512xf32>
    %5 = arith.addf %2, %4 : vector<32x512xf32>
    %cst_5 = arith.constant 0.000000e+00 : f32
    %6 = vector.broadcast %cst_5 : f32 to vector<32x512xf32>
    %7 = arith.maximumf %5, %6 : vector<32x512xf32>
    %c0_6 = arith.constant 0 : index
    %c0_7 = arith.constant 0 : index
    %8 = vector.load %arg3[%c0_6, %c0_7] : memref<32x512xf32, #tpu.memory_space<vmem>>, vector<32x512xf32>
    tpu.vector_store %arg3[%c0_6, %c0_7], %7 {strides = array<i32>} : memref<32x512xf32, #tpu.memory_space<vmem>>, vector<32x512xf32>,
    return
  }
}

module attributes {stable_mosaic.version = 11 : i64} {
  func.func @_mm_bias_kernel(%arg0: memref<128x128xf32, #tpu.memory_space<vmem>>, %arg1: memref<128x256xf32, #tpu.memory_space<vmem>>, %arg2: memref<1x256xf32, #tpu.memory_space<vmem>>, %arg3: memref<128x256xf32, #tpu.memory_space<vmem>>) attributes {dimension_semantics = [], scalar_prefetch = 0 : i64, scratch_operands = 0 : i64, tpu.core_type = #tpu.core_type<tc>} {
    %c0 = arith.constant 0 : index
    %c0_0 = arith.constant 0 : index
    %0 = vector.load %arg0[%c0, %c0_0] : memref<128x128xf32, #tpu.memory_space<vmem>>, vector<128x128xf32>
    %c0_1 = arith.constant 0 : index
    %c0_2 = arith.constant 0 : index
    %1 = vector.load %arg1[%c0_1, %c0_2] : memref<128x256xf32, #tpu.memory_space<vmem>>, vector<128x256xf32>
    %cst = arith.constant dense<0.000000e+00> : vector<128x256xf32>
    %2 = tpu.matmul %0, %1, %cst {dimension_numbers = #tpu.dot_dimension_numbers<[1], [0], [0], [1], [0, 0, 1, 1], [], []>} : vector<128x128xf32>, vector<128x256xf32>, vector<128x256xf32> -> vector<128x256xf32>
    %c0_3 = arith.constant 0 : index
    %c0_4 = arith.constant 0 : index
    %3 = vector.load %arg2[%c0_3, %c0_4] : memref<1x256xf32, #tpu.memory_space<vmem>>, vector<1x256xf32>
    %4 = vector.broadcast %3 : vector<1x256xf32> to vector<128x256xf32>
    %5 = arith.addf %2, %4 : vector<128x256xf32>
    %cst_5 = arith.constant 0.000000e+00 : f32
    %6 = vector.broadcast %cst_5 : f32 to vector<128x256xf32>
    %7 = arith.maximumf %5, %6 : vector<128x256xf32>
    %c0_6 = arith.constant 0 : index
    %c0_7 = arith.constant 0 : index
    %8 = vector.load %arg3[%c0_6, %c0_7] : memref<128x256xf32, #tpu.memory_space<vmem>>, vector<128x256xf32>
    tpu.vector_store %arg3[%c0_6, %c0_7], %7 {strides = array<i32>} : memref<128x256xf32, #tpu.memory_space<vmem>>, vector<128x256xf32>,
    return
  }
}

module attributes {stable_mosaic.version = 11 : i64} {
  func.func @_final_head_kernel(%arg0: memref<512x64xf32, #tpu.memory_space<vmem>>, %arg1: memref<64x256xf32, #tpu.memory_space<vmem>>, %arg2: memref<1x256xf32, #tpu.memory_space<vmem>>, %arg3: memref<256x256xf32, #tpu.memory_space<vmem>>, %arg4: memref<1x256xf32, #tpu.memory_space<vmem>>, %arg5: memref<512x256xf32, #tpu.memory_space<vmem>>) attributes {dimension_semantics = [], scalar_prefetch = 0 : i64, scratch_operands = 0 : i64, tpu.core_type = #tpu.core_type<tc>} {
    %c0 = arith.constant 0 : index
    %c0_0 = arith.constant 0 : index
    %0 = vector.load %arg0[%c0, %c0_0] : memref<512x64xf32, #tpu.memory_space<vmem>>, vector<512x64xf32>
    %c0_1 = arith.constant 0 : index
    %c0_2 = arith.constant 0 : index
    %1 = vector.load %arg1[%c0_1, %c0_2] : memref<64x256xf32, #tpu.memory_space<vmem>>, vector<64x256xf32>
    %cst = arith.constant dense<0.000000e+00> : vector<512x256xf32>
    %2 = tpu.matmul %0, %1, %cst {dimension_numbers = #tpu.dot_dimension_numbers<[1], [0], [0], [1], [0, 0, 1, 1], [], []>} : vector<512x64xf32>, vector<64x256xf32>, vector<512x256xf32> -> vector<512x256xf32>
    %c0_3 = arith.constant 0 : index
    %c0_4 = arith.constant 0 : index
    %3 = vector.load %arg2[%c0_3, %c0_4] : memref<1x256xf32, #tpu.memory_space<vmem>>, vector<1x256xf32>
    %4 = vector.broadcast %3 : vector<1x256xf32> to vector<512x256xf32>
    %5 = arith.addf %2, %4 : vector<512x256xf32>
    %c0_5 = arith.constant 0 : index
    %c0_6 = arith.constant 0 : index
    %6 = vector.load %arg3[%c0_5, %c0_6] : memref<256x256xf32, #tpu.memory_space<vmem>>, vector<256x256xf32>
    %cst_7 = arith.constant dense<0.000000e+00> : vector<512x256xf32>
    %7 = tpu.matmul %5, %6, %cst_7 {dimension_numbers = #tpu.dot_dimension_numbers<[1], [0], [0], [1], [0, 0, 1, 1], [], []>} : vector<512x256xf32>, vector<256x256xf32>, vector<512x256xf32> -> vector<512x256xf32>
    %c0_8 = arith.constant 0 : index
    %c0_9 = arith.constant 0 : index
    %8 = vector.load %arg4[%c0_8, %c0_9] : memref<1x256xf32, #tpu.memory_space<vmem>>, vector<1x256xf32>
    %9 = vector.broadcast %8 : vector<1x256xf32> to vector<512x256xf32>
    %10 = arith.addf %7, %9 : vector<512x256xf32>
    %c0_10 = arith.constant 0 : index
    %c0_11 = arith.constant 0 : index
    %11 = vector.load %arg5[%c0_10, %c0_11] : memref<512x256xf32, #tpu.memory_space<vmem>>, vector<512x256xf32>
    tpu.vector_store %arg5[%c0_10, %c0_11], %10 {strides = array<i32>} : memref<512x256xf32, #tpu.memory_space<vmem>>, vector<512x256xf32>,
    return
  }
}

</mosaic_0001>

<llo_original>
// kernel: prompt_encoder.7
$region0: #{prompt_encoder.7}
  #allocation0 [shape = 'u32[]', space=smem, size = 0x4, offset = 0x4, fixed_abs, tag = 'smem constant byte address 0x4 - core index']
  #allocation1 [shape = 'u32[144,128]{1,0:T(1,128)}', space=vmem, size = 0x12000, scoped, tag = 'internal scratch']
  %s0 = inlined_call_operand.vmem [shape: f32[512,128], index: 0, kind: input, shape index: {}]
  %s1 = inlined_call_operand.vmem [shape: f32[128,64], index: 1, kind: input, shape index: {}]
  %s2 = inlined_call_operand.vmem [shape: f32[1,64], index: 2, kind: input, shape index: {}]
  %s3 = inlined_call_operand.vmem [shape: f32[512,64], index: 3, kind: output, shape index: {}]
  %s4 = sld [smem:[#allocation0]]
  $region22: #{prompt_encoder.7} parent=0
    _
  %s6 = ssub.s32 1, %s4
  %s7 = scalar_select 0, %s6, %s4
  // Predicated region
  $region2: #{prompt_encoder.7} parent=0 // pred_check
    _
  $region3: #{prompt_encoder.7} parent=0 // pred_check_branch
    %9 = sbr.rel (0) target = $region5
  $region4: #{prompt_encoder.7} parent=0 // pred_region
    _
  $region5: #{prompt_encoder.7} parent=0 // pred_fallthru
    _
  // Predicated region
  $region6: #{prompt_encoder.7} parent=0 // pred_check
    _
  $region7: #{prompt_encoder.7} parent=0 // pred_check_branch
    %11 = sbr.rel (0) target = $region9
  $region8: #{prompt_encoder.7} parent=0 // pred_region
    _
  $region9: #{prompt_encoder.7} parent=0 // pred_fallthru
    _
  // Predicated region
  $region10: #{prompt_encoder.7} parent=0 // pred_check
    _
  $region11: #{prompt_encoder.7} parent=0 // pred_check_branch
    %13 = sbr.rel (0) target = $region13
  $region12: #{prompt_encoder.7} parent=0 // pred_region
    _
  $region13: #{prompt_encoder.7} parent=0 // pred_fallthru
    _
  %v14 = vld [vmem:[%s0] sm:$0xff]
  %v15 = vld [vmem:[%s0 + $0x8] sm:$0xff]
  %v16 = vld [vmem:[%s0 + $0x10] sm:$0xff]
  %v17 = vld [vmem:[%s0 + $0x18] sm:$0xff]
  %v18 = vld [vmem:[%s0 + $0x20] sm:$0xff]
  %v19 = vld [vmem:[%s0 + $0x28] sm:$0xff]
  %v20 = vld [vmem:[%s0 + $0x30] sm:$0xff]
  %v21 = vld [vmem:[%s0 + $0x38] sm:$0xff]
  %v22 = vld [vmem:[%s0 + $0x40] sm:$0xff]
  %v23 = vld [vmem:[%s0 + $0x48] sm:$0xff]
  %v24 = vld [vmem:[%s0 + $0x50] sm:$0xff]
  %v25 = vld [vmem:[%s0 + $0x58] sm:$0xff]
  %v26 = vld [vmem:[%s0 + $0x60] sm:$0xff]
  %v27 = vld [vmem:[%s0 + $0x68] sm:$0xff]
  %v28 = vld [vmem:[%s0 + $0x70] sm:$0xff]
  %v29 = vld [vmem:[%s0 + $0x78] sm:$0xff]
  %v30 = vld [vmem:[%s0 + $0x80] sm:$0xff]
  %v31 = vld [vmem:[%s0 + $0x88] sm:$0xff]
  %v32 = vld [vmem:[%s0 + $0x90] sm:$0xff]
  %v33 = vld [vmem:[%s0 + $0x98] sm:$0xff]
  %v34 = vld [vmem:[%s0 + $0xa0] sm:$0xff]
  %v35 = vld [vmem:[%s0 + $0xa8] sm:$0xff]
  %v36 = vld [vmem:[%s0 + $0xb0] sm:$0xff]
  %v37 = vld [vmem:[%s0 + $0xb8] sm:$0xff]
  %v38 = vld [vmem:[%s0 + $0xc0] sm:$0xff]
  %v39 = vld [vmem:[%s0 + $0xc8] sm:$0xff]
  %v40 = vld [vmem:[%s0 + $0xd0] sm:$0xff]
  %v41 = vld [vmem:[%s0 + $0xd8] sm:$0xff]
  %v42 = vld [vmem:[%s0 + $0xe0] sm:$0xff]
  %v43 = vld [vmem:[%s0 + $0xe8] sm:$0xff]
  %v44 = vld [vmem:[%s0 + $0xf0] sm:$0xff]
  %v45 = vld [vmem:[%s0 + $0xf8] sm:$0xff]
  %v46 = vld [vmem:[%s0 + $0x100] sm:$0xff]
  %v47 = vld [vmem:[%s0 + $0x108] sm:$0xff]
  %v48 = vld [vmem:[%s0 + $0x110] sm:$0xff]
  %v49 = vld [vmem:[%s0 + $0x118] sm:$0xff]
  %v50 = vld [vmem:[%s0 + $0x120] sm:$0xff]
  %v51 = vld [vmem:[%s0 + $0x128] sm:$0xff]
  %v52 = vld [vmem:[%s0 + $0x130] sm:$0xff]
  %v53 = vld [vmem:[%s0 + $0x138] sm:$0xff]
  %v54 = vld [vmem:[%s0 + $0x140] sm:$0xff]
  %v55 = vld [vmem:[%s0 + $0x148] sm:$0xff]
  %v56 = vld [vmem:[%s0 + $0x150] sm:$0xff]
  %v57 = vld [vmem:[%s0 + $0x158] sm:$0xff]
  %v58 = vld [vmem:[%s0 + $0x160] sm:$0xff]
  %v59 = vld [vmem:[%s0 + $0x168] sm:$0xff]
  %v60 = vld [vmem:[%s0 + $0x170] sm:$0xff]
  %v61 = vld [vmem:[%s0 + $0x178] sm:$0xff]
  %v62 = vld [vmem:[%s0 + $0x180] sm:$0xff]
  %v63 = vld [vmem:[%s0 + $0x188] sm:$0xff]
  %v64 = vld [vmem:[%s0 + $0x190] sm:$0xff]
  %v65 = vld [vmem:[%s0 + $0x198] sm:$0xff]
  %v66 = vld [vmem:[%s0 + $0x1a0] sm:$0xff]
  %v67 = vld [vmem:[%s0 + $0x1a8] sm:$0xff]
  %v68 = vld [vmem:[%s0 + $0x1b0] sm:$0xff]
  %v69 = vld [vmem:[%s0 + $0x1b8] sm:$0xff]
  %v70 = vld [vmem:[%s0 + $0x1c0] sm:$0xff]
  %v71 = vld [vmem:[%s0 + $0x1c8] sm:$0xff]
  %v72 = vld [vmem:[%s0 + $0x1d0] sm:$0xff]
  %v73 = vld [vmem:[%s0 + $0x1d8] sm:$0xff]
  %v74 = vld [vmem:[%s0 + $0x1e0] sm:$0xff]
  %v75 = vld [vmem:[%s0 + $0x1e8] sm:$0xff]
  %v76 = vld [vmem:[%s0 + $0x1f0] sm:$0xff]
  %v77 = vld [vmem:[%s0 + $0x1f8] sm:$0xff]
  %v78 = vld [vmem:[%s1] sm:$0xff]
  %v79 = vld [vmem:[%s1 + $0x8] sm:$0xff]
  %v80 = vld [vmem:[%s1 + $0x10] sm:$0xff]
  %v81 = vld [vmem:[%s1 + $0x18] sm:$0xff]
  %v82 = vld [vmem:[%s1 + $0x20] sm:$0xff]
  %v83 = vld [vmem:[%s1 + $0x28] sm:$0xff]
  %v84 = vld [vmem:[%s1 + $0x30] sm:$0xff]
  %v85 = vld [vmem:[%s1 + $0x38] sm:$0xff]
  %v86 = vld [vmem:[%s1 + $0x40] sm:$0xff]
  %v87 = vld [vmem:[%s1 + $0x48] sm:$0xff]
  %v88 = vld [vmem:[%s1 + $0x50] sm:$0xff]
  %v89 = vld [vmem:[%s1 + $0x58] sm:$0xff]
  %v90 = vld [vmem:[%s1 + $0x60] sm:$0xff]
  %v91 = vld [vmem:[%s1 + $0x68] sm:$0xff]
  %v92 = vld [vmem:[%s1 + $0x70] sm:$0xff]
  %v93 = vld [vmem:[%s1 + $0x78] sm:$0xff]
  %v94 = vld [vmem:[%s2] sm:$0x1]
  %v96 = vlaneseq
  %v97 = vshrl.u32 %v96, 7
  %v98 = vsub.s32 0, %v97
  %v99 = vrot.slane %v94, %v98
  %101 = vmatprep.subr.mxu0 0.0
  %102 = vmatpush1.msra.mxu0 %v78
  %103 = vmatprep.subr.mxu0 0.0
  %104 = vmatpush1.msra.mxu0 %v79
  %105 = vmatprep.subr.mxu0 0.0
  %106 = vmatpush1.msra.mxu0 %v80
  %107 = vmatprep.subr.mxu0 0.0
  %108 = vmatpush1.msra.mxu0 %v81
  %109 = vmatprep.subr.mxu0 0.0
  %110 = vmatpush1.msra.mxu0 %v82
  %111 = vmatprep.subr.mxu0 0.0
  %112 = vmatpush1.msra.mxu0 %v83
  %113 = vmatprep.subr.mxu0 0.0
  %114 = vmatpush1.msra.mxu0 %v84
  %115 = vmatprep.subr.mxu0 0.0
  %116 = vmatpush1.msra.mxu0 %v85
  %117 = vmatprep.subr.mxu0 0.0
  %118 = vmatpush1.msra.mxu0 %v86
  %119 = vmatprep.subr.mxu0 0.0
  %120 = vmatpush1.msra.mxu0 %v87
  %121 = vmatprep.subr.mxu0 0.0
  %122 = vmatpush1.msra.mxu0 %v88
  %123 = vmatprep.subr.mxu0 0.0
  %124 = vmatpush1.msra.mxu0 %v89
  %125 = vmatprep.subr.mxu0 0.0
  %126 = vmatpush1.msra.mxu0 %v90
  %127 = vmatprep.subr.mxu0 0.0
  %128 = vmatpush1.msra.mxu0 %v91
  %129 = vmatprep.subr.mxu0 0.0
  %130 = vmatpush1.msra.mxu0 %v92
  %131 = vmatprep.subr.mxu0 0.0
  %132 = vmatpush1.msra.mxu0 %v93
  %133 = vmatprep.subr.mxu0 0.0
  %134 = vmatpush1.msra.mxu0 0.0
  %135 = vmatprep.subr.mxu0 0.0
  %136 = vmatpush1.msra.mxu0 0.0
  %137 = vmatprep.subr.mxu0 0.0
  %138 = vmatpush1.msra.mxu0 0.0
  %139 = vmatprep.subr.mxu0 0.0
  %140 = vmatpush1.msra.mxu0 0.0
  %141 = vmatprep.subr.mxu0 0.0
  %142 = vmatpush1.msra.mxu0 0.0
  %143 = vmatprep.subr.mxu0 0.0
  %144 = vmatpush1.msra.mxu0 0.0
  %145 = vmatprep.subr.mxu0 0.0
  %146 = vmatpush1.msra.mxu0 0.0
  %147 = vmatprep.subr.mxu0 0.0
  %148 = vmatpush1.msra.mxu0 0.0
  %149 = vmatprep.subr.mxu0 0.0
  %150 = vmatpush1.msra.mxu0 0.0
  %151 = vmatprep.subr.mxu0 0.0
  %152 = vmatpush1.msra.mxu0 0.0
  %153 = vmatprep.subr.mxu0 0.0
  %154 = vmatpush1.msra.mxu0 0.0
  %155 = vmatprep.subr.mxu0 0.0
  %156 = vmatpush1.msra.mxu0 0.0
  %157 = vmatprep.subr.mxu0 0.0
  %158 = vmatpush1.msra.mxu0 0.0
  %159 = vmatprep.subr.mxu0 0.0
  %160 = vmatpush1.msra.mxu0 0.0
  %161 = vmatprep.subr.mxu0 0.0
  %162 = vmatpush1.msra.mxu0 0.0
  %163 = vmatprep.subr.mxu0 0.0
  %164 = vmatpush1.msra.mxu0 0.0
  %165 = vmatprep.mubr.f32.mxu0 0.0
  %166 = vmatmul.mubr.f32.gmra.mrb[0].mxu0 %v14
  %v167 = vpop.f32.mrb[0].mxu0
  %v168 = vadd.f32 %v99, %v167
  %v169 = vpop.f32.mrb[0].mxu0
  %170 = vmatprep.mubr.f32.mxu0 0.0
  %171 = vmatmul.mubr.f32.gmra.mrb[0].mxu0 %v15
  %v172 = vpop.f32.mrb[0].mxu0
  %v173 = vadd.f32 %v99, %v172
  %v174 = vpop.f32.mrb[0].mxu0
  %175 = vmatprep.mubr.f32.mxu0 0.0
  %176 = vmatmul.mubr.f32.gmra.mrb[0].mxu0 %v16
  %v177 = vpop.f32.mrb[0].mxu0
  %v178 = vadd.f32 %v99, %v177
  %v179 = vpop.f32.mrb[0].mxu0
  %180 = vmatprep.mubr.f32.mxu0 0.0
  %181 = vmatmul.mubr.f32.gmra.mrb[0].mxu0 %v17
  %v182 = vpop.f32.mrb[0].mxu0
  %v183 = vadd.f32 %v99, %v182
  %v184 = vpop.f32.mrb[0].mxu0
  %185 = vmatprep.mubr.f32.mxu0 0.0
  %186 = vmatmul.mubr.f32.gmra.mrb[0].mxu0 %v18
  %v187 = vpop.f32.mrb[0].mxu0
  %v188 = vadd.f32 %v99, %v187
  %v189 = vpop.f32.mrb[0].mxu0
  %190 = vmatprep.mubr.f32.mxu0 0.0
  %191 = vmatmul.mubr.f32.gmra.mrb[0].mxu0 %v19
  %v192 = vpop.f32.mrb[0].mxu0
  %v193 = vadd.f32 %v99, %v192
  %v194 = vpop.f32.mrb[0].mxu0
  %195 = vmatprep.mubr.f32.mxu0 0.0
  %196 = vmatmul.mubr.f32.gmra.mrb[0].mxu0 %v20
  %v197 = vpop.f32.mrb[0].mxu0
  %v198 = vadd.f32 %v99, %v197
  %v199 = vpop.f32.mrb[0].mxu0
  %200 = vmatprep.mubr.f32.mxu0 0.0
  %201 = vmatmul.mubr.f32.gmra.mrb[0].mxu0 %v21
  %v202 = vpop.f32.mrb[0].mxu0
  %v203 = vadd.f32 %v99, %v202
  %v204 = vpop.f32.mrb[0].mxu0
  %205 = vmatprep.mubr.f32.mxu0 0.0
  %206 = vmatmul.mubr.f32.gmra.mrb[0].mxu0 %v22
  %v207 = vpop.f32.mrb[0].mxu0
  %v208 = vadd.f32 %v99, %v207
  %v209 = vpop.f32.mrb[0].mxu0
  %210 = vmatprep.mubr.f32.mxu0 0.0
  %211 = vmatmul.mubr.f32.gmra.mrb[0].mxu0 %v23
  %v212 = vpop.f32.mrb[0].mxu0
  %v213 = vadd.f32 %v99, %v212
  %v214 = vpop.f32.mrb[0].mxu0
  %215 = vmatprep.mubr.f32.mxu0 0.0
  %216 = vmatmul.mubr.f32.gmra.mrb[0].mxu0 %v24
  %v217 = vpop.f32.mrb[0].mxu0
  %v218 = vadd.f32 %v99, %v217
  %v219 = vpop.f32.mrb[0].mxu0
  %220 = vmatprep.mubr.f32.mxu0 0.0
  %221 = vmatmul.mubr.f32.gmra.mrb[0].mxu0 %v25
  %v222 = vpop.f32.mrb[0].mxu0
  %v223 = vadd.f32 %v99, %v222
  %v224 = vpop.f32.mrb[0].mxu0
  %225 = vmatprep.mubr.f32.mxu0 0.0
  %226 = vmatmul.mubr.f32.gmra.mrb[0].mxu0 %v26
  %v227 = vpop.f32.mrb[0].mxu0
  %v228 = vadd.f32 %v99, %v227
  %v229 = vpop.f32.mrb[0].mxu0
  %230 = vmatprep.mubr.f32.mxu0 0.0
  %231 = vmatmul.mubr.f32.gmra.mrb[0].mxu0 %v27
  %v232 = vpop.f32.mrb[0].mxu0
  %v233 = vadd.f32 %v99, %v232
  %v234 = vpop.f32.mrb[0].mxu0
  %235 = vmatprep.mubr.f32.mxu0 0.0
  %236 = vmatmul.mubr.f32.gmra.mrb[0].mxu0 %v28
  %v237 = vpop.f32.mrb[0].mxu0
  %v238 = vadd.f32 %v99, %v237
  %v239 = vpop.f32.mrb[0].mxu0
  %240 = vmatprep.mubr.f32.mxu0 0.0
  %241 = vmatmul.mubr.f32.gmra.mrb[0].mxu0 %v29
  %v242 = vpop.f32.mrb[0].mxu0
  %v243 = vadd.f32 %v99, %v242
  %v244 = vpop.f32.mrb[0].mxu0
  %245 = vmatprep.mubr.f32.mxu0 0.0
  %246 = vmatmul.mubr.f32.gmra.mrb[0].mxu0 %v30
  %v247 = vpop.f32.mrb[0].mxu0
  %v248 = vadd.f32 %v99, %v247
  %v249 = vpop.f32.mrb[0].mxu0
  %250 = vmatprep.mubr.f32.mxu0 0.0
  %251 = vmatmul.mubr.f32.gmra.mrb[0].mxu0 %v31
  %v252 = vpop.f32.mrb[0].mxu0
  %v253 = vadd.f32 %v99, %v252
  %v254 = vpop.f32.mrb[0].mxu0
  %255 = vmatprep.mubr.f32.mxu0 0.0
  %256 = vmatmul.mubr.f32.gmra.mrb[0].mxu0 %v32
  %v257 = vpop.f32.mrb[0].mxu0
  %v258 = vadd.f32 %v99, %v257
  %v259 = vpop.f32.mrb[0].mxu0
  %260 = vmatprep.mubr.f32.mxu0 0.0
  %261 = vmatmul.mubr.f32.gmra.mrb[0].mxu0 %v33
  %v262 = vpop.f32.mrb[0].mxu0
  %v263 = vadd.f32 %v99, %v262
  %v264 = vpop.f32.mrb[0].mxu0
  %265 = vmatprep.mubr.f32.mxu0 0.0
  %266 = vmatmul.mubr.f32.gmra.mrb[0].mxu0 %v34
  %v267 = vpop.f32.mrb[0].mxu0
  %v268 = vadd.f32 %v99, %v267
  %v269 = vpop.f32.mrb[0].mxu0
  %270 = vmatprep.mubr.f32.mxu0 0.0
  %271 = vmatmul.mubr.f32.gmra.mrb[0].mxu0 %v35
  %v272 = vpop.f32.mrb[0].mxu0
  %v273 = vadd.f32 %v99, %v272
  %v274 = vpop.f32.mrb[0].mxu0
  %275 = vmatprep.mubr.f32.mxu0 0.0
  %276 = vmatmul.mubr.f32.gmra.mrb[0].mxu0 %v36
  %v277 = vpop.f32.mrb[0].mxu0
  %v278 = vadd.f32 %v99, %v277
  %v279 = vpop.f32.mrb[0].mxu0
  %280 = vmatprep.mubr.f32.mxu0 0.0
  %281 = vmatmul.mubr.f32.gmra.mrb[0].mxu0 %v37
  %v282 = vpop.f32.mrb[0].mxu0
  %v283 = vadd.f32 %v99, %v282
  %v284 = vpop.f32.mrb[0].mxu0
  %285 = vmatprep.mubr.f32.mxu0 0.0
  %286 = vmatmul.mubr.f32.gmra.mrb[0].mxu0 %v38
  %v287 = vpop.f32.mrb[0].mxu0
  %v288 = vadd.f32 %v99, %v287
  %v289 = vpop.f32.mrb[0].mxu0
  %290 = vmatprep.mubr.f32.mxu0 0.0
  %291 = vmatmul.mubr.f32.gmra.mrb[0].mxu0 %v39
  %v292 = vpop.f32.mrb[0].mxu0
  %v293 = vadd.f32 %v99, %v292
  %v294 = vpop.f32.mrb[0].mxu0
  %295 = vmatprep.mubr.f32.mxu0 0.0
  %296 = vmatmul.mubr.f32.gmra.mrb[0].mxu0 %v40
  %v297 = vpop.f32.mrb[0].mxu0
  %v298 = vadd.f32 %v99, %v297
  %v299 = vpop.f32.mrb[0].mxu0
  %300 = vmatprep.mubr.f32.mxu0 0.0
  %301 = vmatmul.mubr.f32.gmra.mrb[0].mxu0 %v41
  %v302 = vpop.f32.mrb[0].mxu0
  %v303 = vadd.f32 %v99, %v302
  %v304 = vpop.f32.mrb[0].mxu0
  %305 = vmatprep.mubr.f32.mxu0 0.0
  %306 = vmatmul.mubr.f32.gmra.mrb[0].mxu0 %v42
  %v307 = vpop.f32.mrb[0].mxu0
  %v308 = vadd.f32 %v99, %v307
  %v309 = vpop.f32.mrb[0].mxu0
  %310 = vmatprep.mubr.f32.mxu0 0.0
  %311 = vmatmul.mubr.f32.gmra.mrb[0].mxu0 %v43
  %v312 = vpop.f32.mrb[0].mxu0
  %v313 = vadd.f32 %v99, %v312
  %v314 = vpop.f32.mrb[0].mxu0
  %315 = vmatprep.mubr.f32.mxu0 0.0
  %316 = vmatmul.mubr.f32.gmra.mrb[0].mxu0 %v44
  %v317 = vpop.f32.mrb[0].mxu0
  %v318 = vadd.f32 %v99, %v317
  %v319 = vpop.f32.mrb[0].mxu0
  %320 = vmatprep.mubr.f32.mxu0 0.0
  %321 = vmatmul.mubr.f32.gmra.mrb[0].mxu0 %v45
  %v322 = vpop.f32.mrb[0].mxu0
  %v323 = vadd.f32 %v99, %v322
  %v324 = vpop.f32.mrb[0].mxu0
  %325 = vmatprep.mubr.f32.mxu0 0.0
  %326 = vmatmul.mubr.f32.gmra.mrb[0].mxu0 %v46
  %v327 = vpop.f32.mrb[0].mxu0
  %v328 = vadd.f32 %v99, %v327
  %v329 = vpop.f32.mrb[0].mxu0
  %330 = vmatprep.mubr.f32.mxu0 0.0
  %331 = vmatmul.mubr.f32.gmra.mrb[0].mxu0 %v47
  %v332 = vpop.f32.mrb[0].mxu0
  %v333 = vadd.f32 %v99, %v332
  %v334 = vpop.f32.mrb[0].mxu0
  %335 = vmatprep.mubr.f32.mxu0 0.0
  %336 = vmatmul.mubr.f32.gmra.mrb[0].mxu0 %v48
  %v337 = vpop.f32.mrb[0].mxu0
  %v338 = vadd.f32 %v99, %v337
  %v339 = vpop.f32.mrb[0].mxu0
  %340 = vmatprep.mubr.f32.mxu0 0.0
  %341 = vmatmul.mubr.f32.gmra.mrb[0].mxu0 %v49
  %v342 = vpop.f32.mrb[0].mxu0
  %v343 = vadd.f32 %v99, %v342
  %v344 = vpop.f32.mrb[0].mxu0
  %345 = vmatprep.mubr.f32.mxu0 0.0
  %346 = vmatmul.mubr.f32.gmra.mrb[0].mxu0 %v50
  %v347 = vpop.f32.mrb[0].mxu0
  %v348 = vadd.f32 %v99, %v347
  %v349 = vpop.f32.mrb[0].mxu0
  %350 = vmatprep.mubr.f32.mxu0 0.0
  %351 = vmatmul.mubr.f32.gmra.mrb[0].mxu0 %v51
  %v352 = vpop.f32.mrb[0].mxu0
  %v353 = vadd.f32 %v99, %v352
  %v354 = vpop.f32.mrb[0].mxu0
  %355 = vmatprep.mubr.f32.mxu0 0.0
  %356 = vmatmul.mubr.f32.gmra.mrb[0].mxu0 %v52
  %v357 = vpop.f32.mrb[0].mxu0
  %v358 = vadd.f32 %v99, %v357
  %v359 = vpop.f32.mrb[0].mxu0
  %360 = vmatprep.mubr.f32.mxu0 0.0
  %361 = vmatmul.mubr.f32.gmra.mrb[0].mxu0 %v53
  %v362 = vpop.f32.mrb[0].mxu0
  %v363 = vadd.f32 %v99, %v362
  %v364 = vpop.f32.mrb[0].mxu0
  %365 = vmatprep.mubr.f32.mxu0 0.0
  %366 = vmatmul.mubr.f32.gmra.mrb[0].mxu0 %v54
  %v367 = vpop.f32.mrb[0].mxu0
  %v368 = vadd.f32 %v99, %v367
  %v369 = vpop.f32.mrb[0].mxu0
  %370 = vmatprep.mubr.f32.mxu0 0.0
  %371 = vmatmul.mubr.f32.gmra.mrb[0].mxu0 %v55
  %v372 = vpop.f32.mrb[0].mxu0
  %v373 = vadd.f32 %v99, %v372
  %v374 = vpop.f32.mrb[0].mxu0
  %375 = vmatprep.mubr.f32.mxu0 0.0
  %376 = vmatmul.mubr.f32.gmra.mrb[0].mxu0 %v56
  %v377 = vpop.f32.mrb[0].mxu0
  %v378 = vadd.f32 %v99, %v377
  %v379 = vpop.f32.mrb[0].mxu0
  %380 = vmatprep.mubr.f32.mxu0 0.0
  %381 = vmatmul.mubr.f32.gmra.mrb[0].mxu0 %v57
  %v382 = vpop.f32.mrb[0].mxu0
  %v383 = vadd.f32 %v99, %v382
  %v384 = vpop.f32.mrb[0].mxu0
  %385 = vmatprep.mubr.f32.mxu0 0.0
  %386 = vmatmul.mubr.f32.gmra.mrb[0].mxu0 %v58
  %v387 = vpop.f32.mrb[0].mxu0
  %v388 = vadd.f32 %v99, %v387
  %v389 = vpop.f32.mrb[0].mxu0
  %390 = vmatprep.mubr.f32.mxu0 0.0
  %391 = vmatmul.mubr.f32.gmra.mrb[0].mxu0 %v59
  %v392 = vpop.f32.mrb[0].mxu0
  %v393 = vadd.f32 %v99, %v392
  %v394 = vpop.f32.mrb[0].mxu0
  %395 = vmatprep.mubr.f32.mxu0 0.0
  %396 = vmatmul.mubr.f32.gmra.mrb[0].mxu0 %v60
  %v397 = vpop.f32.mrb[0].mxu0
  %v398 = vadd.f32 %v99, %v397
  %v399 = vpop.f32.mrb[0].mxu0
  %400 = vmatprep.mubr.f32.mxu0 0.0
  %401 = vmatmul.mubr.f32.gmra.mrb[0].mxu0 %v61
  %v402 = vpop.f32.mrb[0].mxu0
  %v403 = vadd.f32 %v99, %v402
  %v404 = vpop.f32.mrb[0].mxu0
  %405 = vmatprep.mubr.f32.mxu0 0.0
  %406 = vmatmul.mubr.f32.gmra.mrb[0].mxu0 %v62
  %v407 = vpop.f32.mrb[0].mxu0
  %v408 = vadd.f32 %v99, %v407
  %v409 = vpop.f32.mrb[0].mxu0
  %410 = vmatprep.mubr.f32.mxu0 0.0
  %411 = vmatmul.mubr.f32.gmra.mrb[0].mxu0 %v63
  %v412 = vpop.f32.mrb[0].mxu0
  %v413 = vadd.f32 %v99, %v412
  %v414 = vpop.f32.mrb[0].mxu0
  %415 = vmatprep.mubr.f32.mxu0 0.0
  %416 = vmatmul.mubr.f32.gmra.mrb[0].mxu0 %v64
  %v417 = vpop.f32.mrb[0].mxu0
  %v418 = vadd.f32 %v99, %v417
  %v419 = vpop.f32.mrb[0].mxu0
  %420 = vmatprep.mubr.f32.mxu0 0.0
  %421 = vmatmul.mubr.f32.gmra.mrb[0].mxu0 %v65
  %v422 = vpop.f32.mrb[0].mxu0
  %v423 = vadd.f32 %v99, %v422
  %v424 = vpop.f32.mrb[0].mxu0
  %425 = vmatprep.mubr.f32.mxu0 0.0
  %426 = vmatmul.mubr.f32.gmra.mrb[0].mxu0 %v66
  %v427 = vpop.f32.mrb[0].mxu0
  %v428 = vadd.f32 %v99, %v427
  %v429 = vpop.f32.mrb[0].mxu0
  %430 = vmatprep.mubr.f32.mxu0 0.0
  %431 = vmatmul.mubr.f32.gmra.mrb[0].mxu0 %v67
  %v432 = vpop.f32.mrb[0].mxu0
  %v433 = vadd.f32 %v99, %v432
  %v434 = vpop.f32.mrb[0].mxu0
  %435 = vmatprep.mubr.f32.mxu0 0.0
  %436 = vmatmul.mubr.f32.gmra.mrb[0].mxu0 %v68
  %v437 = vpop.f32.mrb[0].mxu0
  %v438 = vadd.f32 %v99, %v437
  %v439 = vpop.f32.mrb[0].mxu0
  %440 = vmatprep.mubr.f32.mxu0 0.0
  %441 = vmatmul.mubr.f32.gmra.mrb[0].mxu0 %v69
  %v442 = vpop.f32.mrb[0].mxu0
  %v443 = vadd.f32 %v99, %v442
  %v444 = vpop.f32.mrb[0].mxu0
  %445 = vmatprep.mubr.f32.mxu0 0.0
  %446 = vmatmul.mubr.f32.gmra.mrb[0].mxu0 %v70
  %v447 = vpop.f32.mrb[0].mxu0
  %v448 = vadd.f32 %v99, %v447
  %v449 = vpop.f32.mrb[0].mxu0
  %450 = vmatprep.mubr.f32.mxu0 0.0
  %451 = vmatmul.mubr.f32.gmra.mrb[0].mxu0 %v71
  %v452 = vpop.f32.mrb[0].mxu0
  %v453 = vadd.f32 %v99, %v452
  %v454 = vpop.f32.mrb[0].mxu0
  %455 = vmatprep.mubr.f32.mxu0 0.0
  %456 = vmatmul.mubr.f32.gmra.mrb[0].mxu0 %v72
  %v457 = vpop.f32.mrb[0].mxu0
  %v458 = vadd.f32 %v99, %v457
  %v459 = vpop.f32.mrb[0].mxu0
  %460 = vmatprep.mubr.f32.mxu0 0.0
  %461 = vmatmul.mubr.f32.gmra.mrb[0].mxu0 %v73
  %v462 = vpop.f32.mrb[0].mxu0
  %v463 = vadd.f32 %v99, %v462
  %v464 = vpop.f32.mrb[0].mxu0
  %465 = vmatprep.mubr.f32.mxu0 0.0
  %466 = vmatmul.mubr.f32.gmra.mrb[0].mxu0 %v74
  %v467 = vpop.f32.mrb[0].mxu0
  %v468 = vadd.f32 %v99, %v467
  %v469 = vpop.f32.mrb[0].mxu0
  %470 = vmatprep.mubr.f32.mxu0 0.0
  %471 = vmatmul.mubr.f32.gmra.mrb[0].mxu0 %v75
  %v472 = vpop.f32.mrb[0].mxu0
  %v473 = vadd.f32 %v99, %v472
  %v474 = vpop.f32.mrb[0].mxu0
  %475 = vmatprep.mubr.f32.mxu0 0.0
  %476 = vmatmul.mubr.f32.gmra.mrb[0].mxu0 %v76
  %v477 = vpop.f32.mrb[0].mxu0
  %v478 = vadd.f32 %v99, %v477
  %v479 = vpop.f32.mrb[0].mxu0
  %480 = vmatprep.mubr.f32.mxu0 0.0
  %481 = vmatmul.mubr.f32.gmra.mrb[0].mxu0 %v77
  %v482 = vpop.f32.mrb[0].mxu0
  %v483 = vadd.f32 %v99, %v482
  %v484 = vpop.f32.mrb[0].mxu0
  %485 = vdwg.mxu0
  %v486 = vmax.f32 %v168, 0.0
  %v487 = vmax.f32 %v173, 0.0
  %v488 = vmax.f32 %v178, 0.0
  %v489 = vmax.f32 %v183, 0.0
  %v490 = vmax.f32 %v188, 0.0
  %v491 = vmax.f32 %v193, 0.0
  %v492 = vmax.f32 %v198, 0.0
  %v493 = vmax.f32 %v203, 0.0
  %v494 = vmax.f32 %v208, 0.0
  %v495 = vmax.f32 %v213, 0.0
  %v496 = vmax.f32 %v218, 0.0
  %v497 = vmax.f32 %v223, 0.0
  %v498 = vmax.f32 %v228, 0.0
  %v499 = vmax.f32 %v233, 0.0
  %v500 = vmax.f32 %v238, 0.0
  %v501 = vmax.f32 %v243, 0.0
  %v502 = vmax.f32 %v248, 0.0
  %v503 = vmax.f32 %v253, 0.0
  %v504 = vmax.f32 %v258, 0.0
  %v505 = vmax.f32 %v263, 0.0
  %v506 = vmax.f32 %v268, 0.0
  %v507 = vmax.f32 %v273, 0.0
  %v508 = vmax.f32 %v278, 0.0
  %v509 = vmax.f32 %v283, 0.0
  %v510 = vmax.f32 %v288, 0.0
  %v511 = vmax.f32 %v293, 0.0
  %v512 = vmax.f32 %v298, 0.0
  %v513 = vmax.f32 %v303, 0.0
  %v514 = vmax.f32 %v308, 0.0
  %v515 = vmax.f32 %v313, 0.0
  %v516 = vmax.f32 %v318, 0.0
  %v517 = vmax.f32 %v323, 0.0
  %v518 = vmax.f32 %v328, 0.0
  %v519 = vmax.f32 %v333, 0.0
  %v520 = vmax.f32 %v338, 0.0
  %v521 = vmax.f32 %v343, 0.0
  %v522 = vmax.f32 %v348, 0.0
  %v523 = vmax.f32 %v353, 0.0
  %v524 = vmax.f32 %v358, 0.0
  %v525 = vmax.f32 %v363, 0.0
  %v526 = vmax.f32 %v368, 0.0
  %v527 = vmax.f32 %v373, 0.0
  %v528 = vmax.f32 %v378, 0.0
  %v529 = vmax.f32 %v383, 0.0
  %v530 = vmax.f32 %v388, 0.0
  %v531 = vmax.f32 %v393, 0.0
  %v532 = vmax.f32 %v398, 0.0
  %v533 = vmax.f32 %v403, 0.0
  %v534 = vmax.f32 %v408, 0.0
  %v535 = vmax.f32 %v413, 0.0
  %v536 = vmax.f32 %v418, 0.0
  %v537 = vmax.f32 %v423, 0.0
  %v538 = vmax.f32 %v428, 0.0
  %v539 = vmax.f32 %v433, 0.0
  %v540 = vmax.f32 %v438, 0.0
  %v541 = vmax.f32 %v443, 0.0
  %v542 = vmax.f32 %v448, 0.0
  %v543 = vmax.f32 %v453, 0.0
  %v544 = vmax.f32 %v458, 0.0
  %v545 = vmax.f32 %v463, 0.0
  %v546 = vmax.f32 %v468, 0.0
  %v547 = vmax.f32 %v473, 0.0
  %v548 = vmax.f32 %v478, 0.0
  %v549 = vmax.f32 %v483, 0.0
  %vm550 = vcmask 523264
  %551 = vst.msk [vmem:[%s3] sm:$0xff] %vm550, %v486
  %552 = vst.msk [vmem:[%s3 + $0x8] sm:$0xff] %vm550, %v487
  %553 = vst.msk [vmem:[%s3 + $0x10] sm:$0xff] %vm550, %v488
  %554 = vst.msk [vmem:[%s3 + $0x18] sm:$0xff] %vm550, %v489
  %555 = vst.msk [vmem:[%s3 + $0x20] sm:$0xff] %vm550, %v490
  %556 = vst.msk [vmem:[%s3 + $0x28] sm:$0xff] %vm550, %v491
  %557 = vst.msk [vmem:[%s3 + $0x30] sm:$0xff] %vm550, %v492
  %558 = vst.msk [vmem:[%s3 + $0x38] sm:$0xff] %vm550, %v493
  %559 = vst.msk [vmem:[%s3 + $0x40] sm:$0xff] %vm550, %v494
  %560 = vst.msk [vmem:[%s3 + $0x48] sm:$0xff] %vm550, %v495
  %561 = vst.msk [vmem:[%s3 + $0x50] sm:$0xff] %vm550, %v496
  %562 = vst.msk [vmem:[%s3 + $0x58] sm:$0xff] %vm550, %v497
  %563 = vst.msk [vmem:[%s3 + $0x60] sm:$0xff] %vm550, %v498
  %564 = vst.msk [vmem:[%s3 + $0x68] sm:$0xff] %vm550, %v499
  %565 = vst.msk [vmem:[%s3 + $0x70] sm:$0xff] %vm550, %v500
  %566 = vst.msk [vmem:[%s3 + $0x78] sm:$0xff] %vm550, %v501
  %567 = vst.msk [vmem:[%s3 + $0x80] sm:$0xff] %vm550, %v502
  %568 = vst.msk [vmem:[%s3 + $0x88] sm:$0xff] %vm550, %v503
  %569 = vst.msk [vmem:[%s3 + $0x90] sm:$0xff] %vm550, %v504
  %570 = vst.msk [vmem:[%s3 + $0x98] sm:$0xff] %vm550, %v505
  %571 = vst.msk [vmem:[%s3 + $0xa0] sm:$0xff] %vm550, %v506
  %572 = vst.msk [vmem:[%s3 + $0xa8] sm:$0xff] %vm550, %v507
  %573 = vst.msk [vmem:[%s3 + $0xb0] sm:$0xff] %vm550, %v508
  %574 = vst.msk [vmem:[%s3 + $0xb8] sm:$0xff] %vm550, %v509
  %575 = vst.msk [vmem:[%s3 + $0xc0] sm:$0xff] %vm550, %v510
  %576 = vst.msk [vmem:[%s3 + $0xc8] sm:$0xff] %vm550, %v511
  %577 = vst.msk [vmem:[%s3 + $0xd0] sm:$0xff] %vm550, %v512
  %578 = vst.msk [vmem:[%s3 + $0xd8] sm:$0xff] %vm550, %v513
  %579 = vst.msk [vmem:[%s3 + $0xe0] sm:$0xff] %vm550, %v514
  %580 = vst.msk [vmem:[%s3 + $0xe8] sm:$0xff] %vm550, %v515
  %581 = vst.msk [vmem:[%s3 + $0xf0] sm:$0xff] %vm550, %v516
  %582 = vst.msk [vmem:[%s3 + $0xf8] sm:$0xff] %vm550, %v517
  %583 = vst.msk [vmem:[%s3 + $0x100] sm:$0xff] %vm550, %v518
  %584 = vst.msk [vmem:[%s3 + $0x108] sm:$0xff] %vm550, %v519
  %585 = vst.msk [vmem:[%s3 + $0x110] sm:$0xff] %vm550, %v520
  %586 = vst.msk [vmem:[%s3 + $0x118] sm:$0xff] %vm550, %v521
  %587 = vst.msk [vmem:[%s3 + $0x120] sm:$0xff] %vm550, %v522
  %588 = vst.msk [vmem:[%s3 + $0x128] sm:$0xff] %vm550, %v523
  %589 = vst.msk [vmem:[%s3 + $0x130] sm:$0xff] %vm550, %v524
  %590 = vst.msk [vmem:[%s3 + $0x138] sm:$0xff] %vm550, %v525
  %591 = vst.msk [vmem:[%s3 + $0x140] sm:$0xff] %vm550, %v526
  %592 = vst.msk [vmem:[%s3 + $0x148] sm:$0xff] %vm550, %v527
  %593 = vst.msk [vmem:[%s3 + $0x150] sm:$0xff] %vm550, %v528
  %594 = vst.msk [vmem:[%s3 + $0x158] sm:$0xff] %vm550, %v529
  %595 = vst.msk [vmem:[%s3 + $0x160] sm:$0xff] %vm550, %v530
  %596 = vst.msk [vmem:[%s3 + $0x168] sm:$0xff] %vm550, %v531
  %597 = vst.msk [vmem:[%s3 + $0x170] sm:$0xff] %vm550, %v532
  %598 = vst.msk [vmem:[%s3 + $0x178] sm:$0xff] %vm550, %v533
  %599 = vst.msk [vmem:[%s3 + $0x180] sm:$0xff] %vm550, %v534
  %600 = vst.msk [vmem:[%s3 + $0x188] sm:$0xff] %vm550, %v535
  %601 = vst.msk [vmem:[%s3 + $0x190] sm:$0xff] %vm550, %v536
  %602 = vst.msk [vmem:[%s3 + $0x198] sm:$0xff] %vm550, %v537
  %603 = vst.msk [vmem:[%s3 + $0x1a0] sm:$0xff] %vm550, %v538
  %604 = vst.msk [vmem:[%s3 + $0x1a8] sm:$0xff] %vm550, %v539
  %605 = vst.msk [vmem:[%s3 + $0x1b0] sm:$0xff] %vm550, %v540
  %606 = vst.msk [vmem:[%s3 + $0x1b8] sm:$0xff] %vm550, %v541
  %607 = vst.msk [vmem:[%s3 + $0x1c0] sm:$0xff] %vm550, %v542
  %608 = vst.msk [vmem:[%s3 + $0x1c8] sm:$0xff] %vm550, %v543
  %609 = vst.msk [vmem:[%s3 + $0x1d0] sm:$0xff] %vm550, %v544
  %610 = vst.msk [vmem:[%s3 + $0x1d8] sm:$0xff] %vm550, %v545
  %611 = vst.msk [vmem:[%s3 + $0x1e0] sm:$0xff] %vm550, %v546
  %612 = vst.msk [vmem:[%s3 + $0x1e8] sm:$0xff] %vm550, %v547
  %613 = vst.msk [vmem:[%s3 + $0x1f0] sm:$0xff] %vm550, %v548
  %614 = vst.msk [vmem:[%s3 + $0x1f8] sm:$0xff] %vm550, %v549
  // Predicated region
  $region14: #{prompt_encoder.7} parent=0 // pred_check
    _
  $region15: #{prompt_encoder.7} parent=0 // pred_check_branch
    %616 = sbr.rel (0) target = $region17
  $region16: #{prompt_encoder.7} parent=0 // pred_region
    _
  $region17: #{prompt_encoder.7} parent=0 // pred_fallthru
    _
  // Predicated region
  $region18: #{prompt_encoder.7} parent=0 // pred_check
    _
  $region19: #{prompt_encoder.7} parent=0 // pred_check_branch
    %618 = sbr.rel (0) target = $region21
  $region20: #{prompt_encoder.7} parent=0 // pred_region
    _
  $region21: #{prompt_encoder.7} parent=0 // pred_fallthru
    _

// kernel: prompt_encoder.8
$region0: #{prompt_encoder.8}
  #allocation0 [shape = 'u32[]', space=smem, size = 0x4, offset = 0x4, fixed_abs, tag = 'smem constant byte address 0x4 - core index']
  #allocation1 [shape = 'u32[144,128]{1,0:T(1,128)}', space=vmem, size = 0x12000, scoped, tag = 'internal scratch']
  %s0 = inlined_call_operand.vmem [shape: f32[128,640], index: 0, kind: input, shape index: {}]
  %s1 = inlined_call_operand.vmem [shape: f32[640,128], index: 1, kind: input, shape index: {}]
  %s2 = inlined_call_operand.vmem [shape: f32[1,128], index: 2, kind: input, shape index: {}]
  %s3 = inlined_call_operand.vmem [shape: f32[128,128], index: 3, kind: output, shape index: {}]
  %s4 = sld [smem:[#allocation0]]
  $region22: #{prompt_encoder.8} parent=0
    _
  %s6 = ssub.s32 1, %s4
  %s7 = scalar_select 0, %s6, %s4
  // Predicated region
  $region2: #{prompt_encoder.8} parent=0 // pred_check
    _
  $region3: #{prompt_encoder.8} parent=0 // pred_check_branch
    %9 = sbr.rel (0) target = $region5
  $region4: #{prompt_encoder.8} parent=0 // pred_region
    _
  $region5: #{prompt_encoder.8} parent=0 // pred_fallthru
    _
  // Predicated region
  $region6: #{prompt_encoder.8} parent=0 // pred_check
    _
  $region7: #{prompt_encoder.8} parent=0 // pred_check_branch
    %11 = sbr.rel (0) target = $region9
  $region8: #{prompt_encoder.8} parent=0 // pred_region
    _
  $region9: #{prompt_encoder.8} parent=0 // pred_fallthru
    _
  // Predicated region
  $region10: #{prompt_encoder.8} parent=0 // pred_check
    _
  $region11: #{prompt_encoder.8} parent=0 // pred_check_branch
    %13 = sbr.rel (0) target = $region13
  $region12: #{prompt_encoder.8} parent=0 // pred_region
    _
  $region13: #{prompt_encoder.8} parent=0 // pred_fallthru
    _
  %v14 = vld [vmem:[%s0] sm:$0xff]
  %v15 = vld [vmem:[%s0 + $0x8] sm:$0xff]
  %v16 = vld [vmem:[%s0 + $0x10] sm:$0xff]
  %v17 = vld [vmem:[%s0 + $0x18] sm:$0xff]
  %v18 = vld [vmem:[%s0 + $0x20] sm:$0xff]
  %v19 = vld [vmem:[%s0 + $0x28] sm:$0xff]
  %v20 = vld [vmem:[%s0 + $0x30] sm:$0xff]
  %v21 = vld [vmem:[%s0 + $0x38] sm:$0xff]
  %v22 = vld [vmem:[%s0 + $0x40] sm:$0xff]
  %v23 = vld [vmem:[%s0 + $0x48] sm:$0xff]
  %v24 = vld [vmem:[%s0 + $0x50] sm:$0xff]
  %v25 = vld [vmem:[%s0 + $0x58] sm:$0xff]
  %v26 = vld [vmem:[%s0 + $0x60] sm:$0xff]
  %v27 = vld [vmem:[%s0 + $0x68] sm:$0xff]
  %v28 = vld [vmem:[%s0 + $0x70] sm:$0xff]
  %v29 = vld [vmem:[%s0 + $0x78] sm:$0xff]
  %v30 = vld [vmem:[%s0 + $0x80] sm:$0xff]
  %v31 = vld [vmem:[%s0 + $0x88] sm:$0xff]
  %v32 = vld [vmem:[%s0 + $0x90] sm:$0xff]
  %v33 = vld [vmem:[%s0 + $0x98] sm:$0xff]
  %v34 = vld [vmem:[%s0 + $0xa0] sm:$0xff]
  %v35 = vld [vmem:[%s0 + $0xa8] sm:$0xff]
  %v36 = vld [vmem:[%s0 + $0xb0] sm:$0xff]
  %v37 = vld [vmem:[%s0 + $0xb8] sm:$0xff]
  %v38 = vld [vmem:[%s0 + $0xc0] sm:$0xff]
  %v39 = vld [vmem:[%s0 + $0xc8] sm:$0xff]
  %v40 = vld [vmem:[%s0 + $0xd0] sm:$0xff]
  %v41 = vld [vmem:[%s0 + $0xd8] sm:$0xff]
  %v42 = vld [vmem:[%s0 + $0xe0] sm:$0xff]
  %v43 = vld [vmem:[%s0 + $0xe8] sm:$0xff]
  %v44 = vld [vmem:[%s0 + $0xf0] sm:$0xff]
  %v45 = vld [vmem:[%s0 + $0xf8] sm:$0xff]
  %v46 = vld [vmem:[%s0 + $0x100] sm:$0xff]
  %v47 = vld [vmem:[%s0 + $0x108] sm:$0xff]
  %v48 = vld [vmem:[%s0 + $0x110] sm:$0xff]
  %v49 = vld [vmem:[%s0 + $0x118] sm:$0xff]
  %v50 = vld [vmem:[%s0 + $0x120] sm:$0xff]
  %v51 = vld [vmem:[%s0 + $0x128] sm:$0xff]
  %v52 = vld [vmem:[%s0 + $0x130] sm:$0xff]
  %v53 = vld [vmem:[%s0 + $0x138] sm:$0xff]
  %v54 = vld [vmem:[%s0 + $0x140] sm:$0xff]
  %v55 = vld [vmem:[%s0 + $0x148] sm:$0xff]
  %v56 = vld [vmem:[%s0 + $0x150] sm:$0xff]
  %v57 = vld [vmem:[%s0 + $0x158] sm:$0xff]
  %v58 = vld [vmem:[%s0 + $0x160] sm:$0xff]
  %v59 = vld [vmem:[%s0 + $0x168] sm:$0xff]
  %v60 = vld [vmem:[%s0 + $0x170] sm:$0xff]
  %v61 = vld [vmem:[%s0 + $0x178] sm:$0xff]
  %v62 = vld [vmem:[%s0 + $0x180] sm:$0xff]
  %v63 = vld [vmem:[%s0 + $0x188] sm:$0xff]
  %v64 = vld [vmem:[%s0 + $0x190] sm:$0xff]
  %v65 = vld [vmem:[%s0 + $0x198] sm:$0xff]
  %v66 = vld [vmem:[%s0 + $0x1a0] sm:$0xff]
  %v67 = vld [vmem:[%s0 + $0x1a8] sm:$0xff]
  %v68 = vld [vmem:[%s0 + $0x1b0] sm:$0xff]
  %v69 = vld [vmem:[%s0 + $0x1b8] sm:$0xff]
  %v70 = vld [vmem:[%s0 + $0x1c0] sm:$0xff]
  %v71 = vld [vmem:[%s0 + $0x1c8] sm:$0xff]
  %v72 = vld [vmem:[%s0 + $0x1d0] sm:$0xff]
  %v73 = vld [vmem:[%s0 + $0x1d8] sm:$0xff]
  %v74 = vld [vmem:[%s0 + $0x1e0] sm:$0xff]
  %v75 = vld [vmem:[%s0 + $0x1e8] sm:$0xff]
  %v76 = vld [vmem:[%s0 + $0x1f0] sm:$0xff]
  %v77 = vld [vmem:[%s0 + $0x1f8] sm:$0xff]
  %v78 = vld [vmem:[%s0 + $0x200] sm:$0xff]
  %v79 = vld [vmem:[%s0 + $0x208] sm:$0xff]
  %v80 = vld [vmem:[%s0 + $0x210] sm:$0xff]
  %v81 = vld [vmem:[%s0 + $0x218] sm:$0xff]
  %v82 = vld [vmem:[%s0 + $0x220] sm:$0xff]
  %v83 = vld [vmem:[%s0 + $0x228] sm:$0xff]
  %v84 = vld [vmem:[%s0 + $0x230] sm:$0xff]
  %v85 = vld [vmem:[%s0 + $0x238] sm:$0xff]
  %v86 = vld [vmem:[%s0 + $0x240] sm:$0xff]
  %v87 = vld [vmem:[%s0 + $0x248] sm:$0xff]
  %v88 = vld [vmem:[%s0 + $0x250] sm:$0xff]
  %v89 = vld [vmem:[%s0 + $0x258] sm:$0xff]
  %v90 = vld [vmem:[%s0 + $0x260] sm:$0xff]
  %v91 = vld [vmem:[%s0 + $0x268] sm:$0xff]
  %v92 = vld [vmem:[%s0 + $0x270] sm:$0xff]
  %v93 = vld [vmem:[%s0 + $0x278] sm:$0xff]
  %v94 = vld [vmem:[%s1] sm:$0xff]
  %v95 = vld [vmem:[%s1 + $0x8] sm:$0xff]
  %v96 = vld [vmem:[%s1 + $0x10] sm:$0xff]
  %v97 = vld [vmem:[%s1 + $0x18] sm:$0xff]
  %v98 = vld [vmem:[%s1 + $0x20] sm:$0xff]
  %v99 = vld [vmem:[%s1 + $0x28] sm:$0xff]
  %v100 = vld [vmem:[%s1 + $0x30] sm:$0xff]
  %v101 = vld [vmem:[%s1 + $0x38] sm:$0xff]
  %v102 = vld [vmem:[%s1 + $0x40] sm:$0xff]
  %v103 = vld [vmem:[%s1 + $0x48] sm:$0xff]
  %v104 = vld [vmem:[%s1 + $0x50] sm:$0xff]
  %v105 = vld [vmem:[%s1 + $0x58] sm:$0xff]
  %v106 = vld [vmem:[%s1 + $0x60] sm:$0xff]
  %v107 = vld [vmem:[%s1 + $0x68] sm:$0xff]
  %v108 = vld [vmem:[%s1 + $0x70] sm:$0xff]
  %v109 = vld [vmem:[%s1 + $0x78] sm:$0xff]
  %v110 = vld [vmem:[%s1 + $0x80] sm:$0xff]
  %v111 = vld [vmem:[%s1 + $0x88] sm:$0xff]
  %v112 = vld [vmem:[%s1 + $0x90] sm:$0xff]
  %v113 = vld [vmem:[%s1 + $0x98] sm:$0xff]
  %v114 = vld [vmem:[%s1 + $0xa0] sm:$0xff]
  %v115 = vld [vmem:[%s1 + $0xa8] sm:$0xff]
  %v116 = vld [vmem:[%s1 + $0xb0] sm:$0xff]
  %v117 = vld [vmem:[%s1 + $0xb8] sm:$0xff]
  %v118 = vld [vmem:[%s1 + $0xc0] sm:$0xff]
  %v119 = vld [vmem:[%s1 + $0xc8] sm:$0xff]
  %v120 = vld [vmem:[%s1 + $0xd0] sm:$0xff]
  %v121 = vld [vmem:[%s1 + $0xd8] sm:$0xff]
  %v122 = vld [vmem:[%s1 + $0xe0] sm:$0xff]
  %v123 = vld [vmem:[%s1 + $0xe8] sm:$0xff]
  %v124 = vld [vmem:[%s1 + $0xf0] sm:$0xff]
  %v125 = vld [vmem:[%s1 + $0xf8] sm:$0xff]
  %v126 = vld [vmem:[%s1 + $0x100] sm:$0xff]
  %v127 = vld [vmem:[%s1 + $0x108] sm:$0xff]
  %v128 = vld [vmem:[%s1 + $0x110] sm:$0xff]
  %v129 = vld [vmem:[%s1 + $0x118] sm:$0xff]
  %v130 = vld [vmem:[%s1 + $0x120] sm:$0xff]
  %v131 = vld [vmem:[%s1 + $0x128] sm:$0xff]
  %v132 = vld [vmem:[%s1 + $0x130] sm:$0xff]
  %v133 = vld [vmem:[%s1 + $0x138] sm:$0xff]
  %v134 = vld [vmem:[%s1 + $0x140] sm:$0xff]
  %v135 = vld [vmem:[%s1 + $0x148] sm:$0xff]
  %v136 = vld [vmem:[%s1 + $0x150] sm:$0xff]
  %v137 = vld [vmem:[%s1 + $0x158] sm:$0xff]
  %v138 = vld [vmem:[%s1 + $0x160] sm:$0xff]
  %v139 = vld [vmem:[%s1 + $0x168] sm:$0xff]
  %v140 = vld [vmem:[%s1 + $0x170] sm:$0xff]
  %v141 = vld [vmem:[%s1 + $0x178] sm:$0xff]
  %v142 = vld [vmem:[%s1 + $0x180] sm:$0xff]
  %v143 = vld [vmem:[%s1 + $0x188] sm:$0xff]
  %v144 = vld [vmem:[%s1 + $0x190] sm:$0xff]
  %v145 = vld [vmem:[%s1 + $0x198] sm:$0xff]
  %v146 = vld [vmem:[%s1 + $0x1a0] sm:$0xff]
  %v147 = vld [vmem:[%s1 + $0x1a8] sm:$0xff]
  %v148 = vld [vmem:[%s1 + $0x1b0] sm:$0xff]
  %v149 = vld [vmem:[%s1 + $0x1b8] sm:$0xff]
  %v150 = vld [vmem:[%s1 + $0x1c0] sm:$0xff]
  %v151 = vld [vmem:[%s1 + $0x1c8] sm:$0xff]
  %v152 = vld [vmem:[%s1 + $0x1d0] sm:$0xff]
  %v153 = vld [vmem:[%s1 + $0x1d8] sm:$0xff]
  %v154 = vld [vmem:[%s1 + $0x1e0] sm:$0xff]
  %v155 = vld [vmem:[%s1 + $0x1e8] sm:$0xff]
  %v156 = vld [vmem:[%s1 + $0x1f0] sm:$0xff]
  %v157 = vld [vmem:[%s1 + $0x1f8] sm:$0xff]
  %v158 = vld [vmem:[%s1 + $0x200] sm:$0xff]
  %v159 = vld [vmem:[%s1 + $0x208] sm:$0xff]
  %v160 = vld [vmem:[%s1 + $0x210] sm:$0xff]
  %v161 = vld [vmem:[%s1 + $0x218] sm:$0xff]
  %v162 = vld [vmem:[%s1 + $0x220] sm:$0xff]
  %v163 = vld [vmem:[%s1 + $0x228] sm:$0xff]
  %v164 = vld [vmem:[%s1 + $0x230] sm:$0xff]
  %v165 = vld [vmem:[%s1 + $0x238] sm:$0xff]
  %v166 = vld [vmem:[%s1 + $0x240] sm:$0xff]
  %v167 = vld [vmem:[%s1 + $0x248] sm:$0xff]
  %v168 = vld [vmem:[%s1 + $0x250] sm:$0xff]
  %v169 = vld [vmem:[%s1 + $0x258] sm:$0xff]
  %v170 = vld [vmem:[%s1 + $0x260] sm:$0xff]
  %v171 = vld [vmem:[%s1 + $0x268] sm:$0xff]
  %v172 = vld [vmem:[%s1 + $0x270] sm:$0xff]
  %v173 = vld [vmem:[%s1 + $0x278] sm:$0xff]
  %v174 = vld [vmem:[%s2] sm:$0x1]
  %v176 = vlaneseq
  %v177 = vshrl.u32 %v176, 7
  %v178 = vsub.s32 0, %v177
  %v179 = vrot.slane %v174, %v178
  %181 = vmatprep.subr.mxu0 0.0
  %182 = vmatpush1.msra.mxu0 %v94
  %183 = vmatprep.subr.mxu0 0.0
  %184 = vmatpush1.msra.mxu0 %v95
  %185 = vmatprep.subr.mxu0 0.0
  %186 = vmatpush1.msra.mxu0 %v96
  %187 = vmatprep.subr.mxu0 0.0
  %188 = vmatpush1.msra.mxu0 %v97
  %189 = vmatprep.subr.mxu0 0.0
  %190 = vmatpush1.msra.mxu0 %v98
  %191 = vmatprep.subr.mxu0 0.0
  %192 = vmatpush1.msra.mxu0 %v99
  %193 = vmatprep.subr.mxu0 0.0
  %194 = vmatpush1.msra.mxu0 %v100
  %195 = vmatprep.subr.mxu0 0.0
  %196 = vmatpush1.msra.mxu0 %v101
  %197 = vmatprep.subr.mxu0 0.0
  %198 = vmatpush1.msra.mxu0 %v102
  %199 = vmatprep.subr.mxu0 0.0
  %200 = vmatpush1.msra.mxu0 %v103
  %201 = vmatprep.subr.mxu0 0.0
  %202 = vmatpush1.msra.mxu0 %v104
  %203 = vmatprep.subr.mxu0 0.0
  %204 = vmatpush1.msra.mxu0 %v105
  %205 = vmatprep.subr.mxu0 0.0
  %206 = vmatpush1.msra.mxu0 %v106
  %207 = vmatprep.subr.mxu0 0.0
  %208 = vmatpush1.msra.mxu0 %v107
  %209 = vmatprep.subr.mxu0 0.0
  %210 = vmatpush1.msra.mxu0 %v108
  %211 = vmatprep.subr.mxu0 0.0
  %212 = vmatpush1.msra.mxu0 %v109
  %213 = vmatprep.subr.mxu0 0.0
  %214 = vmatpush1.msra.mxu0 %v110
  %215 = vmatprep.subr.mxu0 0.0
  %216 = vmatpush1.msra.mxu0 %v111
  %217 = vmatprep.subr.mxu0 0.0
  %218 = vmatpush1.msra.mxu0 %v112
  %219 = vmatprep.subr.mxu0 0.0
  %220 = vmatpush1.msra.mxu0 %v113
  %221 = vmatprep.subr.mxu0 0.0
  %222 = vmatpush1.msra.mxu0 %v114
  %223 = vmatprep.subr.mxu0 0.0
  %224 = vmatpush1.msra.mxu0 %v115
  %225 = vmatprep.subr.mxu0 0.0
  %226 = vmatpush1.msra.mxu0 %v116
  %227 = vmatprep.subr.mxu0 0.0
  %228 = vmatpush1.msra.mxu0 %v117
  %229 = vmatprep.subr.mxu0 0.0
  %230 = vmatpush1.msra.mxu0 %v118
  %231 = vmatprep.subr.mxu0 0.0
  %232 = vmatpush1.msra.mxu0 %v119
  %233 = vmatprep.subr.mxu0 0.0
  %234 = vmatpush1.msra.mxu0 %v120
  %235 = vmatprep.subr.mxu0 0.0
  %236 = vmatpush1.msra.mxu0 %v121
  %237 = vmatprep.subr.mxu0 0.0
  %238 = vmatpush1.msra.mxu0 %v122
  %239 = vmatprep.subr.mxu0 0.0
  %240 = vmatpush1.msra.mxu0 %v123
  %241 = vmatprep.subr.mxu0 0.0
  %242 = vmatpush1.msra.mxu0 %v124
  %243 = vmatprep.subr.mxu0 0.0
  %244 = vmatpush1.msra.mxu0 %v125
  %245 = vmatprep.mubr.f32.mxu0 %v15
  %246 = vmatmul.mubr.f32.gmra.mrb[0].mxu0 %v14
  %v247 = vpop.f32.mrb[0].mxu0
  %v248 = vadd.f32 %v179, %v247
  %v249 = vpop.f32.mrb[0].mxu0
  %250 = vmatprep.mubr.f32.mxu0 %v20
  %251 = vmatmul.mubr.f32.gmra.mrb[0].mxu0 %v19
  %v252 = vpop.f32.mrb[0].mxu0
  %v253 = vadd.f32 %v179, %v252
  %v254 = vpop.f32.mrb[0].mxu0
  %255 = vmatprep.mubr.f32.mxu0 %v25
  %256 = vmatmul.mubr.f32.gmra.mrb[0].mxu0 %v24
  %v257 = vpop.f32.mrb[0].mxu0
  %v258 = vadd.f32 %v179, %v257
  %v259 = vpop.f32.mrb[0].mxu0
  %260 = vmatprep.mubr.f32.mxu0 %v30
  %261 = vmatmul.mubr.f32.gmra.mrb[0].mxu0 %v29
  %v262 = vpop.f32.mrb[0].mxu0
  %v263 = vadd.f32 %v179, %v262
  %v264 = vpop.f32.mrb[0].mxu0
  %265 = vmatprep.mubr.f32.mxu0 %v35
  %266 = vmatmul.mubr.f32.gmra.mrb[0].mxu0 %v34
  %v267 = vpop.f32.mrb[0].mxu0
  %v268 = vadd.f32 %v179, %v267
  %v269 = vpop.f32.mrb[0].mxu0
  %270 = vmatprep.mubr.f32.mxu0 %v40
  %271 = vmatmul.mubr.f32.gmra.mrb[0].mxu0 %v39
  %v272 = vpop.f32.mrb[0].mxu0
  %v273 = vadd.f32 %v179, %v272
  %v274 = vpop.f32.mrb[0].mxu0
  %275 = vmatprep.mubr.f32.mxu0 %v45
  %276 = vmatmul.mubr.f32.gmra.mrb[0].mxu0 %v44
  %v277 = vpop.f32.mrb[0].mxu0
  %v278 = vadd.f32 %v179, %v277
  %v279 = vpop.f32.mrb[0].mxu0
  %280 = vmatprep.mubr.f32.mxu0 %v50
  %281 = vmatmul.mubr.f32.gmra.mrb[0].mxu0 %v49
  %v282 = vpop.f32.mrb[0].mxu0
  %v283 = vadd.f32 %v179, %v282
  %v284 = vpop.f32.mrb[0].mxu0
  %285 = vmatprep.mubr.f32.mxu0 %v55
  %286 = vmatmul.mubr.f32.gmra.mrb[0].mxu0 %v54
  %v287 = vpop.f32.mrb[0].mxu0
  %v288 = vadd.f32 %v179, %v287
  %v289 = vpop.f32.mrb[0].mxu0
  %290 = vmatprep.mubr.f32.mxu0 %v60
  %291 = vmatmul.mubr.f32.gmra.mrb[0].mxu0 %v59
  %v292 = vpop.f32.mrb[0].mxu0
  %v293 = vadd.f32 %v179, %v292
  %v294 = vpop.f32.mrb[0].mxu0
  %295 = vmatprep.mubr.f32.mxu0 %v65
  %296 = vmatmul.mubr.f32.gmra.mrb[0].mxu0 %v64
  %v297 = vpop.f32.mrb[0].mxu0
  %v298 = vadd.f32 %v179, %v297
  %v299 = vpop.f32.mrb[0].mxu0
  %300 = vmatprep.mubr.f32.mxu0 %v70
  %301 = vmatmul.mubr.f32.gmra.mrb[0].mxu0 %v69
  %v302 = vpop.f32.mrb[0].mxu0
  %v303 = vadd.f32 %v179, %v302
  %v304 = vpop.f32.mrb[0].mxu0
  %305 = vmatprep.mubr.f32.mxu0 %v75
  %306 = vmatmul.mubr.f32.gmra.mrb[0].mxu0 %v74
  %v307 = vpop.f32.mrb[0].mxu0
  %v308 = vadd.f32 %v179, %v307
  %v309 = vpop.f32.mrb[0].mxu0
  %310 = vmatprep.mubr.f32.mxu0 %v80
  %311 = vmatmul.mubr.f32.gmra.mrb[0].mxu0 %v79
  %v312 = vpop.f32.mrb[0].mxu0
  %v313 = vadd.f32 %v179, %v312
  %v314 = vpop.f32.mrb[0].mxu0
  %315 = vmatprep.mubr.f32.mxu0 %v85
  %316 = vmatmul.mubr.f32.gmra.mrb[0].mxu0 %v84
  %v317 = vpop.f32.mrb[0].mxu0
  %v318 = vadd.f32 %v179, %v317
  %v319 = vpop.f32.mrb[0].mxu0
  %320 = vmatprep.mubr.f32.mxu0 %v90
  %321 = vmatmul.mubr.f32.gmra.mrb[0].mxu0 %v89
  %v322 = vpop.f32.mrb[0].mxu0
  %v323 = vadd.f32 %v179, %v322
  %v324 = vpop.f32.mrb[0].mxu0
  %325 = vdwg.mxu0
  %326 = vmatprep.subr.mxu0 0.0
  %327 = vmatpush1.msra.mxu0 %v126
  %328 = vmatprep.subr.mxu0 0.0
  %329 = vmatpush1.msra.mxu0 %v127
  %330 = vmatprep.subr.mxu0 0.0
  %331 = vmatpush1.msra.mxu0 %v128
  %332 = vmatprep.subr.mxu0 0.0
  %333 = vmatpush1.msra.mxu0 %v129
  %334 = vmatprep.subr.mxu0 0.0
  %335 = vmatpush1.msra.mxu0 %v130
  %336 = vmatprep.subr.mxu0 0.0
  %337 = vmatpush1.msra.mxu0 %v131
  %338 = vmatprep.subr.mxu0 0.0
  %339 = vmatpush1.msra.mxu0 %v132
  %340 = vmatprep.subr.mxu0 0.0
  %341 = vmatpush1.msra.mxu0 %v133
  %342 = vmatprep.subr.mxu0 0.0
  %343 = vmatpush1.msra.mxu0 %v134
  %344 = vmatprep.subr.mxu0 0.0
  %345 = vmatpush1.msra.mxu0 %v135
  %346 = vmatprep.subr.mxu0 0.0
  %347 = vmatpush1.msra.mxu0 %v136
  %348 = vmatprep.subr.mxu0 0.0
  %349 = vmatpush1.msra.mxu0 %v137
  %350 = vmatprep.subr.mxu0 0.0
  %351 = vmatpush1.msra.mxu0 %v138
  %352 = vmatprep.subr.mxu0 0.0
  %353 = vmatpush1.msra.mxu0 %v139
  %354 = vmatprep.subr.mxu0 0.0
  %355 = vmatpush1.msra.mxu0 %v140
  %356 = vmatprep.subr.mxu0 0.0
  %357 = vmatpush1.msra.mxu0 %v141
  %358 = vmatprep.subr.mxu0 0.0
  %359 = vmatpush1.msra.mxu0 %v142
  %360 = vmatprep.subr.mxu0 0.0
  %361 = vmatpush1.msra.mxu0 %v143
  %362 = vmatprep.subr.mxu0 0.0
  %363 = vmatpush1.msra.mxu0 %v144
  %364 = vmatprep.subr.mxu0 0.0
  %365 = vmatpush1.msra.mxu0 %v145
  %366 = vmatprep.subr.mxu0 0.0
  %367 = vmatpush1.msra.mxu0 %v146
  %368 = vmatprep.subr.mxu0 0.0
  %369 = vmatpush1.msra.mxu0 %v147
  %370 = vmatprep.subr.mxu0 0.0
  %371 = vmatpush1.msra.mxu0 %v148
  %372 = vmatprep.subr.mxu0 0.0
  %373 = vmatpush1.msra.mxu0 %v149
  %374 = vmatprep.subr.mxu0 0.0
  %375 = vmatpush1.msra.mxu0 %v150
  %376 = vmatprep.subr.mxu0 0.0
  %377 = vmatpush1.msra.mxu0 %v151
  %378 = vmatprep.subr.mxu0 0.0
  %379 = vmatpush1.msra.mxu0 %v152
  %380 = vmatprep.subr.mxu0 0.0
  %381 = vmatpush1.msra.mxu0 %v153
  %382 = vmatprep.subr.mxu0 0.0
  %383 = vmatpush1.msra.mxu0 %v154
  %384 = vmatprep.subr.mxu0 0.0
  %385 = vmatpush1.msra.mxu0 %v155
  %386 = vmatprep.subr.mxu0 0.0
  %387 = vmatpush1.msra.mxu0 %v156
  %388 = vmatprep.subr.mxu0 0.0
  %389 = vmatpush1.msra.mxu0 %v157
  %390 = vmatprep.mubr.f32.mxu0 %v17
  %391 = vmatmul.mubr.f32.gmra.mrb[0].mxu0 %v16
  %v392 = vpop.f32.mrb[0].mxu0
  %v393 = vadd.f32 %v248, %v392
  %v394 = vpop.f32.mrb[0].mxu0
  %395 = vmatprep.mubr.f32.mxu0 %v22
  %396 = vmatmul.mubr.f32.gmra.mrb[0].mxu0 %v21
  %v397 = vpop.f32.mrb[0].mxu0
  %v398 = vadd.f32 %v253, %v397
  %v399 = vpop.f32.mrb[0].mxu0
  %400 = vmatprep.mubr.f32.mxu0 %v27
  %401 = vmatmul.mubr.f32.gmra.mrb[0].mxu0 %v26
  %v402 = vpop.f32.mrb[0].mxu0
  %v403 = vadd.f32 %v258, %v402
  %v404 = vpop.f32.mrb[0].mxu0
  %405 = vmatprep.mubr.f32.mxu0 %v32
  %406 = vmatmul.mubr.f32.gmra.mrb[0].mxu0 %v31
  %v407 = vpop.f32.mrb[0].mxu0
  %v408 = vadd.f32 %v263, %v407
  %v409 = vpop.f32.mrb[0].mxu0
  %410 = vmatprep.mubr.f32.mxu0 %v37
  %411 = vmatmul.mubr.f32.gmra.mrb[0].mxu0 %v36
  %v412 = vpop.f32.mrb[0].mxu0
  %v413 = vadd.f32 %v268, %v412
  %v414 = vpop.f32.mrb[0].mxu0
  %415 = vmatprep.mubr.f32.mxu0 %v42
  %416 = vmatmul.mubr.f32.gmra.mrb[0].mxu0 %v41
  %v417 = vpop.f32.mrb[0].mxu0
  %v418 = vadd.f32 %v273, %v417
  %v419 = vpop.f32.mrb[0].mxu0
  %420 = vmatprep.mubr.f32.mxu0 %v47
  %421 = vmatmul.mubr.f32.gmra.mrb[0].mxu0 %v46
  %v422 = vpop.f32.mrb[0].mxu0
  %v423 = vadd.f32 %v278, %v422
  %v424 = vpop.f32.mrb[0].mxu0
  %425 = vmatprep.mubr.f32.mxu0 %v52
  %426 = vmatmul.mubr.f32.gmra.mrb[0].mxu0 %v51
  %v427 = vpop.f32.mrb[0].mxu0
  %v428 = vadd.f32 %v283, %v427
  %v429 = vpop.f32.mrb[0].mxu0
  %430 = vmatprep.mubr.f32.mxu0 %v57
  %431 = vmatmul.mubr.f32.gmra.mrb[0].mxu0 %v56
  %v432 = vpop.f32.mrb[0].mxu0
  %v433 = vadd.f32 %v288, %v432
  %v434 = vpop.f32.mrb[0].mxu0
  %435 = vmatprep.mubr.f32.mxu0 %v62
  %436 = vmatmul.mubr.f32.gmra.mrb[0].mxu0 %v61
  %v437 = vpop.f32.mrb[0].mxu0
  %v438 = vadd.f32 %v293, %v437
  %v439 = vpop.f32.mrb[0].mxu0
  %440 = vmatprep.mubr.f32.mxu0 %v67
  %441 = vmatmul.mubr.f32.gmra.mrb[0].mxu0 %v66
  %v442 = vpop.f32.mrb[0].mxu0
  %v443 = vadd.f32 %v298, %v442
  %v444 = vpop.f32.mrb[0].mxu0
  %445 = vmatprep.mubr.f32.mxu0 %v72
  %446 = vmatmul.mubr.f32.gmra.mrb[0].mxu0 %v71
  %v447 = vpop.f32.mrb[0].mxu0
  %v448 = vadd.f32 %v303, %v447
  %v449 = vpop.f32.mrb[0].mxu0
  %450 = vmatprep.mubr.f32.mxu0 %v77
  %451 = vmatmul.mubr.f32.gmra.mrb[0].mxu0 %v76
  %v452 = vpop.f32.mrb[0].mxu0
  %v453 = vadd.f32 %v308, %v452
  %v454 = vpop.f32.mrb[0].mxu0
  %455 = vmatprep.mubr.f32.mxu0 %v82
  %456 = vmatmul.mubr.f32.gmra.mrb[0].mxu0 %v81
  %v457 = vpop.f32.mrb[0].mxu0
  %v458 = vadd.f32 %v313, %v457
  %v459 = vpop.f32.mrb[0].mxu0
  %460 = vmatprep.mubr.f32.mxu0 %v87
  %461 = vmatmul.mubr.f32.gmra.mrb[0].mxu0 %v86
  %v462 = vpop.f32.mrb[0].mxu0
  %v463 = vadd.f32 %v318, %v462
  %v464 = vpop.f32.mrb[0].mxu0
  %465 = vmatprep.mubr.f32.mxu0 %v92
  %466 = vmatmul.mubr.f32.gmra.mrb[0].mxu0 %v91
  %v467 = vpop.f32.mrb[0].mxu0
  %v468 = vadd.f32 %v323, %v467
  %v469 = vpop.f32.mrb[0].mxu0
  %470 = vdwg.mxu0
  %471 = vmatprep.subr.mxu0 0.0
  %472 = vmatpush1.msra.mxu0 %v158
  %473 = vmatprep.subr.mxu0 0.0
  %474 = vmatpush1.msra.mxu0 %v159
  %475 = vmatprep.subr.mxu0 0.0
  %476 = vmatpush1.msra.mxu0 %v160
  %477 = vmatprep.subr.mxu0 0.0
  %478 = vmatpush1.msra.mxu0 %v161
  %479 = vmatprep.subr.mxu0 0.0
  %480 = vmatpush1.msra.mxu0 %v162
  %481 = vmatprep.subr.mxu0 0.0
  %482 = vmatpush1.msra.mxu0 %v163
  %483 = vmatprep.subr.mxu0 0.0
  %484 = vmatpush1.msra.mxu0 %v164
  %485 = vmatprep.subr.mxu0 0.0
  %486 = vmatpush1.msra.mxu0 %v165
  %487 = vmatprep.subr.mxu0 0.0
  %488 = vmatpush1.msra.mxu0 %v166
  %489 = vmatprep.subr.mxu0 0.0
  %490 = vmatpush1.msra.mxu0 %v167
  %491 = vmatprep.subr.mxu0 0.0
  %492 = vmatpush1.msra.mxu0 %v168
  %493 = vmatprep.subr.mxu0 0.0
  %494 = vmatpush1.msra.mxu0 %v169
  %495 = vmatprep.subr.mxu0 0.0
  %496 = vmatpush1.msra.mxu0 %v170
  %497 = vmatprep.subr.mxu0 0.0
  %498 = vmatpush1.msra.mxu0 %v171
  %499 = vmatprep.subr.mxu0 0.0
  %500 = vmatpush1.msra.mxu0 %v172
  %501 = vmatprep.subr.mxu0 0.0
  %502 = vmatpush1.msra.mxu0 %v173
  %503 = vmatprep.subr.mxu0 0.0
  %504 = vmatpush1.msra.mxu0 0.0
  %505 = vmatprep.subr.mxu0 0.0
  %506 = vmatpush1.msra.mxu0 0.0
  %507 = vmatprep.subr.mxu0 0.0
  %508 = vmatpush1.msra.mxu0 0.0
  %509 = vmatprep.subr.mxu0 0.0
  %510 = vmatpush1.msra.mxu0 0.0
  %511 = vmatprep.subr.mxu0 0.0
  %512 = vmatpush1.msra.mxu0 0.0
  %513 = vmatprep.subr.mxu0 0.0
  %514 = vmatpush1.msra.mxu0 0.0
  %515 = vmatprep.subr.mxu0 0.0
  %516 = vmatpush1.msra.mxu0 0.0
  %517 = vmatprep.subr.mxu0 0.0
  %518 = vmatpush1.msra.mxu0 0.0
  %519 = vmatprep.subr.mxu0 0.0
  %520 = vmatpush1.msra.mxu0 0.0
  %521 = vmatprep.subr.mxu0 0.0
  %522 = vmatpush1.msra.mxu0 0.0
  %523 = vmatprep.subr.mxu0 0.0
  %524 = vmatpush1.msra.mxu0 0.0
  %525 = vmatprep.subr.mxu0 0.0
  %526 = vmatpush1.msra.mxu0 0.0
  %527 = vmatprep.subr.mxu0 0.0
  %528 = vmatpush1.msra.mxu0 0.0
  %529 = vmatprep.subr.mxu0 0.0
  %530 = vmatpush1.msra.mxu0 0.0
  %531 = vmatprep.subr.mxu0 0.0
  %532 = vmatpush1.msra.mxu0 0.0
  %533 = vmatprep.subr.mxu0 0.0
  %534 = vmatpush1.msra.mxu0 0.0
  %535 = vmatprep.mubr.f32.mxu0 0.0
  %536 = vmatmul.mubr.f32.gmra.mrb[0].mxu0 %v18
  %v537 = vpop.f32.mrb[0].mxu0
  %v538 = vadd.f32 %v393, %v537
  %v539 = vpop.f32.mrb[0].mxu0
  %540 = vmatprep.mubr.f32.mxu0 0.0
  %541 = vmatmul.mubr.f32.gmra.mrb[0].mxu0 %v23
  %v542 = vpop.f32.mrb[0].mxu0
  %v543 = vadd.f32 %v398, %v542
  %v544 = vpop.f32.mrb[0].mxu0
  %545 = vmatprep.mubr.f32.mxu0 0.0
  %546 = vmatmul.mubr.f32.gmra.mrb[0].mxu0 %v28
  %v547 = vpop.f32.mrb[0].mxu0
  %v548 = vadd.f32 %v403, %v547
  %v549 = vpop.f32.mrb[0].mxu0
  %550 = vmatprep.mubr.f32.mxu0 0.0
  %551 = vmatmul.mubr.f32.gmra.mrb[0].mxu0 %v33
  %v552 = vpop.f32.mrb[0].mxu0
  %v553 = vadd.f32 %v408, %v552
  %v554 = vpop.f32.mrb[0].mxu0
  %555 = vmatprep.mubr.f32.mxu0 0.0
  %556 = vmatmul.mubr.f32.gmra.mrb[0].mxu0 %v38
  %v557 = vpop.f32.mrb[0].mxu0
  %v558 = vadd.f32 %v413, %v557
  %v559 = vpop.f32.mrb[0].mxu0
  %560 = vmatprep.mubr.f32.mxu0 0.0
  %561 = vmatmul.mubr.f32.gmra.mrb[0].mxu0 %v43
  %v562 = vpop.f32.mrb[0].mxu0
  %v563 = vadd.f32 %v418, %v562
  %v564 = vpop.f32.mrb[0].mxu0
  %565 = vmatprep.mubr.f32.mxu0 0.0
  %566 = vmatmul.mubr.f32.gmra.mrb[0].mxu0 %v48
  %v567 = vpop.f32.mrb[0].mxu0
  %v568 = vadd.f32 %v423, %v567
  %v569 = vpop.f32.mrb[0].mxu0
  %570 = vmatprep.mubr.f32.mxu0 0.0
  %571 = vmatmul.mubr.f32.gmra.mrb[0].mxu0 %v53
  %v572 = vpop.f32.mrb[0].mxu0
  %v573 = vadd.f32 %v428, %v572
  %v574 = vpop.f32.mrb[0].mxu0
  %575 = vmatprep.mubr.f32.mxu0 0.0
  %576 = vmatmul.mubr.f32.gmra.mrb[0].mxu0 %v58
  %v577 = vpop.f32.mrb[0].mxu0
  %v578 = vadd.f32 %v433, %v577
  %v579 = vpop.f32.mrb[0].mxu0
  %580 = vmatprep.mubr.f32.mxu0 0.0
  %581 = vmatmul.mubr.f32.gmra.mrb[0].mxu0 %v63
  %v582 = vpop.f32.mrb[0].mxu0
  %v583 = vadd.f32 %v438, %v582
  %v584 = vpop.f32.mrb[0].mxu0
  %585 = vmatprep.mubr.f32.mxu0 0.0
  %586 = vmatmul.mubr.f32.gmra.mrb[0].mxu0 %v68
  %v587 = vpop.f32.mrb[0].mxu0
  %v588 = vadd.f32 %v443, %v587
  %v589 = vpop.f32.mrb[0].mxu0
  %590 = vmatprep.mubr.f32.mxu0 0.0
  %591 = vmatmul.mubr.f32.gmra.mrb[0].mxu0 %v73
  %v592 = vpop.f32.mrb[0].mxu0
  %v593 = vadd.f32 %v448, %v592
  %v594 = vpop.f32.mrb[0].mxu0
  %595 = vmatprep.mubr.f32.mxu0 0.0
  %596 = vmatmul.mubr.f32.gmra.mrb[0].mxu0 %v78
  %v597 = vpop.f32.mrb[0].mxu0
  %v598 = vadd.f32 %v453, %v597
  %v599 = vpop.f32.mrb[0].mxu0
  %600 = vmatprep.mubr.f32.mxu0 0.0
  %601 = vmatmul.mubr.f32.gmra.mrb[0].mxu0 %v83
  %v602 = vpop.f32.mrb[0].mxu0
  %v603 = vadd.f32 %v458, %v602
  %v604 = vpop.f32.mrb[0].mxu0
  %605 = vmatprep.mubr.f32.mxu0 0.0
  %606 = vmatmul.mubr.f32.gmra.mrb[0].mxu0 %v88
  %v607 = vpop.f32.mrb[0].mxu0
  %v608 = vadd.f32 %v463, %v607
  %v609 = vpop.f32.mrb[0].mxu0
  %610 = vmatprep.mubr.f32.mxu0 0.0
  %611 = vmatmul.mubr.f32.gmra.mrb[0].mxu0 %v93
  %v612 = vpop.f32.mrb[0].mxu0
  %v613 = vadd.f32 %v468, %v612
  %v614 = vpop.f32.mrb[0].mxu0
  %615 = vdwg.mxu0
  %v616 = vmax.f32 %v538, 0.0
  %v617 = vmax.f32 %v543, 0.0
  %v618 = vmax.f32 %v548, 0.0
  %v619 = vmax.f32 %v553, 0.0
  %v620 = vmax.f32 %v558, 0.0
  %v621 = vmax.f32 %v563, 0.0
  %v622 = vmax.f32 %v568, 0.0
  %v623 = vmax.f32 %v573, 0.0
  %v624 = vmax.f32 %v578, 0.0
  %v625 = vmax.f32 %v583, 0.0
  %v626 = vmax.f32 %v588, 0.0
  %v627 = vmax.f32 %v593, 0.0
  %v628 = vmax.f32 %v598, 0.0
  %v629 = vmax.f32 %v603, 0.0
  %v630 = vmax.f32 %v608, 0.0
  %v631 = vmax.f32 %v613, 0.0
  %632 = vst [vmem:[%s3] sm:$0xff] %v616
  %633 = vst [vmem:[%s3 + $0x8] sm:$0xff] %v617
  %634 = vst [vmem:[%s3 + $0x10] sm:$0xff] %v618
  %635 = vst [vmem:[%s3 + $0x18] sm:$0xff] %v619
  %636 = vst [vmem:[%s3 + $0x20] sm:$0xff] %v620
  %637 = vst [vmem:[%s3 + $0x28] sm:$0xff] %v621
  %638 = vst [vmem:[%s3 + $0x30] sm:$0xff] %v622
  %639 = vst [vmem:[%s3 + $0x38] sm:$0xff] %v623
  %640 = vst [vmem:[%s3 + $0x40] sm:$0xff] %v624
  %641 = vst [vmem:[%s3 + $0x48] sm:$0xff] %v625
  %642 = vst [vmem:[%s3 + $0x50] sm:$0xff] %v626
  %643 = vst [vmem:[%s3 + $0x58] sm:$0xff] %v627
  %644 = vst [vmem:[%s3 + $0x60] sm:$0xff] %v628
  %645 = vst [vmem:[%s3 + $0x68] sm:$0xff] %v629
  %646 = vst [vmem:[%s3 + $0x70] sm:$0xff] %v630
  %647 = vst [vmem:[%s3 + $0x78] sm:$0xff] %v631
  // Predicated region
  $region14: #{prompt_encoder.8} parent=0 // pred_check
    _
  $region15: #{prompt_encoder.8} parent=0 // pred_check_branch
    %649 = sbr.rel (0) target = $region17
  $region16: #{prompt_encoder.8} parent=0 // pred_region
    _
  $region17: #{prompt_encoder.8} parent=0 // pred_fallthru
    _
  // Predicated region
  $region18: #{prompt_encoder.8} parent=0 // pred_check
    _
  $region19: #{prompt_encoder.8} parent=0 // pred_check_branch
    %651 = sbr.rel (0) target = $region21
  $region20: #{prompt_encoder.8} parent=0 // pred_region
    _
  $region21: #{prompt_encoder.8} parent=0 // pred_fallthru
    _

// kernel: tile.13
$region0: #{tile.13}
  #allocation0 [shape = 's32[1]{0}', space=sflag, size = 0x4, scoped, tag = 'scoped memory for tile.13']
  %s0 = inlined_call_operand.vmem [shape: f32[128], index: 0, kind: input, shape index: {}]
  %s1 = inlined_call_operand.vmem [shape: f32[4,128], index: 1, kind: output, shape index: {}]
  // Predicated region
  $region2: #{tile.13} parent=0 // pred_check
    _
  $region3: #{tile.13} parent=0 // pred_check_branch
    %3 = sbr.rel (0) target = $region5
  $region4: #{tile.13} parent=0 // pred_region
    _
  $region5: #{tile.13} parent=0 // pred_fallthru
    _
  %v4 = vld [vmem:[%s0] ss:$0 sm:$0xff]
  %5 = vst [vmem:[%s1] sm:$0xf] %v4

// kernel: prompt_encoder.9
$region0: #{prompt_encoder.9}
  #allocation0 [shape = 'u32[]', space=smem, size = 0x4, offset = 0x4, fixed_abs, tag = 'smem constant byte address 0x4 - core index']
  #allocation1 [shape = 'u32[144,128]{1,0:T(1,128)}', space=vmem, size = 0x12000, scoped, tag = 'internal scratch']
  %s0 = inlined_call_operand.vmem [shape: f32[32,1152], index: 0, kind: input, shape index: {}]
  %s1 = inlined_call_operand.vmem [shape: f32[1152,256], index: 1, kind: input, shape index: {}]
  %s2 = inlined_call_operand.vmem [shape: f32[1,256], index: 2, kind: input, shape index: {}]
  %s3 = inlined_call_operand.vmem [shape: f32[32,256], index: 3, kind: output, shape index: {}]
  %s4 = sld [smem:[#allocation0]]
  $region22: #{prompt_encoder.9} parent=0
    _
  %s6 = ssub.s32 1, %s4
  %s7 = scalar_select 0, %s6, %s4
  // Predicated region
  $region2: #{prompt_encoder.9} parent=0 // pred_check
    _
  $region3: #{prompt_encoder.9} parent=0 // pred_check_branch
    %9 = sbr.rel (0) target = $region5
  $region4: #{prompt_encoder.9} parent=0 // pred_region
    _
  $region5: #{prompt_encoder.9} parent=0 // pred_fallthru
    _
  // Predicated region
  $region6: #{prompt_encoder.9} parent=0 // pred_check
    _
  $region7: #{prompt_encoder.9} parent=0 // pred_check_branch
    %11 = sbr.rel (0) target = $region9
  $region8: #{prompt_encoder.9} parent=0 // pred_region
    _
  $region9: #{prompt_encoder.9} parent=0 // pred_fallthru
    _
  // Predicated region
  $region10: #{prompt_encoder.9} parent=0 // pred_check
    _
  $region11: #{prompt_encoder.9} parent=0 // pred_check_branch
    %13 = sbr.rel (0) target = $region13
  $region12: #{prompt_encoder.9} parent=0 // pred_region
    _
  $region13: #{prompt_encoder.9} parent=0 // pred_fallthru
    _
  %v14 = vld [vmem:[%s0] sm:$0xff]
  %v15 = vld [vmem:[%s0 + $0x8] sm:$0xff]
  %v16 = vld [vmem:[%s0 + $0x10] sm:$0xff]
  %v17 = vld [vmem:[%s0 + $0x18] sm:$0xff]
  %v18 = vld [vmem:[%s0 + $0x20] sm:$0xff]
  %v19 = vld [vmem:[%s0 + $0x28] sm:$0xff]
  %v20 = vld [vmem:[%s0 + $0x30] sm:$0xff]
  %v21 = vld [vmem:[%s0 + $0x38] sm:$0xff]
  %v22 = vld [vmem:[%s0 + $0x40] sm:$0xff]
  %v23 = vld [vmem:[%s0 + $0x48] sm:$0xff]
  %v24 = vld [vmem:[%s0 + $0x50] sm:$0xff]
  %v25 = vld [vmem:[%s0 + $0x58] sm:$0xff]
  %v26 = vld [vmem:[%s0 + $0x60] sm:$0xff]
  %v27 = vld [vmem:[%s0 + $0x68] sm:$0xff]
  %v28 = vld [vmem:[%s0 + $0x70] sm:$0xff]
  %v29 = vld [vmem:[%s0 + $0x78] sm:$0xff]
  %v30 = vld [vmem:[%s0 + $0x80] sm:$0xff]
  %v31 = vld [vmem:[%s0 + $0x88] sm:$0xff]
  %v32 = vld [vmem:[%s0 + $0x90] sm:$0xff]
  %v33 = vld [vmem:[%s0 + $0x98] sm:$0xff]
  %v34 = vld [vmem:[%s0 + $0xa0] sm:$0xff]
  %v35 = vld [vmem:[%s0 + $0xa8] sm:$0xff]
  %v36 = vld [vmem:[%s0 + $0xb0] sm:$0xff]
  %v37 = vld [vmem:[%s0 + $0xb8] sm:$0xff]
  %v38 = vld [vmem:[%s0 + $0xc0] sm:$0xff]
  %v39 = vld [vmem:[%s0 + $0xc8] sm:$0xff]
  %v40 = vld [vmem:[%s0 + $0xd0] sm:$0xff]
  %v41 = vld [vmem:[%s0 + $0xd8] sm:$0xff]
  %v42 = vld [vmem:[%s0 + $0xe0] sm:$0xff]
  %v43 = vld [vmem:[%s0 + $0xe8] sm:$0xff]
  %v44 = vld [vmem:[%s0 + $0xf0] sm:$0xff]
  %v45 = vld [vmem:[%s0 + $0xf8] sm:$0xff]
  %v46 = vld [vmem:[%s0 + $0x100] sm:$0xff]
  %v47 = vld [vmem:[%s0 + $0x108] sm:$0xff]
  %v48 = vld [vmem:[%s0 + $0x110] sm:$0xff]
  %v49 = vld [vmem:[%s0 + $0x118] sm:$0xff]
  %v50 = vld [vmem:[%s1] sm:$0xff]
  %v51 = vld [vmem:[%s1 + $0x8] sm:$0xff]
  %v52 = vld [vmem:[%s1 + $0x10] sm:$0xff]
  %v53 = vld [vmem:[%s1 + $0x18] sm:$0xff]
  %v54 = vld [vmem:[%s1 + $0x20] sm:$0xff]
  %v55 = vld [vmem:[%s1 + $0x28] sm:$0xff]
  %v56 = vld [vmem:[%s1 + $0x30] sm:$0xff]
  %v57 = vld [vmem:[%s1 + $0x38] sm:$0xff]
  %v58 = vld [vmem:[%s1 + $0x40] sm:$0xff]
  %v59 = vld [vmem:[%s1 + $0x48] sm:$0xff]
  %v60 = vld [vmem:[%s1 + $0x50] sm:$0xff]
  %v61 = vld [vmem:[%s1 + $0x58] sm:$0xff]
  %v62 = vld [vmem:[%s1 + $0x60] sm:$0xff]
  %v63 = vld [vmem:[%s1 + $0x68] sm:$0xff]
  %v64 = vld [vmem:[%s1 + $0x70] sm:$0xff]
  %v65 = vld [vmem:[%s1 + $0x78] sm:$0xff]
  %v66 = vld [vmem:[%s1 + $0x80] sm:$0xff]
  %v67 = vld [vmem:[%s1 + $0x88] sm:$0xff]
  %v68 = vld [vmem:[%s1 + $0x90] sm:$0xff]
  %v69 = vld [vmem:[%s1 + $0x98] sm:$0xff]
  %v70 = vld [vmem:[%s1 + $0xa0] sm:$0xff]
  %v71 = vld [vmem:[%s1 + $0xa8] sm:$0xff]
  %v72 = vld [vmem:[%s1 + $0xb0] sm:$0xff]
  %v73 = vld [vmem:[%s1 + $0xb8] sm:$0xff]
  %v74 = vld [vmem:[%s1 + $0xc0] sm:$0xff]
  %v75 = vld [vmem:[%s1 + $0xc8] sm:$0xff]
  %v76 = vld [vmem:[%s1 + $0xd0] sm:$0xff]
  %v77 = vld [vmem:[%s1 + $0xd8] sm:$0xff]
  %v78 = vld [vmem:[%s1 + $0xe0] sm:$0xff]
  %v79 = vld [vmem:[%s1 + $0xe8] sm:$0xff]
  %v80 = vld [vmem:[%s1 + $0xf0] sm:$0xff]
  %v81 = vld [vmem:[%s1 + $0xf8] sm:$0xff]
  %v82 = vld [vmem:[%s1 + $0x100] sm:$0xff]
  %v83 = vld [vmem:[%s1 + $0x108] sm:$0xff]
  %v84 = vld [vmem:[%s1 + $0x110] sm:$0xff]
  %v85 = vld [vmem:[%s1 + $0x118] sm:$0xff]
  %v86 = vld [vmem:[%s1 + $0x120] sm:$0xff]
  %v87 = vld [vmem:[%s1 + $0x128] sm:$0xff]
  %v88 = vld [vmem:[%s1 + $0x130] sm:$0xff]
  %v89 = vld [vmem:[%s1 + $0x138] sm:$0xff]
  %v90 = vld [vmem:[%s1 + $0x140] sm:$0xff]
  %v91 = vld [vmem:[%s1 + $0x148] sm:$0xff]
  %v92 = vld [vmem:[%s1 + $0x150] sm:$0xff]
  %v93 = vld [vmem:[%s1 + $0x158] sm:$0xff]
  %v94 = vld [vmem:[%s1 + $0x160] sm:$0xff]
  %v95 = vld [vmem:[%s1 + $0x168] sm:$0xff]
  %v96 = vld [vmem:[%s1 + $0x170] sm:$0xff]
  %v97 = vld [vmem:[%s1 + $0x178] sm:$0xff]
  %v98 = vld [vmem:[%s1 + $0x180] sm:$0xff]
  %v99 = vld [vmem:[%s1 + $0x188] sm:$0xff]
  %v100 = vld [vmem:[%s1 + $0x190] sm:$0xff]
  %v101 = vld [vmem:[%s1 + $0x198] sm:$0xff]
  %v102 = vld [vmem:[%s1 + $0x1a0] sm:$0xff]
  %v103 = vld [vmem:[%s1 + $0x1a8] sm:$0xff]
  %v104 = vld [vmem:[%s1 + $0x1b0] sm:$0xff]
  %v105 = vld [vmem:[%s1 + $0x1b8] sm:$0xff]
  %v106 = vld [vmem:[%s1 + $0x1c0] sm:$0xff]
  %v107 = vld [vmem:[%s1 + $0x1c8] sm:$0xff]
  %v108 = vld [vmem:[%s1 + $0x1d0] sm:$0xff]
  %v109 = vld [vmem:[%s1 + $0x1d8] sm:$0xff]
  %v110 = vld [vmem:[%s1 + $0x1e0] sm:$0xff]
  %v111 = vld [vmem:[%s1 + $0x1e8] sm:$0xff]
  %v112 = vld [vmem:[%s1 + $0x1f0] sm:$0xff]
  %v113 = vld [vmem:[%s1 + $0x1f8] sm:$0xff]
  %v114 = vld [vmem:[%s1 + $0x200] sm:$0xff]
  %v115 = vld [vmem:[%s1 + $0x208] sm:$0xff]
  %v116 = vld [vmem:[%s1 + $0x210] sm:$0xff]
  %v117 = vld [vmem:[%s1 + $0x218] sm:$0xff]
  %v118 = vld [vmem:[%s1 + $0x220] sm:$0xff]
  %v119 = vld [vmem:[%s1 + $0x228] sm:$0xff]
  %v120 = vld [vmem:[%s1 + $0x230] sm:$0xff]
  %v121 = vld [vmem:[%s1 + $0x238] sm:$0xff]
  %v122 = vld [vmem:[%s1 + $0x240] sm:$0xff]
  %v123 = vld [vmem:[%s1 + $0x248] sm:$0xff]
  %v124 = vld [vmem:[%s1 + $0x250] sm:$0xff]
  %v125 = vld [vmem:[%s1 + $0x258] sm:$0xff]
  %v126 = vld [vmem:[%s1 + $0x260] sm:$0xff]
  %v127 = vld [vmem:[%s1 + $0x268] sm:$0xff]
  %v128 = vld [vmem:[%s1 + $0x270] sm:$0xff]
  %v129 = vld [vmem:[%s1 + $0x278] sm:$0xff]
  %v130 = vld [vmem:[%s1 + $0x280] sm:$0xff]
  %v131 = vld [vmem:[%s1 + $0x288] sm:$0xff]
  %v132 = vld [vmem:[%s1 + $0x290] sm:$0xff]
  %v133 = vld [vmem:[%s1 + $0x298] sm:$0xff]
  %v134 = vld [vmem:[%s1 + $0x2a0] sm:$0xff]
  %v135 = vld [vmem:[%s1 + $0x2a8] sm:$0xff]
  %v136 = vld [vmem:[%s1 + $0x2b0] sm:$0xff]
  %v137 = vld [vmem:[%s1 + $0x2b8] sm:$0xff]
  %v138 = vld [vmem:[%s1 + $0x2c0] sm:$0xff]
  %v139 = vld [vmem:[%s1 + $0x2c8] sm:$0xff]
  %v140 = vld [vmem:[%s1 + $0x2d0] sm:$0xff]
  %v141 = vld [vmem:[%s1 + $0x2d8] sm:$0xff]
  %v142 = vld [vmem:[%s1 + $0x2e0] sm:$0xff]
  %v143 = vld [vmem:[%s1 + $0x2e8] sm:$0xff]
  %v144 = vld [vmem:[%s1 + $0x2f0] sm:$0xff]
  %v145 = vld [vmem:[%s1 + $0x2f8] sm:$0xff]
  %v146 = vld [vmem:[%s1 + $0x300] sm:$0xff]
  %v147 = vld [vmem:[%s1 + $0x308] sm:$0xff]
  %v148 = vld [vmem:[%s1 + $0x310] sm:$0xff]
  %v149 = vld [vmem:[%s1 + $0x318] sm:$0xff]
  %v150 = vld [vmem:[%s1 + $0x320] sm:$0xff]
  %v151 = vld [vmem:[%s1 + $0x328] sm:$0xff]
  %v152 = vld [vmem:[%s1 + $0x330] sm:$0xff]
  %v153 = vld [vmem:[%s1 + $0x338] sm:$0xff]
  %v154 = vld [vmem:[%s1 + $0x340] sm:$0xff]
  %v155 = vld [vmem:[%s1 + $0x348] sm:$0xff]
  %v156 = vld [vmem:[%s1 + $0x350] sm:$0xff]
  %v157 = vld [vmem:[%s1 + $0x358] sm:$0xff]
  %v158 = vld [vmem:[%s1 + $0x360] sm:$0xff]
  %v159 = vld [vmem:[%s1 + $0x368] sm:$0xff]
  %v160 = vld [vmem:[%s1 + $0x370] sm:$0xff]
  %v161 = vld [vmem:[%s1 + $0x378] sm:$0xff]
  %v162 = vld [vmem:[%s1 + $0x380] sm:$0xff]
  %v163 = vld [vmem:[%s1 + $0x388] sm:$0xff]
  %v164 = vld [vmem:[%s1 + $0x390] sm:$0xff]
  %v165 = vld [vmem:[%s1 + $0x398] sm:$0xff]
  %v166 = vld [vmem:[%s1 + $0x3a0] sm:$0xff]
  %v167 = vld [vmem:[%s1 + $0x3a8] sm:$0xff]
  %v168 = vld [vmem:[%s1 + $0x3b0] sm:$0xff]
  %v169 = vld [vmem:[%s1 + $0x3b8] sm:$0xff]
  %v170 = vld [vmem:[%s1 + $0x3c0] sm:$0xff]
  %v171 = vld [vmem:[%s1 + $0x3c8] sm:$0xff]
  %v172 = vld [vmem:[%s1 + $0x3d0] sm:$0xff]
  %v173 = vld [vmem:[%s1 + $0x3d8] sm:$0xff]
  %v174 = vld [vmem:[%s1 + $0x3e0] sm:$0xff]
  %v175 = vld [vmem:[%s1 + $0x3e8] sm:$0xff]
  %v176 = vld [vmem:[%s1 + $0x3f0] sm:$0xff]
  %v177 = vld [vmem:[%s1 + $0x3f8] sm:$0xff]
  %v178 = vld [vmem:[%s1 + $0x400] sm:$0xff]
  %v179 = vld [vmem:[%s1 + $0x408] sm:$0xff]
  %v180 = vld [vmem:[%s1 + $0x410] sm:$0xff]
  %v181 = vld [vmem:[%s1 + $0x418] sm:$0xff]
  %v182 = vld [vmem:[%s1 + $0x420] sm:$0xff]
  %v183 = vld [vmem:[%s1 + $0x428] sm:$0xff]
  %v184 = vld [vmem:[%s1 + $0x430] sm:$0xff]
  %v185 = vld [vmem:[%s1 + $0x438] sm:$0xff]
  %v186 = vld [vmem:[%s1 + $0x440] sm:$0xff]
  %v187 = vld [vmem:[%s1 + $0x448] sm:$0xff]
  %v188 = vld [vmem:[%s1 + $0x450] sm:$0xff]
  %v189 = vld [vmem:[%s1 + $0x458] sm:$0xff]
  %v190 = vld [vmem:[%s1 + $0x460] sm:$0xff]
  %v191 = vld [vmem:[%s1 + $0x468] sm:$0xff]
  %v192 = vld [vmem:[%s1 + $0x470] sm:$0xff]
  %v193 = vld [vmem:[%s1 + $0x478] sm:$0xff]
  %v194 = vld [vmem:[%s1 + $0x480] sm:$0xff]
  %v195 = vld [vmem:[%s1 + $0x488] sm:$0xff]
  %v196 = vld [vmem:[%s1 + $0x490] sm:$0xff]
  %v197 = vld [vmem:[%s1 + $0x498] sm:$0xff]
  %v198 = vld [vmem:[%s1 + $0x4a0] sm:$0xff]
  %v199 = vld [vmem:[%s1 + $0x4a8] sm:$0xff]
  %v200 = vld [vmem:[%s1 + $0x4b0] sm:$0xff]
  %v201 = vld [vmem:[%s1 + $0x4b8] sm:$0xff]
  %v202 = vld [vmem:[%s1 + $0x4c0] sm:$0xff]
  %v203 = vld [vmem:[%s1 + $0x4c8] sm:$0xff]
  %v204 = vld [vmem:[%s1 + $0x4d0] sm:$0xff]
  %v205 = vld [vmem:[%s1 + $0x4d8] sm:$0xff]
  %v206 = vld [vmem:[%s1 + $0x4e0] sm:$0xff]
  %v207 = vld [vmem:[%s1 + $0x4e8] sm:$0xff]
  %v208 = vld [vmem:[%s1 + $0x4f0] sm:$0xff]
  %v209 = vld [vmem:[%s1 + $0x4f8] sm:$0xff]
  %v210 = vld [vmem:[%s1 + $0x500] sm:$0xff]
  %v211 = vld [vmem:[%s1 + $0x508] sm:$0xff]
  %v212 = vld [vmem:[%s1 + $0x510] sm:$0xff]
  %v213 = vld [vmem:[%s1 + $0x518] sm:$0xff]
  %v214 = vld [vmem:[%s1 + $0x520] sm:$0xff]
  %v215 = vld [vmem:[%s1 + $0x528] sm:$0xff]
  %v216 = vld [vmem:[%s1 + $0x530] sm:$0xff]
  %v217 = vld [vmem:[%s1 + $0x538] sm:$0xff]
  %v218 = vld [vmem:[%s1 + $0x540] sm:$0xff]
  %v219 = vld [vmem:[%s1 + $0x548] sm:$0xff]
  %v220 = vld [vmem:[%s1 + $0x550] sm:$0xff]
  %v221 = vld [vmem:[%s1 + $0x558] sm:$0xff]
  %v222 = vld [vmem:[%s1 + $0x560] sm:$0xff]
  %v223 = vld [vmem:[%s1 + $0x568] sm:$0xff]
  %v224 = vld [vmem:[%s1 + $0x570] sm:$0xff]
  %v225 = vld [vmem:[%s1 + $0x578] sm:$0xff]
  %v226 = vld [vmem:[%s1 + $0x580] sm:$0xff]
  %v227 = vld [vmem:[%s1 + $0x588] sm:$0xff]
  %v228 = vld [vmem:[%s1 + $0x590] sm:$0xff]
  %v229 = vld [vmem:[%s1 + $0x598] sm:$0xff]
  %v230 = vld [vmem:[%s1 + $0x5a0] sm:$0xff]
  %v231 = vld [vmem:[%s1 + $0x5a8] sm:$0xff]
  %v232 = vld [vmem:[%s1 + $0x5b0] sm:$0xff]
  %v233 = vld [vmem:[%s1 + $0x5b8] sm:$0xff]
  %v234 = vld [vmem:[%s1 + $0x5c0] sm:$0xff]
  %v235 = vld [vmem:[%s1 + $0x5c8] sm:$0xff]
  %v236 = vld [vmem:[%s1 + $0x5d0] sm:$0xff]
  %v237 = vld [vmem:[%s1 + $0x5d8] sm:$0xff]
  %v238 = vld [vmem:[%s1 + $0x5e0] sm:$0xff]
  %v239 = vld [vmem:[%s1 + $0x5e8] sm:$0xff]
  %v240 = vld [vmem:[%s1 + $0x5f0] sm:$0xff]
  %v241 = vld [vmem:[%s1 + $0x5f8] sm:$0xff]
  %v242 = vld [vmem:[%s1 + $0x600] sm:$0xff]
  %v243 = vld [vmem:[%s1 + $0x608] sm:$0xff]
  %v244 = vld [vmem:[%s1 + $0x610] sm:$0xff]
  %v245 = vld [vmem:[%s1 + $0x618] sm:$0xff]
  %v246 = vld [vmem:[%s1 + $0x620] sm:$0xff]
  %v247 = vld [vmem:[%s1 + $0x628] sm:$0xff]
  %v248 = vld [vmem:[%s1 + $0x630] sm:$0xff]
  %v249 = vld [vmem:[%s1 + $0x638] sm:$0xff]
  %v250 = vld [vmem:[%s1 + $0x640] sm:$0xff]
  %v251 = vld [vmem:[%s1 + $0x648] sm:$0xff]
  %v252 = vld [vmem:[%s1 + $0x650] sm:$0xff]
  %v253 = vld [vmem:[%s1 + $0x658] sm:$0xff]
  %v254 = vld [vmem:[%s1 + $0x660] sm:$0xff]
  %v255 = vld [vmem:[%s1 + $0x668] sm:$0xff]
  %v256 = vld [vmem:[%s1 + $0x670] sm:$0xff]
  %v257 = vld [vmem:[%s1 + $0x678] sm:$0xff]
  %v258 = vld [vmem:[%s1 + $0x680] sm:$0xff]
  %v259 = vld [vmem:[%s1 + $0x688] sm:$0xff]
  %v260 = vld [vmem:[%s1 + $0x690] sm:$0xff]
  %v261 = vld [vmem:[%s1 + $0x698] sm:$0xff]
  %v262 = vld [vmem:[%s1 + $0x6a0] sm:$0xff]
  %v263 = vld [vmem:[%s1 + $0x6a8] sm:$0xff]
  %v264 = vld [vmem:[%s1 + $0x6b0] sm:$0xff]
  %v265 = vld [vmem:[%s1 + $0x6b8] sm:$0xff]
  %v266 = vld [vmem:[%s1 + $0x6c0] sm:$0xff]
  %v267 = vld [vmem:[%s1 + $0x6c8] sm:$0xff]
  %v268 = vld [vmem:[%s1 + $0x6d0] sm:$0xff]
  %v269 = vld [vmem:[%s1 + $0x6d8] sm:$0xff]
  %v270 = vld [vmem:[%s1 + $0x6e0] sm:$0xff]
  %v271 = vld [vmem:[%s1 + $0x6e8] sm:$0xff]
  %v272 = vld [vmem:[%s1 + $0x6f0] sm:$0xff]
  %v273 = vld [vmem:[%s1 + $0x6f8] sm:$0xff]
  %v274 = vld [vmem:[%s1 + $0x700] sm:$0xff]
  %v275 = vld [vmem:[%s1 + $0x708] sm:$0xff]
  %v276 = vld [vmem:[%s1 + $0x710] sm:$0xff]
  %v277 = vld [vmem:[%s1 + $0x718] sm:$0xff]
  %v278 = vld [vmem:[%s1 + $0x720] sm:$0xff]
  %v279 = vld [vmem:[%s1 + $0x728] sm:$0xff]
  %v280 = vld [vmem:[%s1 + $0x730] sm:$0xff]
  %v281 = vld [vmem:[%s1 + $0x738] sm:$0xff]
  %v282 = vld [vmem:[%s1 + $0x740] sm:$0xff]
  %v283 = vld [vmem:[%s1 + $0x748] sm:$0xff]
  %v284 = vld [vmem:[%s1 + $0x750] sm:$0xff]
  %v285 = vld [vmem:[%s1 + $0x758] sm:$0xff]
  %v286 = vld [vmem:[%s1 + $0x760] sm:$0xff]
  %v287 = vld [vmem:[%s1 + $0x768] sm:$0xff]
  %v288 = vld [vmem:[%s1 + $0x770] sm:$0xff]
  %v289 = vld [vmem:[%s1 + $0x778] sm:$0xff]
  %v290 = vld [vmem:[%s1 + $0x780] sm:$0xff]
  %v291 = vld [vmem:[%s1 + $0x788] sm:$0xff]
  %v292 = vld [vmem:[%s1 + $0x790] sm:$0xff]
  %v293 = vld [vmem:[%s1 + $0x798] sm:$0xff]
  %v294 = vld [vmem:[%s1 + $0x7a0] sm:$0xff]
  %v295 = vld [vmem:[%s1 + $0x7a8] sm:$0xff]
  %v296 = vld [vmem:[%s1 + $0x7b0] sm:$0xff]
  %v297 = vld [vmem:[%s1 + $0x7b8] sm:$0xff]
  %v298 = vld [vmem:[%s1 + $0x7c0] sm:$0xff]
  %v299 = vld [vmem:[%s1 + $0x7c8] sm:$0xff]
  %v300 = vld [vmem:[%s1 + $0x7d0] sm:$0xff]
  %v301 = vld [vmem:[%s1 + $0x7d8] sm:$0xff]
  %v302 = vld [vmem:[%s1 + $0x7e0] sm:$0xff]
  %v303 = vld [vmem:[%s1 + $0x7e8] sm:$0xff]
  %v304 = vld [vmem:[%s1 + $0x7f0] sm:$0xff]
  %v305 = vld [vmem:[%s1 + $0x7f8] sm:$0xff]
  %v306 = vld [vmem:[%s1 + $0x800] sm:$0xff]
  %v307 = vld [vmem:[%s1 + $0x808] sm:$0xff]
  %v308 = vld [vmem:[%s1 + $0x810] sm:$0xff]
  %v309 = vld [vmem:[%s1 + $0x818] sm:$0xff]
  %v310 = vld [vmem:[%s1 + $0x820] sm:$0xff]
  %v311 = vld [vmem:[%s1 + $0x828] sm:$0xff]
  %v312 = vld [vmem:[%s1 + $0x830] sm:$0xff]
  %v313 = vld [vmem:[%s1 + $0x838] sm:$0xff]
  %v314 = vld [vmem:[%s1 + $0x840] sm:$0xff]
  %v315 = vld [vmem:[%s1 + $0x848] sm:$0xff]
  %v316 = vld [vmem:[%s1 + $0x850] sm:$0xff]
  %v317 = vld [vmem:[%s1 + $0x858] sm:$0xff]
  %v318 = vld [vmem:[%s1 + $0x860] sm:$0xff]
  %v319 = vld [vmem:[%s1 + $0x868] sm:$0xff]
  %v320 = vld [vmem:[%s1 + $0x870] sm:$0xff]
  %v321 = vld [vmem:[%s1 + $0x878] sm:$0xff]
  %v322 = vld [vmem:[%s1 + $0x880] sm:$0xff]
  %v323 = vld [vmem:[%s1 + $0x888] sm:$0xff]
  %v324 = vld [vmem:[%s1 + $0x890] sm:$0xff]
  %v325 = vld [vmem:[%s1 + $0x898] sm:$0xff]
  %v326 = vld [vmem:[%s1 + $0x8a0] sm:$0xff]
  %v327 = vld [vmem:[%s1 + $0x8a8] sm:$0xff]
  %v328 = vld [vmem:[%s1 + $0x8b0] sm:$0xff]
  %v329 = vld [vmem:[%s1 + $0x8b8] sm:$0xff]
  %v330 = vld [vmem:[%s1 + $0x8c0] sm:$0xff]
  %v331 = vld [vmem:[%s1 + $0x8c8] sm:$0xff]
  %v332 = vld [vmem:[%s1 + $0x8d0] sm:$0xff]
  %v333 = vld [vmem:[%s1 + $0x8d8] sm:$0xff]
  %v334 = vld [vmem:[%s1 + $0x8e0] sm:$0xff]
  %v335 = vld [vmem:[%s1 + $0x8e8] sm:$0xff]
  %v336 = vld [vmem:[%s1 + $0x8f0] sm:$0xff]
  %v337 = vld [vmem:[%s1 + $0x8f8] sm:$0xff]
  %v338 = vld [vmem:[%s2] sm:$0x3]
  %v340 = vlaneseq
  %v341 = vshrl.u32 %v340, 7
  %v342 = vsub.s32 0, %v341
  %v343 = vrot.slane %v338, %v342
  %v344 = vlaneseq
  %v345 = vshrl.u32 %v344, 7
  %v346 = vsub.s32 1, %v345
  %v347 = vrot.slane %v338, %v346
  %350 = vmatprep.subr.mxu0 %v51
  %351 = vmatpush1.msra.mxu0 %v50
  %352 = vmatprep.subr.mxu0 %v53
  %353 = vmatpush1.msra.mxu0 %v52
  %354 = vmatprep.subr.mxu0 %v55
  %355 = vmatpush1.msra.mxu0 %v54
  %356 = vmatprep.subr.mxu0 %v57
  %357 = vmatpush1.msra.mxu0 %v56
  %358 = vmatprep.subr.mxu0 %v59
  %359 = vmatpush1.msra.mxu0 %v58
  %360 = vmatprep.subr.mxu0 %v61
  %361 = vmatpush1.msra.mxu0 %v60
  %362 = vmatprep.subr.mxu0 %v63
  %363 = vmatpush1.msra.mxu0 %v62
  %364 = vmatprep.subr.mxu0 %v65
  %365 = vmatpush1.msra.mxu0 %v64
  %366 = vmatprep.subr.mxu0 %v67
  %367 = vmatpush1.msra.mxu0 %v66
  %368 = vmatprep.subr.mxu0 %v69
  %369 = vmatpush1.msra.mxu0 %v68
  %370 = vmatprep.subr.mxu0 %v71
  %371 = vmatpush1.msra.mxu0 %v70
  %372 = vmatprep.subr.mxu0 %v73
  %373 = vmatpush1.msra.mxu0 %v72
  %374 = vmatprep.subr.mxu0 %v75
  %375 = vmatpush1.msra.mxu0 %v74
  %376 = vmatprep.subr.mxu0 %v77
  %377 = vmatpush1.msra.mxu0 %v76
  %378 = vmatprep.subr.mxu0 %v79
  %379 = vmatpush1.msra.mxu0 %v78
  %380 = vmatprep.subr.mxu0 %v81
  %381 = vmatpush1.msra.mxu0 %v80
  %382 = vmatprep.subr.mxu0 %v83
  %383 = vmatpush1.msra.mxu0 %v82
  %384 = vmatprep.subr.mxu0 %v85
  %385 = vmatpush1.msra.mxu0 %v84
  %386 = vmatprep.subr.mxu0 %v87
  %387 = vmatpush1.msra.mxu0 %v86
  %388 = vmatprep.subr.mxu0 %v89
  %389 = vmatpush1.msra.mxu0 %v88
  %390 = vmatprep.subr.mxu0 %v91
  %391 = vmatpush1.msra.mxu0 %v90
  %392 = vmatprep.subr.mxu0 %v93
  %393 = vmatpush1.msra.mxu0 %v92
  %394 = vmatprep.subr.mxu0 %v95
  %395 = vmatpush1.msra.mxu0 %v94
  %396 = vmatprep.subr.mxu0 %v97
  %397 = vmatpush1.msra.mxu0 %v96
  %398 = vmatprep.subr.mxu0 %v99
  %399 = vmatpush1.msra.mxu0 %v98
  %400 = vmatprep.subr.mxu0 %v101
  %401 = vmatpush1.msra.mxu0 %v100
  %402 = vmatprep.subr.mxu0 %v103
  %403 = vmatpush1.msra.mxu0 %v102
  %404 = vmatprep.subr.mxu0 %v105
  %405 = vmatpush1.msra.mxu0 %v104
  %406 = vmatprep.subr.mxu0 %v107
  %407 = vmatpush1.msra.mxu0 %v106
  %408 = vmatprep.subr.mxu0 %v109
  %409 = vmatpush1.msra.mxu0 %v108
  %410 = vmatprep.subr.mxu0 %v111
  %411 = vmatpush1.msra.mxu0 %v110
  %412 = vmatprep.subr.mxu0 %v113
  %413 = vmatpush1.msra.mxu0 %v112
  %414 = vmatprep.mubr.f32.mxu0 %v15
  %415 = vmatmul.mubr.f32.gmra.mrb[0].mxu0 %v14
  %v416 = vpop.f32.mrb[0].mxu0
  %v417 = vadd.f32 %v343, %v416
  %v418 = vpop.f32.mrb[0].mxu0
  %v419 = vadd.f32 %v347, %v418
  %420 = vmatprep.mubr.f32.mxu0 %v24
  %421 = vmatmul.mubr.f32.gmra.mrb[0].mxu0 %v23
  %v422 = vpop.f32.mrb[0].mxu0
  %v423 = vadd.f32 %v343, %v422
  %v424 = vpop.f32.mrb[0].mxu0
  %v425 = vadd.f32 %v347, %v424
  %426 = vmatprep.mubr.f32.mxu0 %v33
  %427 = vmatmul.mubr.f32.gmra.mrb[0].mxu0 %v32
  %v428 = vpop.f32.mrb[0].mxu0
  %v429 = vadd.f32 %v343, %v428
  %v430 = vpop.f32.mrb[0].mxu0
  %v431 = vadd.f32 %v347, %v430
  %432 = vmatprep.mubr.f32.mxu0 %v42
  %433 = vmatmul.mubr.f32.gmra.mrb[0].mxu0 %v41
  %v434 = vpop.f32.mrb[0].mxu0
  %v435 = vadd.f32 %v343, %v434
  %v436 = vpop.f32.mrb[0].mxu0
  %v437 = vadd.f32 %v347, %v436
  %438 = vdwg.mxu0
  %439 = vmatprep.subr.mxu0 %v115
  %440 = vmatpush1.msra.mxu0 %v114
  %441 = vmatprep.subr.mxu0 %v117
  %442 = vmatpush1.msra.mxu0 %v116
  %443 = vmatprep.subr.mxu0 %v119
  %444 = vmatpush1.msra.mxu0 %v118
  %445 = vmatprep.subr.mxu0 %v121
  %446 = vmatpush1.msra.mxu0 %v120
  %447 = vmatprep.subr.mxu0 %v123
  %448 = vmatpush1.msra.mxu0 %v122
  %449 = vmatprep.subr.mxu0 %v125
  %450 = vmatpush1.msra.mxu0 %v124
  %451 = vmatprep.subr.mxu0 %v127
  %452 = vmatpush1.msra.mxu0 %v126
  %453 = vmatprep.subr.mxu0 %v129
  %454 = vmatpush1.msra.mxu0 %v128
  %455 = vmatprep.subr.mxu0 %v131
  %456 = vmatpush1.msra.mxu0 %v130
  %457 = vmatprep.subr.mxu0 %v133
  %458 = vmatpush1.msra.mxu0 %v132
  %459 = vmatprep.subr.mxu0 %v135
  %460 = vmatpush1.msra.mxu0 %v134
  %461 = vmatprep.subr.mxu0 %v137
  %462 = vmatpush1.msra.mxu0 %v136
  %463 = vmatprep.subr.mxu0 %v139
  %464 = vmatpush1.msra.mxu0 %v138
  %465 = vmatprep.subr.mxu0 %v141
  %466 = vmatpush1.msra.mxu0 %v140
  %467 = vmatprep.subr.mxu0 %v143
  %468 = vmatpush1.msra.mxu0 %v142
  %469 = vmatprep.subr.mxu0 %v145
  %470 = vmatpush1.msra.mxu0 %v144
  %471 = vmatprep.subr.mxu0 %v147
  %472 = vmatpush1.msra.mxu0 %v146
  %473 = vmatprep.subr.mxu0 %v149
  %474 = vmatpush1.msra.mxu0 %v148
  %475 = vmatprep.subr.mxu0 %v151
  %476 = vmatpush1.msra.mxu0 %v150
  %477 = vmatprep.subr.mxu0 %v153
  %478 = vmatpush1.msra.mxu0 %v152
  %479 = vmatprep.subr.mxu0 %v155
  %480 = vmatpush1.msra.mxu0 %v154
  %481 = vmatprep.subr.mxu0 %v157
  %482 = vmatpush1.msra.mxu0 %v156
  %483 = vmatprep.subr.mxu0 %v159
  %484 = vmatpush1.msra.mxu0 %v158
  %485 = vmatprep.subr.mxu0 %v161
  %486 = vmatpush1.msra.mxu0 %v160
  %487 = vmatprep.subr.mxu0 %v163
  %488 = vmatpush1.msra.mxu0 %v162
  %489 = vmatprep.subr.mxu0 %v165
  %490 = vmatpush1.msra.mxu0 %v164
  %491 = vmatprep.subr.mxu0 %v167
  %492 = vmatpush1.msra.mxu0 %v166
  %493 = vmatprep.subr.mxu0 %v169
  %494 = vmatpush1.msra.mxu0 %v168
  %495 = vmatprep.subr.mxu0 %v171
  %496 = vmatpush1.msra.mxu0 %v170
  %497 = vmatprep.subr.mxu0 %v173
  %498 = vmatpush1.msra.mxu0 %v172
  %499 = vmatprep.subr.mxu0 %v175
  %500 = vmatpush1.msra.mxu0 %v174
  %501 = vmatprep.subr.mxu0 %v177
  %502 = vmatpush1.msra.mxu0 %v176
  %503 = vmatprep.mubr.f32.mxu0 %v17
  %504 = vmatmul.mubr.f32.gmra.mrb[0].mxu0 %v16
  %v505 = vpop.f32.mrb[0].mxu0
  %v506 = vadd.f32 %v417, %v505
  %v507 = vpop.f32.mrb[0].mxu0
  %v508 = vadd.f32 %v419, %v507
  %509 = vmatprep.mubr.f32.mxu0 %v26
  %510 = vmatmul.mubr.f32.gmra.mrb[0].mxu0 %v25
  %v511 = vpop.f32.mrb[0].mxu0
  %v512 = vadd.f32 %v423, %v511
  %v513 = vpop.f32.mrb[0].mxu0
  %v514 = vadd.f32 %v425, %v513
  %515 = vmatprep.mubr.f32.mxu0 %v35
  %516 = vmatmul.mubr.f32.gmra.mrb[0].mxu0 %v34
  %v517 = vpop.f32.mrb[0].mxu0
  %v518 = vadd.f32 %v429, %v517
  %v519 = vpop.f32.mrb[0].mxu0
  %v520 = vadd.f32 %v431, %v519
  %521 = vmatprep.mubr.f32.mxu0 %v44
  %522 = vmatmul.mubr.f32.gmra.mrb[0].mxu0 %v43
  %v523 = vpop.f32.mrb[0].mxu0
  %v524 = vadd.f32 %v435, %v523
  %v525 = vpop.f32.mrb[0].mxu0
  %v526 = vadd.f32 %v437, %v525
  %527 = vdwg.mxu0
  %528 = vmatprep.subr.mxu0 %v179
  %529 = vmatpush1.msra.mxu0 %v178
  %530 = vmatprep.subr.mxu0 %v181
  %531 = vmatpush1.msra.mxu0 %v180
  %532 = vmatprep.subr.mxu0 %v183
  %533 = vmatpush1.msra.mxu0 %v182
  %534 = vmatprep.subr.mxu0 %v185
  %535 = vmatpush1.msra.mxu0 %v184
  %536 = vmatprep.subr.mxu0 %v187
  %537 = vmatpush1.msra.mxu0 %v186
  %538 = vmatprep.subr.mxu0 %v189
  %539 = vmatpush1.msra.mxu0 %v188
  %540 = vmatprep.subr.mxu0 %v191
  %541 = vmatpush1.msra.mxu0 %v190
  %542 = vmatprep.subr.mxu0 %v193
  %543 = vmatpush1.msra.mxu0 %v192
  %544 = vmatprep.subr.mxu0 %v195
  %545 = vmatpush1.msra.mxu0 %v194
  %546 = vmatprep.subr.mxu0 %v197
  %547 = vmatpush1.msra.mxu0 %v196
  %548 = vmatprep.subr.mxu0 %v199
  %549 = vmatpush1.msra.mxu0 %v198
  %550 = vmatprep.subr.mxu0 %v201
  %551 = vmatpush1.msra.mxu0 %v200
  %552 = vmatprep.subr.mxu0 %v203
  %553 = vmatpush1.msra.mxu0 %v202
  %554 = vmatprep.subr.mxu0 %v205
  %555 = vmatpush1.msra.mxu0 %v204
  %556 = vmatprep.subr.mxu0 %v207
  %557 = vmatpush1.msra.mxu0 %v206
  %558 = vmatprep.subr.mxu0 %v209
  %559 = vmatpush1.msra.mxu0 %v208
  %560 = vmatprep.subr.mxu0 %v211
  %561 = vmatpush1.msra.mxu0 %v210
  %562 = vmatprep.subr.mxu0 %v213
  %563 = vmatpush1.msra.mxu0 %v212
  %564 = vmatprep.subr.mxu0 %v215
  %565 = vmatpush1.msra.mxu0 %v214
  %566 = vmatprep.subr.mxu0 %v217
  %567 = vmatpush1.msra.mxu0 %v216
  %568 = vmatprep.subr.mxu0 %v219
  %569 = vmatpush1.msra.mxu0 %v218
  %570 = vmatprep.subr.mxu0 %v221
  %571 = vmatpush1.msra.mxu0 %v220
  %572 = vmatprep.subr.mxu0 %v223
  %573 = vmatpush1.msra.mxu0 %v222
  %574 = vmatprep.subr.mxu0 %v225
  %575 = vmatpush1.msra.mxu0 %v224
  %576 = vmatprep.subr.mxu0 %v227
  %577 = vmatpush1.msra.mxu0 %v226
  %578 = vmatprep.subr.mxu0 %v229
  %579 = vmatpush1.msra.mxu0 %v228
  %580 = vmatprep.subr.mxu0 %v231
  %581 = vmatpush1.msra.mxu0 %v230
  %582 = vmatprep.subr.mxu0 %v233
  %583 = vmatpush1.msra.mxu0 %v232
  %584 = vmatprep.subr.mxu0 %v235
  %585 = vmatpush1.msra.mxu0 %v234
  %586 = vmatprep.subr.mxu0 %v237
  %587 = vmatpush1.msra.mxu0 %v236
  %588 = vmatprep.subr.mxu0 %v239
  %589 = vmatpush1.msra.mxu0 %v238
  %590 = vmatprep.subr.mxu0 %v241
  %591 = vmatpush1.msra.mxu0 %v240
  %592 = vmatprep.mubr.f32.mxu0 %v19
  %593 = vmatmul.mubr.f32.gmra.mrb[0].mxu0 %v18
  %v594 = vpop.f32.mrb[0].mxu0
  %v595 = vadd.f32 %v506, %v594
  %v596 = vpop.f32.mrb[0].mxu0
  %v597 = vadd.f32 %v508, %v596
  %598 = vmatprep.mubr.f32.mxu0 %v28
  %599 = vmatmul.mubr.f32.gmra.mrb[0].mxu0 %v27
  %v600 = vpop.f32.mrb[0].mxu0
  %v601 = vadd.f32 %v512, %v600
  %v602 = vpop.f32.mrb[0].mxu0
  %v603 = vadd.f32 %v514, %v602
  %604 = vmatprep.mubr.f32.mxu0 %v37
  %605 = vmatmul.mubr.f32.gmra.mrb[0].mxu0 %v36
  %v606 = vpop.f32.mrb[0].mxu0
  %v607 = vadd.f32 %v518, %v606
  %v608 = vpop.f32.mrb[0].mxu0
  %v609 = vadd.f32 %v520, %v608
  %610 = vmatprep.mubr.f32.mxu0 %v46
  %611 = vmatmul.mubr.f32.gmra.mrb[0].mxu0 %v45
  %v612 = vpop.f32.mrb[0].mxu0
  %v613 = vadd.f32 %v524, %v612
  %v614 = vpop.f32.mrb[0].mxu0
  %v615 = vadd.f32 %v526, %v614
  %616 = vdwg.mxu0
  %617 = vmatprep.subr.mxu0 %v243
  %618 = vmatpush1.msra.mxu0 %v242
  %619 = vmatprep.subr.mxu0 %v245
  %620 = vmatpush1.msra.mxu0 %v244
  %621 = vmatprep.subr.mxu0 %v247
  %622 = vmatpush1.msra.mxu0 %v246
  %623 = vmatprep.subr.mxu0 %v249
  %624 = vmatpush1.msra.mxu0 %v248
  %625 = vmatprep.subr.mxu0 %v251
  %626 = vmatpush1.msra.mxu0 %v250
  %627 = vmatprep.subr.mxu0 %v253
  %628 = vmatpush1.msra.mxu0 %v252
  %629 = vmatprep.subr.mxu0 %v255
  %630 = vmatpush1.msra.mxu0 %v254
  %631 = vmatprep.subr.mxu0 %v257
  %632 = vmatpush1.msra.mxu0 %v256
  %633 = vmatprep.subr.mxu0 %v259
  %634 = vmatpush1.msra.mxu0 %v258
  %635 = vmatprep.subr.mxu0 %v261
  %636 = vmatpush1.msra.mxu0 %v260
  %637 = vmatprep.subr.mxu0 %v263
  %638 = vmatpush1.msra.mxu0 %v262
  %639 = vmatprep.subr.mxu0 %v265
  %640 = vmatpush1.msra.mxu0 %v264
  %641 = vmatprep.subr.mxu0 %v267
  %642 = vmatpush1.msra.mxu0 %v266
  %643 = vmatprep.subr.mxu0 %v269
  %644 = vmatpush1.msra.mxu0 %v268
  %645 = vmatprep.subr.mxu0 %v271
  %646 = vmatpush1.msra.mxu0 %v270
  %647 = vmatprep.subr.mxu0 %v273
  %648 = vmatpush1.msra.mxu0 %v272
  %649 = vmatprep.subr.mxu0 %v275
  %650 = vmatpush1.msra.mxu0 %v274
  %651 = vmatprep.subr.mxu0 %v277
  %652 = vmatpush1.msra.mxu0 %v276
  %653 = vmatprep.subr.mxu0 %v279
  %654 = vmatpush1.msra.mxu0 %v278
  %655 = vmatprep.subr.mxu0 %v281
  %656 = vmatpush1.msra.mxu0 %v280
  %657 = vmatprep.subr.mxu0 %v283
  %658 = vmatpush1.msra.mxu0 %v282
  %659 = vmatprep.subr.mxu0 %v285
  %660 = vmatpush1.msra.mxu0 %v284
  %661 = vmatprep.subr.mxu0 %v287
  %662 = vmatpush1.msra.mxu0 %v286
  %663 = vmatprep.subr.mxu0 %v289
  %664 = vmatpush1.msra.mxu0 %v288
  %665 = vmatprep.subr.mxu0 %v291
  %666 = vmatpush1.msra.mxu0 %v290
  %667 = vmatprep.subr.mxu0 %v293
  %668 = vmatpush1.msra.mxu0 %v292
  %669 = vmatprep.subr.mxu0 %v295
  %670 = vmatpush1.msra.mxu0 %v294
  %671 = vmatprep.subr.mxu0 %v297
  %672 = vmatpush1.msra.mxu0 %v296
  %673 = vmatprep.subr.mxu0 %v299
  %674 = vmatpush1.msra.mxu0 %v298
  %675 = vmatprep.subr.mxu0 %v301
  %676 = vmatpush1.msra.mxu0 %v300
  %677 = vmatprep.subr.mxu0 %v303
  %678 = vmatpush1.msra.mxu0 %v302
  %679 = vmatprep.subr.mxu0 %v305
  %680 = vmatpush1.msra.mxu0 %v304
  %681 = vmatprep.mubr.f32.mxu0 %v21
  %682 = vmatmul.mubr.f32.gmra.mrb[0].mxu0 %v20
  %v683 = vpop.f32.mrb[0].mxu0
  %v684 = vadd.f32 %v595, %v683
  %v685 = vpop.f32.mrb[0].mxu0
  %v686 = vadd.f32 %v597, %v685
  %687 = vmatprep.mubr.f32.mxu0 %v30
  %688 = vmatmul.mubr.f32.gmra.mrb[0].mxu0 %v29
  %v689 = vpop.f32.mrb[0].mxu0
  %v690 = vadd.f32 %v601, %v689
  %v691 = vpop.f32.mrb[0].mxu0
  %v692 = vadd.f32 %v603, %v691
  %693 = vmatprep.mubr.f32.mxu0 %v39
  %694 = vmatmul.mubr.f32.gmra.mrb[0].mxu0 %v38
  %v695 = vpop.f32.mrb[0].mxu0
  %v696 = vadd.f32 %v607, %v695
  %v697 = vpop.f32.mrb[0].mxu0
  %v698 = vadd.f32 %v609, %v697
  %699 = vmatprep.mubr.f32.mxu0 %v48
  %700 = vmatmul.mubr.f32.gmra.mrb[0].mxu0 %v47
  %v701 = vpop.f32.mrb[0].mxu0
  %v702 = vadd.f32 %v613, %v701
  %v703 = vpop.f32.mrb[0].mxu0
  %v704 = vadd.f32 %v615, %v703
  %705 = vdwg.mxu0
  %706 = vmatprep.subr.mxu0 %v307
  %707 = vmatpush1.msra.mxu0 %v306
  %708 = vmatprep.subr.mxu0 %v309
  %709 = vmatpush1.msra.mxu0 %v308
  %710 = vmatprep.subr.mxu0 %v311
  %711 = vmatpush1.msra.mxu0 %v310
  %712 = vmatprep.subr.mxu0 %v313
  %713 = vmatpush1.msra.mxu0 %v312
  %714 = vmatprep.subr.mxu0 %v315
  %715 = vmatpush1.msra.mxu0 %v314
  %716 = vmatprep.subr.mxu0 %v317
  %717 = vmatpush1.msra.mxu0 %v316
  %718 = vmatprep.subr.mxu0 %v319
  %719 = vmatpush1.msra.mxu0 %v318
  %720 = vmatprep.subr.mxu0 %v321
  %721 = vmatpush1.msra.mxu0 %v320
  %722 = vmatprep.subr.mxu0 %v323
  %723 = vmatpush1.msra.mxu0 %v322
  %724 = vmatprep.subr.mxu0 %v325
  %725 = vmatpush1.msra.mxu0 %v324
  %726 = vmatprep.subr.mxu0 %v327
  %727 = vmatpush1.msra.mxu0 %v326
  %728 = vmatprep.subr.mxu0 %v329
  %729 = vmatpush1.msra.mxu0 %v328
  %730 = vmatprep.subr.mxu0 %v331
  %731 = vmatpush1.msra.mxu0 %v330
  %732 = vmatprep.subr.mxu0 %v333
  %733 = vmatpush1.msra.mxu0 %v332
  %734 = vmatprep.subr.mxu0 %v335
  %735 = vmatpush1.msra.mxu0 %v334
  %736 = vmatprep.subr.mxu0 %v337
  %737 = vmatpush1.msra.mxu0 %v336
  %738 = vmatprep.subr.mxu0 0.0
  %739 = vmatpush1.msra.mxu0 0.0
  %740 = vmatprep.subr.mxu0 0.0
  %741 = vmatpush1.msra.mxu0 0.0
  %742 = vmatprep.subr.mxu0 0.0
  %743 = vmatpush1.msra.mxu0 0.0
  %744 = vmatprep.subr.mxu0 0.0
  %745 = vmatpush1.msra.mxu0 0.0
  %746 = vmatprep.subr.mxu0 0.0
  %747 = vmatpush1.msra.mxu0 0.0
  %748 = vmatprep.subr.mxu0 0.0
  %749 = vmatpush1.msra.mxu0 0.0
  %750 = vmatprep.subr.mxu0 0.0
  %751 = vmatpush1.msra.mxu0 0.0
  %752 = vmatprep.subr.mxu0 0.0
  %753 = vmatpush1.msra.mxu0 0.0
  %754 = vmatprep.subr.mxu0 0.0
  %755 = vmatpush1.msra.mxu0 0.0
  %756 = vmatprep.subr.mxu0 0.0
  %757 = vmatpush1.msra.mxu0 0.0
  %758 = vmatprep.subr.mxu0 0.0
  %759 = vmatpush1.msra.mxu0 0.0
  %760 = vmatprep.subr.mxu0 0.0
  %761 = vmatpush1.msra.mxu0 0.0
  %762 = vmatprep.subr.mxu0 0.0
  %763 = vmatpush1.msra.mxu0 0.0
  %764 = vmatprep.subr.mxu0 0.0
  %765 = vmatpush1.msra.mxu0 0.0
  %766 = vmatprep.subr.mxu0 0.0
  %767 = vmatpush1.msra.mxu0 0.0
  %768 = vmatprep.subr.mxu0 0.0
  %769 = vmatpush1.msra.mxu0 0.0
  %770 = vmatprep.mubr.f32.mxu0 0.0
  %771 = vmatmul.mubr.f32.gmra.mrb[0].mxu0 %v22
  %v772 = vpop.f32.mrb[0].mxu0
  %v773 = vadd.f32 %v684, %v772
  %v774 = vpop.f32.mrb[0].mxu0
  %v775 = vadd.f32 %v686, %v774
  %776 = vmatprep.mubr.f32.mxu0 0.0
  %777 = vmatmul.mubr.f32.gmra.mrb[0].mxu0 %v31
  %v778 = vpop.f32.mrb[0].mxu0
  %v779 = vadd.f32 %v690, %v778
  %v780 = vpop.f32.mrb[0].mxu0
  %v781 = vadd.f32 %v692, %v780
  %782 = vmatprep.mubr.f32.mxu0 0.0
  %783 = vmatmul.mubr.f32.gmra.mrb[0].mxu0 %v40
  %v784 = vpop.f32.mrb[0].mxu0
  %v785 = vadd.f32 %v696, %v784
  %v786 = vpop.f32.mrb[0].mxu0
  %v787 = vadd.f32 %v698, %v786
  %788 = vmatprep.mubr.f32.mxu0 0.0
  %789 = vmatmul.mubr.f32.gmra.mrb[0].mxu0 %v49
  %v790 = vpop.f32.mrb[0].mxu0
  %v791 = vadd.f32 %v702, %v790
  %v792 = vpop.f32.mrb[0].mxu0
  %v793 = vadd.f32 %v704, %v792
  %794 = vdwg.mxu0
  %v795 = vmax.f32 %v773, 0.0
  %v796 = vmax.f32 %v775, 0.0
  %v797 = vmax.f32 %v779, 0.0
  %v798 = vmax.f32 %v781, 0.0
  %v799 = vmax.f32 %v785, 0.0
  %v800 = vmax.f32 %v787, 0.0
  %v801 = vmax.f32 %v791, 0.0
  %v802 = vmax.f32 %v793, 0.0
  %803 = vst [vmem:[%s3] sm:$0xff] %v795
  %804 = vst [vmem:[%s3 + $0x8] sm:$0xff] %v796
  %805 = vst [vmem:[%s3 + $0x10] sm:$0xff] %v797
  %806 = vst [vmem:[%s3 + $0x18] sm:$0xff] %v798
  %807 = vst [vmem:[%s3 + $0x20] sm:$0xff] %v799
  %808 = vst [vmem:[%s3 + $0x28] sm:$0xff] %v800
  %809 = vst [vmem:[%s3 + $0x30] sm:$0xff] %v801
  %810 = vst [vmem:[%s3 + $0x38] sm:$0xff] %v802
  // Predicated region
  $region14: #{prompt_encoder.9} parent=0 // pred_check
    _
  $region15: #{prompt_encoder.9} parent=0 // pred_check_branch
    %812 = sbr.rel (0) target = $region17
  $region16: #{prompt_encoder.9} parent=0 // pred_region
    _
  $region17: #{prompt_encoder.9} parent=0 // pred_fallthru
    _
  // Predicated region
  $region18: #{prompt_encoder.9} parent=0 // pred_check
    _
  $region19: #{prompt_encoder.9} parent=0 // pred_check_branch
    %814 = sbr.rel (0) target = $region21
  $region20: #{prompt_encoder.9} parent=0 // pred_region
    _
  $region21: #{prompt_encoder.9} parent=0 // pred_fallthru
    _

// kernel: tile.18
$region0: #{tile.18}
  #allocation0 [shape = 's32[1]{0}', space=sflag, size = 0x4, scoped, tag = 'scoped memory for tile.18']
  %s0 = inlined_call_operand.vmem [shape: f32[64], index: 0, kind: input, shape index: {}]
  %s1 = inlined_call_operand.vmem [shape: f32[4,64], index: 1, kind: output, shape index: {}]
  // Predicated region
  $region2: #{tile.18} parent=0 // pred_check
    _
  $region3: #{tile.18} parent=0 // pred_check_branch
    %3 = sbr.rel (0) target = $region5
  $region4: #{tile.18} parent=0 // pred_region
    _
  $region5: #{tile.18} parent=0 // pred_fallthru
    _
  %v4 = vld [vmem:[%s0] ss:$0 sm:$0xff]
  %5 = vst [vmem:[%s1] sm:$0xf] %v4

// kernel: tile.19
$region0: #{tile.19}
  %s0 = inlined_call_operand.vmem [shape: f32[4,64], index: 0, kind: input, shape index: {}]
  %s1 = inlined_call_operand.vmem [shape: f32[1,256], index: 1, kind: output, shape index: {}]
  $region1: #{tile.19} parent=0
    #allocation0 [shape = 'u8[8192]{0}', space=vmem, size = 0x2000, scoped, tag = 'scoped mem for output reshape']
    #allocation1 [shape = 'u8[4096]{0}', space=vmem, size = 0x1000, scoped, tag = 'scoped mem for input reshape']
    %s3 = sshllo.u32 0, 4
    %v4 = vld [vmem:[%s0] sm:%s3]
    %5 = vst [vmem:[#allocation1] sm:%s3] %v4
    %s6 = smov 3
    %v7 = vld [vmem:[#allocation1] ss:$2 sm:%s6]
    %vm8 = vcmask 523264
    %9 = vst.msk [vmem:[#allocation0] ss:$8 sm:$0x3] %vm8, %v7
    %s10 = scalar_lea.vmem [#allocation1], 1
    %s11 = smov 3
    %v12 = vld [vmem:[%s10] ss:$2 sm:%s11]
    %13 = vrot.lane.b32.xlu0 %v12, 64
    %v14 = vpop.permute.xlu0 %13
    %vm15 = vcmask 1048064
    %16 = vst.msk [vmem:[#allocation0] ss:$8 sm:$0x3] %vm15, %v14
    %s18 = sshllo.u32 0, 1
    %v20 = vld [vmem:[#allocation0] sm:%s18]
    %s21 = sshllo.u32 0, 1
    %22 = vst [vmem:[%s1] sm:%s21] %v20
    %s23 = scalar_lea.vmem [#allocation0], 8
    %v24 = vld [vmem:[%s23] sm:%s18]
    %s25 = sshllo.u32 0, 1
    %s26 = scalar_lea.vmem %s1, 1
    %27 = vst [vmem:[%s26] sm:%s25] %v24

// kernel: prompt_encoder.11
$region0: #{prompt_encoder.11}
  #allocation0 [shape = 'u32[]', space=smem, size = 0x4, offset = 0x4, fixed_abs, tag = 'smem constant byte address 0x4 - core index']
  #allocation1 [shape = 'u32[144,128]{1,0:T(1,128)}', space=vmem, size = 0x12000, scoped, tag = 'internal scratch']
  %s0 = inlined_call_operand.vmem [shape: f32[32,256], index: 0, kind: input, shape index: {}]
  %s1 = inlined_call_operand.vmem [shape: f32[256,512], index: 1, kind: input, shape index: {}]
  %s2 = inlined_call_operand.vmem [shape: f32[1,512], index: 2, kind: input, shape index: {}]
  %s3 = inlined_call_operand.vmem [shape: f32[32,512], index: 3, kind: output, shape index: {}]
  %s4 = sld [smem:[#allocation0]]
  $region22: #{prompt_encoder.11} parent=0
    _
  %s6 = ssub.s32 1, %s4
  %s7 = scalar_select 0, %s6, %s4
  // Predicated region
  $region2: #{prompt_encoder.11} parent=0 // pred_check
    _
  $region3: #{prompt_encoder.11} parent=0 // pred_check_branch
    %9 = sbr.rel (0) target = $region5
  $region4: #{prompt_encoder.11} parent=0 // pred_region
    _
  $region5: #{prompt_encoder.11} parent=0 // pred_fallthru
    _
  // Predicated region
  $region6: #{prompt_encoder.11} parent=0 // pred_check
    _
  $region7: #{prompt_encoder.11} parent=0 // pred_check_branch
    %11 = sbr.rel (0) target = $region9
  $region8: #{prompt_encoder.11} parent=0 // pred_region
    _
  $region9: #{prompt_encoder.11} parent=0 // pred_fallthru
    _
  // Predicated region
  $region10: #{prompt_encoder.11} parent=0 // pred_check
    _
  $region11: #{prompt_encoder.11} parent=0 // pred_check_branch
    %13 = sbr.rel (0) target = $region13
  $region12: #{prompt_encoder.11} parent=0 // pred_region
    _
  $region13: #{prompt_encoder.11} parent=0 // pred_fallthru
    _
  %v14 = vld [vmem:[%s0] sm:$0xff]
  %v15 = vld [vmem:[%s0 + $0x8] sm:$0xff]
  %v16 = vld [vmem:[%s0 + $0x10] sm:$0xff]
  %v17 = vld [vmem:[%s0 + $0x18] sm:$0xff]
  %v18 = vld [vmem:[%s0 + $0x20] sm:$0xff]
  %v19 = vld [vmem:[%s0 + $0x28] sm:$0xff]
  %v20 = vld [vmem:[%s0 + $0x30] sm:$0xff]
  %v21 = vld [vmem:[%s0 + $0x38] sm:$0xff]
  %v22 = vld [vmem:[%s1] sm:$0xff]
  %v23 = vld [vmem:[%s1 + $0x8] sm:$0xff]
  %v24 = vld [vmem:[%s1 + $0x10] sm:$0xff]
  %v25 = vld [vmem:[%s1 + $0x18] sm:$0xff]
  %v26 = vld [vmem:[%s1 + $0x20] sm:$0xff]
  %v27 = vld [vmem:[%s1 + $0x28] sm:$0xff]
  %v28 = vld [vmem:[%s1 + $0x30] sm:$0xff]
  %v29 = vld [vmem:[%s1 + $0x38] sm:$0xff]
  %v30 = vld [vmem:[%s1 + $0x40] sm:$0xff]
  %v31 = vld [vmem:[%s1 + $0x48] sm:$0xff]
  %v32 = vld [vmem:[%s1 + $0x50] sm:$0xff]
  %v33 = vld [vmem:[%s1 + $0x58] sm:$0xff]
  %v34 = vld [vmem:[%s1 + $0x60] sm:$0xff]
  %v35 = vld [vmem:[%s1 + $0x68] sm:$0xff]
  %v36 = vld [vmem:[%s1 + $0x70] sm:$0xff]
  %v37 = vld [vmem:[%s1 + $0x78] sm:$0xff]
  %v38 = vld [vmem:[%s1 + $0x80] sm:$0xff]
  %v39 = vld [vmem:[%s1 + $0x88] sm:$0xff]
  %v40 = vld [vmem:[%s1 + $0x90] sm:$0xff]
  %v41 = vld [vmem:[%s1 + $0x98] sm:$0xff]
  %v42 = vld [vmem:[%s1 + $0xa0] sm:$0xff]
  %v43 = vld [vmem:[%s1 + $0xa8] sm:$0xff]
  %v44 = vld [vmem:[%s1 + $0xb0] sm:$0xff]
  %v45 = vld [vmem:[%s1 + $0xb8] sm:$0xff]
  %v46 = vld [vmem:[%s1 + $0xc0] sm:$0xff]
  %v47 = vld [vmem:[%s1 + $0xc8] sm:$0xff]
  %v48 = vld [vmem:[%s1 + $0xd0] sm:$0xff]
  %v49 = vld [vmem:[%s1 + $0xd8] sm:$0xff]
  %v50 = vld [vmem:[%s1 + $0xe0] sm:$0xff]
  %v51 = vld [vmem:[%s1 + $0xe8] sm:$0xff]
  %v52 = vld [vmem:[%s1 + $0xf0] sm:$0xff]
  %v53 = vld [vmem:[%s1 + $0xf8] sm:$0xff]
  %v54 = vld [vmem:[%s1 + $0x100] sm:$0xff]
  %v55 = vld [vmem:[%s1 + $0x108] sm:$0xff]
  %v56 = vld [vmem:[%s1 + $0x110] sm:$0xff]
  %v57 = vld [vmem:[%s1 + $0x118] sm:$0xff]
  %v58 = vld [vmem:[%s1 + $0x120] sm:$0xff]
  %v59 = vld [vmem:[%s1 + $0x128] sm:$0xff]
  %v60 = vld [vmem:[%s1 + $0x130] sm:$0xff]
  %v61 = vld [vmem:[%s1 + $0x138] sm:$0xff]
  %v62 = vld [vmem:[%s1 + $0x140] sm:$0xff]
  %v63 = vld [vmem:[%s1 + $0x148] sm:$0xff]
  %v64 = vld [vmem:[%s1 + $0x150] sm:$0xff]
  %v65 = vld [vmem:[%s1 + $0x158] sm:$0xff]
  %v66 = vld [vmem:[%s1 + $0x160] sm:$0xff]
  %v67 = vld [vmem:[%s1 + $0x168] sm:$0xff]
  %v68 = vld [vmem:[%s1 + $0x170] sm:$0xff]
  %v69 = vld [vmem:[%s1 + $0x178] sm:$0xff]
  %v70 = vld [vmem:[%s1 + $0x180] sm:$0xff]
  %v71 = vld [vmem:[%s1 + $0x188] sm:$0xff]
  %v72 = vld [vmem:[%s1 + $0x190] sm:$0xff]
  %v73 = vld [vmem:[%s1 + $0x198] sm:$0xff]
  %v74 = vld [vmem:[%s1 + $0x1a0] sm:$0xff]
  %v75 = vld [vmem:[%s1 + $0x1a8] sm:$0xff]
  %v76 = vld [vmem:[%s1 + $0x1b0] sm:$0xff]
  %v77 = vld [vmem:[%s1 + $0x1b8] sm:$0xff]
  %v78 = vld [vmem:[%s1 + $0x1c0] sm:$0xff]
  %v79 = vld [vmem:[%s1 + $0x1c8] sm:$0xff]
  %v80 = vld [vmem:[%s1 + $0x1d0] sm:$0xff]
  %v81 = vld [vmem:[%s1 + $0x1d8] sm:$0xff]
  %v82 = vld [vmem:[%s1 + $0x1e0] sm:$0xff]
  %v83 = vld [vmem:[%s1 + $0x1e8] sm:$0xff]
  %v84 = vld [vmem:[%s1 + $0x1f0] sm:$0xff]
  %v85 = vld [vmem:[%s1 + $0x1f8] sm:$0xff]
  %v86 = vld [vmem:[%s1 + $0x200] sm:$0xff]
  %v87 = vld [vmem:[%s1 + $0x208] sm:$0xff]
  %v88 = vld [vmem:[%s1 + $0x210] sm:$0xff]
  %v89 = vld [vmem:[%s1 + $0x218] sm:$0xff]
  %v90 = vld [vmem:[%s1 + $0x220] sm:$0xff]
  %v91 = vld [vmem:[%s1 + $0x228] sm:$0xff]
  %v92 = vld [vmem:[%s1 + $0x230] sm:$0xff]
  %v93 = vld [vmem:[%s1 + $0x238] sm:$0xff]
  %v94 = vld [vmem:[%s1 + $0x240] sm:$0xff]
  %v95 = vld [vmem:[%s1 + $0x248] sm:$0xff]
  %v96 = vld [vmem:[%s1 + $0x250] sm:$0xff]
  %v97 = vld [vmem:[%s1 + $0x258] sm:$0xff]
  %v98 = vld [vmem:[%s1 + $0x260] sm:$0xff]
  %v99 = vld [vmem:[%s1 + $0x268] sm:$0xff]
  %v100 = vld [vmem:[%s1 + $0x270] sm:$0xff]
  %v101 = vld [vmem:[%s1 + $0x278] sm:$0xff]
  %v102 = vld [vmem:[%s1 + $0x280] sm:$0xff]
  %v103 = vld [vmem:[%s1 + $0x288] sm:$0xff]
  %v104 = vld [vmem:[%s1 + $0x290] sm:$0xff]
  %v105 = vld [vmem:[%s1 + $0x298] sm:$0xff]
  %v106 = vld [vmem:[%s1 + $0x2a0] sm:$0xff]
  %v107 = vld [vmem:[%s1 + $0x2a8] sm:$0xff]
  %v108 = vld [vmem:[%s1 + $0x2b0] sm:$0xff]
  %v109 = vld [vmem:[%s1 + $0x2b8] sm:$0xff]
  %v110 = vld [vmem:[%s1 + $0x2c0] sm:$0xff]
  %v111 = vld [vmem:[%s1 + $0x2c8] sm:$0xff]
  %v112 = vld [vmem:[%s1 + $0x2d0] sm:$0xff]
  %v113 = vld [vmem:[%s1 + $0x2d8] sm:$0xff]
  %v114 = vld [vmem:[%s1 + $0x2e0] sm:$0xff]
  %v115 = vld [vmem:[%s1 + $0x2e8] sm:$0xff]
  %v116 = vld [vmem:[%s1 + $0x2f0] sm:$0xff]
  %v117 = vld [vmem:[%s1 + $0x2f8] sm:$0xff]
  %v118 = vld [vmem:[%s1 + $0x300] sm:$0xff]
  %v119 = vld [vmem:[%s1 + $0x308] sm:$0xff]
  %v120 = vld [vmem:[%s1 + $0x310] sm:$0xff]
  %v121 = vld [vmem:[%s1 + $0x318] sm:$0xff]
  %v122 = vld [vmem:[%s1 + $0x320] sm:$0xff]
  %v123 = vld [vmem:[%s1 + $0x328] sm:$0xff]
  %v124 = vld [vmem:[%s1 + $0x330] sm:$0xff]
  %v125 = vld [vmem:[%s1 + $0x338] sm:$0xff]
  %v126 = vld [vmem:[%s1 + $0x340] sm:$0xff]
  %v127 = vld [vmem:[%s1 + $0x348] sm:$0xff]
  %v128 = vld [vmem:[%s1 + $0x350] sm:$0xff]
  %v129 = vld [vmem:[%s1 + $0x358] sm:$0xff]
  %v130 = vld [vmem:[%s1 + $0x360] sm:$0xff]
  %v131 = vld [vmem:[%s1 + $0x368] sm:$0xff]
  %v132 = vld [vmem:[%s1 + $0x370] sm:$0xff]
  %v133 = vld [vmem:[%s1 + $0x378] sm:$0xff]
  %v134 = vld [vmem:[%s1 + $0x380] sm:$0xff]
  %v135 = vld [vmem:[%s1 + $0x388] sm:$0xff]
  %v136 = vld [vmem:[%s1 + $0x390] sm:$0xff]
  %v137 = vld [vmem:[%s1 + $0x398] sm:$0xff]
  %v138 = vld [vmem:[%s1 + $0x3a0] sm:$0xff]
  %v139 = vld [vmem:[%s1 + $0x3a8] sm:$0xff]
  %v140 = vld [vmem:[%s1 + $0x3b0] sm:$0xff]
  %v141 = vld [vmem:[%s1 + $0x3b8] sm:$0xff]
  %v142 = vld [vmem:[%s1 + $0x3c0] sm:$0xff]
  %v143 = vld [vmem:[%s1 + $0x3c8] sm:$0xff]
  %v144 = vld [vmem:[%s1 + $0x3d0] sm:$0xff]
  %v145 = vld [vmem:[%s1 + $0x3d8] sm:$0xff]
  %v146 = vld [vmem:[%s1 + $0x3e0] sm:$0xff]
  %v147 = vld [vmem:[%s1 + $0x3e8] sm:$0xff]
  %v148 = vld [vmem:[%s1 + $0x3f0] sm:$0xff]
  %v149 = vld [vmem:[%s1 + $0x3f8] sm:$0xff]
  %v150 = vld [vmem:[%s2] sm:$0xf]
  %v152 = vlaneseq
  %v153 = vshrl.u32 %v152, 7
  %v154 = vsub.s32 0, %v153
  %v155 = vrot.slane %v150, %v154
  %v156 = vlaneseq
  %v157 = vshrl.u32 %v156, 7
  %v158 = vsub.s32 1, %v157
  %v159 = vrot.slane %v150, %v158
  %v160 = vlaneseq
  %v161 = vshrl.u32 %v160, 7
  %v162 = vsub.s32 2, %v161
  %v163 = vrot.slane %v150, %v162
  %v164 = vlaneseq
  %v165 = vshrl.u32 %v164, 7
  %v166 = vsub.s32 3, %v165
  %v167 = vrot.slane %v150, %v166
  %172 = vmatprep.subr.mxu0 %v23
  %173 = vmatpush1.msra.mxu0 %v22
  %174 = vmatprep.subr.mxu0 %v27
  %175 = vmatpush1.msra.mxu0 %v26
  %176 = vmatprep.subr.mxu0 %v31
  %177 = vmatpush1.msra.mxu0 %v30
  %178 = vmatprep.subr.mxu0 %v35
  %179 = vmatpush1.msra.mxu0 %v34
  %180 = vmatprep.subr.mxu0 %v39
  %181 = vmatpush1.msra.mxu0 %v38
  %182 = vmatprep.subr.mxu0 %v43
  %183 = vmatpush1.msra.mxu0 %v42
  %184 = vmatprep.subr.mxu0 %v47
  %185 = vmatpush1.msra.mxu0 %v46
  %186 = vmatprep.subr.mxu0 %v51
  %187 = vmatpush1.msra.mxu0 %v50
  %188 = vmatprep.subr.mxu0 %v55
  %189 = vmatpush1.msra.mxu0 %v54
  %190 = vmatprep.subr.mxu0 %v59
  %191 = vmatpush1.msra.mxu0 %v58
  %192 = vmatprep.subr.mxu0 %v63
  %193 = vmatpush1.msra.mxu0 %v62
  %194 = vmatprep.subr.mxu0 %v67
  %195 = vmatpush1.msra.mxu0 %v66
  %196 = vmatprep.subr.mxu0 %v71
  %197 = vmatpush1.msra.mxu0 %v70
  %198 = vmatprep.subr.mxu0 %v75
  %199 = vmatpush1.msra.mxu0 %v74
  %200 = vmatprep.subr.mxu0 %v79
  %201 = vmatpush1.msra.mxu0 %v78
  %202 = vmatprep.subr.mxu0 %v83
  %203 = vmatpush1.msra.mxu0 %v82
  %204 = vmatprep.subr.mxu0 %v87
  %205 = vmatpush1.msra.mxu0 %v86
  %206 = vmatprep.subr.mxu0 %v91
  %207 = vmatpush1.msra.mxu0 %v90
  %208 = vmatprep.subr.mxu0 %v95
  %209 = vmatpush1.msra.mxu0 %v94
  %210 = vmatprep.subr.mxu0 %v99
  %211 = vmatpush1.msra.mxu0 %v98
  %212 = vmatprep.subr.mxu0 %v103
  %213 = vmatpush1.msra.mxu0 %v102
  %214 = vmatprep.subr.mxu0 %v107
  %215 = vmatpush1.msra.mxu0 %v106
  %216 = vmatprep.subr.mxu0 %v111
  %217 = vmatpush1.msra.mxu0 %v110
  %218 = vmatprep.subr.mxu0 %v115
  %219 = vmatpush1.msra.mxu0 %v114
  %220 = vmatprep.subr.mxu0 %v119
  %221 = vmatpush1.msra.mxu0 %v118
  %222 = vmatprep.subr.mxu0 %v123
  %223 = vmatpush1.msra.mxu0 %v122
  %224 = vmatprep.subr.mxu0 %v127
  %225 = vmatpush1.msra.mxu0 %v126
  %226 = vmatprep.subr.mxu0 %v131
  %227 = vmatpush1.msra.mxu0 %v130
  %228 = vmatprep.subr.mxu0 %v135
  %229 = vmatpush1.msra.mxu0 %v134
  %230 = vmatprep.subr.mxu0 %v139
  %231 = vmatpush1.msra.mxu0 %v138
  %232 = vmatprep.subr.mxu0 %v143
  %233 = vmatpush1.msra.mxu0 %v142
  %234 = vmatprep.subr.mxu0 %v147
  %235 = vmatpush1.msra.mxu0 %v146
  %236 = vmatprep.mubr.f32.mxu0 %v15
  %237 = vmatmul.mubr.f32.gmra.mrb[0].mxu0 %v14
  %v238 = vpop.f32.mrb[0].mxu0
  %v239 = vadd.f32 %v155, %v238
  %v240 = vpop.f32.mrb[0].mxu0
  %v241 = vadd.f32 %v159, %v240
  %242 = vmatprep.mubr.f32.mxu0 %v17
  %243 = vmatmul.mubr.f32.gmra.mrb[0].mxu0 %v16
  %v244 = vpop.f32.mrb[0].mxu0
  %v245 = vadd.f32 %v155, %v244
  %v246 = vpop.f32.mrb[0].mxu0
  %v247 = vadd.f32 %v159, %v246
  %248 = vmatprep.mubr.f32.mxu0 %v19
  %249 = vmatmul.mubr.f32.gmra.mrb[0].mxu0 %v18
  %v250 = vpop.f32.mrb[0].mxu0
  %v251 = vadd.f32 %v155, %v250
  %v252 = vpop.f32.mrb[0].mxu0
  %v253 = vadd.f32 %v159, %v252
  %254 = vmatprep.mubr.f32.mxu0 %v21
  %255 = vmatmul.mubr.f32.gmra.mrb[0].mxu0 %v20
  %v256 = vpop.f32.mrb[0].mxu0
  %v257 = vadd.f32 %v155, %v256
  %v258 = vpop.f32.mrb[0].mxu0
  %v259 = vadd.f32 %v159, %v258
  %260 = vdwg.mxu0
  %261 = vmatprep.subr.mxu0 %v25
  %262 = vmatpush1.msra.mxu0 %v24
  %263 = vmatprep.subr.mxu0 %v29
  %264 = vmatpush1.msra.mxu0 %v28
  %265 = vmatprep.subr.mxu0 %v33
  %266 = vmatpush1.msra.mxu0 %v32
  %267 = vmatprep.subr.mxu0 %v37
  %268 = vmatpush1.msra.mxu0 %v36
  %269 = vmatprep.subr.mxu0 %v41
  %270 = vmatpush1.msra.mxu0 %v40
  %271 = vmatprep.subr.mxu0 %v45
  %272 = vmatpush1.msra.mxu0 %v44
  %273 = vmatprep.subr.mxu0 %v49
  %274 = vmatpush1.msra.mxu0 %v48
  %275 = vmatprep.subr.mxu0 %v53
  %276 = vmatpush1.msra.mxu0 %v52
  %277 = vmatprep.subr.mxu0 %v57
  %278 = vmatpush1.msra.mxu0 %v56
  %279 = vmatprep.subr.mxu0 %v61
  %280 = vmatpush1.msra.mxu0 %v60
  %281 = vmatprep.subr.mxu0 %v65
  %282 = vmatpush1.msra.mxu0 %v64
  %283 = vmatprep.subr.mxu0 %v69
  %284 = vmatpush1.msra.mxu0 %v68
  %285 = vmatprep.subr.mxu0 %v73
  %286 = vmatpush1.msra.mxu0 %v72
  %287 = vmatprep.subr.mxu0 %v77
  %288 = vmatpush1.msra.mxu0 %v76
  %289 = vmatprep.subr.mxu0 %v81
  %290 = vmatpush1.msra.mxu0 %v80
  %291 = vmatprep.subr.mxu0 %v85
  %292 = vmatpush1.msra.mxu0 %v84
  %293 = vmatprep.subr.mxu0 %v89
  %294 = vmatpush1.msra.mxu0 %v88
  %295 = vmatprep.subr.mxu0 %v93
  %296 = vmatpush1.msra.mxu0 %v92
  %297 = vmatprep.subr.mxu0 %v97
  %298 = vmatpush1.msra.mxu0 %v96
  %299 = vmatprep.subr.mxu0 %v101
  %300 = vmatpush1.msra.mxu0 %v100
  %301 = vmatprep.subr.mxu0 %v105
  %302 = vmatpush1.msra.mxu0 %v104
  %303 = vmatprep.subr.mxu0 %v109
  %304 = vmatpush1.msra.mxu0 %v108
  %305 = vmatprep.subr.mxu0 %v113
  %306 = vmatpush1.msra.mxu0 %v112
  %307 = vmatprep.subr.mxu0 %v117
  %308 = vmatpush1.msra.mxu0 %v116
  %309 = vmatprep.subr.mxu0 %v121
  %310 = vmatpush1.msra.mxu0 %v120
  %311 = vmatprep.subr.mxu0 %v125
  %312 = vmatpush1.msra.mxu0 %v124
  %313 = vmatprep.subr.mxu0 %v129
  %314 = vmatpush1.msra.mxu0 %v128
  %315 = vmatprep.subr.mxu0 %v133
  %316 = vmatpush1.msra.mxu0 %v132
  %317 = vmatprep.subr.mxu0 %v137
  %318 = vmatpush1.msra.mxu0 %v136
  %319 = vmatprep.subr.mxu0 %v141
  %320 = vmatpush1.msra.mxu0 %v140
  %321 = vmatprep.subr.mxu0 %v145
  %322 = vmatpush1.msra.mxu0 %v144
  %323 = vmatprep.subr.mxu0 %v149
  %324 = vmatpush1.msra.mxu0 %v148
  %325 = vmatprep.mubr.f32.mxu0 %v15
  %326 = vmatmul.mubr.f32.gmra.mrb[0].mxu0 %v14
  %v327 = vpop.f32.mrb[0].mxu0
  %v328 = vadd.f32 %v163, %v327
  %v329 = vpop.f32.mrb[0].mxu0
  %v330 = vadd.f32 %v167, %v329
  %331 = vmatprep.mubr.f32.mxu0 %v17
  %332 = vmatmul.mubr.f32.gmra.mrb[0].mxu0 %v16
  %v333 = vpop.f32.mrb[0].mxu0
  %v334 = vadd.f32 %v163, %v333
  %v335 = vpop.f32.mrb[0].mxu0
  %v336 = vadd.f32 %v167, %v335
  %337 = vmatprep.mubr.f32.mxu0 %v19
  %338 = vmatmul.mubr.f32.gmra.mrb[0].mxu0 %v18
  %v339 = vpop.f32.mrb[0].mxu0
  %v340 = vadd.f32 %v163, %v339
  %v341 = vpop.f32.mrb[0].mxu0
  %v342 = vadd.f32 %v167, %v341
  %343 = vmatprep.mubr.f32.mxu0 %v21
  %344 = vmatmul.mubr.f32.gmra.mrb[0].mxu0 %v20
  %v345 = vpop.f32.mrb[0].mxu0
  %v346 = vadd.f32 %v163, %v345
  %v347 = vpop.f32.mrb[0].mxu0
  %v348 = vadd.f32 %v167, %v347
  %349 = vdwg.mxu0
  %v350 = vmax.f32 %v239, 0.0
  %v351 = vmax.f32 %v241, 0.0
  %v352 = vmax.f32 %v328, 0.0
  %v353 = vmax.f32 %v330, 0.0
  %v354 = vmax.f32 %v245, 0.0
  %v355 = vmax.f32 %v247, 0.0
  %v356 = vmax.f32 %v334, 0.0
  %v357 = vmax.f32 %v336, 0.0
  %v358 = vmax.f32 %v251, 0.0
  %v359 = vmax.f32 %v253, 0.0
  %v360 = vmax.f32 %v340, 0.0
  %v361 = vmax.f32 %v342, 0.0
  %v362 = vmax.f32 %v257, 0.0
  %v363 = vmax.f32 %v259, 0.0
  %v364 = vmax.f32 %v346, 0.0
  %v365 = vmax.f32 %v348, 0.0
  %366 = vst [vmem:[%s3] sm:$0xff] %v350
  %367 = vst [vmem:[%s3 + $0x8] sm:$0xff] %v351
  %368 = vst [vmem:[%s3 + $0x10] sm:$0xff] %v352
  %369 = vst [vmem:[%s3 + $0x18] sm:$0xff] %v353
  %370 = vst [vmem:[%s3 + $0x20] sm:$0xff] %v354
  %371 = vst [vmem:[%s3 + $0x28] sm:$0xff] %v355
  %372 = vst [vmem:[%s3 + $0x30] sm:$0xff] %v356
  %373 = vst [vmem:[%s3 + $0x38] sm:$0xff] %v357
  %374 = vst [vmem:[%s3 + $0x40] sm:$0xff] %v358
  %375 = vst [vmem:[%s3 + $0x48] sm:$0xff] %v359
  %376 = vst [vmem:[%s3 + $0x50] sm:$0xff] %v360
  %377 = vst [vmem:[%s3 + $0x58] sm:$0xff] %v361
  %378 = vst [vmem:[%s3 + $0x60] sm:$0xff] %v362
  %379 = vst [vmem:[%s3 + $0x68] sm:$0xff] %v363
  %380 = vst [vmem:[%s3 + $0x70] sm:$0xff] %v364
  %381 = vst [vmem:[%s3 + $0x78] sm:$0xff] %v365
  // Predicated region
  $region14: #{prompt_encoder.11} parent=0 // pred_check
    _
  $region15: #{prompt_encoder.11} parent=0 // pred_check_branch
    %383 = sbr.rel (0) target = $region17
  $region16: #{prompt_encoder.11} parent=0 // pred_region
    _
  $region17: #{prompt_encoder.11} parent=0 // pred_fallthru
    _
  // Predicated region
  $region18: #{prompt_encoder.11} parent=0 // pred_check
    _
  $region19: #{prompt_encoder.11} parent=0 // pred_check_branch
    %385 = sbr.rel (0) target = $region21
  $region20: #{prompt_encoder.11} parent=0 // pred_region
    _
  $region21: #{prompt_encoder.11} parent=0 // pred_fallthru
    _

// kernel: prompt_encoder.12
$region0: #{prompt_encoder.12}
  #allocation0 [shape = 'u32[]', space=smem, size = 0x4, offset = 0x4, fixed_abs, tag = 'smem constant byte address 0x4 - core index']
  #allocation1 [shape = 'u32[144,128]{1,0:T(1,128)}', space=vmem, size = 0x12000, scoped, tag = 'internal scratch']
  %s0 = inlined_call_operand.vmem [shape: f32[128,128], index: 0, kind: input, shape index: {}]
  %s1 = inlined_call_operand.vmem [shape: f32[128,256], index: 1, kind: input, shape index: {}]
  %s2 = inlined_call_operand.vmem [shape: f32[1,256], index: 2, kind: input, shape index: {}]
  %s3 = inlined_call_operand.vmem [shape: f32[128,256], index: 3, kind: output, shape index: {}]
  %s4 = sld [smem:[#allocation0]]
  $region22: #{prompt_encoder.12} parent=0
    _
  %s6 = ssub.s32 1, %s4
  %s7 = scalar_select 0, %s6, %s4
  // Predicated region
  $region2: #{prompt_encoder.12} parent=0 // pred_check
    _
  $region3: #{prompt_encoder.12} parent=0 // pred_check_branch
    %9 = sbr.rel (0) target = $region5
  $region4: #{prompt_encoder.12} parent=0 // pred_region
    _
  $region5: #{prompt_encoder.12} parent=0 // pred_fallthru
    _
  // Predicated region
  $region6: #{prompt_encoder.12} parent=0 // pred_check
    _
  $region7: #{prompt_encoder.12} parent=0 // pred_check_branch
    %11 = sbr.rel (0) target = $region9
  $region8: #{prompt_encoder.12} parent=0 // pred_region
    _
  $region9: #{prompt_encoder.12} parent=0 // pred_fallthru
    _
  // Predicated region
  $region10: #{prompt_encoder.12} parent=0 // pred_check
    _
  $region11: #{prompt_encoder.12} parent=0 // pred_check_branch
    %13 = sbr.rel (0) target = $region13
  $region12: #{prompt_encoder.12} parent=0 // pred_region
    _
  $region13: #{prompt_encoder.12} parent=0 // pred_fallthru
    _
  %v14 = vld [vmem:[%s0] sm:$0xff]
  %v15 = vld [vmem:[%s0 + $0x8] sm:$0xff]
  %v16 = vld [vmem:[%s0 + $0x10] sm:$0xff]
  %v17 = vld [vmem:[%s0 + $0x18] sm:$0xff]
  %v18 = vld [vmem:[%s0 + $0x20] sm:$0xff]
  %v19 = vld [vmem:[%s0 + $0x28] sm:$0xff]
  %v20 = vld [vmem:[%s0 + $0x30] sm:$0xff]
  %v21 = vld [vmem:[%s0 + $0x38] sm:$0xff]
  %v22 = vld [vmem:[%s0 + $0x40] sm:$0xff]
  %v23 = vld [vmem:[%s0 + $0x48] sm:$0xff]
  %v24 = vld [vmem:[%s0 + $0x50] sm:$0xff]
  %v25 = vld [vmem:[%s0 + $0x58] sm:$0xff]
  %v26 = vld [vmem:[%s0 + $0x60] sm:$0xff]
  %v27 = vld [vmem:[%s0 + $0x68] sm:$0xff]
  %v28 = vld [vmem:[%s0 + $0x70] sm:$0xff]
  %v29 = vld [vmem:[%s0 + $0x78] sm:$0xff]
  %v30 = vld [vmem:[%s1] sm:$0xff]
  %v31 = vld [vmem:[%s1 + $0x8] sm:$0xff]
  %v32 = vld [vmem:[%s1 + $0x10] sm:$0xff]
  %v33 = vld [vmem:[%s1 + $0x18] sm:$0xff]
  %v34 = vld [vmem:[%s1 + $0x20] sm:$0xff]
  %v35 = vld [vmem:[%s1 + $0x28] sm:$0xff]
  %v36 = vld [vmem:[%s1 + $0x30] sm:$0xff]
  %v37 = vld [vmem:[%s1 + $0x38] sm:$0xff]
  %v38 = vld [vmem:[%s1 + $0x40] sm:$0xff]
  %v39 = vld [vmem:[%s1 + $0x48] sm:$0xff]
  %v40 = vld [vmem:[%s1 + $0x50] sm:$0xff]
  %v41 = vld [vmem:[%s1 + $0x58] sm:$0xff]
  %v42 = vld [vmem:[%s1 + $0x60] sm:$0xff]
  %v43 = vld [vmem:[%s1 + $0x68] sm:$0xff]
  %v44 = vld [vmem:[%s1 + $0x70] sm:$0xff]
  %v45 = vld [vmem:[%s1 + $0x78] sm:$0xff]
  %v46 = vld [vmem:[%s1 + $0x80] sm:$0xff]
  %v47 = vld [vmem:[%s1 + $0x88] sm:$0xff]
  %v48 = vld [vmem:[%s1 + $0x90] sm:$0xff]
  %v49 = vld [vmem:[%s1 + $0x98] sm:$0xff]
  %v50 = vld [vmem:[%s1 + $0xa0] sm:$0xff]
  %v51 = vld [vmem:[%s1 + $0xa8] sm:$0xff]
  %v52 = vld [vmem:[%s1 + $0xb0] sm:$0xff]
  %v53 = vld [vmem:[%s1 + $0xb8] sm:$0xff]
  %v54 = vld [vmem:[%s1 + $0xc0] sm:$0xff]
  %v55 = vld [vmem:[%s1 + $0xc8] sm:$0xff]
  %v56 = vld [vmem:[%s1 + $0xd0] sm:$0xff]
  %v57 = vld [vmem:[%s1 + $0xd8] sm:$0xff]
  %v58 = vld [vmem:[%s1 + $0xe0] sm:$0xff]
  %v59 = vld [vmem:[%s1 + $0xe8] sm:$0xff]
  %v60 = vld [vmem:[%s1 + $0xf0] sm:$0xff]
  %v61 = vld [vmem:[%s1 + $0xf8] sm:$0xff]
  %v62 = vld [vmem:[%s2] sm:$0x3]
  %v64 = vlaneseq
  %v65 = vshrl.u32 %v64, 7
  %v66 = vsub.s32 0, %v65
  %v67 = vrot.slane %v62, %v66
  %v68 = vlaneseq
  %v69 = vshrl.u32 %v68, 7
  %v70 = vsub.s32 1, %v69
  %v71 = vrot.slane %v62, %v70
  %74 = vmatprep.subr.mxu0 %v31
  %75 = vmatpush1.msra.mxu0 %v30
  %76 = vmatprep.subr.mxu0 %v33
  %77 = vmatpush1.msra.mxu0 %v32
  %78 = vmatprep.subr.mxu0 %v35
  %79 = vmatpush1.msra.mxu0 %v34
  %80 = vmatprep.subr.mxu0 %v37
  %81 = vmatpush1.msra.mxu0 %v36
  %82 = vmatprep.subr.mxu0 %v39
  %83 = vmatpush1.msra.mxu0 %v38
  %84 = vmatprep.subr.mxu0 %v41
  %85 = vmatpush1.msra.mxu0 %v40
  %86 = vmatprep.subr.mxu0 %v43
  %87 = vmatpush1.msra.mxu0 %v42
  %88 = vmatprep.subr.mxu0 %v45
  %89 = vmatpush1.msra.mxu0 %v44
  %90 = vmatprep.subr.mxu0 %v47
  %91 = vmatpush1.msra.mxu0 %v46
  %92 = vmatprep.subr.mxu0 %v49
  %93 = vmatpush1.msra.mxu0 %v48
  %94 = vmatprep.subr.mxu0 %v51
  %95 = vmatpush1.msra.mxu0 %v50
  %96 = vmatprep.subr.mxu0 %v53
  %97 = vmatpush1.msra.mxu0 %v52
  %98 = vmatprep.subr.mxu0 %v55
  %99 = vmatpush1.msra.mxu0 %v54
  %100 = vmatprep.subr.mxu0 %v57
  %101 = vmatpush1.msra.mxu0 %v56
  %102 = vmatprep.subr.mxu0 %v59
  %103 = vmatpush1.msra.mxu0 %v58
  %104 = vmatprep.subr.mxu0 %v61
  %105 = vmatpush1.msra.mxu0 %v60
  %106 = vmatprep.subr.mxu0 0.0
  %107 = vmatpush1.msra.mxu0 0.0
  %108 = vmatprep.subr.mxu0 0.0
  %109 = vmatpush1.msra.mxu0 0.0
  %110 = vmatprep.subr.mxu0 0.0
  %111 = vmatpush1.msra.mxu0 0.0
  %112 = vmatprep.subr.mxu0 0.0
  %113 = vmatpush1.msra.mxu0 0.0
  %114 = vmatprep.subr.mxu0 0.0
  %115 = vmatpush1.msra.mxu0 0.0
  %116 = vmatprep.subr.mxu0 0.0
  %117 = vmatpush1.msra.mxu0 0.0
  %118 = vmatprep.subr.mxu0 0.0
  %119 = vmatpush1.msra.mxu0 0.0
  %120 = vmatprep.subr.mxu0 0.0
  %121 = vmatpush1.msra.mxu0 0.0
  %122 = vmatprep.subr.mxu0 0.0
  %123 = vmatpush1.msra.mxu0 0.0
  %124 = vmatprep.subr.mxu0 0.0
  %125 = vmatpush1.msra.mxu0 0.0
  %126 = vmatprep.subr.mxu0 0.0
  %127 = vmatpush1.msra.mxu0 0.0
  %128 = vmatprep.subr.mxu0 0.0
  %129 = vmatpush1.msra.mxu0 0.0
  %130 = vmatprep.subr.mxu0 0.0
  %131 = vmatpush1.msra.mxu0 0.0
  %132 = vmatprep.subr.mxu0 0.0
  %133 = vmatpush1.msra.mxu0 0.0
  %134 = vmatprep.subr.mxu0 0.0
  %135 = vmatpush1.msra.mxu0 0.0
  %136 = vmatprep.subr.mxu0 0.0
  %137 = vmatpush1.msra.mxu0 0.0
  %138 = vmatprep.mubr.f32.mxu0 0.0
  %139 = vmatmul.mubr.f32.gmra.mrb[0].mxu0 %v14
  %v140 = vpop.f32.mrb[0].mxu0
  %v141 = vadd.f32 %v67, %v140
  %v142 = vpop.f32.mrb[0].mxu0
  %v143 = vadd.f32 %v71, %v142
  %144 = vmatprep.mubr.f32.mxu0 0.0
  %145 = vmatmul.mubr.f32.gmra.mrb[0].mxu0 %v15
  %v146 = vpop.f32.mrb[0].mxu0
  %v147 = vadd.f32 %v67, %v146
  %v148 = vpop.f32.mrb[0].mxu0
  %v149 = vadd.f32 %v71, %v148
  %150 = vmatprep.mubr.f32.mxu0 0.0
  %151 = vmatmul.mubr.f32.gmra.mrb[0].mxu0 %v16
  %v152 = vpop.f32.mrb[0].mxu0
  %v153 = vadd.f32 %v67, %v152
  %v154 = vpop.f32.mrb[0].mxu0
  %v155 = vadd.f32 %v71, %v154
  %156 = vmatprep.mubr.f32.mxu0 0.0
  %157 = vmatmul.mubr.f32.gmra.mrb[0].mxu0 %v17
  %v158 = vpop.f32.mrb[0].mxu0
  %v159 = vadd.f32 %v67, %v158
  %v160 = vpop.f32.mrb[0].mxu0
  %v161 = vadd.f32 %v71, %v160
  %162 = vmatprep.mubr.f32.mxu0 0.0
  %163 = vmatmul.mubr.f32.gmra.mrb[0].mxu0 %v18
  %v164 = vpop.f32.mrb[0].mxu0
  %v165 = vadd.f32 %v67, %v164
  %v166 = vpop.f32.mrb[0].mxu0
  %v167 = vadd.f32 %v71, %v166
  %168 = vmatprep.mubr.f32.mxu0 0.0
  %169 = vmatmul.mubr.f32.gmra.mrb[0].mxu0 %v19
  %v170 = vpop.f32.mrb[0].mxu0
  %v171 = vadd.f32 %v67, %v170
  %v172 = vpop.f32.mrb[0].mxu0
  %v173 = vadd.f32 %v71, %v172
  %174 = vmatprep.mubr.f32.mxu0 0.0
  %175 = vmatmul.mubr.f32.gmra.mrb[0].mxu0 %v20
  %v176 = vpop.f32.mrb[0].mxu0
  %v177 = vadd.f32 %v67, %v176
  %v178 = vpop.f32.mrb[0].mxu0
  %v179 = vadd.f32 %v71, %v178
  %180 = vmatprep.mubr.f32.mxu0 0.0
  %181 = vmatmul.mubr.f32.gmra.mrb[0].mxu0 %v21
  %v182 = vpop.f32.mrb[0].mxu0
  %v183 = vadd.f32 %v67, %v182
  %v184 = vpop.f32.mrb[0].mxu0
  %v185 = vadd.f32 %v71, %v184
  %186 = vmatprep.mubr.f32.mxu0 0.0
  %187 = vmatmul.mubr.f32.gmra.mrb[0].mxu0 %v22
  %v188 = vpop.f32.mrb[0].mxu0
  %v189 = vadd.f32 %v67, %v188
  %v190 = vpop.f32.mrb[0].mxu0
  %v191 = vadd.f32 %v71, %v190
  %192 = vmatprep.mubr.f32.mxu0 0.0
  %193 = vmatmul.mubr.f32.gmra.mrb[0].mxu0 %v23
  %v194 = vpop.f32.mrb[0].mxu0
  %v195 = vadd.f32 %v67, %v194
  %v196 = vpop.f32.mrb[0].mxu0
  %v197 = vadd.f32 %v71, %v196
  %198 = vmatprep.mubr.f32.mxu0 0.0
  %199 = vmatmul.mubr.f32.gmra.mrb[0].mxu0 %v24
  %v200 = vpop.f32.mrb[0].mxu0
  %v201 = vadd.f32 %v67, %v200
  %v202 = vpop.f32.mrb[0].mxu0
  %v203 = vadd.f32 %v71, %v202
  %204 = vmatprep.mubr.f32.mxu0 0.0
  %205 = vmatmul.mubr.f32.gmra.mrb[0].mxu0 %v25
  %v206 = vpop.f32.mrb[0].mxu0
  %v207 = vadd.f32 %v67, %v206
  %v208 = vpop.f32.mrb[0].mxu0
  %v209 = vadd.f32 %v71, %v208
  %210 = vmatprep.mubr.f32.mxu0 0.0
  %211 = vmatmul.mubr.f32.gmra.mrb[0].mxu0 %v26
  %v212 = vpop.f32.mrb[0].mxu0
  %v213 = vadd.f32 %v67, %v212
  %v214 = vpop.f32.mrb[0].mxu0
  %v215 = vadd.f32 %v71, %v214
  %216 = vmatprep.mubr.f32.mxu0 0.0
  %217 = vmatmul.mubr.f32.gmra.mrb[0].mxu0 %v27
  %v218 = vpop.f32.mrb[0].mxu0
  %v219 = vadd.f32 %v67, %v218
  %v220 = vpop.f32.mrb[0].mxu0
  %v221 = vadd.f32 %v71, %v220
  %222 = vmatprep.mubr.f32.mxu0 0.0
  %223 = vmatmul.mubr.f32.gmra.mrb[0].mxu0 %v28
  %v224 = vpop.f32.mrb[0].mxu0
  %v225 = vadd.f32 %v67, %v224
  %v226 = vpop.f32.mrb[0].mxu0
  %v227 = vadd.f32 %v71, %v226
  %228 = vmatprep.mubr.f32.mxu0 0.0
  %229 = vmatmul.mubr.f32.gmra.mrb[0].mxu0 %v29
  %v230 = vpop.f32.mrb[0].mxu0
  %v231 = vadd.f32 %v67, %v230
  %v232 = vpop.f32.mrb[0].mxu0
  %v233 = vadd.f32 %v71, %v232
  %234 = vdwg.mxu0
  %v235 = vmax.f32 %v141, 0.0
  %v236 = vmax.f32 %v143, 0.0
  %v237 = vmax.f32 %v147, 0.0
  %v238 = vmax.f32 %v149, 0.0
  %v239 = vmax.f32 %v153, 0.0
  %v240 = vmax.f32 %v155, 0.0
  %v241 = vmax.f32 %v159, 0.0
  %v242 = vmax.f32 %v161, 0.0
  %v243 = vmax.f32 %v165, 0.0
  %v244 = vmax.f32 %v167, 0.0
  %v245 = vmax.f32 %v171, 0.0
  %v246 = vmax.f32 %v173, 0.0
  %v247 = vmax.f32 %v177, 0.0
  %v248 = vmax.f32 %v179, 0.0
  %v249 = vmax.f32 %v183, 0.0
  %v250 = vmax.f32 %v185, 0.0
  %v251 = vmax.f32 %v189, 0.0
  %v252 = vmax.f32 %v191, 0.0
  %v253 = vmax.f32 %v195, 0.0
  %v254 = vmax.f32 %v197, 0.0
  %v255 = vmax.f32 %v201, 0.0
  %v256 = vmax.f32 %v203, 0.0
  %v257 = vmax.f32 %v207, 0.0
  %v258 = vmax.f32 %v209, 0.0
  %v259 = vmax.f32 %v213, 0.0
  %v260 = vmax.f32 %v215, 0.0
  %v261 = vmax.f32 %v219, 0.0
  %v262 = vmax.f32 %v221, 0.0
  %v263 = vmax.f32 %v225, 0.0
  %v264 = vmax.f32 %v227, 0.0
  %v265 = vmax.f32 %v231, 0.0
  %v266 = vmax.f32 %v233, 0.0
  %267 = vst [vmem:[%s3] sm:$0xff] %v235
  %268 = vst [vmem:[%s3 + $0x8] sm:$0xff] %v236
  %269 = vst [vmem:[%s3 + $0x10] sm:$0xff] %v237
  %270 = vst [vmem:[%s3 + $0x18] sm:$0xff] %v238
  %271 = vst [vmem:[%s3 + $0x20] sm:$0xff] %v239
  %272 = vst [vmem:[%s3 + $0x28] sm:$0xff] %v240
  %273 = vst [vmem:[%s3 + $0x30] sm:$0xff] %v241
  %274 = vst [vmem:[%s3 + $0x38] sm:$0xff] %v242
  %275 = vst [vmem:[%s3 + $0x40] sm:$0xff] %v243
  %276 = vst [vmem:[%s3 + $0x48] sm:$0xff] %v244
  %277 = vst [vmem:[%s3 + $0x50] sm:$0xff] %v245
  %278 = vst [vmem:[%s3 + $0x58] sm:$0xff] %v246
  %279 = vst [vmem:[%s3 + $0x60] sm:$0xff] %v247
  %280 = vst [vmem:[%s3 + $0x68] sm:$0xff] %v248
  %281 = vst [vmem:[%s3 + $0x70] sm:$0xff] %v249
  %282 = vst [vmem:[%s3 + $0x78] sm:$0xff] %v250
  %283 = vst [vmem:[%s3 + $0x80] sm:$0xff] %v251
  %284 = vst [vmem:[%s3 + $0x88] sm:$0xff] %v252
  %285 = vst [vmem:[%s3 + $0x90] sm:$0xff] %v253
  %286 = vst [vmem:[%s3 + $0x98] sm:$0xff] %v254
  %287 = vst [vmem:[%s3 + $0xa0] sm:$0xff] %v255
  %288 = vst [vmem:[%s3 + $0xa8] sm:$0xff] %v256
  %289 = vst [vmem:[%s3 + $0xb0] sm:$0xff] %v257
  %290 = vst [vmem:[%s3 + $0xb8] sm:$0xff] %v258
  %291 = vst [vmem:[%s3 + $0xc0] sm:$0xff] %v259
  %292 = vst [vmem:[%s3 + $0xc8] sm:$0xff] %v260
  %293 = vst [vmem:[%s3 + $0xd0] sm:$0xff] %v261
  %294 = vst [vmem:[%s3 + $0xd8] sm:$0xff] %v262
  %295 = vst [vmem:[%s3 + $0xe0] sm:$0xff] %v263
  %296 = vst [vmem:[%s3 + $0xe8] sm:$0xff] %v264
  %297 = vst [vmem:[%s3 + $0xf0] sm:$0xff] %v265
  %298 = vst [vmem:[%s3 + $0xf8] sm:$0xff] %v266
  // Predicated region
  $region14: #{prompt_encoder.12} parent=0 // pred_check
    _
  $region15: #{prompt_encoder.12} parent=0 // pred_check_branch
    %300 = sbr.rel (0) target = $region17
  $region16: #{prompt_encoder.12} parent=0 // pred_region
    _
  $region17: #{prompt_encoder.12} parent=0 // pred_fallthru
    _
  // Predicated region
  $region18: #{prompt_encoder.12} parent=0 // pred_check
    _
  $region19: #{prompt_encoder.12} parent=0 // pred_check_branch
    %302 = sbr.rel (0) target = $region21
  $region20: #{prompt_encoder.12} parent=0 // pred_region
    _
  $region21: #{prompt_encoder.12} parent=0 // pred_fallthru
    _

// kernel: prompt_encoder.10
$region0: #{prompt_encoder.10}
  #allocation0 [shape = 'u32[]', space=smem, size = 0x4, offset = 0x4, fixed_abs, tag = 'smem constant byte address 0x4 - core index']
  #allocation1 [shape = 'u32[144,128]{1,0:T(1,128)}', space=vmem, size = 0x12000, scoped, tag = 'internal scratch']
  #allocation2 [shape = 'f32[32,256]{1,0:T(8,128)}', space=vmem, size = 0x8000, scoped, tag = 'scratch operand']
  #allocation3 [shape = 'f32[32,768]{1,0:T(8,128)}', space=vmem, size = 0x18000, scoped, tag = 'scratch operand']
  #allocation4 [shape = 'f32[32,256]{1,0:T(8,128)}', space=vmem, size = 0x8000, scoped, tag = 'scratch operand']
  %s0 = inlined_call_operand.vmem [shape: f32[32,256], index: 0, kind: input, shape index: {}]
  %s1 = inlined_call_operand.vmem [shape: f32[4,256,768], index: 1, kind: input, shape index: {}]
  %s2 = inlined_call_operand.vmem [shape: f32[4,1,768], index: 2, kind: input, shape index: {}]
  %s3 = inlined_call_operand.vmem [shape: f32[4,256,256], index: 3, kind: input, shape index: {}]
  %s4 = inlined_call_operand.vmem [shape: f32[4,1,256], index: 4, kind: input, shape index: {}]
  %s5 = inlined_call_operand.vmem [shape: f32[4,1,256], index: 5, kind: input, shape index: {}]
  %s6 = inlined_call_operand.vmem [shape: f32[4,1,256], index: 6, kind: input, shape index: {}]
  %s7 = inlined_call_operand.vmem [shape: f32[4,256,512], index: 7, kind: input, shape index: {}]
  %s8 = inlined_call_operand.vmem [shape: f32[4,1,512], index: 8, kind: input, shape index: {}]
  %s9 = inlined_call_operand.vmem [shape: f32[4,512,256], index: 9, kind: input, shape index: {}]
  %s10 = inlined_call_operand.vmem [shape: f32[4,1,256], index: 10, kind: input, shape index: {}]
  %s11 = inlined_call_operand.vmem [shape: f32[4,1,256], index: 11, kind: input, shape index: {}]
  %s12 = inlined_call_operand.vmem [shape: f32[4,1,256], index: 12, kind: input, shape index: {}]
  %s13 = inlined_call_operand.vmem [shape: f32[32,256], index: 13, kind: output, shape index: {}]
  %s14 = sld [smem:[#allocation0]]
  $region89: #{prompt_encoder.10} parent=0
    _
  %s16 = ssub.s32 1, %s14
  %s17 = scalar_select 0, %s16, %s14
  loop: start=0, step=1, limit=6
  $region2: #{prompt_encoder.10} parent=0 // loop_pre_header
    _
  $region3: #{prompt_encoder.10} parent=0 // loop_header
    %s19 = sphi 0, %s23
    %p20 = scmp.ge.s32.totalorder %s19, 6
    %s27 = sphi 0, %s27
    %s29 = sphi 0, %s27
    %s30 = sphi 0, %s29
    %s44 = sphi 0, %s30
    %s50 = sphi 0, %s52
    %s53 = sphi 0, %s50
    %s54 = sphi 0, %s53
    %s70 = sphi 0, %s54
    %s76 = sphi 0, %s78
    %s79 = sphi 0, %s76
    %s80 = sphi 0, %s79
    %s96 = sphi 0, %s80
    %s102 = sphi 0, %s104
    %s105 = sphi 0, %s102
    %s106 = sphi 0, %s105
    %s122 = sphi 0, %s106
    %s128 = sphi 0, %s130
    %s131 = sphi 0, %s128
    %s132 = sphi 0, %s131
    %s148 = sphi 0, %s132
    %s154 = sphi 0, %s156
    %s157 = sphi 0, %s154
    %s158 = sphi 0, %s157
    %s174 = sphi 0, %s158
    %s180 = sphi 0, %s182
    %s183 = sphi 0, %s180
    %s184 = sphi 0, %s183
    %s200 = sphi 0, %s184
    %s206 = sphi 0, %s208
    %s209 = sphi 0, %s206
    %s210 = sphi 0, %s209
    %s226 = sphi 0, %s210
    %s232 = sphi 0, %s234
    %s235 = sphi 0, %s232
    %s236 = sphi 0, %s235
    %s252 = sphi 0, %s236
    %s258 = sphi 0, %s260
    %s261 = sphi 0, %s258
    %s262 = sphi 0, %s261
    %s278 = sphi 0, %s262
    %s284 = sphi 0, %s286
    %s287 = sphi 0, %s284
    %s288 = sphi 0, %s287
    %s304 = sphi 0, %s288
    %s310 = sphi 0, %s312
    %s313 = sphi 0, %s310
    %s314 = sphi 0, %s313
    %s330 = sphi 0, %s314
    %s336 = sphi 0, %s338
    %s339 = sphi 0, %s336
    %s340 = sphi 0, %s339
    %s356 = sphi 0, %s340
    %s360 = sphi 0, %s360
    %s362 = sphi 0, %s360
    %s363 = sphi 0, %s362
    %s377 = sphi 0, %s363
  $region4: #{prompt_encoder.10} parent=0 // loop_header_branch
    %22 = sbr.rel (%p20) target = $region8
  $region5: #{prompt_encoder.10} parent=0 // loop_body
    %s24 = ssub.s32 %s19, 1
    %s25 = ssub.s32 %s19, 2
    %s26 = sadd.s32 %s19, 1
    %s28 = sadd.s32 %s27, 1
    %p31 = scmp.eq.s32.totalorder %s19, 3
    %p32 = scmp.ne.s32.totalorder %s27, %s29
    %p33 = scmp.eq.s32.totalorder %s19, 0
    %p34 = por %p32, %p33
    %p35 = scmp.ne.s32.totalorder %s27, %s29
    %p36 = scmp.eq.s32.totalorder %s24, 3
    %p37 = por %p35, %p36
    %p38 = scmp.ne.s32.totalorder %s29, %s30
    %p39 = scmp.eq.s32.totalorder %s24, 0
    %p40 = por %p38, %p39
    %p41 = scmp.ne.s32.totalorder %s29, %s30
    %p42 = scmp.eq.s32.totalorder %s25, 3
    %p43 = por %p41, %p42
    %p45 = scmp.ne.s32.totalorder %s30, %s44
    %p46 = scmp.eq.s32.totalorder %s25, 0
    %p47 = por %p45, %p46
    %s48 = ssub.s32 %s19, %s26
    %p49 = scmp.eq.s32.totalorder %s48, 0
    %s51 = sadd.s32 %s50, 1
    %s52 = scalar_select %p49, %s50, %s51
    %p55 = pneg %p49
    %p56 = scmp.eq.s32.totalorder %s19, 3
    %p57 = por %p55, %p56
    %p58 = scmp.ne.s32.totalorder %s50, %s53
    %p59 = scmp.eq.s32.totalorder %s19, 0
    %p60 = por %p58, %p59
    %p61 = scmp.ne.s32.totalorder %s50, %s53
    %p62 = scmp.eq.s32.totalorder %s24, 3
    %p63 = por %p61, %p62
    %p64 = scmp.ne.s32.totalorder %s53, %s54
    %p65 = scmp.eq.s32.totalorder %s24, 0
    %p66 = por %p64, %p65
    %p67 = scmp.ne.s32.totalorder %s53, %s54
    %p68 = scmp.eq.s32.totalorder %s25, 3
    %p69 = por %p67, %p68
    %p71 = scmp.ne.s32.totalorder %s54, %s70
    %p72 = scmp.eq.s32.totalorder %s25, 0
    %p73 = por %p71, %p72
    %s74 = ssub.s32 %s19, %s26
    %p75 = scmp.eq.s32.totalorder %s74, 0
    %s77 = sadd.s32 %s76, 1
    %s78 = scalar_select %p75, %s76, %s77
    %p81 = pneg %p75
    %p82 = scmp.eq.s32.totalorder %s19, 3
    %p83 = por %p81, %p82
    %p84 = scmp.ne.s32.totalorder %s76, %s79
    %p85 = scmp.eq.s32.totalorder %s19, 0
    %p86 = por %p84, %p85
    %p87 = scmp.ne.s32.totalorder %s76, %s79
    %p88 = scmp.eq.s32.totalorder %s24, 3
    %p89 = por %p87, %p88
    %p90 = scmp.ne.s32.totalorder %s79, %s80
    %p91 = scmp.eq.s32.totalorder %s24, 0
    %p92 = por %p90, %p91
    %p93 = scmp.ne.s32.totalorder %s79, %s80
    %p94 = scmp.eq.s32.totalorder %s25, 3
    %p95 = por %p93, %p94
    %p97 = scmp.ne.s32.totalorder %s80, %s96
    %p98 = scmp.eq.s32.totalorder %s25, 0
    %p99 = por %p97, %p98
    %s100 = ssub.s32 %s19, %s26
    %p101 = scmp.eq.s32.totalorder %s100, 0
    %s103 = sadd.s32 %s102, 1
    %s104 = scalar_select %p101, %s102, %s103
    %p107 = pneg %p101
    %p108 = scmp.eq.s32.totalorder %s19, 3
    %p109 = por %p107, %p108
    %p110 = scmp.ne.s32.totalorder %s102, %s105
    %p111 = scmp.eq.s32.totalorder %s19, 0
    %p112 = por %p110, %p111
    %p113 = scmp.ne.s32.totalorder %s102, %s105
    %p114 = scmp.eq.s32.totalorder %s24, 3
    %p115 = por %p113, %p114
    %p116 = scmp.ne.s32.totalorder %s105, %s106
    %p117 = scmp.eq.s32.totalorder %s24, 0
    %p118 = por %p116, %p117
    %p119 = scmp.ne.s32.totalorder %s105, %s106
    %p120 = scmp.eq.s32.totalorder %s25, 3
    %p121 = por %p119, %p120
    %p123 = scmp.ne.s32.totalorder %s106, %s122
    %p124 = scmp.eq.s32.totalorder %s25, 0
    %p125 = por %p123, %p124
    %s126 = ssub.s32 %s19, %s26
    %p127 = scmp.eq.s32.totalorder %s126, 0
    %s129 = sadd.s32 %s128, 1
    %s130 = scalar_select %p127, %s128, %s129
    %p133 = pneg %p127
    %p134 = scmp.eq.s32.totalorder %s19, 3
    %p135 = por %p133, %p134
    %p136 = scmp.ne.s32.totalorder %s128, %s131
    %p137 = scmp.eq.s32.totalorder %s19, 0
    %p138 = por %p136, %p137
    %p139 = scmp.ne.s32.totalorder %s128, %s131
    %p140 = scmp.eq.s32.totalorder %s24, 3
    %p141 = por %p139, %p140
    %p142 = scmp.ne.s32.totalorder %s131, %s132
    %p143 = scmp.eq.s32.totalorder %s24, 0
    %p144 = por %p142, %p143
    %p145 = scmp.ne.s32.totalorder %s131, %s132
    %p146 = scmp.eq.s32.totalorder %s25, 3
    %p147 = por %p145, %p146
    %p149 = scmp.ne.s32.totalorder %s132, %s148
    %p150 = scmp.eq.s32.totalorder %s25, 0
    %p151 = por %p149, %p150
    %s152 = ssub.s32 %s19, %s26
    %p153 = scmp.eq.s32.totalorder %s152, 0
    %s155 = sadd.s32 %s154, 1
    %s156 = scalar_select %p153, %s154, %s155
    %p159 = pneg %p153
    %p160 = scmp.eq.s32.totalorder %s19, 3
    %p161 = por %p159, %p160
    %p162 = scmp.ne.s32.totalorder %s154, %s157
    %p163 = scmp.eq.s32.totalorder %s19, 0
    %p164 = por %p162, %p163
    %p165 = scmp.ne.s32.totalorder %s154, %s157
    %p166 = scmp.eq.s32.totalorder %s24, 3
    %p167 = por %p165, %p166
    %p168 = scmp.ne.s32.totalorder %s157, %s158
    %p169 = scmp.eq.s32.totalorder %s24, 0
    %p170 = por %p168, %p169
    %p171 = scmp.ne.s32.totalorder %s157, %s158
    %p172 = scmp.eq.s32.totalorder %s25, 3
    %p173 = por %p171, %p172
    %p175 = scmp.ne.s32.totalorder %s158, %s174
    %p176 = scmp.eq.s32.totalorder %s25, 0
    %p177 = por %p175, %p176
    %s178 = ssub.s32 %s19, %s26
    %p179 = scmp.eq.s32.totalorder %s178, 0
    %s181 = sadd.s32 %s180, 1
    %s182 = scalar_select %p179, %s180, %s181
    %p185 = pneg %p179
    %p186 = scmp.eq.s32.totalorder %s19, 3
    %p187 = por %p185, %p186
    %p188 = scmp.ne.s32.totalorder %s180, %s183
    %p189 = scmp.eq.s32.totalorder %s19, 0
    %p190 = por %p188, %p189
    %p191 = scmp.ne.s32.totalorder %s180, %s183
    %p192 = scmp.eq.s32.totalorder %s24, 3
    %p193 = por %p191, %p192
    %p194 = scmp.ne.s32.totalorder %s183, %s184
    %p195 = scmp.eq.s32.totalorder %s24, 0
    %p196 = por %p194, %p195
    %p197 = scmp.ne.s32.totalorder %s183, %s184
    %p198 = scmp.eq.s32.totalorder %s25, 3
    %p199 = por %p197, %p198
    %p201 = scmp.ne.s32.totalorder %s184, %s200
    %p202 = scmp.eq.s32.totalorder %s25, 0
    %p203 = por %p201, %p202
    %s204 = ssub.s32 %s19, %s26
    %p205 = scmp.eq.s32.totalorder %s204, 0
    %s207 = sadd.s32 %s206, 1
    %s208 = scalar_select %p205, %s206, %s207
    %p211 = pneg %p205
    %p212 = scmp.eq.s32.totalorder %s19, 3
    %p213 = por %p211, %p212
    %p214 = scmp.ne.s32.totalorder %s206, %s209
    %p215 = scmp.eq.s32.totalorder %s19, 0
    %p216 = por %p214, %p215
    %p217 = scmp.ne.s32.totalorder %s206, %s209
    %p218 = scmp.eq.s32.totalorder %s24, 3
    %p219 = por %p217, %p218
    %p220 = scmp.ne.s32.totalorder %s209, %s210
    %p221 = scmp.eq.s32.totalorder %s24, 0
    %p222 = por %p220, %p221
    %p223 = scmp.ne.s32.totalorder %s209, %s210
    %p224 = scmp.eq.s32.totalorder %s25, 3
    %p225 = por %p223, %p224
    %p227 = scmp.ne.s32.totalorder %s210, %s226
    %p228 = scmp.eq.s32.totalorder %s25, 0
    %p229 = por %p227, %p228
    %s230 = ssub.s32 %s19, %s26
    %p231 = scmp.eq.s32.totalorder %s230, 0
    %s233 = sadd.s32 %s232, 1
    %s234 = scalar_select %p231, %s232, %s233
    %p237 = pneg %p231
    %p238 = scmp.eq.s32.totalorder %s19, 3
    %p239 = por %p237, %p238
    %p240 = scmp.ne.s32.totalorder %s232, %s235
    %p241 = scmp.eq.s32.totalorder %s19, 0
    %p242 = por %p240, %p241
    %p243 = scmp.ne.s32.totalorder %s232, %s235
    %p244 = scmp.eq.s32.totalorder %s24, 3
    %p245 = por %p243, %p244
    %p246 = scmp.ne.s32.totalorder %s235, %s236
    %p247 = scmp.eq.s32.totalorder %s24, 0
    %p248 = por %p246, %p247
    %p249 = scmp.ne.s32.totalorder %s235, %s236
    %p250 = scmp.eq.s32.totalorder %s25, 3
    %p251 = por %p249, %p250
    %p253 = scmp.ne.s32.totalorder %s236, %s252
    %p254 = scmp.eq.s32.totalorder %s25, 0
    %p255 = por %p253, %p254
    %s256 = ssub.s32 %s19, %s26
    %p257 = scmp.eq.s32.totalorder %s256, 0
    %s259 = sadd.s32 %s258, 1
    %s260 = scalar_select %p257, %s258, %s259
    %p263 = pneg %p257
    %p264 = scmp.eq.s32.totalorder %s19, 3
    %p265 = por %p263, %p264
    %p266 = scmp.ne.s32.totalorder %s258, %s261
    %p267 = scmp.eq.s32.totalorder %s19, 0
    %p268 = por %p266, %p267
    %p269 = scmp.ne.s32.totalorder %s258, %s261
    %p270 = scmp.eq.s32.totalorder %s24, 3
    %p271 = por %p269, %p270
    %p272 = scmp.ne.s32.totalorder %s261, %s262
    %p273 = scmp.eq.s32.totalorder %s24, 0
    %p274 = por %p272, %p273
    %p275 = scmp.ne.s32.totalorder %s261, %s262
    %p276 = scmp.eq.s32.totalorder %s25, 3
    %p277 = por %p275, %p276
    %p279 = scmp.ne.s32.totalorder %s262, %s278
    %p280 = scmp.eq.s32.totalorder %s25, 0
    %p281 = por %p279, %p280
    %s282 = ssub.s32 %s19, %s26
    %p283 = scmp.eq.s32.totalorder %s282, 0
    %s285 = sadd.s32 %s284, 1
    %s286 = scalar_select %p283, %s284, %s285
    %p289 = pneg %p283
    %p290 = scmp.eq.s32.totalorder %s19, 3
    %p291 = por %p289, %p290
    %p292 = scmp.ne.s32.totalorder %s284, %s287
    %p293 = scmp.eq.s32.totalorder %s19, 0
    %p294 = por %p292, %p293
    %p295 = scmp.ne.s32.totalorder %s284, %s287
    %p296 = scmp.eq.s32.totalorder %s24, 3
    %p297 = por %p295, %p296
    %p298 = scmp.ne.s32.totalorder %s287, %s288
    %p299 = scmp.eq.s32.totalorder %s24, 0
    %p300 = por %p298, %p299
    %p301 = scmp.ne.s32.totalorder %s287, %s288
    %p302 = scmp.eq.s32.totalorder %s25, 3
    %p303 = por %p301, %p302
    %p305 = scmp.ne.s32.totalorder %s288, %s304
    %p306 = scmp.eq.s32.totalorder %s25, 0
    %p307 = por %p305, %p306
    %s308 = ssub.s32 %s19, %s26
    %p309 = scmp.eq.s32.totalorder %s308, 0
    %s311 = sadd.s32 %s310, 1
    %s312 = scalar_select %p309, %s310, %s311
    %p315 = pneg %p309
    %p316 = scmp.eq.s32.totalorder %s19, 3
    %p317 = por %p315, %p316
    %p318 = scmp.ne.s32.totalorder %s310, %s313
    %p319 = scmp.eq.s32.totalorder %s19, 0
    %p320 = por %p318, %p319
    %p321 = scmp.ne.s32.totalorder %s310, %s313
    %p322 = scmp.eq.s32.totalorder %s24, 3
    %p323 = por %p321, %p322
    %p324 = scmp.ne.s32.totalorder %s313, %s314
    %p325 = scmp.eq.s32.totalorder %s24, 0
    %p326 = por %p324, %p325
    %p327 = scmp.ne.s32.totalorder %s313, %s314
    %p328 = scmp.eq.s32.totalorder %s25, 3
    %p329 = por %p327, %p328
    %p331 = scmp.ne.s32.totalorder %s314, %s330
    %p332 = scmp.eq.s32.totalorder %s25, 0
    %p333 = por %p331, %p332
    %s334 = ssub.s32 %s19, %s26
    %p335 = scmp.eq.s32.totalorder %s334, 0
    %s337 = sadd.s32 %s336, 1
    %s338 = scalar_select %p335, %s336, %s337
    %p341 = pneg %p335
    %p342 = scmp.eq.s32.totalorder %s19, 3
    %p343 = por %p341, %p342
    %p344 = scmp.ne.s32.totalorder %s336, %s339
    %p345 = scmp.eq.s32.totalorder %s19, 0
    %p346 = por %p344, %p345
    %p347 = scmp.ne.s32.totalorder %s336, %s339
    %p348 = scmp.eq.s32.totalorder %s24, 3
    %p349 = por %p347, %p348
    %p350 = scmp.ne.s32.totalorder %s339, %s340
    %p351 = scmp.eq.s32.totalorder %s24, 0
    %p352 = por %p350, %p351
    %p353 = scmp.ne.s32.totalorder %s339, %s340
    %p354 = scmp.eq.s32.totalorder %s25, 3
    %p355 = por %p353, %p354
    %p357 = scmp.ne.s32.totalorder %s340, %s356
    %p358 = scmp.eq.s32.totalorder %s25, 0
    %p359 = por %p357, %p358
    %s361 = sadd.s32 %s360, 1
    %p364 = scmp.eq.s32.totalorder %s19, 3
    %p365 = scmp.ne.s32.totalorder %s360, %s362
    %p366 = scmp.eq.s32.totalorder %s19, 0
    %p367 = por %p365, %p366
    %p368 = scmp.ne.s32.totalorder %s360, %s362
    %p369 = scmp.eq.s32.totalorder %s24, 3
    %p370 = por %p368, %p369
    %p371 = scmp.ne.s32.totalorder %s362, %s363
    %p372 = scmp.eq.s32.totalorder %s24, 0
    %p373 = por %p371, %p372
    %p374 = scmp.ne.s32.totalorder %s362, %s363
    %p375 = scmp.eq.s32.totalorder %s25, 3
    %p376 = por %p374, %p375
    %p378 = scmp.ne.s32.totalorder %s363, %s377
    %p379 = scmp.eq.s32.totalorder %s25, 0
    %p380 = por %p378, %p379
    %p381 = scmp.le.s32.totalorder 1, %s19
    %p382 = scmp.lt.s32.totalorder %s19, 5
    %p383 = pnand %p381, %p382
    %p384 = pneg %p383
    // Predicated region
    $region9: #{prompt_encoder.10} parent=5 // pred_check
      _
    $region10: #{prompt_encoder.10} parent=5 // pred_check_branch
      %386 = sbr.rel (%p383) target = $region12
    $region11: #{prompt_encoder.10} parent=5 // pred_region
      %s387 = ssub.s32 %s19, 1
      // Predicated region
      $region13: #{prompt_encoder.10} parent=11 // pred_check
        %p388 = pneg %p40
      $region14: #{prompt_encoder.10} parent=11 // pred_check_branch
        %390 = sbr.rel (%p388) target = $region16
      $region15: #{prompt_encoder.10} parent=11 // pred_region
        _
      $region16: #{prompt_encoder.10} parent=11 // pred_fallthru
        _
    $region12: #{prompt_encoder.10} parent=5 // pred_fallthru
      _
    %p391 = scmp.lt.s32.totalorder %s19, 4
    // Predicated region
    $region17: #{prompt_encoder.10} parent=5 // pred_check
      %p392 = pneg %p391
    $region18: #{prompt_encoder.10} parent=5 // pred_check_branch
      %394 = sbr.rel (%p392) target = $region20
    $region19: #{prompt_encoder.10} parent=5 // pred_region
      // Predicated region
      $region21: #{prompt_encoder.10} parent=19 // pred_check
        %p395 = pneg %p60
      $region22: #{prompt_encoder.10} parent=19 // pred_check_branch
        %397 = sbr.rel (%p395) target = $region24
      $region23: #{prompt_encoder.10} parent=19 // pred_region
        %p398 = scmp.lt.s32.totalorder %s19, 3
        %s399 = scalar_select %p398, %s19, 3
        %s400 = smul.addr %s399, 192
        %s401 = smul.addr %s400, 8
        %s402 = scalar_lea.vmem %s1, %s401
      $region24: #{prompt_encoder.10} parent=19 // pred_fallthru
        _
      // Predicated region
      $region25: #{prompt_encoder.10} parent=19 // pred_check
        %p403 = pneg %p86
      $region26: #{prompt_encoder.10} parent=19 // pred_check_branch
        %405 = sbr.rel (%p403) target = $region28
      $region27: #{prompt_encoder.10} parent=19 // pred_region
        %p406 = scmp.lt.s32.totalorder %s19, 3
        %s407 = scalar_select %p406, %s19, 3
        %s408 = smul.addr %s407, 6
        %s409 = scalar_lea.vmem %s2, %s408
      $region28: #{prompt_encoder.10} parent=19 // pred_fallthru
        _
      // Predicated region
      $region29: #{prompt_encoder.10} parent=19 // pred_check
        %p410 = pneg %p112
      $region30: #{prompt_encoder.10} parent=19 // pred_check_branch
        %412 = sbr.rel (%p410) target = $region32
      $region31: #{prompt_encoder.10} parent=19 // pred_region
        %p413 = scmp.lt.s32.totalorder %s19, 3
        %s414 = scalar_select %p413, %s19, 3
        %s415 = smul.addr %s414, 64
        %s416 = smul.addr %s415, 8
        %s417 = scalar_lea.vmem %s3, %s416
      $region32: #{prompt_encoder.10} parent=19 // pred_fallthru
        _
      // Predicated region
      $region33: #{prompt_encoder.10} parent=19 // pred_check
        %p418 = pneg %p138
      $region34: #{prompt_encoder.10} parent=19 // pred_check_branch
        %420 = sbr.rel (%p418) target = $region36
      $region35: #{prompt_encoder.10} parent=19 // pred_region
        %p421 = scmp.lt.s32.totalorder %s19, 3
        %s422 = scalar_select %p421, %s19, 3
        %s423 = smul.addr %s422, 2
        %s424 = scalar_lea.vmem %s4, %s423
      $region36: #{prompt_encoder.10} parent=19 // pred_fallthru
        _
      // Predicated region
      $region37: #{prompt_encoder.10} parent=19 // pred_check
        %p425 = pneg %p164
      $region38: #{prompt_encoder.10} parent=19 // pred_check_branch
        %427 = sbr.rel (%p425) target = $region40
      $region39: #{prompt_encoder.10} parent=19 // pred_region
        %p428 = scmp.lt.s32.totalorder %s19, 3
        %s429 = scalar_select %p428, %s19, 3
        %s430 = smul.addr %s429, 2
        %s431 = scalar_lea.vmem %s5, %s430
      $region40: #{prompt_encoder.10} parent=19 // pred_fallthru
        _
      // Predicated region
      $region41: #{prompt_encoder.10} parent=19 // pred_check
        %p432 = pneg %p190
      $region42: #{prompt_encoder.10} parent=19 // pred_check_branch
        %434 = sbr.rel (%p432) target = $region44
      $region43: #{prompt_encoder.10} parent=19 // pred_region
        %p435 = scmp.lt.s32.totalorder %s19, 3
        %s436 = scalar_select %p435, %s19, 3
        %s437 = smul.addr %s436, 2
        %s438 = scalar_lea.vmem %s6, %s437
      $region44: #{prompt_encoder.10} parent=19 // pred_fallthru
        _
      // Predicated region
      $region45: #{prompt_encoder.10} parent=19 // pred_check
        %p439 = pneg %p216
      $region46: #{prompt_encoder.10} parent=19 // pred_check_branch
        %441 = sbr.rel (%p439) target = $region48
      $region47: #{prompt_encoder.10} parent=19 // pred_region
        %p442 = scmp.lt.s32.totalorder %s19, 3
        %s443 = scalar_select %p442, %s19, 3
        %s444 = smul.addr %s443, 128
        %s445 = smul.addr %s444, 8
        %s446 = scalar_lea.vmem %s7, %s445
      $region48: #{prompt_encoder.10} parent=19 // pred_fallthru
        _
      // Predicated region
      $region49: #{prompt_encoder.10} parent=19 // pred_check
        %p447 = pneg %p242
      $region50: #{prompt_encoder.10} parent=19 // pred_check_branch
        %449 = sbr.rel (%p447) target = $region52
      $region51: #{prompt_encoder.10} parent=19 // pred_region
        %p450 = scmp.lt.s32.totalorder %s19, 3
        %s451 = scalar_select %p450, %s19, 3
        %s452 = smul.addr %s451, 4
        %s453 = scalar_lea.vmem %s8, %s452
      $region52: #{prompt_encoder.10} parent=19 // pred_fallthru
        _
      // Predicated region
      $region53: #{prompt_encoder.10} parent=19 // pred_check
        %p454 = pneg %p268
      $region54: #{prompt_encoder.10} parent=19 // pred_check_branch
        %456 = sbr.rel (%p454) target = $region56
      $region55: #{prompt_encoder.10} parent=19 // pred_region
        %p457 = scmp.lt.s32.totalorder %s19, 3
        %s458 = scalar_select %p457, %s19, 3
        %s459 = smul.addr %s458, 128
        %s460 = smul.addr %s459, 8
        %s461 = scalar_lea.vmem %s9, %s460
      $region56: #{prompt_encoder.10} parent=19 // pred_fallthru
        _
      // Predicated region
      $region57: #{prompt_encoder.10} parent=19 // pred_check
        %p462 = pneg %p294
      $region58: #{prompt_encoder.10} parent=19 // pred_check_branch
        %464 = sbr.rel (%p462) target = $region60
      $region59: #{prompt_encoder.10} parent=19 // pred_region
        %p465 = scmp.lt.s32.totalorder %s19, 3
        %s466 = scalar_select %p465, %s19, 3
        %s467 = smul.addr %s466, 2
        %s468 = scalar_lea.vmem %s10, %s467
      $region60: #{prompt_encoder.10} parent=19 // pred_fallthru
        _
      // Predicated region
      $region61: #{prompt_encoder.10} parent=19 // pred_check
        %p469 = pneg %p320
      $region62: #{prompt_encoder.10} parent=19 // pred_check_branch
        %471 = sbr.rel (%p469) target = $region64
      $region63: #{prompt_encoder.10} parent=19 // pred_region
        %p472 = scmp.lt.s32.totalorder %s19, 3
        %s473 = scalar_select %p472, %s19, 3
        %s474 = smul.addr %s473, 2
        %s475 = scalar_lea.vmem %s11, %s474
      $region64: #{prompt_encoder.10} parent=19 // pred_fallthru
        _
      // Predicated region
      $region65: #{prompt_encoder.10} parent=19 // pred_check
        %p476 = pneg %p346
      $region66: #{prompt_encoder.10} parent=19 // pred_check_branch
        %478 = sbr.rel (%p476) target = $region68
      $region67: #{prompt_encoder.10} parent=19 // pred_region
        %p479 = scmp.lt.s32.totalorder %s19, 3
        %s480 = scalar_select %p479, %s19, 3
        %s481 = smul.addr %s480, 2
        %s482 = scalar_lea.vmem %s12, %s481
      $region68: #{prompt_encoder.10} parent=19 // pred_fallthru
        _
    $region20: #{prompt_encoder.10} parent=5 // pred_fallthru
      _
    %p483 = scmp.le.s32.totalorder 1, %s19
    %p484 = scmp.lt.s32.totalorder %s19, 5
    %p485 = pnand %p483, %p484
    %p486 = pneg %p485
    // Predicated region
    $region69: #{prompt_encoder.10} parent=5 // pred_check
      _
    $region70: #{prompt_encoder.10} parent=5 // pred_check_branch
      %488 = sbr.rel (%p485) target = $region72
    $region71: #{prompt_encoder.10} parent=5 // pred_region
      %s489 = ssub.s32 %s19, 1
      %p490 = pneg %p40
      %p491 = pneg %p37
      %p492 = scmp.lt.s32.totalorder %s24, 3
      %s493 = scalar_select %p492, %s24, 3
      %s494 = smul.addr %s493, 192
      %s495 = smul.addr %s494, 8
      %s496 = scalar_lea.vmem %s1, %s495
      %p497 = pneg %p66
      %p498 = pneg %p63
      %p499 = scmp.lt.s32.totalorder %s24, 3
      %s500 = scalar_select %p499, %s24, 3
      %s501 = smul.addr %s500, 6
      %s502 = scalar_lea.vmem %s2, %s501
      %p503 = pneg %p92
      %p504 = pneg %p89
      %p505 = scmp.lt.s32.totalorder %s24, 3
      %s506 = scalar_select %p505, %s24, 3
      %s507 = smul.addr %s506, 64
      %s508 = smul.addr %s507, 8
      %s509 = scalar_lea.vmem %s3, %s508
      %p510 = pneg %p118
      %p511 = pneg %p115
      %p512 = scmp.lt.s32.totalorder %s24, 3
      %s513 = scalar_select %p512, %s24, 3
      %s514 = smul.addr %s513, 2
      %s515 = scalar_lea.vmem %s4, %s514
      %p516 = pneg %p144
      %p517 = pneg %p141
      %p518 = scmp.lt.s32.totalorder %s24, 3
      %s519 = scalar_select %p518, %s24, 3
      %s520 = smul.addr %s519, 2
      %s521 = scalar_lea.vmem %s5, %s520
      %p522 = pneg %p170
      %p523 = pneg %p167
      %p524 = scmp.lt.s32.totalorder %s24, 3
      %s525 = scalar_select %p524, %s24, 3
      %s526 = smul.addr %s525, 2
      %s527 = scalar_lea.vmem %s6, %s526
      %p528 = pneg %p196
      %p529 = pneg %p193
      %p530 = scmp.lt.s32.totalorder %s24, 3
      %s531 = scalar_select %p530, %s24, 3
      %s532 = smul.addr %s531, 128
      %s533 = smul.addr %s532, 8
      %s534 = scalar_lea.vmem %s7, %s533
      %p535 = pneg %p222
      %p536 = pneg %p219
      %p537 = scmp.lt.s32.totalorder %s24, 3
      %s538 = scalar_select %p537, %s24, 3
      %s539 = smul.addr %s538, 4
      %s540 = scalar_lea.vmem %s8, %s539
      %p541 = pneg %p248
      %p542 = pneg %p245
      %p543 = scmp.lt.s32.totalorder %s24, 3
      %s544 = scalar_select %p543, %s24, 3
      %s545 = smul.addr %s544, 128
      %s546 = smul.addr %s545, 8
      %s547 = scalar_lea.vmem %s9, %s546
      %p548 = pneg %p274
      %p549 = pneg %p271
      %p550 = scmp.lt.s32.totalorder %s24, 3
      %s551 = scalar_select %p550, %s24, 3
      %s552 = smul.addr %s551, 2
      %s553 = scalar_lea.vmem %s10, %s552
      %p554 = pneg %p300
      %p555 = pneg %p297
      %p556 = scmp.lt.s32.totalorder %s24, 3
      %s557 = scalar_select %p556, %s24, 3
      %s558 = smul.addr %s557, 2
      %s559 = scalar_lea.vmem %s11, %s558
      %p560 = pneg %p326
      %p561 = pneg %p323
      %p562 = scmp.lt.s32.totalorder %s24, 3
      %s563 = scalar_select %p562, %s24, 3
      %s564 = smul.addr %s563, 2
      %s565 = scalar_lea.vmem %s12, %s564
      %p566 = pneg %p352
      %p567 = pneg %p349
      %p568 = pneg %p373
      %p569 = pneg %p370
      %p570 = scmp.lt.s32.totalorder %s24, 3
      %s571 = scalar_select %p570, %s24, 3
      %s572 = smul.addr %s571, 192
      %s573 = smul.addr %s572, 8
      %s574 = scalar_lea.vmem %s1, %s573
      %p575 = scmp.lt.s32.totalorder %s24, 3
      %s576 = scalar_select %p575, %s24, 3
      %s577 = smul.addr %s576, 6
      %s578 = scalar_lea.vmem %s2, %s577
      %p579 = scmp.lt.s32.totalorder %s24, 3
      %s580 = scalar_select %p579, %s24, 3
      %s581 = smul.addr %s580, 64
      %s582 = smul.addr %s581, 8
      %s583 = scalar_lea.vmem %s3, %s582
      %p584 = scmp.lt.s32.totalorder %s24, 3
      %s585 = scalar_select %p584, %s24, 3
      %s586 = smul.addr %s585, 2
      %s587 = scalar_lea.vmem %s4, %s586
      %p588 = scmp.lt.s32.totalorder %s24, 3
      %s589 = scalar_select %p588, %s24, 3
      %s590 = smul.addr %s589, 2
      %s591 = scalar_lea.vmem %s5, %s590
      %p592 = scmp.lt.s32.totalorder %s24, 3
      %s593 = scalar_select %p592, %s24, 3
      %s594 = smul.addr %s593, 2
      %s595 = scalar_lea.vmem %s6, %s594
      %p596 = scmp.lt.s32.totalorder %s24, 3
      %s597 = scalar_select %p596, %s24, 3
      %s598 = smul.addr %s597, 128
      %s599 = smul.addr %s598, 8
      %s600 = scalar_lea.vmem %s7, %s599
      %p601 = scmp.lt.s32.totalorder %s24, 3
      %s602 = scalar_select %p601, %s24, 3
      %s603 = smul.addr %s602, 4
      %s604 = scalar_lea.vmem %s8, %s603
      %p605 = scmp.lt.s32.totalorder %s24, 3
      %s606 = scalar_select %p605, %s24, 3
      %s607 = smul.addr %s606, 128
      %s608 = smul.addr %s607, 8
      %s609 = scalar_lea.vmem %s9, %s608
      %p610 = scmp.lt.s32.totalorder %s24, 3
      %s611 = scalar_select %p610, %s24, 3
      %s612 = smul.addr %s611, 2
      %s613 = scalar_lea.vmem %s10, %s612
      %p614 = scmp.lt.s32.totalorder %s24, 3
      %s615 = scalar_select %p614, %s24, 3
      %s616 = smul.addr %s615, 2
      %s617 = scalar_lea.vmem %s11, %s616
      %p618 = scmp.lt.s32.totalorder %s24, 3
      %s619 = scalar_select %p618, %s24, 3
      %s620 = smul.addr %s619, 2
      %s621 = scalar_lea.vmem %s12, %s620
      %p622 = scmp.eq.s32.totalorder %s24, 0
      // Predicated region
      $region73: #{prompt_encoder.10} parent=71 // pred_check
        %p623 = pneg %p622
      $region74: #{prompt_encoder.10} parent=71 // pred_check_branch
        %625 = sbr.rel (%p623) target = $region76
      $region75: #{prompt_encoder.10} parent=71 // pred_region
        %v626 = vld [vmem:[%s0] sm:$0xff]
        %v627 = vld [vmem:[%s0 + $0x8] sm:$0xff]
        %v628 = vld [vmem:[%s0 + $0x10] sm:$0xff]
        %v629 = vld [vmem:[%s0 + $0x18] sm:$0xff]
        %v630 = vld [vmem:[%s0 + $0x20] sm:$0xff]
        %v631 = vld [vmem:[%s0 + $0x28] sm:$0xff]
        %v632 = vld [vmem:[%s0 + $0x30] sm:$0xff]
        %v633 = vld [vmem:[%s0 + $0x38] sm:$0xff]
        %634 = vst [vmem:[#allocation2] sm:$0xff] %v626
        %635 = vst [vmem:[#allocation2 + $0x8] sm:$0xff] %v627
        %636 = vst [vmem:[#allocation2 + $0x10] sm:$0xff] %v628
        %637 = vst [vmem:[#allocation2 + $0x18] sm:$0xff] %v629
        %638 = vst [vmem:[#allocation2 + $0x20] sm:$0xff] %v630
        %639 = vst [vmem:[#allocation2 + $0x28] sm:$0xff] %v631
        %640 = vst [vmem:[#allocation2 + $0x30] sm:$0xff] %v632
        %641 = vst [vmem:[#allocation2 + $0x38] sm:$0xff] %v633
      $region76: #{prompt_encoder.10} parent=71 // pred_fallthru
        _
      %v642 = vld [vmem:[#allocation2] sm:$0xff]
      %v643 = vld [vmem:[#allocation2 + $0x8] sm:$0xff]
      %v644 = vld [vmem:[#allocation2 + $0x10] sm:$0xff]
      %v645 = vld [vmem:[#allocation2 + $0x18] sm:$0xff]
      %v646 = vld [vmem:[#allocation2 + $0x20] sm:$0xff]
      %v647 = vld [vmem:[#allocation2 + $0x28] sm:$0xff]
      %v648 = vld [vmem:[#allocation2 + $0x30] sm:$0xff]
      %v649 = vld [vmem:[#allocation2 + $0x38] sm:$0xff]
      %v650 = vld [vmem:[%s574] sm:$0xff]
      %v651 = vld [vmem:[%s574 + $0x8] sm:$0xff]
      %v652 = vld [vmem:[%s574 + $0x10] sm:$0xff]
      %v653 = vld [vmem:[%s574 + $0x18] sm:$0xff]
      %v654 = vld [vmem:[%s574 + $0x20] sm:$0xff]
      %v655 = vld [vmem:[%s574 + $0x28] sm:$0xff]
      %v656 = vld [vmem:[%s574 + $0x30] sm:$0xff]
      %v657 = vld [vmem:[%s574 + $0x38] sm:$0xff]
      %v658 = vld [vmem:[%s574 + $0x40] sm:$0xff]
      %v659 = vld [vmem:[%s574 + $0x48] sm:$0xff]
      %v660 = vld [vmem:[%s574 + $0x50] sm:$0xff]
      %v661 = vld [vmem:[%s574 + $0x58] sm:$0xff]
      %v662 = vld [vmem:[%s574 + $0x60] sm:$0xff]
      %v663 = vld [vmem:[%s574 + $0x68] sm:$0xff]
      %v664 = vld [vmem:[%s574 + $0x70] sm:$0xff]
      %v665 = vld [vmem:[%s574 + $0x78] sm:$0xff]
      %v666 = vld [vmem:[%s574 + $0x80] sm:$0xff]
      %v667 = vld [vmem:[%s574 + $0x88] sm:$0xff]
      %v668 = vld [vmem:[%s574 + $0x90] sm:$0xff]
      %v669 = vld [vmem:[%s574 + $0x98] sm:$0xff]
      %v670 = vld [vmem:[%s574 + $0xa0] sm:$0xff]
      %v671 = vld [vmem:[%s574 + $0xa8] sm:$0xff]
      %v672 = vld [vmem:[%s574 + $0xb0] sm:$0xff]
      %v673 = vld [vmem:[%s574 + $0xb8] sm:$0xff]
      %v674 = vld [vmem:[%s574 + $0xc0] sm:$0xff]
      %v675 = vld [vmem:[%s574 + $0xc8] sm:$0xff]
      %v676 = vld [vmem:[%s574 + $0xd0] sm:$0xff]
      %v677 = vld [vmem:[%s574 + $0xd8] sm:$0xff]
      %v678 = vld [vmem:[%s574 + $0xe0] sm:$0xff]
      %v679 = vld [vmem:[%s574 + $0xe8] sm:$0xff]
      %v680 = vld [vmem:[%s574 + $0xf0] sm:$0xff]
      %v681 = vld [vmem:[%s574 + $0xf8] sm:$0xff]
      %v682 = vld [vmem:[%s574 + $0x100] sm:$0xff]
      %v683 = vld [vmem:[%s574 + $0x108] sm:$0xff]
      %v684 = vld [vmem:[%s574 + $0x110] sm:$0xff]
      %v685 = vld [vmem:[%s574 + $0x118] sm:$0xff]
      %v686 = vld [vmem:[%s574 + $0x120] sm:$0xff]
      %v687 = vld [vmem:[%s574 + $0x128] sm:$0xff]
      %v688 = vld [vmem:[%s574 + $0x130] sm:$0xff]
      %v689 = vld [vmem:[%s574 + $0x138] sm:$0xff]
      %v690 = vld [vmem:[%s574 + $0x140] sm:$0xff]
      %v691 = vld [vmem:[%s574 + $0x148] sm:$0xff]
      %v692 = vld [vmem:[%s574 + $0x150] sm:$0xff]
      %v693 = vld [vmem:[%s574 + $0x158] sm:$0xff]
      %v694 = vld [vmem:[%s574 + $0x160] sm:$0xff]
      %v695 = vld [vmem:[%s574 + $0x168] sm:$0xff]
      %v696 = vld [vmem:[%s574 + $0x170] sm:$0xff]
      %v697 = vld [vmem:[%s574 + $0x178] sm:$0xff]
      %v698 = vld [vmem:[%s574 + $0x180] sm:$0xff]
      %v699 = vld [vmem:[%s574 + $0x188] sm:$0xff]
      %v700 = vld [vmem:[%s574 + $0x190] sm:$0xff]
      %v701 = vld [vmem:[%s574 + $0x198] sm:$0xff]
      %v702 = vld [vmem:[%s574 + $0x1a0] sm:$0xff]
      %v703 = vld [vmem:[%s574 + $0x1a8] sm:$0xff]
      %v704 = vld [vmem:[%s574 + $0x1b0] sm:$0xff]
      %v705 = vld [vmem:[%s574 + $0x1b8] sm:$0xff]
      %v706 = vld [vmem:[%s574 + $0x1c0] sm:$0xff]
      %v707 = vld [vmem:[%s574 + $0x1c8] sm:$0xff]
      %v708 = vld [vmem:[%s574 + $0x1d0] sm:$0xff]
      %v709 = vld [vmem:[%s574 + $0x1d8] sm:$0xff]
      %v710 = vld [vmem:[%s574 + $0x1e0] sm:$0xff]
      %v711 = vld [vmem:[%s574 + $0x1e8] sm:$0xff]
      %v712 = vld [vmem:[%s574 + $0x1f0] sm:$0xff]
      %v713 = vld [vmem:[%s574 + $0x1f8] sm:$0xff]
      %v714 = vld [vmem:[%s574 + $0x200] sm:$0xff]
      %v715 = vld [vmem:[%s574 + $0x208] sm:$0xff]
      %v716 = vld [vmem:[%s574 + $0x210] sm:$0xff]
      %v717 = vld [vmem:[%s574 + $0x218] sm:$0xff]
      %v718 = vld [vmem:[%s574 + $0x220] sm:$0xff]
      %v719 = vld [vmem:[%s574 + $0x228] sm:$0xff]
      %v720 = vld [vmem:[%s574 + $0x230] sm:$0xff]
      %v721 = vld [vmem:[%s574 + $0x238] sm:$0xff]
      %v722 = vld [vmem:[%s574 + $0x240] sm:$0xff]
      %v723 = vld [vmem:[%s574 + $0x248] sm:$0xff]
      %v724 = vld [vmem:[%s574 + $0x250] sm:$0xff]
      %v725 = vld [vmem:[%s574 + $0x258] sm:$0xff]
      %v726 = vld [vmem:[%s574 + $0x260] sm:$0xff]
      %v727 = vld [vmem:[%s574 + $0x268] sm:$0xff]
      %v728 = vld [vmem:[%s574 + $0x270] sm:$0xff]
      %v729 = vld [vmem:[%s574 + $0x278] sm:$0xff]
      %v730 = vld [vmem:[%s574 + $0x280] sm:$0xff]
      %v731 = vld [vmem:[%s574 + $0x288] sm:$0xff]
      %v732 = vld [vmem:[%s574 + $0x290] sm:$0xff]
      %v733 = vld [vmem:[%s574 + $0x298] sm:$0xff]
      %v734 = vld [vmem:[%s574 + $0x2a0] sm:$0xff]
      %v735 = vld [vmem:[%s574 + $0x2a8] sm:$0xff]
      %v736 = vld [vmem:[%s574 + $0x2b0] sm:$0xff]
      %v737 = vld [vmem:[%s574 + $0x2b8] sm:$0xff]
      %v738 = vld [vmem:[%s574 + $0x2c0] sm:$0xff]
      %v739 = vld [vmem:[%s574 + $0x2c8] sm:$0xff]
      %v740 = vld [vmem:[%s574 + $0x2d0] sm:$0xff]
      %v741 = vld [vmem:[%s574 + $0x2d8] sm:$0xff]
      %v742 = vld [vmem:[%s574 + $0x2e0] sm:$0xff]
      %v743 = vld [vmem:[%s574 + $0x2e8] sm:$0xff]
      %v744 = vld [vmem:[%s574 + $0x2f0] sm:$0xff]
      %v745 = vld [vmem:[%s574 + $0x2f8] sm:$0xff]
      %v746 = vld [vmem:[%s574 + $0x300] sm:$0xff]
      %v747 = vld [vmem:[%s574 + $0x308] sm:$0xff]
      %v748 = vld [vmem:[%s574 + $0x310] sm:$0xff]
      %v749 = vld [vmem:[%s574 + $0x318] sm:$0xff]
      %v750 = vld [vmem:[%s574 + $0x320] sm:$0xff]
      %v751 = vld [vmem:[%s574 + $0x328] sm:$0xff]
      %v752 = vld [vmem:[%s574 + $0x330] sm:$0xff]
      %v753 = vld [vmem:[%s574 + $0x338] sm:$0xff]
      %v754 = vld [vmem:[%s574 + $0x340] sm:$0xff]
      %v755 = vld [vmem:[%s574 + $0x348] sm:$0xff]
      %v756 = vld [vmem:[%s574 + $0x350] sm:$0xff]
      %v757 = vld [vmem:[%s574 + $0x358] sm:$0xff]
      %v758 = vld [vmem:[%s574 + $0x360] sm:$0xff]
      %v759 = vld [vmem:[%s574 + $0x368] sm:$0xff]
      %v760 = vld [vmem:[%s574 + $0x370] sm:$0xff]
      %v761 = vld [vmem:[%s574 + $0x378] sm:$0xff]
      %v762 = vld [vmem:[%s574 + $0x380] sm:$0xff]
      %v763 = vld [vmem:[%s574 + $0x388] sm:$0xff]
      %v764 = vld [vmem:[%s574 + $0x390] sm:$0xff]
      %v765 = vld [vmem:[%s574 + $0x398] sm:$0xff]
      %v766 = vld [vmem:[%s574 + $0x3a0] sm:$0xff]
      %v767 = vld [vmem:[%s574 + $0x3a8] sm:$0xff]
      %v768 = vld [vmem:[%s574 + $0x3b0] sm:$0xff]
      %v769 = vld [vmem:[%s574 + $0x3b8] sm:$0xff]
      %v770 = vld [vmem:[%s574 + $0x3c0] sm:$0xff]
      %v771 = vld [vmem:[%s574 + $0x3c8] sm:$0xff]
      %v772 = vld [vmem:[%s574 + $0x3d0] sm:$0xff]
      %v773 = vld [vmem:[%s574 + $0x3d8] sm:$0xff]
      %v774 = vld [vmem:[%s574 + $0x3e0] sm:$0xff]
      %v775 = vld [vmem:[%s574 + $0x3e8] sm:$0xff]
      %v776 = vld [vmem:[%s574 + $0x3f0] sm:$0xff]
      %v777 = vld [vmem:[%s574 + $0x3f8] sm:$0xff]
      %v778 = vld [vmem:[%s574 + $0x400] sm:$0xff]
      %v779 = vld [vmem:[%s574 + $0x408] sm:$0xff]
      %v780 = vld [vmem:[%s574 + $0x410] sm:$0xff]
      %v781 = vld [vmem:[%s574 + $0x418] sm:$0xff]
      %v782 = vld [vmem:[%s574 + $0x420] sm:$0xff]
      %v783 = vld [vmem:[%s574 + $0x428] sm:$0xff]
      %v784 = vld [vmem:[%s574 + $0x430] sm:$0xff]
      %v785 = vld [vmem:[%s574 + $0x438] sm:$0xff]
      %v786 = vld [vmem:[%s574 + $0x440] sm:$0xff]
      %v787 = vld [vmem:[%s574 + $0x448] sm:$0xff]
      %v788 = vld [vmem:[%s574 + $0x450] sm:$0xff]
      %v789 = vld [vmem:[%s574 + $0x458] sm:$0xff]
      %v790 = vld [vmem:[%s574 + $0x460] sm:$0xff]
      %v791 = vld [vmem:[%s574 + $0x468] sm:$0xff]
      %v792 = vld [vmem:[%s574 + $0x470] sm:$0xff]
      %v793 = vld [vmem:[%s574 + $0x478] sm:$0xff]
      %v794 = vld [vmem:[%s574 + $0x480] sm:$0xff]
      %v795 = vld [vmem:[%s574 + $0x488] sm:$0xff]
      %v796 = vld [vmem:[%s574 + $0x490] sm:$0xff]
      %v797 = vld [vmem:[%s574 + $0x498] sm:$0xff]
      %v798 = vld [vmem:[%s574 + $0x4a0] sm:$0xff]
      %v799 = vld [vmem:[%s574 + $0x4a8] sm:$0xff]
      %v800 = vld [vmem:[%s574 + $0x4b0] sm:$0xff]
      %v801 = vld [vmem:[%s574 + $0x4b8] sm:$0xff]
      %v802 = vld [vmem:[%s574 + $0x4c0] sm:$0xff]
      %v803 = vld [vmem:[%s574 + $0x4c8] sm:$0xff]
      %v804 = vld [vmem:[%s574 + $0x4d0] sm:$0xff]
      %v805 = vld [vmem:[%s574 + $0x4d8] sm:$0xff]
      %v806 = vld [vmem:[%s574 + $0x4e0] sm:$0xff]
      %v807 = vld [vmem:[%s574 + $0x4e8] sm:$0xff]
      %v808 = vld [vmem:[%s574 + $0x4f0] sm:$0xff]
      %v809 = vld [vmem:[%s574 + $0x4f8] sm:$0xff]
      %v810 = vld [vmem:[%s574 + $0x500] sm:$0xff]
      %v811 = vld [vmem:[%s574 + $0x508] sm:$0xff]
      %v812 = vld [vmem:[%s574 + $0x510] sm:$0xff]
      %v813 = vld [vmem:[%s574 + $0x518] sm:$0xff]
      %v814 = vld [vmem:[%s574 + $0x520] sm:$0xff]
      %v815 = vld [vmem:[%s574 + $0x528] sm:$0xff]
      %v816 = vld [vmem:[%s574 + $0x530] sm:$0xff]
      %v817 = vld [vmem:[%s574 + $0x538] sm:$0xff]
      %v818 = vld [vmem:[%s574 + $0x540] sm:$0xff]
      %v819 = vld [vmem:[%s574 + $0x548] sm:$0xff]
      %v820 = vld [vmem:[%s574 + $0x550] sm:$0xff]
      %v821 = vld [vmem:[%s574 + $0x558] sm:$0xff]
      %v822 = vld [vmem:[%s574 + $0x560] sm:$0xff]
      %v823 = vld [vmem:[%s574 + $0x568] sm:$0xff]
      %v824 = vld [vmem:[%s574 + $0x570] sm:$0xff]
      %v825 = vld [vmem:[%s574 + $0x578] sm:$0xff]
      %v826 = vld [vmem:[%s574 + $0x580] sm:$0xff]
      %v827 = vld [vmem:[%s574 + $0x588] sm:$0xff]
      %v828 = vld [vmem:[%s574 + $0x590] sm:$0xff]
      %v829 = vld [vmem:[%s574 + $0x598] sm:$0xff]
      %v830 = vld [vmem:[%s574 + $0x5a0] sm:$0xff]
      %v831 = vld [vmem:[%s574 + $0x5a8] sm:$0xff]
      %v832 = vld [vmem:[%s574 + $0x5b0] sm:$0xff]
      %v833 = vld [vmem:[%s574 + $0x5b8] sm:$0xff]
      %v834 = vld [vmem:[%s574 + $0x5c0] sm:$0xff]
      %v835 = vld [vmem:[%s574 + $0x5c8] sm:$0xff]
      %v836 = vld [vmem:[%s574 + $0x5d0] sm:$0xff]
      %v837 = vld [vmem:[%s574 + $0x5d8] sm:$0xff]
      %v838 = vld [vmem:[%s574 + $0x5e0] sm:$0xff]
      %v839 = vld [vmem:[%s574 + $0x5e8] sm:$0xff]
      %v840 = vld [vmem:[%s574 + $0x5f0] sm:$0xff]
      %v841 = vld [vmem:[%s574 + $0x5f8] sm:$0xff]
      %v842 = vld [vmem:[%s578] sm:$0x3f]
      %v844 = vlaneseq
      %v845 = vshrl.u32 %v844, 7
      %v846 = vsub.s32 0, %v845
      %v847 = vrot.slane %v842, %v846
      %v848 = vlaneseq
      %v849 = vshrl.u32 %v848, 7
      %v850 = vsub.s32 1, %v849
      %v851 = vrot.slane %v842, %v850
      %v852 = vlaneseq
      %v853 = vshrl.u32 %v852, 7
      %v854 = vsub.s32 2, %v853
      %v855 = vrot.slane %v842, %v854
      %v856 = vlaneseq
      %v857 = vshrl.u32 %v856, 7
      %v858 = vsub.s32 3, %v857
      %v859 = vrot.slane %v842, %v858
      %v860 = vlaneseq
      %v861 = vshrl.u32 %v860, 7
      %v862 = vsub.s32 4, %v861
      %v863 = vrot.slane %v842, %v862
      %v864 = vlaneseq
      %v865 = vshrl.u32 %v864, 7
      %v866 = vsub.s32 5, %v865
      %v867 = vrot.slane %v842, %v866
      %874 = vmatprep.subr.mxu0 %v651
      %875 = vmatpush1.msra.mxu0 %v650
      %876 = vmatprep.subr.mxu0 %v657
      %877 = vmatpush1.msra.mxu0 %v656
      %878 = vmatprep.subr.mxu0 %v663
      %879 = vmatpush1.msra.mxu0 %v662
      %880 = vmatprep.subr.mxu0 %v669
      %881 = vmatpush1.msra.mxu0 %v668
      %882 = vmatprep.subr.mxu0 %v675
      %883 = vmatpush1.msra.mxu0 %v674
      %884 = vmatprep.subr.mxu0 %v681
      %885 = vmatpush1.msra.mxu0 %v680
      %886 = vmatprep.subr.mxu0 %v687
      %887 = vmatpush1.msra.mxu0 %v686
      %888 = vmatprep.subr.mxu0 %v693
      %889 = vmatpush1.msra.mxu0 %v692
      %890 = vmatprep.subr.mxu0 %v699
      %891 = vmatpush1.msra.mxu0 %v698
      %892 = vmatprep.subr.mxu0 %v705
      %893 = vmatpush1.msra.mxu0 %v704
      %894 = vmatprep.subr.mxu0 %v711
      %895 = vmatpush1.msra.mxu0 %v710
      %896 = vmatprep.subr.mxu0 %v717
      %897 = vmatpush1.msra.mxu0 %v716
      %898 = vmatprep.subr.mxu0 %v723
      %899 = vmatpush1.msra.mxu0 %v722
      %900 = vmatprep.subr.mxu0 %v729
      %901 = vmatpush1.msra.mxu0 %v728
      %902 = vmatprep.subr.mxu0 %v735
      %903 = vmatpush1.msra.mxu0 %v734
      %904 = vmatprep.subr.mxu0 %v741
      %905 = vmatpush1.msra.mxu0 %v740
      %906 = vmatprep.subr.mxu0 %v747
      %907 = vmatpush1.msra.mxu0 %v746
      %908 = vmatprep.subr.mxu0 %v753
      %909 = vmatpush1.msra.mxu0 %v752
      %910 = vmatprep.subr.mxu0 %v759
      %911 = vmatpush1.msra.mxu0 %v758
      %912 = vmatprep.subr.mxu0 %v765
      %913 = vmatpush1.msra.mxu0 %v764
      %914 = vmatprep.subr.mxu0 %v771
      %915 = vmatpush1.msra.mxu0 %v770
      %916 = vmatprep.subr.mxu0 %v777
      %917 = vmatpush1.msra.mxu0 %v776
      %918 = vmatprep.subr.mxu0 %v783
      %919 = vmatpush1.msra.mxu0 %v782
      %920 = vmatprep.subr.mxu0 %v789
      %921 = vmatpush1.msra.mxu0 %v788
      %922 = vmatprep.subr.mxu0 %v795
      %923 = vmatpush1.msra.mxu0 %v794
      %924 = vmatprep.subr.mxu0 %v801
      %925 = vmatpush1.msra.mxu0 %v800
      %926 = vmatprep.subr.mxu0 %v807
      %927 = vmatpush1.msra.mxu0 %v806
      %928 = vmatprep.subr.mxu0 %v813
      %929 = vmatpush1.msra.mxu0 %v812
      %930 = vmatprep.subr.mxu0 %v819
      %931 = vmatpush1.msra.mxu0 %v818
      %932 = vmatprep.subr.mxu0 %v825
      %933 = vmatpush1.msra.mxu0 %v824
      %934 = vmatprep.subr.mxu0 %v831
      %935 = vmatpush1.msra.mxu0 %v830
      %936 = vmatprep.subr.mxu0 %v837
      %937 = vmatpush1.msra.mxu0 %v836
      %938 = vmatprep.mubr.f32.mxu0 %v643
      %939 = vmatmul.mubr.f32.gmra.mrb[0].mxu0 %v642
      %v940 = vpop.f32.mrb[0].mxu0
      %v941 = vadd.f32 %v847, %v940
      %v942 = vpop.f32.mrb[0].mxu0
      %v943 = vadd.f32 %v851, %v942
      %944 = vmatprep.mubr.f32.mxu0 %v645
      %945 = vmatmul.mubr.f32.gmra.mrb[0].mxu0 %v644
      %v946 = vpop.f32.mrb[0].mxu0
      %v947 = vadd.f32 %v847, %v946
      %v948 = vpop.f32.mrb[0].mxu0
      %v949 = vadd.f32 %v851, %v948
      %950 = vmatprep.mubr.f32.mxu0 %v647
      %951 = vmatmul.mubr.f32.gmra.mrb[0].mxu0 %v646
      %v952 = vpop.f32.mrb[0].mxu0
      %v953 = vadd.f32 %v847, %v952
      %v954 = vpop.f32.mrb[0].mxu0
      %v955 = vadd.f32 %v851, %v954
      %956 = vmatprep.mubr.f32.mxu0 %v649
      %957 = vmatmul.mubr.f32.gmra.mrb[0].mxu0 %v648
      %v958 = vpop.f32.mrb[0].mxu0
      %v959 = vadd.f32 %v847, %v958
      %v960 = vpop.f32.mrb[0].mxu0
      %v961 = vadd.f32 %v851, %v960
      %962 = vdwg.mxu0
      %963 = vmatprep.subr.mxu0 %v653
      %964 = vmatpush1.msra.mxu0 %v652
      %965 = vmatprep.subr.mxu0 %v659
      %966 = vmatpush1.msra.mxu0 %v658
      %967 = vmatprep.subr.mxu0 %v665
      %968 = vmatpush1.msra.mxu0 %v664
      %969 = vmatprep.subr.mxu0 %v671
      %970 = vmatpush1.msra.mxu0 %v670
      %971 = vmatprep.subr.mxu0 %v677
      %972 = vmatpush1.msra.mxu0 %v676
      %973 = vmatprep.subr.mxu0 %v683
      %974 = vmatpush1.msra.mxu0 %v682
      %975 = vmatprep.subr.mxu0 %v689
      %976 = vmatpush1.msra.mxu0 %v688
      %977 = vmatprep.subr.mxu0 %v695
      %978 = vmatpush1.msra.mxu0 %v694
      %979 = vmatprep.subr.mxu0 %v701
      %980 = vmatpush1.msra.mxu0 %v700
      %981 = vmatprep.subr.mxu0 %v707
      %982 = vmatpush1.msra.mxu0 %v706
      %983 = vmatprep.subr.mxu0 %v713
      %984 = vmatpush1.msra.mxu0 %v712
      %985 = vmatprep.subr.mxu0 %v719
      %986 = vmatpush1.msra.mxu0 %v718
      %987 = vmatprep.subr.mxu0 %v725
      %988 = vmatpush1.msra.mxu0 %v724
      %989 = vmatprep.subr.mxu0 %v731
      %990 = vmatpush1.msra.mxu0 %v730
      %991 = vmatprep.subr.mxu0 %v737
      %992 = vmatpush1.msra.mxu0 %v736
      %993 = vmatprep.subr.mxu0 %v743
      %994 = vmatpush1.msra.mxu0 %v742
      %995 = vmatprep.subr.mxu0 %v749
      %996 = vmatpush1.msra.mxu0 %v748
      %997 = vmatprep.subr.mxu0 %v755
      %998 = vmatpush1.msra.mxu0 %v754
      %999 = vmatprep.subr.mxu0 %v761
      %1000 = vmatpush1.msra.mxu0 %v760
      %1001 = vmatprep.subr.mxu0 %v767
      %1002 = vmatpush1.msra.mxu0 %v766
      %1003 = vmatprep.subr.mxu0 %v773
      %1004 = vmatpush1.msra.mxu0 %v772
      %1005 = vmatprep.subr.mxu0 %v779
      %1006 = vmatpush1.msra.mxu0 %v778
      %1007 = vmatprep.subr.mxu0 %v785
      %1008 = vmatpush1.msra.mxu0 %v784
      %1009 = vmatprep.subr.mxu0 %v791
      %1010 = vmatpush1.msra.mxu0 %v790
      %1011 = vmatprep.subr.mxu0 %v797
      %1012 = vmatpush1.msra.mxu0 %v796
      %1013 = vmatprep.subr.mxu0 %v803
      %1014 = vmatpush1.msra.mxu0 %v802
      %1015 = vmatprep.subr.mxu0 %v809
      %1016 = vmatpush1.msra.mxu0 %v808
      %1017 = vmatprep.subr.mxu0 %v815
      %1018 = vmatpush1.msra.mxu0 %v814
      %1019 = vmatprep.subr.mxu0 %v821
      %1020 = vmatpush1.msra.mxu0 %v820
      %1021 = vmatprep.subr.mxu0 %v827
      %1022 = vmatpush1.msra.mxu0 %v826
      %1023 = vmatprep.subr.mxu0 %v833
      %1024 = vmatpush1.msra.mxu0 %v832
      %1025 = vmatprep.subr.mxu0 %v839
      %1026 = vmatpush1.msra.mxu0 %v838
      %1027 = vmatprep.mubr.f32.mxu0 %v643
      %1028 = vmatmul.mubr.f32.gmra.mrb[0].mxu0 %v642
      %v1029 = vpop.f32.mrb[0].mxu0
      %v1030 = vadd.f32 %v855, %v1029
      %v1031 = vpop.f32.mrb[0].mxu0
      %v1032 = vadd.f32 %v859, %v1031
      %1033 = vmatprep.mubr.f32.mxu0 %v645
      %1034 = vmatmul.mubr.f32.gmra.mrb[0].mxu0 %v644
      %v1035 = vpop.f32.mrb[0].mxu0
      %v1036 = vadd.f32 %v855, %v1035
      %v1037 = vpop.f32.mrb[0].mxu0
      %v1038 = vadd.f32 %v859, %v1037
      %1039 = vmatprep.mubr.f32.mxu0 %v647
      %1040 = vmatmul.mubr.f32.gmra.mrb[0].mxu0 %v646
      %v1041 = vpop.f32.mrb[0].mxu0
      %v1042 = vadd.f32 %v855, %v1041
      %v1043 = vpop.f32.mrb[0].mxu0
      %v1044 = vadd.f32 %v859, %v1043
      %1045 = vmatprep.mubr.f32.mxu0 %v649
      %1046 = vmatmul.mubr.f32.gmra.mrb[0].mxu0 %v648
      %v1047 = vpop.f32.mrb[0].mxu0
      %v1048 = vadd.f32 %v855, %v1047
      %v1049 = vpop.f32.mrb[0].mxu0
      %v1050 = vadd.f32 %v859, %v1049
      %1051 = vdwg.mxu0
      %1052 = vmatprep.subr.mxu0 %v655
      %1053 = vmatpush1.msra.mxu0 %v654
      %1054 = vmatprep.subr.mxu0 %v661
      %1055 = vmatpush1.msra.mxu0 %v660
      %1056 = vmatprep.subr.mxu0 %v667
      %1057 = vmatpush1.msra.mxu0 %v666
      %1058 = vmatprep.subr.mxu0 %v673
      %1059 = vmatpush1.msra.mxu0 %v672
      %1060 = vmatprep.subr.mxu0 %v679
      %1061 = vmatpush1.msra.mxu0 %v678
      %1062 = vmatprep.subr.mxu0 %v685
      %1063 = vmatpush1.msra.mxu0 %v684
      %1064 = vmatprep.subr.mxu0 %v691
      %1065 = vmatpush1.msra.mxu0 %v690
      %1066 = vmatprep.subr.mxu0 %v697
      %1067 = vmatpush1.msra.mxu0 %v696
      %1068 = vmatprep.subr.mxu0 %v703
      %1069 = vmatpush1.msra.mxu0 %v702
      %1070 = vmatprep.subr.mxu0 %v709
      %1071 = vmatpush1.msra.mxu0 %v708
      %1072 = vmatprep.subr.mxu0 %v715
      %1073 = vmatpush1.msra.mxu0 %v714
      %1074 = vmatprep.subr.mxu0 %v721
      %1075 = vmatpush1.msra.mxu0 %v720
      %1076 = vmatprep.subr.mxu0 %v727
      %1077 = vmatpush1.msra.mxu0 %v726
      %1078 = vmatprep.subr.mxu0 %v733
      %1079 = vmatpush1.msra.mxu0 %v732
      %1080 = vmatprep.subr.mxu0 %v739
      %1081 = vmatpush1.msra.mxu0 %v738
      %1082 = vmatprep.subr.mxu0 %v745
      %1083 = vmatpush1.msra.mxu0 %v744
      %1084 = vmatprep.subr.mxu0 %v751
      %1085 = vmatpush1.msra.mxu0 %v750
      %1086 = vmatprep.subr.mxu0 %v757
      %1087 = vmatpush1.msra.mxu0 %v756
      %1088 = vmatprep.subr.mxu0 %v763
      %1089 = vmatpush1.msra.mxu0 %v762
      %1090 = vmatprep.subr.mxu0 %v769
      %1091 = vmatpush1.msra.mxu0 %v768
      %1092 = vmatprep.subr.mxu0 %v775
      %1093 = vmatpush1.msra.mxu0 %v774
      %1094 = vmatprep.subr.mxu0 %v781
      %1095 = vmatpush1.msra.mxu0 %v780
      %1096 = vmatprep.subr.mxu0 %v787
      %1097 = vmatpush1.msra.mxu0 %v786
      %1098 = vmatprep.subr.mxu0 %v793
      %1099 = vmatpush1.msra.mxu0 %v792
      %1100 = vmatprep.subr.mxu0 %v799
      %1101 = vmatpush1.msra.mxu0 %v798
      %1102 = vmatprep.subr.mxu0 %v805
      %1103 = vmatpush1.msra.mxu0 %v804
      %1104 = vmatprep.subr.mxu0 %v811
      %1105 = vmatpush1.msra.mxu0 %v810
      %1106 = vmatprep.subr.mxu0 %v817
      %1107 = vmatpush1.msra.mxu0 %v816
      %1108 = vmatprep.subr.mxu0 %v823
      %1109 = vmatpush1.msra.mxu0 %v822
      %1110 = vmatprep.subr.mxu0 %v829
      %1111 = vmatpush1.msra.mxu0 %v828
      %1112 = vmatprep.subr.mxu0 %v835
      %1113 = vmatpush1.msra.mxu0 %v834
      %1114 = vmatprep.subr.mxu0 %v841
      %1115 = vmatpush1.msra.mxu0 %v840
      %1116 = vmatprep.mubr.f32.mxu0 %v643
      %1117 = vmatmul.mubr.f32.gmra.mrb[0].mxu0 %v642
      %v1118 = vpop.f32.mrb[0].mxu0
      %v1119 = vadd.f32 %v863, %v1118
      %v1120 = vpop.f32.mrb[0].mxu0
      %v1121 = vadd.f32 %v867, %v1120
      %1122 = vmatprep.mubr.f32.mxu0 %v645
      %1123 = vmatmul.mubr.f32.gmra.mrb[0].mxu0 %v644
      %v1124 = vpop.f32.mrb[0].mxu0
      %v1125 = vadd.f32 %v863, %v1124
      %v1126 = vpop.f32.mrb[0].mxu0
      %v1127 = vadd.f32 %v867, %v1126
      %1128 = vmatprep.mubr.f32.mxu0 %v647
      %1129 = vmatmul.mubr.f32.gmra.mrb[0].mxu0 %v646
      %v1130 = vpop.f32.mrb[0].mxu0
      %v1131 = vadd.f32 %v863, %v1130
      %v1132 = vpop.f32.mrb[0].mxu0
      %v1133 = vadd.f32 %v867, %v1132
      %1134 = vmatprep.mubr.f32.mxu0 %v649
      %1135 = vmatmul.mubr.f32.gmra.mrb[0].mxu0 %v648
      %v1136 = vpop.f32.mrb[0].mxu0
      %v1137 = vadd.f32 %v863, %v1136
      %v1138 = vpop.f32.mrb[0].mxu0
      %v1139 = vadd.f32 %v867, %v1138
      %1140 = vdwg.mxu0
      %1141 = vst [vmem:[#allocation3] sm:$0xff] %v941
      %1142 = vst [vmem:[#allocation3 + $0x8] sm:$0xff] %v943
      %1143 = vst [vmem:[#allocation3 + $0x10] sm:$0xff] %v1030
      %1144 = vst [vmem:[#allocation3 + $0x18] sm:$0xff] %v1032
      %1145 = vst [vmem:[#allocation3 + $0x20] sm:$0xff] %v1119
      %1146 = vst [vmem:[#allocation3 + $0x28] sm:$0xff] %v1121
      %1147 = vst [vmem:[#allocation3 + $0x30] sm:$0xff] %v947
      %1148 = vst [vmem:[#allocation3 + $0x38] sm:$0xff] %v949
      %1149 = vst [vmem:[#allocation3 + $0x40] sm:$0xff] %v1036
      %1150 = vst [vmem:[#allocation3 + $0x48] sm:$0xff] %v1038
      %1151 = vst [vmem:[#allocation3 + $0x50] sm:$0xff] %v1125
      %1152 = vst [vmem:[#allocation3 + $0x58] sm:$0xff] %v1127
      %1153 = vst [vmem:[#allocation3 + $0x60] sm:$0xff] %v953
      %1154 = vst [vmem:[#allocation3 + $0x68] sm:$0xff] %v955
      %1155 = vst [vmem:[#allocation3 + $0x70] sm:$0xff] %v1042
      %1156 = vst [vmem:[#allocation3 + $0x78] sm:$0xff] %v1044
      %1157 = vst [vmem:[#allocation3 + $0x80] sm:$0xff] %v1131
      %1158 = vst [vmem:[#allocation3 + $0x88] sm:$0xff] %v1133
      %1159 = vst [vmem:[#allocation3 + $0x90] sm:$0xff] %v959
      %1160 = vst [vmem:[#allocation3 + $0x98] sm:$0xff] %v961
      %1161 = vst [vmem:[#allocation3 + $0xa0] sm:$0xff] %v1048
      %1162 = vst [vmem:[#allocation3 + $0xa8] sm:$0xff] %v1050
      %1163 = vst [vmem:[#allocation3 + $0xb0] sm:$0xff] %v1137
      %1164 = vst [vmem:[#allocation3 + $0xb8] sm:$0xff] %v1139
      %v1165 = vld [vmem:[#allocation3] sm:$0xff]
      %v1166 = vld [vmem:[#allocation3 + $0x30] sm:$0xff]
      %v1167 = vmul.f32 %v1165, 0.17677669
      %v1168 = vmul.f32 %v1166, 0.17677669
      %v1169 = vld [vmem:[#allocation3 + $0x10] sm:$0xff]
      %v1170 = vld [vmem:[#allocation3 + $0x40] sm:$0xff]
      %v1171 = vld [vmem:[#allocation3 + $0x20] sm:$0xff]
      %v1172 = vld [vmem:[#allocation3 + $0x50] sm:$0xff]
      %vm1173 = vcmask 261120
      %v1175 = vsel %vm1173, %v1167, 0
      %v1178 = vsel %vm1173, %v1168, 0
      %v1181 = vsel %vm1173, %v1169, 0
      %v1184 = vsel %vm1173, %v1170, 0
      %1186 = vmatprep.subr.mxu0 0.0
      %1187 = vmatpush1.xpose.msra.mxu0 %v1181
      %1188 = vmatprep.subr.mxu0 0.0
      %1189 = vmatpush1.xpose.msra.mxu0 %v1184
      %1190 = vmatprep.subr.mxu0 0.0
      %1191 = vmatpush1.xpose.msra.mxu0 0.0
      %1192 = vmatprep.subr.mxu0 0.0
      %1193 = vmatpush1.xpose.msra.mxu0 0.0
      %1194 = vmatprep.subr.mxu0 0.0
      %1195 = vmatpush1.xpose.msra.mxu0 0.0
      %1196 = vmatprep.subr.mxu0 0.0
      %1197 = vmatpush1.xpose.msra.mxu0 0.0
      %1198 = vmatprep.subr.mxu0 0.0
      %1199 = vmatpush1.xpose.msra.mxu0 0.0
      %1200 = vmatprep.subr.mxu0 0.0
      %1201 = vmatpush1.xpose.msra.mxu0 0.0
      %1202 = vmatprep.subr.mxu0 0.0
      %1203 = vmatpush1.xpose.msra.mxu0 0.0
      %1204 = vmatprep.subr.mxu0 0.0
      %1205 = vmatpush1.xpose.msra.mxu0 0.0
      %1206 = vmatprep.subr.mxu0 0.0
      %1207 = vmatpush1.xpose.msra.mxu0 0.0
      %1208 = vmatprep.subr.mxu0 0.0
      %1209 = vmatpush1.xpose.msra.mxu0 0.0
      %1210 = vmatprep.subr.mxu0 0.0
      %1211 = vmatpush1.xpose.msra.mxu0 0.0
      %1212 = vmatprep.subr.mxu0 0.0
      %1213 = vmatpush1.xpose.msra.mxu0 0.0
      %1214 = vmatprep.subr.mxu0 0.0
      %1215 = vmatpush1.xpose.msra.mxu0 0.0
      %1216 = vmatprep.subr.mxu0 0.0
      %1217 = vmatpush1.xpose.msra.mxu0 0.0
      %1218 = vmatprep.subr.mxu0 0.0
      %1219 = vmatpush1.xpose.msra.mxu0 0.0
      %1220 = vmatprep.subr.mxu0 0.0
      %1221 = vmatpush1.xpose.msra.mxu0 0.0
      %1222 = vmatprep.subr.mxu0 0.0
      %1223 = vmatpush1.xpose.msra.mxu0 0.0
      %1224 = vmatprep.subr.mxu0 0.0
      %1225 = vmatpush1.xpose.msra.mxu0 0.0
      %1226 = vmatprep.subr.mxu0 0.0
      %1227 = vmatpush1.xpose.msra.mxu0 0.0
      %1228 = vmatprep.subr.mxu0 0.0
      %1229 = vmatpush1.xpose.msra.mxu0 0.0
      %1230 = vmatprep.subr.mxu0 0.0
      %1231 = vmatpush1.xpose.msra.mxu0 0.0
      %1232 = vmatprep.subr.mxu0 0.0
      %1233 = vmatpush1.xpose.msra.mxu0 0.0
      %1234 = vmatprep.subr.mxu0 0.0
      %1235 = vmatpush1.xpose.msra.mxu0 0.0
      %1236 = vmatprep.subr.mxu0 0.0
      %1237 = vmatpush1.xpose.msra.mxu0 0.0
      %1238 = vmatprep.subr.mxu0 0.0
      %1239 = vmatpush1.xpose.msra.mxu0 0.0
      %1240 = vmatprep.subr.mxu0 0.0
      %1241 = vmatpush1.xpose.msra.mxu0 0.0
      %1242 = vmatprep.subr.mxu0 0.0
      %1243 = vmatpush1.xpose.msra.mxu0 0.0
      %1244 = vmatprep.subr.mxu0 0.0
      %1245 = vmatpush1.xpose.msra.mxu0 0.0
      %1246 = vmatprep.subr.mxu0 0.0
      %1247 = vmatpush1.xpose.msra.mxu0 0.0
      %1248 = vmatprep.subr.mxu0 0.0
      %1249 = vmatpush1.xpose.msra.mxu0 0.0
      %1250 = vmatprep.mubr.f32.mxu0 0.0
      %1251 = vmatmul.mubr.f32.gmra.mrb[0].mxu0 %v1175
      %v1252 = vpop.f32.mrb[0].mxu0
      %v1253 = vadd.f32 0.0, %v1252
      %v1254 = vpop.f32.mrb[0].mxu0
      %1255 = vmatprep.mubr.f32.mxu0 0.0
      %1256 = vmatmul.mubr.f32.gmra.mrb[0].mxu0 %v1178
      %v1257 = vpop.f32.mrb[0].mxu0
      %v1258 = vadd.f32 0.0, %v1257
      %v1259 = vpop.f32.mrb[0].mxu0
      %1260 = vdwg.mxu0
      %vm1261 = vcmask 130048
      %v1262 = vsel %vm1261, %v1253, -inf
      %1263 = vmax.xlane.f32.xlu0 %v1262
      %v1264 = vpop.xlane.xlu0 %1263
      %v1265 = vsel %vm1261, %v1258, -inf
      %1266 = vmax.xlane.f32.xlu0 %v1265
      %v1267 = vpop.xlane.xlu0 %1266
      %v1268 = vsub.f32 %v1253, %v1264
      %v1269 = vsub.f32 %v1258, %v1267
      %v1270 = vmul.f32 %v1268, 1.442695
      %v1271 = vpow.pop %v1270
      %v1272 = vmul.f32 %v1269, 1.442695
      %v1273 = vpow.pop %v1272
      %v1274 = vsel %vm1261, %v1271, 0.0
      %1275 = vadd.xlane.f32.xlu0 %v1274
      %v1276 = vpop.xlane.xlu0 %1275
      %v1277 = vsel %vm1261, %v1273, 0.0
      %1278 = vadd.xlane.f32.xlu0 %v1277
      %v1279 = vpop.xlane.xlu0 %1278
      %v1280 = vrcp.pop %v1276
      %v1281 = vmul.f32 %v1271, %v1280
      %v1282 = vrcp.pop %v1279
      %v1283 = vmul.f32 %v1273, %v1282
      %v1285 = vsel %vm1261, %v1281, 0
      %v1288 = vsel %vm1261, %v1283, 0
      %1290 = vmatprep.subr.mxu0 0.0
      %1291 = vmatpush1.msra.mxu0 %v1171
      %1292 = vmatprep.subr.mxu0 0.0
      %1293 = vmatpush1.msra.mxu0 %v1172
      %1294 = vmatprep.subr.mxu0 0.0
      %1295 = vmatpush1.msra.mxu0 0.0
      %1296 = vmatprep.subr.mxu0 0.0
      %1297 = vmatpush1.msra.mxu0 0.0
      %1298 = vmatprep.subr.mxu0 0.0
      %1299 = vmatpush1.msra.mxu0 0.0
      %1300 = vmatprep.subr.mxu0 0.0
      %1301 = vmatpush1.msra.mxu0 0.0
      %1302 = vmatprep.subr.mxu0 0.0
      %1303 = vmatpush1.msra.mxu0 0.0
      %1304 = vmatprep.subr.mxu0 0.0
      %1305 = vmatpush1.msra.mxu0 0.0
      %1306 = vmatprep.subr.mxu0 0.0
      %1307 = vmatpush1.msra.mxu0 0.0
      %1308 = vmatprep.subr.mxu0 0.0
      %1309 = vmatpush1.msra.mxu0 0.0
      %1310 = vmatprep.subr.mxu0 0.0
      %1311 = vmatpush1.msra.mxu0 0.0
      %1312 = vmatprep.subr.mxu0 0.0
      %1313 = vmatpush1.msra.mxu0 0.0
      %1314 = vmatprep.subr.mxu0 0.0
      %1315 = vmatpush1.msra.mxu0 0.0
      %1316 = vmatprep.subr.mxu0 0.0
      %1317 = vmatpush1.msra.mxu0 0.0
      %1318 = vmatprep.subr.mxu0 0.0
      %1319 = vmatpush1.msra.mxu0 0.0
      %1320 = vmatprep.subr.mxu0 0.0
      %1321 = vmatpush1.msra.mxu0 0.0
      %1322 = vmatprep.subr.mxu0 0.0
      %1323 = vmatpush1.msra.mxu0 0.0
      %1324 = vmatprep.subr.mxu0 0.0
      %1325 = vmatpush1.msra.mxu0 0.0
      %1326 = vmatprep.subr.mxu0 0.0
      %1327 = vmatpush1.msra.mxu0 0.0
      %1328 = vmatprep.subr.mxu0 0.0
      %1329 = vmatpush1.msra.mxu0 0.0
      %1330 = vmatprep.subr.mxu0 0.0
      %1331 = vmatpush1.msra.mxu0 0.0
      %1332 = vmatprep.subr.mxu0 0.0
      %1333 = vmatpush1.msra.mxu0 0.0
      %1334 = vmatprep.subr.mxu0 0.0
      %1335 = vmatpush1.msra.mxu0 0.0
      %1336 = vmatprep.subr.mxu0 0.0
      %1337 = vmatpush1.msra.mxu0 0.0
      %1338 = vmatprep.subr.mxu0 0.0
      %1339 = vmatpush1.msra.mxu0 0.0
      %1340 = vmatprep.subr.mxu0 0.0
      %1341 = vmatpush1.msra.mxu0 0.0
      %1342 = vmatprep.subr.mxu0 0.0
      %1343 = vmatpush1.msra.mxu0 0.0
      %1344 = vmatprep.subr.mxu0 0.0
      %1345 = vmatpush1.msra.mxu0 0.0
      %1346 = vmatprep.subr.mxu0 0.0
      %1347 = vmatpush1.msra.mxu0 0.0
      %1348 = vmatprep.subr.mxu0 0.0
      %1349 = vmatpush1.msra.mxu0 0.0
      %1350 = vmatprep.subr.mxu0 0.0
      %1351 = vmatpush1.msra.mxu0 0.0
      %1352 = vmatprep.subr.mxu0 0.0
      %1353 = vmatpush1.msra.mxu0 0.0
      %1354 = vmatprep.mubr.f32.mxu0 0.0
      %1355 = vmatmul.mubr.f32.gmra.mrb[0].mxu0 %v1285
      %v1356 = vpop.f32.mrb[0].mxu0
      %v1357 = vadd.f32 0.0, %v1356
      %v1358 = vpop.f32.mrb[0].mxu0
      %1359 = vmatprep.mubr.f32.mxu0 0.0
      %1360 = vmatmul.mubr.f32.gmra.mrb[0].mxu0 %v1288
      %v1361 = vpop.f32.mrb[0].mxu0
      %v1362 = vadd.f32 0.0, %v1361
      %v1363 = vpop.f32.mrb[0].mxu0
      %1364 = vdwg.mxu0
      %1365 = vst.msk [vmem:[#allocation4] sm:$0xff] %vm1173, %v1357
      %1366 = vst.msk [vmem:[#allocation4 + $0x10] sm:$0xff] %vm1173, %v1362
      %v1367 = vld [vmem:[#allocation3] sm:$0xff]
      %v1368 = vld [vmem:[#allocation3 + $0x30] sm:$0xff]
      %v1369 = vmul.f32 %v1367, 0.17677669
      %v1370 = vmul.f32 %v1368, 0.17677669
      %v1371 = vld [vmem:[#allocation3 + $0x10] sm:$0xff]
      %v1372 = vld [vmem:[#allocation3 + $0x40] sm:$0xff]
      %v1373 = vld [vmem:[#allocation3 + $0x20] sm:$0xff]
      %v1374 = vld [vmem:[#allocation3 + $0x50] sm:$0xff]
      %1377 = vrot.lane.b32.xlu0 %v1369, 96
      %v1378 = vpop.permute.xlu0 %1377
      %1379 = vrot.lane.b32.xlu0 %v1370, 96
      %v1380 = vpop.permute.xlu0 %1379
      %1383 = vrot.lane.b32.xlu0 %v1371, 96
      %v1384 = vpop.permute.xlu0 %1383
      %1385 = vrot.lane.b32.xlu0 %v1372, 96
      %v1386 = vpop.permute.xlu0 %1385
      %v1387 = vsel %vm1173, %v1378, 0
      %v1389 = vsel %vm1173, %v1380, 0
      %v1391 = vsel %vm1173, %v1384, 0
      %v1393 = vsel %vm1173, %v1386, 0
      %1395 = vmatprep.subr.mxu0 0.0
      %1396 = vmatpush1.xpose.msra.mxu0 %v1391
      %1397 = vmatprep.subr.mxu0 0.0
      %1398 = vmatpush1.xpose.msra.mxu0 %v1393
      %1399 = vmatprep.subr.mxu0 0.0
      %1400 = vmatpush1.xpose.msra.mxu0 0.0
      %1401 = vmatprep.subr.mxu0 0.0
      %1402 = vmatpush1.xpose.msra.mxu0 0.0
      %1403 = vmatprep.subr.mxu0 0.0
      %1404 = vmatpush1.xpose.msra.mxu0 0.0
      %1405 = vmatprep.subr.mxu0 0.0
      %1406 = vmatpush1.xpose.msra.mxu0 0.0
      %1407 = vmatprep.subr.mxu0 0.0
      %1408 = vmatpush1.xpose.msra.mxu0 0.0
      %1409 = vmatprep.subr.mxu0 0.0
      %1410 = vmatpush1.xpose.msra.mxu0 0.0
      %1411 = vmatprep.subr.mxu0 0.0
      %1412 = vmatpush1.xpose.msra.mxu0 0.0
      %1413 = vmatprep.subr.mxu0 0.0
      %1414 = vmatpush1.xpose.msra.mxu0 0.0
      %1415 = vmatprep.subr.mxu0 0.0
      %1416 = vmatpush1.xpose.msra.mxu0 0.0
      %1417 = vmatprep.subr.mxu0 0.0
      %1418 = vmatpush1.xpose.msra.mxu0 0.0
      %1419 = vmatprep.subr.mxu0 0.0
      %1420 = vmatpush1.xpose.msra.mxu0 0.0
      %1421 = vmatprep.subr.mxu0 0.0
      %1422 = vmatpush1.xpose.msra.mxu0 0.0
      %1423 = vmatprep.subr.mxu0 0.0
      %1424 = vmatpush1.xpose.msra.mxu0 0.0
      %1425 = vmatprep.subr.mxu0 0.0
      %1426 = vmatpush1.xpose.msra.mxu0 0.0
      %1427 = vmatprep.subr.mxu0 0.0
      %1428 = vmatpush1.xpose.msra.mxu0 0.0
      %1429 = vmatprep.subr.mxu0 0.0
      %1430 = vmatpush1.xpose.msra.mxu0 0.0
      %1431 = vmatprep.subr.mxu0 0.0
      %1432 = vmatpush1.xpose.msra.mxu0 0.0
      %1433 = vmatprep.subr.mxu0 0.0
      %1434 = vmatpush1.xpose.msra.mxu0 0.0
      %1435 = vmatprep.subr.mxu0 0.0
      %1436 = vmatpush1.xpose.msra.mxu0 0.0
      %1437 = vmatprep.subr.mxu0 0.0
      %1438 = vmatpush1.xpose.msra.mxu0 0.0
      %1439 = vmatprep.subr.mxu0 0.0
      %1440 = vmatpush1.xpose.msra.mxu0 0.0
      %1441 = vmatprep.subr.mxu0 0.0
      %1442 = vmatpush1.xpose.msra.mxu0 0.0
      %1443 = vmatprep.subr.mxu0 0.0
      %1444 = vmatpush1.xpose.msra.mxu0 0.0
      %1445 = vmatprep.subr.mxu0 0.0
      %1446 = vmatpush1.xpose.msra.mxu0 0.0
      %1447 = vmatprep.subr.mxu0 0.0
      %1448 = vmatpush1.xpose.msra.mxu0 0.0
      %1449 = vmatprep.subr.mxu0 0.0
      %1450 = vmatpush1.xpose.msra.mxu0 0.0
      %1451 = vmatprep.subr.mxu0 0.0
      %1452 = vmatpush1.xpose.msra.mxu0 0.0
      %1453 = vmatprep.subr.mxu0 0.0
      %1454 = vmatpush1.xpose.msra.mxu0 0.0
      %1455 = vmatprep.subr.mxu0 0.0
      %1456 = vmatpush1.xpose.msra.mxu0 0.0
      %1457 = vmatprep.subr.mxu0 0.0
      %1458 = vmatpush1.xpose.msra.mxu0 0.0
      %1459 = vmatprep.mubr.f32.mxu0 0.0
      %1460 = vmatmul.mubr.f32.gmra.mrb[0].mxu0 %v1387
      %v1461 = vpop.f32.mrb[0].mxu0
      %v1462 = vadd.f32 0.0, %v1461
      %v1463 = vpop.f32.mrb[0].mxu0
      %1464 = vmatprep.mubr.f32.mxu0 0.0
      %1465 = vmatmul.mubr.f32.gmra.mrb[0].mxu0 %v1389
      %v1466 = vpop.f32.mrb[0].mxu0
      %v1467 = vadd.f32 0.0, %v1466
      %v1468 = vpop.f32.mrb[0].mxu0
      %1469 = vdwg.mxu0
      %v1470 = vsel %vm1261, %v1462, -inf
      %1471 = vmax.xlane.f32.xlu0 %v1470
      %v1472 = vpop.xlane.xlu0 %1471
      %v1473 = vsel %vm1261, %v1467, -inf
      %1474 = vmax.xlane.f32.xlu0 %v1473
      %v1475 = vpop.xlane.xlu0 %1474
      %v1476 = vsub.f32 %v1462, %v1472
      %v1477 = vsub.f32 %v1467, %v1475
      %v1478 = vmul.f32 %v1476, 1.442695
      %v1479 = vpow.pop %v1478
      %v1480 = vmul.f32 %v1477, 1.442695
      %v1481 = vpow.pop %v1480
      %v1482 = vsel %vm1261, %v1479, 0.0
      %1483 = vadd.xlane.f32.xlu0 %v1482
      %v1484 = vpop.xlane.xlu0 %1483
      %v1485 = vsel %vm1261, %v1481, 0.0
      %1486 = vadd.xlane.f32.xlu0 %v1485
      %v1487 = vpop.xlane.xlu0 %1486
      %v1488 = vrcp.pop %v1484
      %v1489 = vmul.f32 %v1479, %v1488
      %v1490 = vrcp.pop %v1487
      %v1491 = vmul.f32 %v1481, %v1490
      %1494 = vrot.lane.b32.xlu0 %v1373, 96
      %v1495 = vpop.permute.xlu0 %1494
      %1496 = vrot.lane.b32.xlu0 %v1374, 96
      %v1497 = vpop.permute.xlu0 %1496
      %v1501 = vsel %vm1261, %v1489, 0
      %v1504 = vsel %vm1261, %v1491, 0
      %1506 = vmatprep.subr.mxu0 0.0
      %1507 = vmatpush1.msra.mxu0 %v1495
      %1508 = vmatprep.subr.mxu0 0.0
      %1509 = vmatpush1.msra.mxu0 %v1497
      %1510 = vmatprep.subr.mxu0 0.0
      %1511 = vmatpush1.msra.mxu0 0.0
      %1512 = vmatprep.subr.mxu0 0.0
      %1513 = vmatpush1.msra.mxu0 0.0
      %1514 = vmatprep.subr.mxu0 0.0
      %1515 = vmatpush1.msra.mxu0 0.0
      %1516 = vmatprep.subr.mxu0 0.0
      %1517 = vmatpush1.msra.mxu0 0.0
      %1518 = vmatprep.subr.mxu0 0.0
      %1519 = vmatpush1.msra.mxu0 0.0
      %1520 = vmatprep.subr.mxu0 0.0
      %1521 = vmatpush1.msra.mxu0 0.0
      %1522 = vmatprep.subr.mxu0 0.0
      %1523 = vmatpush1.msra.mxu0 0.0
      %1524 = vmatprep.subr.mxu0 0.0
      %1525 = vmatpush1.msra.mxu0 0.0
      %1526 = vmatprep.subr.mxu0 0.0
      %1527 = vmatpush1.msra.mxu0 0.0
      %1528 = vmatprep.subr.mxu0 0.0
      %1529 = vmatpush1.msra.mxu0 0.0
      %1530 = vmatprep.subr.mxu0 0.0
      %1531 = vmatpush1.msra.mxu0 0.0
      %1532 = vmatprep.subr.mxu0 0.0
      %1533 = vmatpush1.msra.mxu0 0.0
      %1534 = vmatprep.subr.mxu0 0.0
      %1535 = vmatpush1.msra.mxu0 0.0
      %1536 = vmatprep.subr.mxu0 0.0
      %1537 = vmatpush1.msra.mxu0 0.0
      %1538 = vmatprep.subr.mxu0 0.0
      %1539 = vmatpush1.msra.mxu0 0.0
      %1540 = vmatprep.subr.mxu0 0.0
      %1541 = vmatpush1.msra.mxu0 0.0
      %1542 = vmatprep.subr.mxu0 0.0
      %1543 = vmatpush1.msra.mxu0 0.0
      %1544 = vmatprep.subr.mxu0 0.0
      %1545 = vmatpush1.msra.mxu0 0.0
      %1546 = vmatprep.subr.mxu0 0.0
      %1547 = vmatpush1.msra.mxu0 0.0
      %1548 = vmatprep.subr.mxu0 0.0
      %1549 = vmatpush1.msra.mxu0 0.0
      %1550 = vmatprep.subr.mxu0 0.0
      %1551 = vmatpush1.msra.mxu0 0.0
      %1552 = vmatprep.subr.mxu0 0.0
      %1553 = vmatpush1.msra.mxu0 0.0
      %1554 = vmatprep.subr.mxu0 0.0
      %1555 = vmatpush1.msra.mxu0 0.0
      %1556 = vmatprep.subr.mxu0 0.0
      %1557 = vmatpush1.msra.mxu0 0.0
      %1558 = vmatprep.subr.mxu0 0.0
      %1559 = vmatpush1.msra.mxu0 0.0
      %1560 = vmatprep.subr.mxu0 0.0
      %1561 = vmatpush1.msra.mxu0 0.0
      %1562 = vmatprep.subr.mxu0 0.0
      %1563 = vmatpush1.msra.mxu0 0.0
      %1564 = vmatprep.subr.mxu0 0.0
      %1565 = vmatpush1.msra.mxu0 0.0
      %1566 = vmatprep.subr.mxu0 0.0
      %1567 = vmatpush1.msra.mxu0 0.0
      %1568 = vmatprep.subr.mxu0 0.0
      %1569 = vmatpush1.msra.mxu0 0.0
      %1570 = vmatprep.mubr.f32.mxu0 0.0
      %1571 = vmatmul.mubr.f32.gmra.mrb[0].mxu0 %v1501
      %v1572 = vpop.f32.mrb[0].mxu0
      %v1573 = vadd.f32 0.0, %v1572
      %v1574 = vpop.f32.mrb[0].mxu0
      %1575 = vmatprep.mubr.f32.mxu0 0.0
      %1576 = vmatmul.mubr.f32.gmra.mrb[0].mxu0 %v1504
      %v1577 = vpop.f32.mrb[0].mxu0
      %v1578 = vadd.f32 0.0, %v1577
      %v1579 = vpop.f32.mrb[0].mxu0
      %1580 = vdwg.mxu0
      %1583 = vrot.lane.b32.xlu0 %v1573, 32
      %v1584 = vpop.permute.xlu0 %1583
      %1585 = vrot.lane.b32.xlu0 %v1578, 32
      %v1586 = vpop.permute.xlu0 %1585
      %vm1589 = vcmask 523520
      %1590 = vst.msk [vmem:[#allocation4] sm:$0xff] %vm1589, %v1584
      %1591 = vst.msk [vmem:[#allocation4 + $0x10] sm:$0xff] %vm1589, %v1586
      %v1592 = vld [vmem:[#allocation3] sm:$0xff]
      %v1593 = vld [vmem:[#allocation3 + $0x30] sm:$0xff]
      %v1594 = vmul.f32 %v1592, 0.17677669
      %v1595 = vmul.f32 %v1593, 0.17677669
      %v1596 = vld [vmem:[#allocation3 + $0x10] sm:$0xff]
      %v1597 = vld [vmem:[#allocation3 + $0x40] sm:$0xff]
      %v1598 = vld [vmem:[#allocation3 + $0x20] sm:$0xff]
      %v1599 = vld [vmem:[#allocation3 + $0x50] sm:$0xff]
      %1602 = vrot.lane.b32.xlu0 %v1594, 64
      %v1603 = vpop.permute.xlu0 %1602
      %1604 = vrot.lane.b32.xlu0 %v1595, 64
      %v1605 = vpop.permute.xlu0 %1604
      %1608 = vrot.lane.b32.xlu0 %v1596, 64
      %v1609 = vpop.permute.xlu0 %1608
      %1610 = vrot.lane.b32.xlu0 %v1597, 64
      %v1611 = vpop.permute.xlu0 %1610
      %v1612 = vsel %vm1173, %v1603, 0
      %v1614 = vsel %vm1173, %v1605, 0
      %v1616 = vsel %vm1173, %v1609, 0
      %v1618 = vsel %vm1173, %v1611, 0
      %1620 = vmatprep.subr.mxu0 0.0
      %1621 = vmatpush1.xpose.msra.mxu0 %v1616
      %1622 = vmatprep.subr.mxu0 0.0
      %1623 = vmatpush1.xpose.msra.mxu0 %v1618
      %1624 = vmatprep.subr.mxu0 0.0
      %1625 = vmatpush1.xpose.msra.mxu0 0.0
      %1626 = vmatprep.subr.mxu0 0.0
      %1627 = vmatpush1.xpose.msra.mxu0 0.0
      %1628 = vmatprep.subr.mxu0 0.0
      %1629 = vmatpush1.xpose.msra.mxu0 0.0
      %1630 = vmatprep.subr.mxu0 0.0
      %1631 = vmatpush1.xpose.msra.mxu0 0.0
      %1632 = vmatprep.subr.mxu0 0.0
      %1633 = vmatpush1.xpose.msra.mxu0 0.0
      %1634 = vmatprep.subr.mxu0 0.0
      %1635 = vmatpush1.xpose.msra.mxu0 0.0
      %1636 = vmatprep.subr.mxu0 0.0
      %1637 = vmatpush1.xpose.msra.mxu0 0.0
      %1638 = vmatprep.subr.mxu0 0.0
      %1639 = vmatpush1.xpose.msra.mxu0 0.0
      %1640 = vmatprep.subr.mxu0 0.0
      %1641 = vmatpush1.xpose.msra.mxu0 0.0
      %1642 = vmatprep.subr.mxu0 0.0
      %1643 = vmatpush1.xpose.msra.mxu0 0.0
      %1644 = vmatprep.subr.mxu0 0.0
      %1645 = vmatpush1.xpose.msra.mxu0 0.0
      %1646 = vmatprep.subr.mxu0 0.0
      %1647 = vmatpush1.xpose.msra.mxu0 0.0
      %1648 = vmatprep.subr.mxu0 0.0
      %1649 = vmatpush1.xpose.msra.mxu0 0.0
      %1650 = vmatprep.subr.mxu0 0.0
      %1651 = vmatpush1.xpose.msra.mxu0 0.0
      %1652 = vmatprep.subr.mxu0 0.0
      %1653 = vmatpush1.xpose.msra.mxu0 0.0
      %1654 = vmatprep.subr.mxu0 0.0
      %1655 = vmatpush1.xpose.msra.mxu0 0.0
      %1656 = vmatprep.subr.mxu0 0.0
      %1657 = vmatpush1.xpose.msra.mxu0 0.0
      %1658 = vmatprep.subr.mxu0 0.0
      %1659 = vmatpush1.xpose.msra.mxu0 0.0
      %1660 = vmatprep.subr.mxu0 0.0
      %1661 = vmatpush1.xpose.msra.mxu0 0.0
      %1662 = vmatprep.subr.mxu0 0.0
      %1663 = vmatpush1.xpose.msra.mxu0 0.0
      %1664 = vmatprep.subr.mxu0 0.0
      %1665 = vmatpush1.xpose.msra.mxu0 0.0
      %1666 = vmatprep.subr.mxu0 0.0
      %1667 = vmatpush1.xpose.msra.mxu0 0.0
      %1668 = vmatprep.subr.mxu0 0.0
      %1669 = vmatpush1.xpose.msra.mxu0 0.0
      %1670 = vmatprep.subr.mxu0 0.0
      %1671 = vmatpush1.xpose.msra.mxu0 0.0
      %1672 = vmatprep.subr.mxu0 0.0
      %1673 = vmatpush1.xpose.msra.mxu0 0.0
      %1674 = vmatprep.subr.mxu0 0.0
      %1675 = vmatpush1.xpose.msra.mxu0 0.0
      %1676 = vmatprep.subr.mxu0 0.0
      %1677 = vmatpush1.xpose.msra.mxu0 0.0
      %1678 = vmatprep.subr.mxu0 0.0
      %1679 = vmatpush1.xpose.msra.mxu0 0.0
      %1680 = vmatprep.subr.mxu0 0.0
      %1681 = vmatpush1.xpose.msra.mxu0 0.0
      %1682 = vmatprep.subr.mxu0 0.0
      %1683 = vmatpush1.xpose.msra.mxu0 0.0
      %1684 = vmatprep.mubr.f32.mxu0 0.0
      %1685 = vmatmul.mubr.f32.gmra.mrb[0].mxu0 %v1612
      %v1686 = vpop.f32.mrb[0].mxu0
      %v1687 = vadd.f32 0.0, %v1686
      %v1688 = vpop.f32.mrb[0].mxu0
      %1689 = vmatprep.mubr.f32.mxu0 0.0
      %1690 = vmatmul.mubr.f32.gmra.mrb[0].mxu0 %v1614
      %v1691 = vpop.f32.mrb[0].mxu0
      %v1692 = vadd.f32 0.0, %v1691
      %v1693 = vpop.f32.mrb[0].mxu0
      %1694 = vdwg.mxu0
      %v1695 = vsel %vm1261, %v1687, -inf
      %1696 = vmax.xlane.f32.xlu0 %v1695
      %v1697 = vpop.xlane.xlu0 %1696
      %v1698 = vsel %vm1261, %v1692, -inf
      %1699 = vmax.xlane.f32.xlu0 %v1698
      %v1700 = vpop.xlane.xlu0 %1699
      %v1701 = vsub.f32 %v1687, %v1697
      %v1702 = vsub.f32 %v1692, %v1700
      %v1703 = vmul.f32 %v1701, 1.442695
      %v1704 = vpow.pop %v1703
      %v1705 = vmul.f32 %v1702, 1.442695
      %v1706 = vpow.pop %v1705
      %v1707 = vsel %vm1261, %v1704, 0.0
      %1708 = vadd.xlane.f32.xlu0 %v1707
      %v1709 = vpop.xlane.xlu0 %1708
      %v1710 = vsel %vm1261, %v1706, 0.0
      %1711 = vadd.xlane.f32.xlu0 %v1710
      %v1712 = vpop.xlane.xlu0 %1711
      %v1713 = vrcp.pop %v1709
      %v1714 = vmul.f32 %v1704, %v1713
      %v1715 = vrcp.pop %v1712
      %v1716 = vmul.f32 %v1706, %v1715
      %1719 = vrot.lane.b32.xlu0 %v1598, 64
      %v1720 = vpop.permute.xlu0 %1719
      %1721 = vrot.lane.b32.xlu0 %v1599, 64
      %v1722 = vpop.permute.xlu0 %1721
      %v1726 = vsel %vm1261, %v1714, 0
      %v1729 = vsel %vm1261, %v1716, 0
      %1731 = vmatprep.subr.mxu0 0.0
      %1732 = vmatpush1.msra.mxu0 %v1720
      %1733 = vmatprep.subr.mxu0 0.0
      %1734 = vmatpush1.msra.mxu0 %v1722
      %1735 = vmatprep.subr.mxu0 0.0
      %1736 = vmatpush1.msra.mxu0 0.0
      %1737 = vmatprep.subr.mxu0 0.0
      %1738 = vmatpush1.msra.mxu0 0.0
      %1739 = vmatprep.subr.mxu0 0.0
      %1740 = vmatpush1.msra.mxu0 0.0
      %1741 = vmatprep.subr.mxu0 0.0
      %1742 = vmatpush1.msra.mxu0 0.0
      %1743 = vmatprep.subr.mxu0 0.0
      %1744 = vmatpush1.msra.mxu0 0.0
      %1745 = vmatprep.subr.mxu0 0.0
      %1746 = vmatpush1.msra.mxu0 0.0
      %1747 = vmatprep.subr.mxu0 0.0
      %1748 = vmatpush1.msra.mxu0 0.0
      %1749 = vmatprep.subr.mxu0 0.0
      %1750 = vmatpush1.msra.mxu0 0.0
      %1751 = vmatprep.subr.mxu0 0.0
      %1752 = vmatpush1.msra.mxu0 0.0
      %1753 = vmatprep.subr.mxu0 0.0
      %1754 = vmatpush1.msra.mxu0 0.0
      %1755 = vmatprep.subr.mxu0 0.0
      %1756 = vmatpush1.msra.mxu0 0.0
      %1757 = vmatprep.subr.mxu0 0.0
      %1758 = vmatpush1.msra.mxu0 0.0
      %1759 = vmatprep.subr.mxu0 0.0
      %1760 = vmatpush1.msra.mxu0 0.0
      %1761 = vmatprep.subr.mxu0 0.0
      %1762 = vmatpush1.msra.mxu0 0.0
      %1763 = vmatprep.subr.mxu0 0.0
      %1764 = vmatpush1.msra.mxu0 0.0
      %1765 = vmatprep.subr.mxu0 0.0
      %1766 = vmatpush1.msra.mxu0 0.0
      %1767 = vmatprep.subr.mxu0 0.0
      %1768 = vmatpush1.msra.mxu0 0.0
      %1769 = vmatprep.subr.mxu0 0.0
      %1770 = vmatpush1.msra.mxu0 0.0
      %1771 = vmatprep.subr.mxu0 0.0
      %1772 = vmatpush1.msra.mxu0 0.0
      %1773 = vmatprep.subr.mxu0 0.0
      %1774 = vmatpush1.msra.mxu0 0.0
      %1775 = vmatprep.subr.mxu0 0.0
      %1776 = vmatpush1.msra.mxu0 0.0
      %1777 = vmatprep.subr.mxu0 0.0
      %1778 = vmatpush1.msra.mxu0 0.0
      %1779 = vmatprep.subr.mxu0 0.0
      %1780 = vmatpush1.msra.mxu0 0.0
      %1781 = vmatprep.subr.mxu0 0.0
      %1782 = vmatpush1.msra.mxu0 0.0
      %1783 = vmatprep.subr.mxu0 0.0
      %1784 = vmatpush1.msra.mxu0 0.0
      %1785 = vmatprep.subr.mxu0 0.0
      %1786 = vmatpush1.msra.mxu0 0.0
      %1787 = vmatprep.subr.mxu0 0.0
      %1788 = vmatpush1.msra.mxu0 0.0
      %1789 = vmatprep.subr.mxu0 0.0
      %1790 = vmatpush1.msra.mxu0 0.0
      %1791 = vmatprep.subr.mxu0 0.0
      %1792 = vmatpush1.msra.mxu0 0.0
      %1793 = vmatprep.subr.mxu0 0.0
      %1794 = vmatpush1.msra.mxu0 0.0
      %1795 = vmatprep.mubr.f32.mxu0 0.0
      %1796 = vmatmul.mubr.f32.gmra.mrb[0].mxu0 %v1726
      %v1797 = vpop.f32.mrb[0].mxu0
      %v1798 = vadd.f32 0.0, %v1797
      %v1799 = vpop.f32.mrb[0].mxu0
      %1800 = vmatprep.mubr.f32.mxu0 0.0
      %1801 = vmatmul.mubr.f32.gmra.mrb[0].mxu0 %v1729
      %v1802 = vpop.f32.mrb[0].mxu0
      %v1803 = vadd.f32 0.0, %v1802
      %v1804 = vpop.f32.mrb[0].mxu0
      %1805 = vdwg.mxu0
      %1808 = vrot.lane.b32.xlu0 %v1798, 64
      %v1809 = vpop.permute.xlu0 %1808
      %1810 = vrot.lane.b32.xlu0 %v1803, 64
      %v1811 = vpop.permute.xlu0 %1810
      %vm1814 = vcmask 785920
      %1815 = vst.msk [vmem:[#allocation4] sm:$0xff] %vm1814, %v1809
      %1816 = vst.msk [vmem:[#allocation4 + $0x10] sm:$0xff] %vm1814, %v1811
      %v1817 = vld [vmem:[#allocation3] sm:$0xff]
      %v1818 = vld [vmem:[#allocation3 + $0x30] sm:$0xff]
      %v1819 = vmul.f32 %v1817, 0.17677669
      %v1820 = vmul.f32 %v1818, 0.17677669
      %v1821 = vld [vmem:[#allocation3 + $0x10] sm:$0xff]
      %v1822 = vld [vmem:[#allocation3 + $0x40] sm:$0xff]
      %v1823 = vld [vmem:[#allocation3 + $0x20] sm:$0xff]
      %v1824 = vld [vmem:[#allocation3 + $0x50] sm:$0xff]
      %1827 = vrot.lane.b32.xlu0 %v1819, 32
      %v1828 = vpop.permute.xlu0 %1827
      %1829 = vrot.lane.b32.xlu0 %v1820, 32
      %v1830 = vpop.permute.xlu0 %1829
      %1833 = vrot.lane.b32.xlu0 %v1821, 32
      %v1834 = vpop.permute.xlu0 %1833
      %1835 = vrot.lane.b32.xlu0 %v1822, 32
      %v1836 = vpop.permute.xlu0 %1835
      %v1837 = vsel %vm1173, %v1828, 0
      %v1839 = vsel %vm1173, %v1830, 0
      %v1841 = vsel %vm1173, %v1834, 0
      %v1843 = vsel %vm1173, %v1836, 0
      %1845 = vmatprep.subr.mxu0 0.0
      %1846 = vmatpush1.xpose.msra.mxu0 %v1841
      %1847 = vmatprep.subr.mxu0 0.0
      %1848 = vmatpush1.xpose.msra.mxu0 %v1843
      %1849 = vmatprep.subr.mxu0 0.0
      %1850 = vmatpush1.xpose.msra.mxu0 0.0
      %1851 = vmatprep.subr.mxu0 0.0
      %1852 = vmatpush1.xpose.msra.mxu0 0.0
      %1853 = vmatprep.subr.mxu0 0.0
      %1854 = vmatpush1.xpose.msra.mxu0 0.0
      %1855 = vmatprep.subr.mxu0 0.0
      %1856 = vmatpush1.xpose.msra.mxu0 0.0
      %1857 = vmatprep.subr.mxu0 0.0
      %1858 = vmatpush1.xpose.msra.mxu0 0.0
      %1859 = vmatprep.subr.mxu0 0.0
      %1860 = vmatpush1.xpose.msra.mxu0 0.0
      %1861 = vmatprep.subr.mxu0 0.0
      %1862 = vmatpush1.xpose.msra.mxu0 0.0
      %1863 = vmatprep.subr.mxu0 0.0
      %1864 = vmatpush1.xpose.msra.mxu0 0.0
      %1865 = vmatprep.subr.mxu0 0.0
      %1866 = vmatpush1.xpose.msra.mxu0 0.0
      %1867 = vmatprep.subr.mxu0 0.0
      %1868 = vmatpush1.xpose.msra.mxu0 0.0
      %1869 = vmatprep.subr.mxu0 0.0
      %1870 = vmatpush1.xpose.msra.mxu0 0.0
      %1871 = vmatprep.subr.mxu0 0.0
      %1872 = vmatpush1.xpose.msra.mxu0 0.0
      %1873 = vmatprep.subr.mxu0 0.0
      %1874 = vmatpush1.xpose.msra.mxu0 0.0
      %1875 = vmatprep.subr.mxu0 0.0
      %1876 = vmatpush1.xpose.msra.mxu0 0.0
      %1877 = vmatprep.subr.mxu0 0.0
      %1878 = vmatpush1.xpose.msra.mxu0 0.0
      %1879 = vmatprep.subr.mxu0 0.0
      %1880 = vmatpush1.xpose.msra.mxu0 0.0
      %1881 = vmatprep.subr.mxu0 0.0
      %1882 = vmatpush1.xpose.msra.mxu0 0.0
      %1883 = vmatprep.subr.mxu0 0.0
      %1884 = vmatpush1.xpose.msra.mxu0 0.0
      %1885 = vmatprep.subr.mxu0 0.0
      %1886 = vmatpush1.xpose.msra.mxu0 0.0
      %1887 = vmatprep.subr.mxu0 0.0
      %1888 = vmatpush1.xpose.msra.mxu0 0.0
      %1889 = vmatprep.subr.mxu0 0.0
      %1890 = vmatpush1.xpose.msra.mxu0 0.0
      %1891 = vmatprep.subr.mxu0 0.0
      %1892 = vmatpush1.xpose.msra.mxu0 0.0
      %1893 = vmatprep.subr.mxu0 0.0
      %1894 = vmatpush1.xpose.msra.mxu0 0.0
      %1895 = vmatprep.subr.mxu0 0.0
      %1896 = vmatpush1.xpose.msra.mxu0 0.0
      %1897 = vmatprep.subr.mxu0 0.0
      %1898 = vmatpush1.xpose.msra.mxu0 0.0
      %1899 = vmatprep.subr.mxu0 0.0
      %1900 = vmatpush1.xpose.msra.mxu0 0.0
      %1901 = vmatprep.subr.mxu0 0.0
      %1902 = vmatpush1.xpose.msra.mxu0 0.0
      %1903 = vmatprep.subr.mxu0 0.0
      %1904 = vmatpush1.xpose.msra.mxu0 0.0
      %1905 = vmatprep.subr.mxu0 0.0
      %1906 = vmatpush1.xpose.msra.mxu0 0.0
      %1907 = vmatprep.subr.mxu0 0.0
      %1908 = vmatpush1.xpose.msra.mxu0 0.0
      %1909 = vmatprep.mubr.f32.mxu0 0.0
      %1910 = vmatmul.mubr.f32.gmra.mrb[0].mxu0 %v1837
      %v1911 = vpop.f32.mrb[0].mxu0
      %v1912 = vadd.f32 0.0, %v1911
      %v1913 = vpop.f32.mrb[0].mxu0
      %1914 = vmatprep.mubr.f32.mxu0 0.0
      %1915 = vmatmul.mubr.f32.gmra.mrb[0].mxu0 %v1839
      %v1916 = vpop.f32.mrb[0].mxu0
      %v1917 = vadd.f32 0.0, %v1916
      %v1918 = vpop.f32.mrb[0].mxu0
      %1919 = vdwg.mxu0
      %v1920 = vsel %vm1261, %v1912, -inf
      %1921 = vmax.xlane.f32.xlu0 %v1920
      %v1922 = vpop.xlane.xlu0 %1921
      %v1923 = vsel %vm1261, %v1917, -inf
      %1924 = vmax.xlane.f32.xlu0 %v1923
      %v1925 = vpop.xlane.xlu0 %1924
      %v1926 = vsub.f32 %v1912, %v1922
      %v1927 = vsub.f32 %v1917, %v1925
      %v1928 = vmul.f32 %v1926, 1.442695
      %v1929 = vpow.pop %v1928
      %v1930 = vmul.f32 %v1927, 1.442695
      %v1931 = vpow.pop %v1930
      %v1932 = vsel %vm1261, %v1929, 0.0
      %1933 = vadd.xlane.f32.xlu0 %v1932
      %v1934 = vpop.xlane.xlu0 %1933
      %v1935 = vsel %vm1261, %v1931, 0.0
      %1936 = vadd.xlane.f32.xlu0 %v1935
      %v1937 = vpop.xlane.xlu0 %1936
      %v1938 = vrcp.pop %v1934
      %v1939 = vmul.f32 %v1929, %v1938
      %v1940 = vrcp.pop %v1937
      %v1941 = vmul.f32 %v1931, %v1940
      %1944 = vrot.lane.b32.xlu0 %v1823, 32
      %v1945 = vpop.permute.xlu0 %1944
      %1946 = vrot.lane.b32.xlu0 %v1824, 32
      %v1947 = vpop.permute.xlu0 %1946
      %v1951 = vsel %vm1261, %v1939, 0
      %v1954 = vsel %vm1261, %v1941, 0
      %1956 = vmatprep.subr.mxu0 0.0
      %1957 = vmatpush1.msra.mxu0 %v1945
      %1958 = vmatprep.subr.mxu0 0.0
      %1959 = vmatpush1.msra.mxu0 %v1947
      %1960 = vmatprep.subr.mxu0 0.0
      %1961 = vmatpush1.msra.mxu0 0.0
      %1962 = vmatprep.subr.mxu0 0.0
      %1963 = vmatpush1.msra.mxu0 0.0
      %1964 = vmatprep.subr.mxu0 0.0
      %1965 = vmatpush1.msra.mxu0 0.0
      %1966 = vmatprep.subr.mxu0 0.0
      %1967 = vmatpush1.msra.mxu0 0.0
      %1968 = vmatprep.subr.mxu0 0.0
      %1969 = vmatpush1.msra.mxu0 0.0
      %1970 = vmatprep.subr.mxu0 0.0
      %1971 = vmatpush1.msra.mxu0 0.0
      %1972 = vmatprep.subr.mxu0 0.0
      %1973 = vmatpush1.msra.mxu0 0.0
      %1974 = vmatprep.subr.mxu0 0.0
      %1975 = vmatpush1.msra.mxu0 0.0
      %1976 = vmatprep.subr.mxu0 0.0
      %1977 = vmatpush1.msra.mxu0 0.0
      %1978 = vmatprep.subr.mxu0 0.0
      %1979 = vmatpush1.msra.mxu0 0.0
      %1980 = vmatprep.subr.mxu0 0.0
      %1981 = vmatpush1.msra.mxu0 0.0
      %1982 = vmatprep.subr.mxu0 0.0
      %1983 = vmatpush1.msra.mxu0 0.0
      %1984 = vmatprep.subr.mxu0 0.0
      %1985 = vmatpush1.msra.mxu0 0.0
      %1986 = vmatprep.subr.mxu0 0.0
      %1987 = vmatpush1.msra.mxu0 0.0
      %1988 = vmatprep.subr.mxu0 0.0
      %1989 = vmatpush1.msra.mxu0 0.0
      %1990 = vmatprep.subr.mxu0 0.0
      %1991 = vmatpush1.msra.mxu0 0.0
      %1992 = vmatprep.subr.mxu0 0.0
      %1993 = vmatpush1.msra.mxu0 0.0
      %1994 = vmatprep.subr.mxu0 0.0
      %1995 = vmatpush1.msra.mxu0 0.0
      %1996 = vmatprep.subr.mxu0 0.0
      %1997 = vmatpush1.msra.mxu0 0.0
      %1998 = vmatprep.subr.mxu0 0.0
      %1999 = vmatpush1.msra.mxu0 0.0
      %2000 = vmatprep.subr.mxu0 0.0
      %2001 = vmatpush1.msra.mxu0 0.0
      %2002 = vmatprep.subr.mxu0 0.0
      %2003 = vmatpush1.msra.mxu0 0.0
      %2004 = vmatprep.subr.mxu0 0.0
      %2005 = vmatpush1.msra.mxu0 0.0
      %2006 = vmatprep.subr.mxu0 0.0
      %2007 = vmatpush1.msra.mxu0 0.0
      %2008 = vmatprep.subr.mxu0 0.0
      %2009 = vmatpush1.msra.mxu0 0.0
      %2010 = vmatprep.subr.mxu0 0.0
      %2011 = vmatpush1.msra.mxu0 0.0
      %2012 = vmatprep.subr.mxu0 0.0
      %2013 = vmatpush1.msra.mxu0 0.0
      %2014 = vmatprep.subr.mxu0 0.0
      %2015 = vmatpush1.msra.mxu0 0.0
      %2016 = vmatprep.subr.mxu0 0.0
      %2017 = vmatpush1.msra.mxu0 0.0
      %2018 = vmatprep.subr.mxu0 0.0
      %2019 = vmatpush1.msra.mxu0 0.0
      %2020 = vmatprep.mubr.f32.mxu0 0.0
      %2021 = vmatmul.mubr.f32.gmra.mrb[0].mxu0 %v1951
      %v2022 = vpop.f32.mrb[0].mxu0
      %v2023 = vadd.f32 0.0, %v2022
      %v2024 = vpop.f32.mrb[0].mxu0
      %2025 = vmatprep.mubr.f32.mxu0 0.0
      %2026 = vmatmul.mubr.f32.gmra.mrb[0].mxu0 %v1954
      %v2027 = vpop.f32.mrb[0].mxu0
      %v2028 = vadd.f32 0.0, %v2027
      %v2029 = vpop.f32.mrb[0].mxu0
      %2030 = vdwg.mxu0
      %2033 = vrot.lane.b32.xlu0 %v2023, 96
      %v2034 = vpop.permute.xlu0 %2033
      %2035 = vrot.lane.b32.xlu0 %v2028, 96
      %v2036 = vpop.permute.xlu0 %2035
      %vm2039 = vcmask 1048320
      %2040 = vst.msk [vmem:[#allocation4] sm:$0xff] %vm2039, %v2034
      %2041 = vst.msk [vmem:[#allocation4 + $0x10] sm:$0xff] %vm2039, %v2036
      %v2042 = vld [vmem:[#allocation3 + $0x8] sm:$0xff]
      %v2043 = vld [vmem:[#allocation3 + $0x38] sm:$0xff]
      %v2044 = vmul.f32 %v2042, 0.17677669
      %v2045 = vmul.f32 %v2043, 0.17677669
      %v2046 = vld [vmem:[#allocation3 + $0x18] sm:$0xff]
      %v2047 = vld [vmem:[#allocation3 + $0x48] sm:$0xff]
      %v2048 = vld [vmem:[#allocation3 + $0x28] sm:$0xff]
      %v2049 = vld [vmem:[#allocation3 + $0x58] sm:$0xff]
      %v2051 = vsel %vm1173, %v2044, 0
      %v2054 = vsel %vm1173, %v2045, 0
      %v2057 = vsel %vm1173, %v2046, 0
      %v2060 = vsel %vm1173, %v2047, 0
      %2062 = vmatprep.subr.mxu0 0.0
      %2063 = vmatpush1.xpose.msra.mxu0 %v2057
      %2064 = vmatprep.subr.mxu0 0.0
      %2065 = vmatpush1.xpose.msra.mxu0 %v2060
      %2066 = vmatprep.subr.mxu0 0.0
      %2067 = vmatpush1.xpose.msra.mxu0 0.0
      %2068 = vmatprep.subr.mxu0 0.0
      %2069 = vmatpush1.xpose.msra.mxu0 0.0
      %2070 = vmatprep.subr.mxu0 0.0
      %2071 = vmatpush1.xpose.msra.mxu0 0.0
      %2072 = vmatprep.subr.mxu0 0.0
      %2073 = vmatpush1.xpose.msra.mxu0 0.0
      %2074 = vmatprep.subr.mxu0 0.0
      %2075 = vmatpush1.xpose.msra.mxu0 0.0
      %2076 = vmatprep.subr.mxu0 0.0
      %2077 = vmatpush1.xpose.msra.mxu0 0.0
      %2078 = vmatprep.subr.mxu0 0.0
      %2079 = vmatpush1.xpose.msra.mxu0 0.0
      %2080 = vmatprep.subr.mxu0 0.0
      %2081 = vmatpush1.xpose.msra.mxu0 0.0
      %2082 = vmatprep.subr.mxu0 0.0
      %2083 = vmatpush1.xpose.msra.mxu0 0.0
      %2084 = vmatprep.subr.mxu0 0.0
      %2085 = vmatpush1.xpose.msra.mxu0 0.0
      %2086 = vmatprep.subr.mxu0 0.0
      %2087 = vmatpush1.xpose.msra.mxu0 0.0
      %2088 = vmatprep.subr.mxu0 0.0
      %2089 = vmatpush1.xpose.msra.mxu0 0.0
      %2090 = vmatprep.subr.mxu0 0.0
      %2091 = vmatpush1.xpose.msra.mxu0 0.0
      %2092 = vmatprep.subr.mxu0 0.0
      %2093 = vmatpush1.xpose.msra.mxu0 0.0
      %2094 = vmatprep.subr.mxu0 0.0
      %2095 = vmatpush1.xpose.msra.mxu0 0.0
      %2096 = vmatprep.subr.mxu0 0.0
      %2097 = vmatpush1.xpose.msra.mxu0 0.0
      %2098 = vmatprep.subr.mxu0 0.0
      %2099 = vmatpush1.xpose.msra.mxu0 0.0
      %2100 = vmatprep.subr.mxu0 0.0
      %2101 = vmatpush1.xpose.msra.mxu0 0.0
      %2102 = vmatprep.subr.mxu0 0.0
      %2103 = vmatpush1.xpose.msra.mxu0 0.0
      %2104 = vmatprep.subr.mxu0 0.0
      %2105 = vmatpush1.xpose.msra.mxu0 0.0
      %2106 = vmatprep.subr.mxu0 0.0
      %2107 = vmatpush1.xpose.msra.mxu0 0.0
      %2108 = vmatprep.subr.mxu0 0.0
      %2109 = vmatpush1.xpose.msra.mxu0 0.0
      %2110 = vmatprep.subr.mxu0 0.0
      %2111 = vmatpush1.xpose.msra.mxu0 0.0
      %2112 = vmatprep.subr.mxu0 0.0
      %2113 = vmatpush1.xpose.msra.mxu0 0.0
      %2114 = vmatprep.subr.mxu0 0.0
      %2115 = vmatpush1.xpose.msra.mxu0 0.0
      %2116 = vmatprep.subr.mxu0 0.0
      %2117 = vmatpush1.xpose.msra.mxu0 0.0
      %2118 = vmatprep.subr.mxu0 0.0
      %2119 = vmatpush1.xpose.msra.mxu0 0.0
      %2120 = vmatprep.subr.mxu0 0.0
      %2121 = vmatpush1.xpose.msra.mxu0 0.0
      %2122 = vmatprep.subr.mxu0 0.0
      %2123 = vmatpush1.xpose.msra.mxu0 0.0
      %2124 = vmatprep.subr.mxu0 0.0
      %2125 = vmatpush1.xpose.msra.mxu0 0.0
      %2126 = vmatprep.mubr.f32.mxu0 0.0
      %2127 = vmatmul.mubr.f32.gmra.mrb[0].mxu0 %v2051
      %v2128 = vpop.f32.mrb[0].mxu0
      %v2129 = vadd.f32 0.0, %v2128
      %v2130 = vpop.f32.mrb[0].mxu0
      %2131 = vmatprep.mubr.f32.mxu0 0.0
      %2132 = vmatmul.mubr.f32.gmra.mrb[0].mxu0 %v2054
      %v2133 = vpop.f32.mrb[0].mxu0
      %v2134 = vadd.f32 0.0, %v2133
      %v2135 = vpop.f32.mrb[0].mxu0
      %2136 = vdwg.mxu0
      %v2137 = vsel %vm1261, %v2129, -inf
      %2138 = vmax.xlane.f32.xlu0 %v2137
      %v2139 = vpop.xlane.xlu0 %2138
      %v2140 = vsel %vm1261, %v2134, -inf
      %2141 = vmax.xlane.f32.xlu0 %v2140
      %v2142 = vpop.xlane.xlu0 %2141
      %v2143 = vsub.f32 %v2129, %v2139
      %v2144 = vsub.f32 %v2134, %v2142
      %v2145 = vmul.f32 %v2143, 1.442695
      %v2146 = vpow.pop %v2145
      %v2147 = vmul.f32 %v2144, 1.442695
      %v2148 = vpow.pop %v2147
      %v2149 = vsel %vm1261, %v2146, 0.0
      %2150 = vadd.xlane.f32.xlu0 %v2149
      %v2151 = vpop.xlane.xlu0 %2150
      %v2152 = vsel %vm1261, %v2148, 0.0
      %2153 = vadd.xlane.f32.xlu0 %v2152
      %v2154 = vpop.xlane.xlu0 %2153
      %v2155 = vrcp.pop %v2151
      %v2156 = vmul.f32 %v2146, %v2155
      %v2157 = vrcp.pop %v2154
      %v2158 = vmul.f32 %v2148, %v2157
      %v2160 = vsel %vm1261, %v2156, 0
      %v2163 = vsel %vm1261, %v2158, 0
      %2165 = vmatprep.subr.mxu0 0.0
      %2166 = vmatpush1.msra.mxu0 %v2048
      %2167 = vmatprep.subr.mxu0 0.0
      %2168 = vmatpush1.msra.mxu0 %v2049
      %2169 = vmatprep.subr.mxu0 0.0
      %2170 = vmatpush1.msra.mxu0 0.0
      %2171 = vmatprep.subr.mxu0 0.0
      %2172 = vmatpush1.msra.mxu0 0.0
      %2173 = vmatprep.subr.mxu0 0.0
      %2174 = vmatpush1.msra.mxu0 0.0
      %2175 = vmatprep.subr.mxu0 0.0
      %2176 = vmatpush1.msra.mxu0 0.0
      %2177 = vmatprep.subr.mxu0 0.0
      %2178 = vmatpush1.msra.mxu0 0.0
      %2179 = vmatprep.subr.mxu0 0.0
      %2180 = vmatpush1.msra.mxu0 0.0
      %2181 = vmatprep.subr.mxu0 0.0
      %2182 = vmatpush1.msra.mxu0 0.0
      %2183 = vmatprep.subr.mxu0 0.0
      %2184 = vmatpush1.msra.mxu0 0.0
      %2185 = vmatprep.subr.mxu0 0.0
      %2186 = vmatpush1.msra.mxu0 0.0
      %2187 = vmatprep.subr.mxu0 0.0
      %2188 = vmatpush1.msra.mxu0 0.0
      %2189 = vmatprep.subr.mxu0 0.0
      %2190 = vmatpush1.msra.mxu0 0.0
      %2191 = vmatprep.subr.mxu0 0.0
      %2192 = vmatpush1.msra.mxu0 0.0
      %2193 = vmatprep.subr.mxu0 0.0
      %2194 = vmatpush1.msra.mxu0 0.0
      %2195 = vmatprep.subr.mxu0 0.0
      %2196 = vmatpush1.msra.mxu0 0.0
      %2197 = vmatprep.subr.mxu0 0.0
      %2198 = vmatpush1.msra.mxu0 0.0
      %2199 = vmatprep.subr.mxu0 0.0
      %2200 = vmatpush1.msra.mxu0 0.0
      %2201 = vmatprep.subr.mxu0 0.0
      %2202 = vmatpush1.msra.mxu0 0.0
      %2203 = vmatprep.subr.mxu0 0.0
      %2204 = vmatpush1.msra.mxu0 0.0
      %2205 = vmatprep.subr.mxu0 0.0
      %2206 = vmatpush1.msra.mxu0 0.0
      %2207 = vmatprep.subr.mxu0 0.0
      %2208 = vmatpush1.msra.mxu0 0.0
      %2209 = vmatprep.subr.mxu0 0.0
      %2210 = vmatpush1.msra.mxu0 0.0
      %2211 = vmatprep.subr.mxu0 0.0
      %2212 = vmatpush1.msra.mxu0 0.0
      %2213 = vmatprep.subr.mxu0 0.0
      %2214 = vmatpush1.msra.mxu0 0.0
      %2215 = vmatprep.subr.mxu0 0.0
      %2216 = vmatpush1.msra.mxu0 0.0
      %2217 = vmatprep.subr.mxu0 0.0
      %2218 = vmatpush1.msra.mxu0 0.0
      %2219 = vmatprep.subr.mxu0 0.0
      %2220 = vmatpush1.msra.mxu0 0.0
      %2221 = vmatprep.subr.mxu0 0.0
      %2222 = vmatpush1.msra.mxu0 0.0
      %2223 = vmatprep.subr.mxu0 0.0
      %2224 = vmatpush1.msra.mxu0 0.0
      %2225 = vmatprep.subr.mxu0 0.0
      %2226 = vmatpush1.msra.mxu0 0.0
      %2227 = vmatprep.subr.mxu0 0.0
      %2228 = vmatpush1.msra.mxu0 0.0
      %2229 = vmatprep.mubr.f32.mxu0 0.0
      %2230 = vmatmul.mubr.f32.gmra.mrb[0].mxu0 %v2160
      %v2231 = vpop.f32.mrb[0].mxu0
      %v2232 = vadd.f32 0.0, %v2231
      %v2233 = vpop.f32.mrb[0].mxu0
      %2234 = vmatprep.mubr.f32.mxu0 0.0
      %2235 = vmatmul.mubr.f32.gmra.mrb[0].mxu0 %v2163
      %v2236 = vpop.f32.mrb[0].mxu0
      %v2237 = vadd.f32 0.0, %v2236
      %v2238 = vpop.f32.mrb[0].mxu0
      %2239 = vdwg.mxu0
      %2240 = vst.msk [vmem:[#allocation4 + $0x8] sm:$0xff] %vm1173, %v2232
      %2241 = vst.msk [vmem:[#allocation4 + $0x18] sm:$0xff] %vm1173, %v2237
      %v2242 = vld [vmem:[#allocation3 + $0x8] sm:$0xff]
      %v2243 = vld [vmem:[#allocation3 + $0x38] sm:$0xff]
      %v2244 = vmul.f32 %v2242, 0.17677669
      %v2245 = vmul.f32 %v2243, 0.17677669
      %v2246 = vld [vmem:[#allocation3 + $0x18] sm:$0xff]
      %v2247 = vld [vmem:[#allocation3 + $0x48] sm:$0xff]
      %v2248 = vld [vmem:[#allocation3 + $0x28] sm:$0xff]
      %v2249 = vld [vmem:[#allocation3 + $0x58] sm:$0xff]
      %2252 = vrot.lane.b32.xlu0 %v2244, 96
      %v2253 = vpop.permute.xlu0 %2252
      %2254 = vrot.lane.b32.xlu0 %v2245, 96
      %v2255 = vpop.permute.xlu0 %2254
      %2258 = vrot.lane.b32.xlu0 %v2246, 96
      %v2259 = vpop.permute.xlu0 %2258
      %2260 = vrot.lane.b32.xlu0 %v2247, 96
      %v2261 = vpop.permute.xlu0 %2260
      %v2262 = vsel %vm1173, %v2253, 0
      %v2264 = vsel %vm1173, %v2255, 0
      %v2266 = vsel %vm1173, %v2259, 0
      %v2268 = vsel %vm1173, %v2261, 0
      %2270 = vmatprep.subr.mxu0 0.0
      %2271 = vmatpush1.xpose.msra.mxu0 %v2266
      %2272 = vmatprep.subr.mxu0 0.0
      %2273 = vmatpush1.xpose.msra.mxu0 %v2268
      %2274 = vmatprep.subr.mxu0 0.0
      %2275 = vmatpush1.xpose.msra.mxu0 0.0
      %2276 = vmatprep.subr.mxu0 0.0
      %2277 = vmatpush1.xpose.msra.mxu0 0.0
      %2278 = vmatprep.subr.mxu0 0.0
      %2279 = vmatpush1.xpose.msra.mxu0 0.0
      %2280 = vmatprep.subr.mxu0 0.0
      %2281 = vmatpush1.xpose.msra.mxu0 0.0
      %2282 = vmatprep.subr.mxu0 0.0
      %2283 = vmatpush1.xpose.msra.mxu0 0.0
      %2284 = vmatprep.subr.mxu0 0.0
      %2285 = vmatpush1.xpose.msra.mxu0 0.0
      %2286 = vmatprep.subr.mxu0 0.0
      %2287 = vmatpush1.xpose.msra.mxu0 0.0
      %2288 = vmatprep.subr.mxu0 0.0
      %2289 = vmatpush1.xpose.msra.mxu0 0.0
      %2290 = vmatprep.subr.mxu0 0.0
      %2291 = vmatpush1.xpose.msra.mxu0 0.0
      %2292 = vmatprep.subr.mxu0 0.0
      %2293 = vmatpush1.xpose.msra.mxu0 0.0
      %2294 = vmatprep.subr.mxu0 0.0
      %2295 = vmatpush1.xpose.msra.mxu0 0.0
      %2296 = vmatprep.subr.mxu0 0.0
      %2297 = vmatpush1.xpose.msra.mxu0 0.0
      %2298 = vmatprep.subr.mxu0 0.0
      %2299 = vmatpush1.xpose.msra.mxu0 0.0
      %2300 = vmatprep.subr.mxu0 0.0
      %2301 = vmatpush1.xpose.msra.mxu0 0.0
      %2302 = vmatprep.subr.mxu0 0.0
      %2303 = vmatpush1.xpose.msra.mxu0 0.0
      %2304 = vmatprep.subr.mxu0 0.0
      %2305 = vmatpush1.xpose.msra.mxu0 0.0
      %2306 = vmatprep.subr.mxu0 0.0
      %2307 = vmatpush1.xpose.msra.mxu0 0.0
      %2308 = vmatprep.subr.mxu0 0.0
      %2309 = vmatpush1.xpose.msra.mxu0 0.0
      %2310 = vmatprep.subr.mxu0 0.0
      %2311 = vmatpush1.xpose.msra.mxu0 0.0
      %2312 = vmatprep.subr.mxu0 0.0
      %2313 = vmatpush1.xpose.msra.mxu0 0.0
      %2314 = vmatprep.subr.mxu0 0.0
      %2315 = vmatpush1.xpose.msra.mxu0 0.0
      %2316 = vmatprep.subr.mxu0 0.0
      %2317 = vmatpush1.xpose.msra.mxu0 0.0
      %2318 = vmatprep.subr.mxu0 0.0
      %2319 = vmatpush1.xpose.msra.mxu0 0.0
      %2320 = vmatprep.subr.mxu0 0.0
      %2321 = vmatpush1.xpose.msra.mxu0 0.0
      %2322 = vmatprep.subr.mxu0 0.0
      %2323 = vmatpush1.xpose.msra.mxu0 0.0
      %2324 = vmatprep.subr.mxu0 0.0
      %2325 = vmatpush1.xpose.msra.mxu0 0.0
      %2326 = vmatprep.subr.mxu0 0.0
      %2327 = vmatpush1.xpose.msra.mxu0 0.0
      %2328 = vmatprep.subr.mxu0 0.0
      %2329 = vmatpush1.xpose.msra.mxu0 0.0
      %2330 = vmatprep.subr.mxu0 0.0
      %2331 = vmatpush1.xpose.msra.mxu0 0.0
      %2332 = vmatprep.subr.mxu0 0.0
      %2333 = vmatpush1.xpose.msra.mxu0 0.0
      %2334 = vmatprep.mubr.f32.mxu0 0.0
      %2335 = vmatmul.mubr.f32.gmra.mrb[0].mxu0 %v2262
      %v2336 = vpop.f32.mrb[0].mxu0
      %v2337 = vadd.f32 0.0, %v2336
      %v2338 = vpop.f32.mrb[0].mxu0
      %2339 = vmatprep.mubr.f32.mxu0 0.0
      %2340 = vmatmul.mubr.f32.gmra.mrb[0].mxu0 %v2264
      %v2341 = vpop.f32.mrb[0].mxu0
      %v2342 = vadd.f32 0.0, %v2341
      %v2343 = vpop.f32.mrb[0].mxu0
      %2344 = vdwg.mxu0
      %v2345 = vsel %vm1261, %v2337, -inf
      %2346 = vmax.xlane.f32.xlu0 %v2345
      %v2347 = vpop.xlane.xlu0 %2346
      %v2348 = vsel %vm1261, %v2342, -inf
      %2349 = vmax.xlane.f32.xlu0 %v2348
      %v2350 = vpop.xlane.xlu0 %2349
      %v2351 = vsub.f32 %v2337, %v2347
      %v2352 = vsub.f32 %v2342, %v2350
      %v2353 = vmul.f32 %v2351, 1.442695
      %v2354 = vpow.pop %v2353
      %v2355 = vmul.f32 %v2352, 1.442695
      %v2356 = vpow.pop %v2355
      %v2357 = vsel %vm1261, %v2354, 0.0
      %2358 = vadd.xlane.f32.xlu0 %v2357
      %v2359 = vpop.xlane.xlu0 %2358
      %v2360 = vsel %vm1261, %v2356, 0.0
      %2361 = vadd.xlane.f32.xlu0 %v2360
      %v2362 = vpop.xlane.xlu0 %2361
      %v2363 = vrcp.pop %v2359
      %v2364 = vmul.f32 %v2354, %v2363
      %v2365 = vrcp.pop %v2362
      %v2366 = vmul.f32 %v2356, %v2365
      %2369 = vrot.lane.b32.xlu0 %v2248, 96
      %v2370 = vpop.permute.xlu0 %2369
      %2371 = vrot.lane.b32.xlu0 %v2249, 96
      %v2372 = vpop.permute.xlu0 %2371
      %v2376 = vsel %vm1261, %v2364, 0
      %v2379 = vsel %vm1261, %v2366, 0
      %2381 = vmatprep.subr.mxu0 0.0
      %2382 = vmatpush1.msra.mxu0 %v2370
      %2383 = vmatprep.subr.mxu0 0.0
      %2384 = vmatpush1.msra.mxu0 %v2372
      %2385 = vmatprep.subr.mxu0 0.0
      %2386 = vmatpush1.msra.mxu0 0.0
      %2387 = vmatprep.subr.mxu0 0.0
      %2388 = vmatpush1.msra.mxu0 0.0
      %2389 = vmatprep.subr.mxu0 0.0
      %2390 = vmatpush1.msra.mxu0 0.0
      %2391 = vmatprep.subr.mxu0 0.0
      %2392 = vmatpush1.msra.mxu0 0.0
      %2393 = vmatprep.subr.mxu0 0.0
      %2394 = vmatpush1.msra.mxu0 0.0
      %2395 = vmatprep.subr.mxu0 0.0
      %2396 = vmatpush1.msra.mxu0 0.0
      %2397 = vmatprep.subr.mxu0 0.0
      %2398 = vmatpush1.msra.mxu0 0.0
      %2399 = vmatprep.subr.mxu0 0.0
      %2400 = vmatpush1.msra.mxu0 0.0
      %2401 = vmatprep.subr.mxu0 0.0
      %2402 = vmatpush1.msra.mxu0 0.0
      %2403 = vmatprep.subr.mxu0 0.0
      %2404 = vmatpush1.msra.mxu0 0.0
      %2405 = vmatprep.subr.mxu0 0.0
      %2406 = vmatpush1.msra.mxu0 0.0
      %2407 = vmatprep.subr.mxu0 0.0
      %2408 = vmatpush1.msra.mxu0 0.0
      %2409 = vmatprep.subr.mxu0 0.0
      %2410 = vmatpush1.msra.mxu0 0.0
      %2411 = vmatprep.subr.mxu0 0.0
      %2412 = vmatpush1.msra.mxu0 0.0
      %2413 = vmatprep.subr.mxu0 0.0
      %2414 = vmatpush1.msra.mxu0 0.0
      %2415 = vmatprep.subr.mxu0 0.0
      %2416 = vmatpush1.msra.mxu0 0.0
      %2417 = vmatprep.subr.mxu0 0.0
      %2418 = vmatpush1.msra.mxu0 0.0
      %2419 = vmatprep.subr.mxu0 0.0
      %2420 = vmatpush1.msra.mxu0 0.0
      %2421 = vmatprep.subr.mxu0 0.0
      %2422 = vmatpush1.msra.mxu0 0.0
      %2423 = vmatprep.subr.mxu0 0.0
      %2424 = vmatpush1.msra.mxu0 0.0
      %2425 = vmatprep.subr.mxu0 0.0
      %2426 = vmatpush1.msra.mxu0 0.0
      %2427 = vmatprep.subr.mxu0 0.0
      %2428 = vmatpush1.msra.mxu0 0.0
      %2429 = vmatprep.subr.mxu0 0.0
      %2430 = vmatpush1.msra.mxu0 0.0
      %2431 = vmatprep.subr.mxu0 0.0
      %2432 = vmatpush1.msra.mxu0 0.0
      %2433 = vmatprep.subr.mxu0 0.0
      %2434 = vmatpush1.msra.mxu0 0.0
      %2435 = vmatprep.subr.mxu0 0.0
      %2436 = vmatpush1.msra.mxu0 0.0
      %2437 = vmatprep.subr.mxu0 0.0
      %2438 = vmatpush1.msra.mxu0 0.0
      %2439 = vmatprep.subr.mxu0 0.0
      %2440 = vmatpush1.msra.mxu0 0.0
      %2441 = vmatprep.subr.mxu0 0.0
      %2442 = vmatpush1.msra.mxu0 0.0
      %2443 = vmatprep.subr.mxu0 0.0
      %2444 = vmatpush1.msra.mxu0 0.0
      %2445 = vmatprep.mubr.f32.mxu0 0.0
      %2446 = vmatmul.mubr.f32.gmra.mrb[0].mxu0 %v2376
      %v2447 = vpop.f32.mrb[0].mxu0
      %v2448 = vadd.f32 0.0, %v2447
      %v2449 = vpop.f32.mrb[0].mxu0
      %2450 = vmatprep.mubr.f32.mxu0 0.0
      %2451 = vmatmul.mubr.f32.gmra.mrb[0].mxu0 %v2379
      %v2452 = vpop.f32.mrb[0].mxu0
      %v2453 = vadd.f32 0.0, %v2452
      %v2454 = vpop.f32.mrb[0].mxu0
      %2455 = vdwg.mxu0
      %2458 = vrot.lane.b32.xlu0 %v2448, 32
      %v2459 = vpop.permute.xlu0 %2458
      %2460 = vrot.lane.b32.xlu0 %v2453, 32
      %v2461 = vpop.permute.xlu0 %2460
      %2464 = vst.msk [vmem:[#allocation4 + $0x8] sm:$0xff] %vm1589, %v2459
      %2465 = vst.msk [vmem:[#allocation4 + $0x18] sm:$0xff] %vm1589, %v2461
      %v2466 = vld [vmem:[#allocation3 + $0x8] sm:$0xff]
      %v2467 = vld [vmem:[#allocation3 + $0x38] sm:$0xff]
      %v2468 = vmul.f32 %v2466, 0.17677669
      %v2469 = vmul.f32 %v2467, 0.17677669
      %v2470 = vld [vmem:[#allocation3 + $0x18] sm:$0xff]
      %v2471 = vld [vmem:[#allocation3 + $0x48] sm:$0xff]
      %v2472 = vld [vmem:[#allocation3 + $0x28] sm:$0xff]
      %v2473 = vld [vmem:[#allocation3 + $0x58] sm:$0xff]
      %2476 = vrot.lane.b32.xlu0 %v2468, 64
      %v2477 = vpop.permute.xlu0 %2476
      %2478 = vrot.lane.b32.xlu0 %v2469, 64
      %v2479 = vpop.permute.xlu0 %2478
      %2482 = vrot.lane.b32.xlu0 %v2470, 64
      %v2483 = vpop.permute.xlu0 %2482
      %2484 = vrot.lane.b32.xlu0 %v2471, 64
      %v2485 = vpop.permute.xlu0 %2484
      %v2486 = vsel %vm1173, %v2477, 0
      %v2488 = vsel %vm1173, %v2479, 0
      %v2490 = vsel %vm1173, %v2483, 0
      %v2492 = vsel %vm1173, %v2485, 0
      %2494 = vmatprep.subr.mxu0 0.0
      %2495 = vmatpush1.xpose.msra.mxu0 %v2490
      %2496 = vmatprep.subr.mxu0 0.0
      %2497 = vmatpush1.xpose.msra.mxu0 %v2492
      %2498 = vmatprep.subr.mxu0 0.0
      %2499 = vmatpush1.xpose.msra.mxu0 0.0
      %2500 = vmatprep.subr.mxu0 0.0
      %2501 = vmatpush1.xpose.msra.mxu0 0.0
      %2502 = vmatprep.subr.mxu0 0.0
      %2503 = vmatpush1.xpose.msra.mxu0 0.0
      %2504 = vmatprep.subr.mxu0 0.0
      %2505 = vmatpush1.xpose.msra.mxu0 0.0
      %2506 = vmatprep.subr.mxu0 0.0
      %2507 = vmatpush1.xpose.msra.mxu0 0.0
      %2508 = vmatprep.subr.mxu0 0.0
      %2509 = vmatpush1.xpose.msra.mxu0 0.0
      %2510 = vmatprep.subr.mxu0 0.0
      %2511 = vmatpush1.xpose.msra.mxu0 0.0
      %2512 = vmatprep.subr.mxu0 0.0
      %2513 = vmatpush1.xpose.msra.mxu0 0.0
      %2514 = vmatprep.subr.mxu0 0.0
      %2515 = vmatpush1.xpose.msra.mxu0 0.0
      %2516 = vmatprep.subr.mxu0 0.0
      %2517 = vmatpush1.xpose.msra.mxu0 0.0
      %2518 = vmatprep.subr.mxu0 0.0
      %2519 = vmatpush1.xpose.msra.mxu0 0.0
      %2520 = vmatprep.subr.mxu0 0.0
      %2521 = vmatpush1.xpose.msra.mxu0 0.0
      %2522 = vmatprep.subr.mxu0 0.0
      %2523 = vmatpush1.xpose.msra.mxu0 0.0
      %2524 = vmatprep.subr.mxu0 0.0
      %2525 = vmatpush1.xpose.msra.mxu0 0.0
      %2526 = vmatprep.subr.mxu0 0.0
      %2527 = vmatpush1.xpose.msra.mxu0 0.0
      %2528 = vmatprep.subr.mxu0 0.0
      %2529 = vmatpush1.xpose.msra.mxu0 0.0
      %2530 = vmatprep.subr.mxu0 0.0
      %2531 = vmatpush1.xpose.msra.mxu0 0.0
      %2532 = vmatprep.subr.mxu0 0.0
      %2533 = vmatpush1.xpose.msra.mxu0 0.0
      %2534 = vmatprep.subr.mxu0 0.0
      %2535 = vmatpush1.xpose.msra.mxu0 0.0
      %2536 = vmatprep.subr.mxu0 0.0
      %2537 = vmatpush1.xpose.msra.mxu0 0.0
      %2538 = vmatprep.subr.mxu0 0.0
      %2539 = vmatpush1.xpose.msra.mxu0 0.0
      %2540 = vmatprep.subr.mxu0 0.0
      %2541 = vmatpush1.xpose.msra.mxu0 0.0
      %2542 = vmatprep.subr.mxu0 0.0
      %2543 = vmatpush1.xpose.msra.mxu0 0.0
      %2544 = vmatprep.subr.mxu0 0.0
      %2545 = vmatpush1.xpose.msra.mxu0 0.0
      %2546 = vmatprep.subr.mxu0 0.0
      %2547 = vmatpush1.xpose.msra.mxu0 0.0
      %2548 = vmatprep.subr.mxu0 0.0
      %2549 = vmatpush1.xpose.msra.mxu0 0.0
      %2550 = vmatprep.subr.mxu0 0.0
      %2551 = vmatpush1.xpose.msra.mxu0 0.0
      %2552 = vmatprep.subr.mxu0 0.0
      %2553 = vmatpush1.xpose.msra.mxu0 0.0
      %2554 = vmatprep.subr.mxu0 0.0
      %2555 = vmatpush1.xpose.msra.mxu0 0.0
      %2556 = vmatprep.subr.mxu0 0.0
      %2557 = vmatpush1.xpose.msra.mxu0 0.0
      %2558 = vmatprep.mubr.f32.mxu0 0.0
      %2559 = vmatmul.mubr.f32.gmra.mrb[0].mxu0 %v2486
      %v2560 = vpop.f32.mrb[0].mxu0
      %v2561 = vadd.f32 0.0, %v2560
      %v2562 = vpop.f32.mrb[0].mxu0
      %2563 = vmatprep.mubr.f32.mxu0 0.0
      %2564 = vmatmul.mubr.f32.gmra.mrb[0].mxu0 %v2488
      %v2565 = vpop.f32.mrb[0].mxu0
      %v2566 = vadd.f32 0.0, %v2565
      %v2567 = vpop.f32.mrb[0].mxu0
      %2568 = vdwg.mxu0
      %v2569 = vsel %vm1261, %v2561, -inf
      %2570 = vmax.xlane.f32.xlu0 %v2569
      %v2571 = vpop.xlane.xlu0 %2570
      %v2572 = vsel %vm1261, %v2566, -inf
      %2573 = vmax.xlane.f32.xlu0 %v2572
      %v2574 = vpop.xlane.xlu0 %2573
      %v2575 = vsub.f32 %v2561, %v2571
      %v2576 = vsub.f32 %v2566, %v2574
      %v2577 = vmul.f32 %v2575, 1.442695
      %v2578 = vpow.pop %v2577
      %v2579 = vmul.f32 %v2576, 1.442695
      %v2580 = vpow.pop %v2579
      %v2581 = vsel %vm1261, %v2578, 0.0
      %2582 = vadd.xlane.f32.xlu0 %v2581
      %v2583 = vpop.xlane.xlu0 %2582
      %v2584 = vsel %vm1261, %v2580, 0.0
      %2585 = vadd.xlane.f32.xlu0 %v2584
      %v2586 = vpop.xlane.xlu0 %2585
      %v2587 = vrcp.pop %v2583
      %v2588 = vmul.f32 %v2578, %v2587
      %v2589 = vrcp.pop %v2586
      %v2590 = vmul.f32 %v2580, %v2589
      %2593 = vrot.lane.b32.xlu0 %v2472, 64
      %v2594 = vpop.permute.xlu0 %2593
      %2595 = vrot.lane.b32.xlu0 %v2473, 64
      %v2596 = vpop.permute.xlu0 %2595
      %v2600 = vsel %vm1261, %v2588, 0
      %v2603 = vsel %vm1261, %v2590, 0
      %2605 = vmatprep.subr.mxu0 0.0
      %2606 = vmatpush1.msra.mxu0 %v2594
      %2607 = vmatprep.subr.mxu0 0.0
      %2608 = vmatpush1.msra.mxu0 %v2596
      %2609 = vmatprep.subr.mxu0 0.0
      %2610 = vmatpush1.msra.mxu0 0.0
      %2611 = vmatprep.subr.mxu0 0.0
      %2612 = vmatpush1.msra.mxu0 0.0
      %2613 = vmatprep.subr.mxu0 0.0
      %2614 = vmatpush1.msra.mxu0 0.0
      %2615 = vmatprep.subr.mxu0 0.0
      %2616 = vmatpush1.msra.mxu0 0.0
      %2617 = vmatprep.subr.mxu0 0.0
      %2618 = vmatpush1.msra.mxu0 0.0
      %2619 = vmatprep.subr.mxu0 0.0
      %2620 = vmatpush1.msra.mxu0 0.0
      %2621 = vmatprep.subr.mxu0 0.0
      %2622 = vmatpush1.msra.mxu0 0.0
      %2623 = vmatprep.subr.mxu0 0.0
      %2624 = vmatpush1.msra.mxu0 0.0
      %2625 = vmatprep.subr.mxu0 0.0
      %2626 = vmatpush1.msra.mxu0 0.0
      %2627 = vmatprep.subr.mxu0 0.0
      %2628 = vmatpush1.msra.mxu0 0.0
      %2629 = vmatprep.subr.mxu0 0.0
      %2630 = vmatpush1.msra.mxu0 0.0
      %2631 = vmatprep.subr.mxu0 0.0
      %2632 = vmatpush1.msra.mxu0 0.0
      %2633 = vmatprep.subr.mxu0 0.0
      %2634 = vmatpush1.msra.mxu0 0.0
      %2635 = vmatprep.subr.mxu0 0.0
      %2636 = vmatpush1.msra.mxu0 0.0
      %2637 = vmatprep.subr.mxu0 0.0
      %2638 = vmatpush1.msra.mxu0 0.0
      %2639 = vmatprep.subr.mxu0 0.0
      %2640 = vmatpush1.msra.mxu0 0.0
      %2641 = vmatprep.subr.mxu0 0.0
      %2642 = vmatpush1.msra.mxu0 0.0
      %2643 = vmatprep.subr.mxu0 0.0
      %2644 = vmatpush1.msra.mxu0 0.0
      %2645 = vmatprep.subr.mxu0 0.0
      %2646 = vmatpush1.msra.mxu0 0.0
      %2647 = vmatprep.subr.mxu0 0.0
      %2648 = vmatpush1.msra.mxu0 0.0
      %2649 = vmatprep.subr.mxu0 0.0
      %2650 = vmatpush1.msra.mxu0 0.0
      %2651 = vmatprep.subr.mxu0 0.0
      %2652 = vmatpush1.msra.mxu0 0.0
      %2653 = vmatprep.subr.mxu0 0.0
      %2654 = vmatpush1.msra.mxu0 0.0
      %2655 = vmatprep.subr.mxu0 0.0
      %2656 = vmatpush1.msra.mxu0 0.0
      %2657 = vmatprep.subr.mxu0 0.0
      %2658 = vmatpush1.msra.mxu0 0.0
      %2659 = vmatprep.subr.mxu0 0.0
      %2660 = vmatpush1.msra.mxu0 0.0
      %2661 = vmatprep.subr.mxu0 0.0
      %2662 = vmatpush1.msra.mxu0 0.0
      %2663 = vmatprep.subr.mxu0 0.0
      %2664 = vmatpush1.msra.mxu0 0.0
      %2665 = vmatprep.subr.mxu0 0.0
      %2666 = vmatpush1.msra.mxu0 0.0
      %2667 = vmatprep.subr.mxu0 0.0
      %2668 = vmatpush1.msra.mxu0 0.0
      %2669 = vmatprep.mubr.f32.mxu0 0.0
      %2670 = vmatmul.mubr.f32.gmra.mrb[0].mxu0 %v2600
      %v2671 = vpop.f32.mrb[0].mxu0
      %v2672 = vadd.f32 0.0, %v2671
      %v2673 = vpop.f32.mrb[0].mxu0
      %2674 = vmatprep.mubr.f32.mxu0 0.0
      %2675 = vmatmul.mubr.f32.gmra.mrb[0].mxu0 %v2603
      %v2676 = vpop.f32.mrb[0].mxu0
      %v2677 = vadd.f32 0.0, %v2676
      %v2678 = vpop.f32.mrb[0].mxu0
      %2679 = vdwg.mxu0
      %2682 = vrot.lane.b32.xlu0 %v2672, 64
      %v2683 = vpop.permute.xlu0 %2682
      %2684 = vrot.lane.b32.xlu0 %v2677, 64
      %v2685 = vpop.permute.xlu0 %2684
      %2688 = vst.msk [vmem:[#allocation4 + $0x8] sm:$0xff] %vm1814, %v2683
      %2689 = vst.msk [vmem:[#allocation4 + $0x18] sm:$0xff] %vm1814, %v2685
      %v2690 = vld [vmem:[#allocation3 + $0x8] sm:$0xff]
      %v2691 = vld [vmem:[#allocation3 + $0x38] sm:$0xff]
      %v2692 = vmul.f32 %v2690, 0.17677669
      %v2693 = vmul.f32 %v2691, 0.17677669
      %v2694 = vld [vmem:[#allocation3 + $0x18] sm:$0xff]
      %v2695 = vld [vmem:[#allocation3 + $0x48] sm:$0xff]
      %v2696 = vld [vmem:[#allocation3 + $0x28] sm:$0xff]
      %v2697 = vld [vmem:[#allocation3 + $0x58] sm:$0xff]
      %2700 = vrot.lane.b32.xlu0 %v2692, 32
      %v2701 = vpop.permute.xlu0 %2700
      %2702 = vrot.lane.b32.xlu0 %v2693, 32
      %v2703 = vpop.permute.xlu0 %2702
      %2706 = vrot.lane.b32.xlu0 %v2694, 32
      %v2707 = vpop.permute.xlu0 %2706
      %2708 = vrot.lane.b32.xlu0 %v2695, 32
      %v2709 = vpop.permute.xlu0 %2708
      %v2710 = vsel %vm1173, %v2701, 0
      %v2712 = vsel %vm1173, %v2703, 0
      %v2714 = vsel %vm1173, %v2707, 0
      %v2716 = vsel %vm1173, %v2709, 0
      %2718 = vmatprep.subr.mxu0 0.0
      %2719 = vmatpush1.xpose.msra.mxu0 %v2714
      %2720 = vmatprep.subr.mxu0 0.0
      %2721 = vmatpush1.xpose.msra.mxu0 %v2716
      %2722 = vmatprep.subr.mxu0 0.0
      %2723 = vmatpush1.xpose.msra.mxu0 0.0
      %2724 = vmatprep.subr.mxu0 0.0
      %2725 = vmatpush1.xpose.msra.mxu0 0.0
      %2726 = vmatprep.subr.mxu0 0.0
      %2727 = vmatpush1.xpose.msra.mxu0 0.0
      %2728 = vmatprep.subr.mxu0 0.0
      %2729 = vmatpush1.xpose.msra.mxu0 0.0
      %2730 = vmatprep.subr.mxu0 0.0
      %2731 = vmatpush1.xpose.msra.mxu0 0.0
      %2732 = vmatprep.subr.mxu0 0.0
      %2733 = vmatpush1.xpose.msra.mxu0 0.0
      %2734 = vmatprep.subr.mxu0 0.0
      %2735 = vmatpush1.xpose.msra.mxu0 0.0
      %2736 = vmatprep.subr.mxu0 0.0
      %2737 = vmatpush1.xpose.msra.mxu0 0.0
      %2738 = vmatprep.subr.mxu0 0.0
      %2739 = vmatpush1.xpose.msra.mxu0 0.0
      %2740 = vmatprep.subr.mxu0 0.0
      %2741 = vmatpush1.xpose.msra.mxu0 0.0
      %2742 = vmatprep.subr.mxu0 0.0
      %2743 = vmatpush1.xpose.msra.mxu0 0.0
      %2744 = vmatprep.subr.mxu0 0.0
      %2745 = vmatpush1.xpose.msra.mxu0 0.0
      %2746 = vmatprep.subr.mxu0 0.0
      %2747 = vmatpush1.xpose.msra.mxu0 0.0
      %2748 = vmatprep.subr.mxu0 0.0
      %2749 = vmatpush1.xpose.msra.mxu0 0.0
      %2750 = vmatprep.subr.mxu0 0.0
      %2751 = vmatpush1.xpose.msra.mxu0 0.0
      %2752 = vmatprep.subr.mxu0 0.0
      %2753 = vmatpush1.xpose.msra.mxu0 0.0
      %2754 = vmatprep.subr.mxu0 0.0
      %2755 = vmatpush1.xpose.msra.mxu0 0.0
      %2756 = vmatprep.subr.mxu0 0.0
      %2757 = vmatpush1.xpose.msra.mxu0 0.0
      %2758 = vmatprep.subr.mxu0 0.0
      %2759 = vmatpush1.xpose.msra.mxu0 0.0
      %2760 = vmatprep.subr.mxu0 0.0
      %2761 = vmatpush1.xpose.msra.mxu0 0.0
      %2762 = vmatprep.subr.mxu0 0.0
      %2763 = vmatpush1.xpose.msra.mxu0 0.0
      %2764 = vmatprep.subr.mxu0 0.0
      %2765 = vmatpush1.xpose.msra.mxu0 0.0
      %2766 = vmatprep.subr.mxu0 0.0
      %2767 = vmatpush1.xpose.msra.mxu0 0.0
      %2768 = vmatprep.subr.mxu0 0.0
      %2769 = vmatpush1.xpose.msra.mxu0 0.0
      %2770 = vmatprep.subr.mxu0 0.0
      %2771 = vmatpush1.xpose.msra.mxu0 0.0
      %2772 = vmatprep.subr.mxu0 0.0
      %2773 = vmatpush1.xpose.msra.mxu0 0.0
      %2774 = vmatprep.subr.mxu0 0.0
      %2775 = vmatpush1.xpose.msra.mxu0 0.0
      %2776 = vmatprep.subr.mxu0 0.0
      %2777 = vmatpush1.xpose.msra.mxu0 0.0
      %2778 = vmatprep.subr.mxu0 0.0
      %2779 = vmatpush1.xpose.msra.mxu0 0.0
      %2780 = vmatprep.subr.mxu0 0.0
      %2781 = vmatpush1.xpose.msra.mxu0 0.0
      %2782 = vmatprep.mubr.f32.mxu0 0.0
      %2783 = vmatmul.mubr.f32.gmra.mrb[0].mxu0 %v2710
      %v2784 = vpop.f32.mrb[0].mxu0
      %v2785 = vadd.f32 0.0, %v2784
      %v2786 = vpop.f32.mrb[0].mxu0
      %2787 = vmatprep.mubr.f32.mxu0 0.0
      %2788 = vmatmul.mubr.f32.gmra.mrb[0].mxu0 %v2712
      %v2789 = vpop.f32.mrb[0].mxu0
      %v2790 = vadd.f32 0.0, %v2789
      %v2791 = vpop.f32.mrb[0].mxu0
      %2792 = vdwg.mxu0
      %v2793 = vsel %vm1261, %v2785, -inf
      %2794 = vmax.xlane.f32.xlu0 %v2793
      %v2795 = vpop.xlane.xlu0 %2794
      %v2796 = vsel %vm1261, %v2790, -inf
      %2797 = vmax.xlane.f32.xlu0 %v2796
      %v2798 = vpop.xlane.xlu0 %2797
      %v2799 = vsub.f32 %v2785, %v2795
      %v2800 = vsub.f32 %v2790, %v2798
      %v2801 = vmul.f32 %v2799, 1.442695
      %v2802 = vpow.pop %v2801
      %v2803 = vmul.f32 %v2800, 1.442695
      %v2804 = vpow.pop %v2803
      %v2805 = vsel %vm1261, %v2802, 0.0
      %2806 = vadd.xlane.f32.xlu0 %v2805
      %v2807 = vpop.xlane.xlu0 %2806
      %v2808 = vsel %vm1261, %v2804, 0.0
      %2809 = vadd.xlane.f32.xlu0 %v2808
      %v2810 = vpop.xlane.xlu0 %2809
      %v2811 = vrcp.pop %v2807
      %v2812 = vmul.f32 %v2802, %v2811
      %v2813 = vrcp.pop %v2810
      %v2814 = vmul.f32 %v2804, %v2813
      %2817 = vrot.lane.b32.xlu0 %v2696, 32
      %v2818 = vpop.permute.xlu0 %2817
      %2819 = vrot.lane.b32.xlu0 %v2697, 32
      %v2820 = vpop.permute.xlu0 %2819
      %v2824 = vsel %vm1261, %v2812, 0
      %v2827 = vsel %vm1261, %v2814, 0
      %2829 = vmatprep.subr.mxu0 0.0
      %2830 = vmatpush1.msra.mxu0 %v2818
      %2831 = vmatprep.subr.mxu0 0.0
      %2832 = vmatpush1.msra.mxu0 %v2820
      %2833 = vmatprep.subr.mxu0 0.0
      %2834 = vmatpush1.msra.mxu0 0.0
      %2835 = vmatprep.subr.mxu0 0.0
      %2836 = vmatpush1.msra.mxu0 0.0
      %2837 = vmatprep.subr.mxu0 0.0
      %2838 = vmatpush1.msra.mxu0 0.0
      %2839 = vmatprep.subr.mxu0 0.0
      %2840 = vmatpush1.msra.mxu0 0.0
      %2841 = vmatprep.subr.mxu0 0.0
      %2842 = vmatpush1.msra.mxu0 0.0
      %2843 = vmatprep.subr.mxu0 0.0
      %2844 = vmatpush1.msra.mxu0 0.0
      %2845 = vmatprep.subr.mxu0 0.0
      %2846 = vmatpush1.msra.mxu0 0.0
      %2847 = vmatprep.subr.mxu0 0.0
      %2848 = vmatpush1.msra.mxu0 0.0
      %2849 = vmatprep.subr.mxu0 0.0
      %2850 = vmatpush1.msra.mxu0 0.0
      %2851 = vmatprep.subr.mxu0 0.0
      %2852 = vmatpush1.msra.mxu0 0.0
      %2853 = vmatprep.subr.mxu0 0.0
      %2854 = vmatpush1.msra.mxu0 0.0
      %2855 = vmatprep.subr.mxu0 0.0
      %2856 = vmatpush1.msra.mxu0 0.0
      %2857 = vmatprep.subr.mxu0 0.0
      %2858 = vmatpush1.msra.mxu0 0.0
      %2859 = vmatprep.subr.mxu0 0.0
      %2860 = vmatpush1.msra.mxu0 0.0
      %2861 = vmatprep.subr.mxu0 0.0
      %2862 = vmatpush1.msra.mxu0 0.0
      %2863 = vmatprep.subr.mxu0 0.0
      %2864 = vmatpush1.msra.mxu0 0.0
      %2865 = vmatprep.subr.mxu0 0.0
      %2866 = vmatpush1.msra.mxu0 0.0
      %2867 = vmatprep.subr.mxu0 0.0
      %2868 = vmatpush1.msra.mxu0 0.0
      %2869 = vmatprep.subr.mxu0 0.0
      %2870 = vmatpush1.msra.mxu0 0.0
      %2871 = vmatprep.subr.mxu0 0.0
      %2872 = vmatpush1.msra.mxu0 0.0
      %2873 = vmatprep.subr.mxu0 0.0
      %2874 = vmatpush1.msra.mxu0 0.0
      %2875 = vmatprep.subr.mxu0 0.0
      %2876 = vmatpush1.msra.mxu0 0.0
      %2877 = vmatprep.subr.mxu0 0.0
      %2878 = vmatpush1.msra.mxu0 0.0
      %2879 = vmatprep.subr.mxu0 0.0
      %2880 = vmatpush1.msra.mxu0 0.0
      %2881 = vmatprep.subr.mxu0 0.0
      %2882 = vmatpush1.msra.mxu0 0.0
      %2883 = vmatprep.subr.mxu0 0.0
      %2884 = vmatpush1.msra.mxu0 0.0
      %2885 = vmatprep.subr.mxu0 0.0
      %2886 = vmatpush1.msra.mxu0 0.0
      %2887 = vmatprep.subr.mxu0 0.0
      %2888 = vmatpush1.msra.mxu0 0.0
      %2889 = vmatprep.subr.mxu0 0.0
      %2890 = vmatpush1.msra.mxu0 0.0
      %2891 = vmatprep.subr.mxu0 0.0
      %2892 = vmatpush1.msra.mxu0 0.0
      %2893 = vmatprep.mubr.f32.mxu0 0.0
      %2894 = vmatmul.mubr.f32.gmra.mrb[0].mxu0 %v2824
      %v2895 = vpop.f32.mrb[0].mxu0
      %v2896 = vadd.f32 0.0, %v2895
      %v2897 = vpop.f32.mrb[0].mxu0
      %2898 = vmatprep.mubr.f32.mxu0 0.0
      %2899 = vmatmul.mubr.f32.gmra.mrb[0].mxu0 %v2827
      %v2900 = vpop.f32.mrb[0].mxu0
      %v2901 = vadd.f32 0.0, %v2900
      %v2902 = vpop.f32.mrb[0].mxu0
      %2903 = vdwg.mxu0
      %2906 = vrot.lane.b32.xlu0 %v2896, 96
      %v2907 = vpop.permute.xlu0 %2906
      %2908 = vrot.lane.b32.xlu0 %v2901, 96
      %v2909 = vpop.permute.xlu0 %2908
      %2912 = vst.msk [vmem:[#allocation4 + $0x8] sm:$0xff] %vm2039, %v2907
      %2913 = vst.msk [vmem:[#allocation4 + $0x18] sm:$0xff] %vm2039, %v2909
      %v2914 = vld [vmem:[#allocation3 + $0x60] sm:$0xff]
      %v2915 = vld [vmem:[#allocation3 + $0x90] sm:$0xff]
      %v2916 = vmul.f32 %v2914, 0.17677669
      %v2917 = vmul.f32 %v2915, 0.17677669
      %v2918 = vld [vmem:[#allocation3 + $0x70] sm:$0xff]
      %v2919 = vld [vmem:[#allocation3 + $0xa0] sm:$0xff]
      %v2920 = vld [vmem:[#allocation3 + $0x80] sm:$0xff]
      %v2921 = vld [vmem:[#allocation3 + $0xb0] sm:$0xff]
      %v2923 = vsel %vm1173, %v2916, 0
      %v2926 = vsel %vm1173, %v2917, 0
      %v2929 = vsel %vm1173, %v2918, 0
      %v2932 = vsel %vm1173, %v2919, 0
      %2934 = vmatprep.subr.mxu0 0.0
      %2935 = vmatpush1.xpose.msra.mxu0 %v2929
      %2936 = vmatprep.subr.mxu0 0.0
      %2937 = vmatpush1.xpose.msra.mxu0 %v2932
      %2938 = vmatprep.subr.mxu0 0.0
      %2939 = vmatpush1.xpose.msra.mxu0 0.0
      %2940 = vmatprep.subr.mxu0 0.0
      %2941 = vmatpush1.xpose.msra.mxu0 0.0
      %2942 = vmatprep.subr.mxu0 0.0
      %2943 = vmatpush1.xpose.msra.mxu0 0.0
      %2944 = vmatprep.subr.mxu0 0.0
      %2945 = vmatpush1.xpose.msra.mxu0 0.0
      %2946 = vmatprep.subr.mxu0 0.0
      %2947 = vmatpush1.xpose.msra.mxu0 0.0
      %2948 = vmatprep.subr.mxu0 0.0
      %2949 = vmatpush1.xpose.msra.mxu0 0.0
      %2950 = vmatprep.subr.mxu0 0.0
      %2951 = vmatpush1.xpose.msra.mxu0 0.0
      %2952 = vmatprep.subr.mxu0 0.0
      %2953 = vmatpush1.xpose.msra.mxu0 0.0
      %2954 = vmatprep.subr.mxu0 0.0
      %2955 = vmatpush1.xpose.msra.mxu0 0.0
      %2956 = vmatprep.subr.mxu0 0.0
      %2957 = vmatpush1.xpose.msra.mxu0 0.0
      %2958 = vmatprep.subr.mxu0 0.0
      %2959 = vmatpush1.xpose.msra.mxu0 0.0
      %2960 = vmatprep.subr.mxu0 0.0
      %2961 = vmatpush1.xpose.msra.mxu0 0.0
      %2962 = vmatprep.subr.mxu0 0.0
      %2963 = vmatpush1.xpose.msra.mxu0 0.0
      %2964 = vmatprep.subr.mxu0 0.0
      %2965 = vmatpush1.xpose.msra.mxu0 0.0
      %2966 = vmatprep.subr.mxu0 0.0
      %2967 = vmatpush1.xpose.msra.mxu0 0.0
      %2968 = vmatprep.subr.mxu0 0.0
      %2969 = vmatpush1.xpose.msra.mxu0 0.0
      %2970 = vmatprep.subr.mxu0 0.0
      %2971 = vmatpush1.xpose.msra.mxu0 0.0
      %2972 = vmatprep.subr.mxu0 0.0
      %2973 = vmatpush1.xpose.msra.mxu0 0.0
      %2974 = vmatprep.subr.mxu0 0.0
      %2975 = vmatpush1.xpose.msra.mxu0 0.0
      %2976 = vmatprep.subr.mxu0 0.0
      %2977 = vmatpush1.xpose.msra.mxu0 0.0
      %2978 = vmatprep.subr.mxu0 0.0
      %2979 = vmatpush1.xpose.msra.mxu0 0.0
      %2980 = vmatprep.subr.mxu0 0.0
      %2981 = vmatpush1.xpose.msra.mxu0 0.0
      %2982 = vmatprep.subr.mxu0 0.0
      %2983 = vmatpush1.xpose.msra.mxu0 0.0
      %2984 = vmatprep.subr.mxu0 0.0
      %2985 = vmatpush1.xpose.msra.mxu0 0.0
      %2986 = vmatprep.subr.mxu0 0.0
      %2987 = vmatpush1.xpose.msra.mxu0 0.0
      %2988 = vmatprep.subr.mxu0 0.0
      %2989 = vmatpush1.xpose.msra.mxu0 0.0
      %2990 = vmatprep.subr.mxu0 0.0
      %2991 = vmatpush1.xpose.msra.mxu0 0.0
      %2992 = vmatprep.subr.mxu0 0.0
      %2993 = vmatpush1.xpose.msra.mxu0 0.0
      %2994 = vmatprep.subr.mxu0 0.0
      %2995 = vmatpush1.xpose.msra.mxu0 0.0
      %2996 = vmatprep.subr.mxu0 0.0
      %2997 = vmatpush1.xpose.msra.mxu0 0.0
      %2998 = vmatprep.mubr.f32.mxu0 0.0
      %2999 = vmatmul.mubr.f32.gmra.mrb[0].mxu0 %v2923
      %v3000 = vpop.f32.mrb[0].mxu0
      %v3001 = vadd.f32 0.0, %v3000
      %v3002 = vpop.f32.mrb[0].mxu0
      %3003 = vmatprep.mubr.f32.mxu0 0.0
      %3004 = vmatmul.mubr.f32.gmra.mrb[0].mxu0 %v2926
      %v3005 = vpop.f32.mrb[0].mxu0
      %v3006 = vadd.f32 0.0, %v3005
      %v3007 = vpop.f32.mrb[0].mxu0
      %3008 = vdwg.mxu0
      %v3009 = vsel %vm1261, %v3001, -inf
      %3010 = vmax.xlane.f32.xlu0 %v3009
      %v3011 = vpop.xlane.xlu0 %3010
      %v3012 = vsel %vm1261, %v3006, -inf
      %3013 = vmax.xlane.f32.xlu0 %v3012
      %v3014 = vpop.xlane.xlu0 %3013
      %v3015 = vsub.f32 %v3001, %v3011
      %v3016 = vsub.f32 %v3006, %v3014
      %v3017 = vmul.f32 %v3015, 1.442695
      %v3018 = vpow.pop %v3017
      %v3019 = vmul.f32 %v3016, 1.442695
      %v3020 = vpow.pop %v3019
      %v3021 = vsel %vm1261, %v3018, 0.0
      %3022 = vadd.xlane.f32.xlu0 %v3021
      %v3023 = vpop.xlane.xlu0 %3022
      %v3024 = vsel %vm1261, %v3020, 0.0
      %3025 = vadd.xlane.f32.xlu0 %v3024
      %v3026 = vpop.xlane.xlu0 %3025
      %v3027 = vrcp.pop %v3023
      %v3028 = vmul.f32 %v3018, %v3027
      %v3029 = vrcp.pop %v3026
      %v3030 = vmul.f32 %v3020, %v3029
      %v3032 = vsel %vm1261, %v3028, 0
      %v3035 = vsel %vm1261, %v3030, 0
      %3037 = vmatprep.subr.mxu0 0.0
      %3038 = vmatpush1.msra.mxu0 %v2920
      %3039 = vmatprep.subr.mxu0 0.0
      %3040 = vmatpush1.msra.mxu0 %v2921
      %3041 = vmatprep.subr.mxu0 0.0
      %3042 = vmatpush1.msra.mxu0 0.0
      %3043 = vmatprep.subr.mxu0 0.0
      %3044 = vmatpush1.msra.mxu0 0.0
      %3045 = vmatprep.subr.mxu0 0.0
      %3046 = vmatpush1.msra.mxu0 0.0
      %3047 = vmatprep.subr.mxu0 0.0
      %3048 = vmatpush1.msra.mxu0 0.0
      %3049 = vmatprep.subr.mxu0 0.0
      %3050 = vmatpush1.msra.mxu0 0.0
      %3051 = vmatprep.subr.mxu0 0.0
      %3052 = vmatpush1.msra.mxu0 0.0
      %3053 = vmatprep.subr.mxu0 0.0
      %3054 = vmatpush1.msra.mxu0 0.0
      %3055 = vmatprep.subr.mxu0 0.0
      %3056 = vmatpush1.msra.mxu0 0.0
      %3057 = vmatprep.subr.mxu0 0.0
      %3058 = vmatpush1.msra.mxu0 0.0
      %3059 = vmatprep.subr.mxu0 0.0
      %3060 = vmatpush1.msra.mxu0 0.0
      %3061 = vmatprep.subr.mxu0 0.0
      %3062 = vmatpush1.msra.mxu0 0.0
      %3063 = vmatprep.subr.mxu0 0.0
      %3064 = vmatpush1.msra.mxu0 0.0
      %3065 = vmatprep.subr.mxu0 0.0
      %3066 = vmatpush1.msra.mxu0 0.0
      %3067 = vmatprep.subr.mxu0 0.0
      %3068 = vmatpush1.msra.mxu0 0.0
      %3069 = vmatprep.subr.mxu0 0.0
      %3070 = vmatpush1.msra.mxu0 0.0
      %3071 = vmatprep.subr.mxu0 0.0
      %3072 = vmatpush1.msra.mxu0 0.0
      %3073 = vmatprep.subr.mxu0 0.0
      %3074 = vmatpush1.msra.mxu0 0.0
      %3075 = vmatprep.subr.mxu0 0.0
      %3076 = vmatpush1.msra.mxu0 0.0
      %3077 = vmatprep.subr.mxu0 0.0
      %3078 = vmatpush1.msra.mxu0 0.0
      %3079 = vmatprep.subr.mxu0 0.0
      %3080 = vmatpush1.msra.mxu0 0.0
      %3081 = vmatprep.subr.mxu0 0.0
      %3082 = vmatpush1.msra.mxu0 0.0
      %3083 = vmatprep.subr.mxu0 0.0
      %3084 = vmatpush1.msra.mxu0 0.0
      %3085 = vmatprep.subr.mxu0 0.0
      %3086 = vmatpush1.msra.mxu0 0.0
      %3087 = vmatprep.subr.mxu0 0.0
      %3088 = vmatpush1.msra.mxu0 0.0
      %3089 = vmatprep.subr.mxu0 0.0
      %3090 = vmatpush1.msra.mxu0 0.0
      %3091 = vmatprep.subr.mxu0 0.0
      %3092 = vmatpush1.msra.mxu0 0.0
      %3093 = vmatprep.subr.mxu0 0.0
      %3094 = vmatpush1.msra.mxu0 0.0
      %3095 = vmatprep.subr.mxu0 0.0
      %3096 = vmatpush1.msra.mxu0 0.0
      %3097 = vmatprep.subr.mxu0 0.0
      %3098 = vmatpush1.msra.mxu0 0.0
      %3099 = vmatprep.subr.mxu0 0.0
      %3100 = vmatpush1.msra.mxu0 0.0
      %3101 = vmatprep.mubr.f32.mxu0 0.0
      %3102 = vmatmul.mubr.f32.gmra.mrb[0].mxu0 %v3032
      %v3103 = vpop.f32.mrb[0].mxu0
      %v3104 = vadd.f32 0.0, %v3103
      %v3105 = vpop.f32.mrb[0].mxu0
      %3106 = vmatprep.mubr.f32.mxu0 0.0
      %3107 = vmatmul.mubr.f32.gmra.mrb[0].mxu0 %v3035
      %v3108 = vpop.f32.mrb[0].mxu0
      %v3109 = vadd.f32 0.0, %v3108
      %v3110 = vpop.f32.mrb[0].mxu0
      %3111 = vdwg.mxu0
      %3112 = vst.msk [vmem:[#allocation4 + $0x20] sm:$0xff] %vm1173, %v3104
      %3113 = vst.msk [vmem:[#allocation4 + $0x30] sm:$0xff] %vm1173, %v3109
      %v3114 = vld [vmem:[#allocation3 + $0x60] sm:$0xff]
      %v3115 = vld [vmem:[#allocation3 + $0x90] sm:$0xff]
      %v3116 = vmul.f32 %v3114, 0.17677669
      %v3117 = vmul.f32 %v3115, 0.17677669
      %v3118 = vld [vmem:[#allocation3 + $0x70] sm:$0xff]
      %v3119 = vld [vmem:[#allocation3 + $0xa0] sm:$0xff]
      %v3120 = vld [vmem:[#allocation3 + $0x80] sm:$0xff]
      %v3121 = vld [vmem:[#allocation3 + $0xb0] sm:$0xff]
      %3124 = vrot.lane.b32.xlu0 %v3116, 96
      %v3125 = vpop.permute.xlu0 %3124
      %3126 = vrot.lane.b32.xlu0 %v3117, 96
      %v3127 = vpop.permute.xlu0 %3126
      %3130 = vrot.lane.b32.xlu0 %v3118, 96
      %v3131 = vpop.permute.xlu0 %3130
      %3132 = vrot.lane.b32.xlu0 %v3119, 96
      %v3133 = vpop.permute.xlu0 %3132
      %v3134 = vsel %vm1173, %v3125, 0
      %v3136 = vsel %vm1173, %v3127, 0
      %v3138 = vsel %vm1173, %v3131, 0
      %v3140 = vsel %vm1173, %v3133, 0
      %3142 = vmatprep.subr.mxu0 0.0
      %3143 = vmatpush1.xpose.msra.mxu0 %v3138
      %3144 = vmatprep.subr.mxu0 0.0
      %3145 = vmatpush1.xpose.msra.mxu0 %v3140
      %3146 = vmatprep.subr.mxu0 0.0
      %3147 = vmatpush1.xpose.msra.mxu0 0.0
      %3148 = vmatprep.subr.mxu0 0.0
      %3149 = vmatpush1.xpose.msra.mxu0 0.0
      %3150 = vmatprep.subr.mxu0 0.0
      %3151 = vmatpush1.xpose.msra.mxu0 0.0
      %3152 = vmatprep.subr.mxu0 0.0
      %3153 = vmatpush1.xpose.msra.mxu0 0.0
      %3154 = vmatprep.subr.mxu0 0.0
      %3155 = vmatpush1.xpose.msra.mxu0 0.0
      %3156 = vmatprep.subr.mxu0 0.0
      %3157 = vmatpush1.xpose.msra.mxu0 0.0
      %3158 = vmatprep.subr.mxu0 0.0
      %3159 = vmatpush1.xpose.msra.mxu0 0.0
      %3160 = vmatprep.subr.mxu0 0.0
      %3161 = vmatpush1.xpose.msra.mxu0 0.0
      %3162 = vmatprep.subr.mxu0 0.0
      %3163 = vmatpush1.xpose.msra.mxu0 0.0
      %3164 = vmatprep.subr.mxu0 0.0
      %3165 = vmatpush1.xpose.msra.mxu0 0.0
      %3166 = vmatprep.subr.mxu0 0.0
      %3167 = vmatpush1.xpose.msra.mxu0 0.0
      %3168 = vmatprep.subr.mxu0 0.0
      %3169 = vmatpush1.xpose.msra.mxu0 0.0
      %3170 = vmatprep.subr.mxu0 0.0
      %3171 = vmatpush1.xpose.msra.mxu0 0.0
      %3172 = vmatprep.subr.mxu0 0.0
      %3173 = vmatpush1.xpose.msra.mxu0 0.0
      %3174 = vmatprep.subr.mxu0 0.0
      %3175 = vmatpush1.xpose.msra.mxu0 0.0
      %3176 = vmatprep.subr.mxu0 0.0
      %3177 = vmatpush1.xpose.msra.mxu0 0.0
      %3178 = vmatprep.subr.mxu0 0.0
      %3179 = vmatpush1.xpose.msra.mxu0 0.0
      %3180 = vmatprep.subr.mxu0 0.0
      %3181 = vmatpush1.xpose.msra.mxu0 0.0
      %3182 = vmatprep.subr.mxu0 0.0
      %3183 = vmatpush1.xpose.msra.mxu0 0.0
      %3184 = vmatprep.subr.mxu0 0.0
      %3185 = vmatpush1.xpose.msra.mxu0 0.0
      %3186 = vmatprep.subr.mxu0 0.0
      %3187 = vmatpush1.xpose.msra.mxu0 0.0
      %3188 = vmatprep.subr.mxu0 0.0
      %3189 = vmatpush1.xpose.msra.mxu0 0.0
      %3190 = vmatprep.subr.mxu0 0.0
      %3191 = vmatpush1.xpose.msra.mxu0 0.0
      %3192 = vmatprep.subr.mxu0 0.0
      %3193 = vmatpush1.xpose.msra.mxu0 0.0
      %3194 = vmatprep.subr.mxu0 0.0
      %3195 = vmatpush1.xpose.msra.mxu0 0.0
      %3196 = vmatprep.subr.mxu0 0.0
      %3197 = vmatpush1.xpose.msra.mxu0 0.0
      %3198 = vmatprep.subr.mxu0 0.0
      %3199 = vmatpush1.xpose.msra.mxu0 0.0
      %3200 = vmatprep.subr.mxu0 0.0
      %3201 = vmatpush1.xpose.msra.mxu0 0.0
      %3202 = vmatprep.subr.mxu0 0.0
      %3203 = vmatpush1.xpose.msra.mxu0 0.0
      %3204 = vmatprep.subr.mxu0 0.0
      %3205 = vmatpush1.xpose.msra.mxu0 0.0
      %3206 = vmatprep.mubr.f32.mxu0 0.0
      %3207 = vmatmul.mubr.f32.gmra.mrb[0].mxu0 %v3134
      %v3208 = vpop.f32.mrb[0].mxu0
      %v3209 = vadd.f32 0.0, %v3208
      %v3210 = vpop.f32.mrb[0].mxu0
      %3211 = vmatprep.mubr.f32.mxu0 0.0
      %3212 = vmatmul.mubr.f32.gmra.mrb[0].mxu0 %v3136
      %v3213 = vpop.f32.mrb[0].mxu0
      %v3214 = vadd.f32 0.0, %v3213
      %v3215 = vpop.f32.mrb[0].mxu0
      %3216 = vdwg.mxu0
      %v3217 = vsel %vm1261, %v3209, -inf
      %3218 = vmax.xlane.f32.xlu0 %v3217
      %v3219 = vpop.xlane.xlu0 %3218
      %v3220 = vsel %vm1261, %v3214, -inf
      %3221 = vmax.xlane.f32.xlu0 %v3220
      %v3222 = vpop.xlane.xlu0 %3221
      %v3223 = vsub.f32 %v3209, %v3219
      %v3224 = vsub.f32 %v3214, %v3222
      %v3225 = vmul.f32 %v3223, 1.442695
      %v3226 = vpow.pop %v3225
      %v3227 = vmul.f32 %v3224, 1.442695
      %v3228 = vpow.pop %v3227
      %v3229 = vsel %vm1261, %v3226, 0.0
      %3230 = vadd.xlane.f32.xlu0 %v3229
      %v3231 = vpop.xlane.xlu0 %3230
      %v3232 = vsel %vm1261, %v3228, 0.0
      %3233 = vadd.xlane.f32.xlu0 %v3232
      %v3234 = vpop.xlane.xlu0 %3233
      %v3235 = vrcp.pop %v3231
      %v3236 = vmul.f32 %v3226, %v3235
      %v3237 = vrcp.pop %v3234
      %v3238 = vmul.f32 %v3228, %v3237
      %3241 = vrot.lane.b32.xlu0 %v3120, 96
      %v3242 = vpop.permute.xlu0 %3241
      %3243 = vrot.lane.b32.xlu0 %v3121, 96
      %v3244 = vpop.permute.xlu0 %3243
      %v3248 = vsel %vm1261, %v3236, 0
      %v3251 = vsel %vm1261, %v3238, 0
      %3253 = vmatprep.subr.mxu0 0.0
      %3254 = vmatpush1.msra.mxu0 %v3242
      %3255 = vmatprep.subr.mxu0 0.0
      %3256 = vmatpush1.msra.mxu0 %v3244
      %3257 = vmatprep.subr.mxu0 0.0
      %3258 = vmatpush1.msra.mxu0 0.0
      %3259 = vmatprep.subr.mxu0 0.0
      %3260 = vmatpush1.msra.mxu0 0.0
      %3261 = vmatprep.subr.mxu0 0.0
      %3262 = vmatpush1.msra.mxu0 0.0
      %3263 = vmatprep.subr.mxu0 0.0
      %3264 = vmatpush1.msra.mxu0 0.0
      %3265 = vmatprep.subr.mxu0 0.0
      %3266 = vmatpush1.msra.mxu0 0.0
      %3267 = vmatprep.subr.mxu0 0.0
      %3268 = vmatpush1.msra.mxu0 0.0
      %3269 = vmatprep.subr.mxu0 0.0
      %3270 = vmatpush1.msra.mxu0 0.0
      %3271 = vmatprep.subr.mxu0 0.0
      %3272 = vmatpush1.msra.mxu0 0.0
      %3273 = vmatprep.subr.mxu0 0.0
      %3274 = vmatpush1.msra.mxu0 0.0
      %3275 = vmatprep.subr.mxu0 0.0
      %3276 = vmatpush1.msra.mxu0 0.0
      %3277 = vmatprep.subr.mxu0 0.0
      %3278 = vmatpush1.msra.mxu0 0.0
      %3279 = vmatprep.subr.mxu0 0.0
      %3280 = vmatpush1.msra.mxu0 0.0
      %3281 = vmatprep.subr.mxu0 0.0
      %3282 = vmatpush1.msra.mxu0 0.0
      %3283 = vmatprep.subr.mxu0 0.0
      %3284 = vmatpush1.msra.mxu0 0.0
      %3285 = vmatprep.subr.mxu0 0.0
      %3286 = vmatpush1.msra.mxu0 0.0
      %3287 = vmatprep.subr.mxu0 0.0
      %3288 = vmatpush1.msra.mxu0 0.0
      %3289 = vmatprep.subr.mxu0 0.0
      %3290 = vmatpush1.msra.mxu0 0.0
      %3291 = vmatprep.subr.mxu0 0.0
      %3292 = vmatpush1.msra.mxu0 0.0
      %3293 = vmatprep.subr.mxu0 0.0
      %3294 = vmatpush1.msra.mxu0 0.0
      %3295 = vmatprep.subr.mxu0 0.0
      %3296 = vmatpush1.msra.mxu0 0.0
      %3297 = vmatprep.subr.mxu0 0.0
      %3298 = vmatpush1.msra.mxu0 0.0
      %3299 = vmatprep.subr.mxu0 0.0
      %3300 = vmatpush1.msra.mxu0 0.0
      %3301 = vmatprep.subr.mxu0 0.0
      %3302 = vmatpush1.msra.mxu0 0.0
      %3303 = vmatprep.subr.mxu0 0.0
      %3304 = vmatpush1.msra.mxu0 0.0
      %3305 = vmatprep.subr.mxu0 0.0
      %3306 = vmatpush1.msra.mxu0 0.0
      %3307 = vmatprep.subr.mxu0 0.0
      %3308 = vmatpush1.msra.mxu0 0.0
      %3309 = vmatprep.subr.mxu0 0.0
      %3310 = vmatpush1.msra.mxu0 0.0
      %3311 = vmatprep.subr.mxu0 0.0
      %3312 = vmatpush1.msra.mxu0 0.0
      %3313 = vmatprep.subr.mxu0 0.0
      %3314 = vmatpush1.msra.mxu0 0.0
      %3315 = vmatprep.subr.mxu0 0.0
      %3316 = vmatpush1.msra.mxu0 0.0
      %3317 = vmatprep.mubr.f32.mxu0 0.0
      %3318 = vmatmul.mubr.f32.gmra.mrb[0].mxu0 %v3248
      %v3319 = vpop.f32.mrb[0].mxu0
      %v3320 = vadd.f32 0.0, %v3319
      %v3321 = vpop.f32.mrb[0].mxu0
      %3322 = vmatprep.mubr.f32.mxu0 0.0
      %3323 = vmatmul.mubr.f32.gmra.mrb[0].mxu0 %v3251
      %v3324 = vpop.f32.mrb[0].mxu0
      %v3325 = vadd.f32 0.0, %v3324
      %v3326 = vpop.f32.mrb[0].mxu0
      %3327 = vdwg.mxu0
      %3330 = vrot.lane.b32.xlu0 %v3320, 32
      %v3331 = vpop.permute.xlu0 %3330
      %3332 = vrot.lane.b32.xlu0 %v3325, 32
      %v3333 = vpop.permute.xlu0 %3332
      %3336 = vst.msk [vmem:[#allocation4 + $0x20] sm:$0xff] %vm1589, %v3331
      %3337 = vst.msk [vmem:[#allocation4 + $0x30] sm:$0xff] %vm1589, %v3333
      %v3338 = vld [vmem:[#allocation3 + $0x60] sm:$0xff]
      %v3339 = vld [vmem:[#allocation3 + $0x90] sm:$0xff]
      %v3340 = vmul.f32 %v3338, 0.17677669
      %v3341 = vmul.f32 %v3339, 0.17677669
      %v3342 = vld [vmem:[#allocation3 + $0x70] sm:$0xff]
      %v3343 = vld [vmem:[#allocation3 + $0xa0] sm:$0xff]
      %v3344 = vld [vmem:[#allocation3 + $0x80] sm:$0xff]
      %v3345 = vld [vmem:[#allocation3 + $0xb0] sm:$0xff]
      %3348 = vrot.lane.b32.xlu0 %v3340, 64
      %v3349 = vpop.permute.xlu0 %3348
      %3350 = vrot.lane.b32.xlu0 %v3341, 64
      %v3351 = vpop.permute.xlu0 %3350
      %3354 = vrot.lane.b32.xlu0 %v3342, 64
      %v3355 = vpop.permute.xlu0 %3354
      %3356 = vrot.lane.b32.xlu0 %v3343, 64
      %v3357 = vpop.permute.xlu0 %3356
      %v3358 = vsel %vm1173, %v3349, 0
      %v3360 = vsel %vm1173, %v3351, 0
      %v3362 = vsel %vm1173, %v3355, 0
      %v3364 = vsel %vm1173, %v3357, 0
      %3366 = vmatprep.subr.mxu0 0.0
      %3367 = vmatpush1.xpose.msra.mxu0 %v3362
      %3368 = vmatprep.subr.mxu0 0.0
      %3369 = vmatpush1.xpose.msra.mxu0 %v3364
      %3370 = vmatprep.subr.mxu0 0.0
      %3371 = vmatpush1.xpose.msra.mxu0 0.0
      %3372 = vmatprep.subr.mxu0 0.0
      %3373 = vmatpush1.xpose.msra.mxu0 0.0
      %3374 = vmatprep.subr.mxu0 0.0
      %3375 = vmatpush1.xpose.msra.mxu0 0.0
      %3376 = vmatprep.subr.mxu0 0.0
      %3377 = vmatpush1.xpose.msra.mxu0 0.0
      %3378 = vmatprep.subr.mxu0 0.0
      %3379 = vmatpush1.xpose.msra.mxu0 0.0
      %3380 = vmatprep.subr.mxu0 0.0
      %3381 = vmatpush1.xpose.msra.mxu0 0.0
      %3382 = vmatprep.subr.mxu0 0.0
      %3383 = vmatpush1.xpose.msra.mxu0 0.0
      %3384 = vmatprep.subr.mxu0 0.0
      %3385 = vmatpush1.xpose.msra.mxu0 0.0
      %3386 = vmatprep.subr.mxu0 0.0
      %3387 = vmatpush1.xpose.msra.mxu0 0.0
      %3388 = vmatprep.subr.mxu0 0.0
      %3389 = vmatpush1.xpose.msra.mxu0 0.0
      %3390 = vmatprep.subr.mxu0 0.0
      %3391 = vmatpush1.xpose.msra.mxu0 0.0
      %3392 = vmatprep.subr.mxu0 0.0
      %3393 = vmatpush1.xpose.msra.mxu0 0.0
      %3394 = vmatprep.subr.mxu0 0.0
      %3395 = vmatpush1.xpose.msra.mxu0 0.0
      %3396 = vmatprep.subr.mxu0 0.0
      %3397 = vmatpush1.xpose.msra.mxu0 0.0
      %3398 = vmatprep.subr.mxu0 0.0
      %3399 = vmatpush1.xpose.msra.mxu0 0.0
      %3400 = vmatprep.subr.mxu0 0.0
      %3401 = vmatpush1.xpose.msra.mxu0 0.0
      %3402 = vmatprep.subr.mxu0 0.0
      %3403 = vmatpush1.xpose.msra.mxu0 0.0
      %3404 = vmatprep.subr.mxu0 0.0
      %3405 = vmatpush1.xpose.msra.mxu0 0.0
      %3406 = vmatprep.subr.mxu0 0.0
      %3407 = vmatpush1.xpose.msra.mxu0 0.0
      %3408 = vmatprep.subr.mxu0 0.0
      %3409 = vmatpush1.xpose.msra.mxu0 0.0
      %3410 = vmatprep.subr.mxu0 0.0
      %3411 = vmatpush1.xpose.msra.mxu0 0.0
      %3412 = vmatprep.subr.mxu0 0.0
      %3413 = vmatpush1.xpose.msra.mxu0 0.0
      %3414 = vmatprep.subr.mxu0 0.0
      %3415 = vmatpush1.xpose.msra.mxu0 0.0
      %3416 = vmatprep.subr.mxu0 0.0
      %3417 = vmatpush1.xpose.msra.mxu0 0.0
      %3418 = vmatprep.subr.mxu0 0.0
      %3419 = vmatpush1.xpose.msra.mxu0 0.0
      %3420 = vmatprep.subr.mxu0 0.0
      %3421 = vmatpush1.xpose.msra.mxu0 0.0
      %3422 = vmatprep.subr.mxu0 0.0
      %3423 = vmatpush1.xpose.msra.mxu0 0.0
      %3424 = vmatprep.subr.mxu0 0.0
      %3425 = vmatpush1.xpose.msra.mxu0 0.0
      %3426 = vmatprep.subr.mxu0 0.0
      %3427 = vmatpush1.xpose.msra.mxu0 0.0
      %3428 = vmatprep.subr.mxu0 0.0
      %3429 = vmatpush1.xpose.msra.mxu0 0.0
      %3430 = vmatprep.mubr.f32.mxu0 0.0
      %3431 = vmatmul.mubr.f32.gmra.mrb[0].mxu0 %v3358
      %v3432 = vpop.f32.mrb[0].mxu0
      %v3433 = vadd.f32 0.0, %v3432
      %v3434 = vpop.f32.mrb[0].mxu0
      %3435 = vmatprep.mubr.f32.mxu0 0.0
      %3436 = vmatmul.mubr.f32.gmra.mrb[0].mxu0 %v3360
      %v3437 = vpop.f32.mrb[0].mxu0
      %v3438 = vadd.f32 0.0, %v3437
      %v3439 = vpop.f32.mrb[0].mxu0
      %3440 = vdwg.mxu0
      %v3441 = vsel %vm1261, %v3433, -inf
      %3442 = vmax.xlane.f32.xlu0 %v3441
      %v3443 = vpop.xlane.xlu0 %3442
      %v3444 = vsel %vm1261, %v3438, -inf
      %3445 = vmax.xlane.f32.xlu0 %v3444
      %v3446 = vpop.xlane.xlu0 %3445
      %v3447 = vsub.f32 %v3433, %v3443
      %v3448 = vsub.f32 %v3438, %v3446
      %v3449 = vmul.f32 %v3447, 1.442695
      %v3450 = vpow.pop %v3449
      %v3451 = vmul.f32 %v3448, 1.442695
      %v3452 = vpow.pop %v3451
      %v3453 = vsel %vm1261, %v3450, 0.0
      %3454 = vadd.xlane.f32.xlu0 %v3453
      %v3455 = vpop.xlane.xlu0 %3454
      %v3456 = vsel %vm1261, %v3452, 0.0
      %3457 = vadd.xlane.f32.xlu0 %v3456
      %v3458 = vpop.xlane.xlu0 %3457
      %v3459 = vrcp.pop %v3455
      %v3460 = vmul.f32 %v3450, %v3459
      %v3461 = vrcp.pop %v3458
      %v3462 = vmul.f32 %v3452, %v3461
      %3465 = vrot.lane.b32.xlu0 %v3344, 64
      %v3466 = vpop.permute.xlu0 %3465
      %3467 = vrot.lane.b32.xlu0 %v3345, 64
      %v3468 = vpop.permute.xlu0 %3467
      %v3472 = vsel %vm1261, %v3460, 0
      %v3475 = vsel %vm1261, %v3462, 0
      %3477 = vmatprep.subr.mxu0 0.0
      %3478 = vmatpush1.msra.mxu0 %v3466
      %3479 = vmatprep.subr.mxu0 0.0
      %3480 = vmatpush1.msra.mxu0 %v3468
      %3481 = vmatprep.subr.mxu0 0.0
      %3482 = vmatpush1.msra.mxu0 0.0
      %3483 = vmatprep.subr.mxu0 0.0
      %3484 = vmatpush1.msra.mxu0 0.0
      %3485 = vmatprep.subr.mxu0 0.0
      %3486 = vmatpush1.msra.mxu0 0.0
      %3487 = vmatprep.subr.mxu0 0.0
      %3488 = vmatpush1.msra.mxu0 0.0
      %3489 = vmatprep.subr.mxu0 0.0
      %3490 = vmatpush1.msra.mxu0 0.0
      %3491 = vmatprep.subr.mxu0 0.0
      %3492 = vmatpush1.msra.mxu0 0.0
      %3493 = vmatprep.subr.mxu0 0.0
      %3494 = vmatpush1.msra.mxu0 0.0
      %3495 = vmatprep.subr.mxu0 0.0
      %3496 = vmatpush1.msra.mxu0 0.0
      %3497 = vmatprep.subr.mxu0 0.0
      %3498 = vmatpush1.msra.mxu0 0.0
      %3499 = vmatprep.subr.mxu0 0.0
      %3500 = vmatpush1.msra.mxu0 0.0
      %3501 = vmatprep.subr.mxu0 0.0
      %3502 = vmatpush1.msra.mxu0 0.0
      %3503 = vmatprep.subr.mxu0 0.0
      %3504 = vmatpush1.msra.mxu0 0.0
      %3505 = vmatprep.subr.mxu0 0.0
      %3506 = vmatpush1.msra.mxu0 0.0
      %3507 = vmatprep.subr.mxu0 0.0
      %3508 = vmatpush1.msra.mxu0 0.0
      %3509 = vmatprep.subr.mxu0 0.0
      %3510 = vmatpush1.msra.mxu0 0.0
      %3511 = vmatprep.subr.mxu0 0.0
      %3512 = vmatpush1.msra.mxu0 0.0
      %3513 = vmatprep.subr.mxu0 0.0
      %3514 = vmatpush1.msra.mxu0 0.0
      %3515 = vmatprep.subr.mxu0 0.0
      %3516 = vmatpush1.msra.mxu0 0.0
      %3517 = vmatprep.subr.mxu0 0.0
      %3518 = vmatpush1.msra.mxu0 0.0
      %3519 = vmatprep.subr.mxu0 0.0
      %3520 = vmatpush1.msra.mxu0 0.0
      %3521 = vmatprep.subr.mxu0 0.0
      %3522 = vmatpush1.msra.mxu0 0.0
      %3523 = vmatprep.subr.mxu0 0.0
      %3524 = vmatpush1.msra.mxu0 0.0
      %3525 = vmatprep.subr.mxu0 0.0
      %3526 = vmatpush1.msra.mxu0 0.0
      %3527 = vmatprep.subr.mxu0 0.0
      %3528 = vmatpush1.msra.mxu0 0.0
      %3529 = vmatprep.subr.mxu0 0.0
      %3530 = vmatpush1.msra.mxu0 0.0
      %3531 = vmatprep.subr.mxu0 0.0
      %3532 = vmatpush1.msra.mxu0 0.0
      %3533 = vmatprep.subr.mxu0 0.0
      %3534 = vmatpush1.msra.mxu0 0.0
      %3535 = vmatprep.subr.mxu0 0.0
      %3536 = vmatpush1.msra.mxu0 0.0
      %3537 = vmatprep.subr.mxu0 0.0
      %3538 = vmatpush1.msra.mxu0 0.0
      %3539 = vmatprep.subr.mxu0 0.0
      %3540 = vmatpush1.msra.mxu0 0.0
      %3541 = vmatprep.mubr.f32.mxu0 0.0
      %3542 = vmatmul.mubr.f32.gmra.mrb[0].mxu0 %v3472
      %v3543 = vpop.f32.mrb[0].mxu0
      %v3544 = vadd.f32 0.0, %v3543
      %v3545 = vpop.f32.mrb[0].mxu0
      %3546 = vmatprep.mubr.f32.mxu0 0.0
      %3547 = vmatmul.mubr.f32.gmra.mrb[0].mxu0 %v3475
      %v3548 = vpop.f32.mrb[0].mxu0
      %v3549 = vadd.f32 0.0, %v3548
      %v3550 = vpop.f32.mrb[0].mxu0
      %3551 = vdwg.mxu0
      %3554 = vrot.lane.b32.xlu0 %v3544, 64
      %v3555 = vpop.permute.xlu0 %3554
      %3556 = vrot.lane.b32.xlu0 %v3549, 64
      %v3557 = vpop.permute.xlu0 %3556
      %3560 = vst.msk [vmem:[#allocation4 + $0x20] sm:$0xff] %vm1814, %v3555
      %3561 = vst.msk [vmem:[#allocation4 + $0x30] sm:$0xff] %vm1814, %v3557
      %v3562 = vld [vmem:[#allocation3 + $0x60] sm:$0xff]
      %v3563 = vld [vmem:[#allocation3 + $0x90] sm:$0xff]
      %v3564 = vmul.f32 %v3562, 0.17677669
      %v3565 = vmul.f32 %v3563, 0.17677669
      %v3566 = vld [vmem:[#allocation3 + $0x70] sm:$0xff]
      %v3567 = vld [vmem:[#allocation3 + $0xa0] sm:$0xff]
      %v3568 = vld [vmem:[#allocation3 + $0x80] sm:$0xff]
      %v3569 = vld [vmem:[#allocation3 + $0xb0] sm:$0xff]
      %3572 = vrot.lane.b32.xlu0 %v3564, 32
      %v3573 = vpop.permute.xlu0 %3572
      %3574 = vrot.lane.b32.xlu0 %v3565, 32
      %v3575 = vpop.permute.xlu0 %3574
      %3578 = vrot.lane.b32.xlu0 %v3566, 32
      %v3579 = vpop.permute.xlu0 %3578
      %3580 = vrot.lane.b32.xlu0 %v3567, 32
      %v3581 = vpop.permute.xlu0 %3580
      %v3582 = vsel %vm1173, %v3573, 0
      %v3584 = vsel %vm1173, %v3575, 0
      %v3586 = vsel %vm1173, %v3579, 0
      %v3588 = vsel %vm1173, %v3581, 0
      %3590 = vmatprep.subr.mxu0 0.0
      %3591 = vmatpush1.xpose.msra.mxu0 %v3586
      %3592 = vmatprep.subr.mxu0 0.0
      %3593 = vmatpush1.xpose.msra.mxu0 %v3588
      %3594 = vmatprep.subr.mxu0 0.0
      %3595 = vmatpush1.xpose.msra.mxu0 0.0
      %3596 = vmatprep.subr.mxu0 0.0
      %3597 = vmatpush1.xpose.msra.mxu0 0.0
      %3598 = vmatprep.subr.mxu0 0.0
      %3599 = vmatpush1.xpose.msra.mxu0 0.0
      %3600 = vmatprep.subr.mxu0 0.0
      %3601 = vmatpush1.xpose.msra.mxu0 0.0
      %3602 = vmatprep.subr.mxu0 0.0
      %3603 = vmatpush1.xpose.msra.mxu0 0.0
      %3604 = vmatprep.subr.mxu0 0.0
      %3605 = vmatpush1.xpose.msra.mxu0 0.0
      %3606 = vmatprep.subr.mxu0 0.0
      %3607 = vmatpush1.xpose.msra.mxu0 0.0
      %3608 = vmatprep.subr.mxu0 0.0
      %3609 = vmatpush1.xpose.msra.mxu0 0.0
      %3610 = vmatprep.subr.mxu0 0.0
      %3611 = vmatpush1.xpose.msra.mxu0 0.0
      %3612 = vmatprep.subr.mxu0 0.0
      %3613 = vmatpush1.xpose.msra.mxu0 0.0
      %3614 = vmatprep.subr.mxu0 0.0
      %3615 = vmatpush1.xpose.msra.mxu0 0.0
      %3616 = vmatprep.subr.mxu0 0.0
      %3617 = vmatpush1.xpose.msra.mxu0 0.0
      %3618 = vmatprep.subr.mxu0 0.0
      %3619 = vmatpush1.xpose.msra.mxu0 0.0
      %3620 = vmatprep.subr.mxu0 0.0
      %3621 = vmatpush1.xpose.msra.mxu0 0.0
      %3622 = vmatprep.subr.mxu0 0.0
      %3623 = vmatpush1.xpose.msra.mxu0 0.0
      %3624 = vmatprep.subr.mxu0 0.0
      %3625 = vmatpush1.xpose.msra.mxu0 0.0
      %3626 = vmatprep.subr.mxu0 0.0
      %3627 = vmatpush1.xpose.msra.mxu0 0.0
      %3628 = vmatprep.subr.mxu0 0.0
      %3629 = vmatpush1.xpose.msra.mxu0 0.0
      %3630 = vmatprep.subr.mxu0 0.0
      %3631 = vmatpush1.xpose.msra.mxu0 0.0
      %3632 = vmatprep.subr.mxu0 0.0
      %3633 = vmatpush1.xpose.msra.mxu0 0.0
      %3634 = vmatprep.subr.mxu0 0.0
      %3635 = vmatpush1.xpose.msra.mxu0 0.0
      %3636 = vmatprep.subr.mxu0 0.0
      %3637 = vmatpush1.xpose.msra.mxu0 0.0
      %3638 = vmatprep.subr.mxu0 0.0
      %3639 = vmatpush1.xpose.msra.mxu0 0.0
      %3640 = vmatprep.subr.mxu0 0.0
      %3641 = vmatpush1.xpose.msra.mxu0 0.0
      %3642 = vmatprep.subr.mxu0 0.0
      %3643 = vmatpush1.xpose.msra.mxu0 0.0
      %3644 = vmatprep.subr.mxu0 0.0
      %3645 = vmatpush1.xpose.msra.mxu0 0.0
      %3646 = vmatprep.subr.mxu0 0.0
      %3647 = vmatpush1.xpose.msra.mxu0 0.0
      %3648 = vmatprep.subr.mxu0 0.0
      %3649 = vmatpush1.xpose.msra.mxu0 0.0
      %3650 = vmatprep.subr.mxu0 0.0
      %3651 = vmatpush1.xpose.msra.mxu0 0.0
      %3652 = vmatprep.subr.mxu0 0.0
      %3653 = vmatpush1.xpose.msra.mxu0 0.0
      %3654 = vmatprep.mubr.f32.mxu0 0.0
      %3655 = vmatmul.mubr.f32.gmra.mrb[0].mxu0 %v3582
      %v3656 = vpop.f32.mrb[0].mxu0
      %v3657 = vadd.f32 0.0, %v3656
      %v3658 = vpop.f32.mrb[0].mxu0
      %3659 = vmatprep.mubr.f32.mxu0 0.0
      %3660 = vmatmul.mubr.f32.gmra.mrb[0].mxu0 %v3584
      %v3661 = vpop.f32.mrb[0].mxu0
      %v3662 = vadd.f32 0.0, %v3661
      %v3663 = vpop.f32.mrb[0].mxu0
      %3664 = vdwg.mxu0
      %v3665 = vsel %vm1261, %v3657, -inf
      %3666 = vmax.xlane.f32.xlu0 %v3665
      %v3667 = vpop.xlane.xlu0 %3666
      %v3668 = vsel %vm1261, %v3662, -inf
      %3669 = vmax.xlane.f32.xlu0 %v3668
      %v3670 = vpop.xlane.xlu0 %3669
      %v3671 = vsub.f32 %v3657, %v3667
      %v3672 = vsub.f32 %v3662, %v3670
      %v3673 = vmul.f32 %v3671, 1.442695
      %v3674 = vpow.pop %v3673
      %v3675 = vmul.f32 %v3672, 1.442695
      %v3676 = vpow.pop %v3675
      %v3677 = vsel %vm1261, %v3674, 0.0
      %3678 = vadd.xlane.f32.xlu0 %v3677
      %v3679 = vpop.xlane.xlu0 %3678
      %v3680 = vsel %vm1261, %v3676, 0.0
      %3681 = vadd.xlane.f32.xlu0 %v3680
      %v3682 = vpop.xlane.xlu0 %3681
      %v3683 = vrcp.pop %v3679
      %v3684 = vmul.f32 %v3674, %v3683
      %v3685 = vrcp.pop %v3682
      %v3686 = vmul.f32 %v3676, %v3685
      %3689 = vrot.lane.b32.xlu0 %v3568, 32
      %v3690 = vpop.permute.xlu0 %3689
      %3691 = vrot.lane.b32.xlu0 %v3569, 32
      %v3692 = vpop.permute.xlu0 %3691
      %v3696 = vsel %vm1261, %v3684, 0
      %v3699 = vsel %vm1261, %v3686, 0
      %3701 = vmatprep.subr.mxu0 0.0
      %3702 = vmatpush1.msra.mxu0 %v3690
      %3703 = vmatprep.subr.mxu0 0.0
      %3704 = vmatpush1.msra.mxu0 %v3692
      %3705 = vmatprep.subr.mxu0 0.0
      %3706 = vmatpush1.msra.mxu0 0.0
      %3707 = vmatprep.subr.mxu0 0.0
      %3708 = vmatpush1.msra.mxu0 0.0
      %3709 = vmatprep.subr.mxu0 0.0
      %3710 = vmatpush1.msra.mxu0 0.0
      %3711 = vmatprep.subr.mxu0 0.0
      %3712 = vmatpush1.msra.mxu0 0.0
      %3713 = vmatprep.subr.mxu0 0.0
      %3714 = vmatpush1.msra.mxu0 0.0
      %3715 = vmatprep.subr.mxu0 0.0
      %3716 = vmatpush1.msra.mxu0 0.0
      %3717 = vmatprep.subr.mxu0 0.0
      %3718 = vmatpush1.msra.mxu0 0.0
      %3719 = vmatprep.subr.mxu0 0.0
      %3720 = vmatpush1.msra.mxu0 0.0
      %3721 = vmatprep.subr.mxu0 0.0
      %3722 = vmatpush1.msra.mxu0 0.0
      %3723 = vmatprep.subr.mxu0 0.0
      %3724 = vmatpush1.msra.mxu0 0.0
      %3725 = vmatprep.subr.mxu0 0.0
      %3726 = vmatpush1.msra.mxu0 0.0
      %3727 = vmatprep.subr.mxu0 0.0
      %3728 = vmatpush1.msra.mxu0 0.0
      %3729 = vmatprep.subr.mxu0 0.0
      %3730 = vmatpush1.msra.mxu0 0.0
      %3731 = vmatprep.subr.mxu0 0.0
      %3732 = vmatpush1.msra.mxu0 0.0
      %3733 = vmatprep.subr.mxu0 0.0
      %3734 = vmatpush1.msra.mxu0 0.0
      %3735 = vmatprep.subr.mxu0 0.0
      %3736 = vmatpush1.msra.mxu0 0.0
      %3737 = vmatprep.subr.mxu0 0.0
      %3738 = vmatpush1.msra.mxu0 0.0
      %3739 = vmatprep.subr.mxu0 0.0
      %3740 = vmatpush1.msra.mxu0 0.0
      %3741 = vmatprep.subr.mxu0 0.0
      %3742 = vmatpush1.msra.mxu0 0.0
      %3743 = vmatprep.subr.mxu0 0.0
      %3744 = vmatpush1.msra.mxu0 0.0
      %3745 = vmatprep.subr.mxu0 0.0
      %3746 = vmatpush1.msra.mxu0 0.0
      %3747 = vmatprep.subr.mxu0 0.0
      %3748 = vmatpush1.msra.mxu0 0.0
      %3749 = vmatprep.subr.mxu0 0.0
      %3750 = vmatpush1.msra.mxu0 0.0
      %3751 = vmatprep.subr.mxu0 0.0
      %3752 = vmatpush1.msra.mxu0 0.0
      %3753 = vmatprep.subr.mxu0 0.0
      %3754 = vmatpush1.msra.mxu0 0.0
      %3755 = vmatprep.subr.mxu0 0.0
      %3756 = vmatpush1.msra.mxu0 0.0
      %3757 = vmatprep.subr.mxu0 0.0
      %3758 = vmatpush1.msra.mxu0 0.0
      %3759 = vmatprep.subr.mxu0 0.0
      %3760 = vmatpush1.msra.mxu0 0.0
      %3761 = vmatprep.subr.mxu0 0.0
      %3762 = vmatpush1.msra.mxu0 0.0
      %3763 = vmatprep.subr.mxu0 0.0
      %3764 = vmatpush1.msra.mxu0 0.0
      %3765 = vmatprep.mubr.f32.mxu0 0.0
      %3766 = vmatmul.mubr.f32.gmra.mrb[0].mxu0 %v3696
      %v3767 = vpop.f32.mrb[0].mxu0
      %v3768 = vadd.f32 0.0, %v3767
      %v3769 = vpop.f32.mrb[0].mxu0
      %3770 = vmatprep.mubr.f32.mxu0 0.0
      %3771 = vmatmul.mubr.f32.gmra.mrb[0].mxu0 %v3699
      %v3772 = vpop.f32.mrb[0].mxu0
      %v3773 = vadd.f32 0.0, %v3772
      %v3774 = vpop.f32.mrb[0].mxu0
      %3775 = vdwg.mxu0
      %3778 = vrot.lane.b32.xlu0 %v3768, 96
      %v3779 = vpop.permute.xlu0 %3778
      %3780 = vrot.lane.b32.xlu0 %v3773, 96
      %v3781 = vpop.permute.xlu0 %3780
      %3784 = vst.msk [vmem:[#allocation4 + $0x20] sm:$0xff] %vm2039, %v3779
      %3785 = vst.msk [vmem:[#allocation4 + $0x30] sm:$0xff] %vm2039, %v3781
      %v3786 = vld [vmem:[#allocation3 + $0x68] sm:$0xff]
      %v3787 = vld [vmem:[#allocation3 + $0x98] sm:$0xff]
      %v3788 = vmul.f32 %v3786, 0.17677669
      %v3789 = vmul.f32 %v3787, 0.17677669
      %v3790 = vld [vmem:[#allocation3 + $0x78] sm:$0xff]
      %v3791 = vld [vmem:[#allocation3 + $0xa8] sm:$0xff]
      %v3792 = vld [vmem:[#allocation3 + $0x88] sm:$0xff]
      %v3793 = vld [vmem:[#allocation3 + $0xb8] sm:$0xff]
      %v3795 = vsel %vm1173, %v3788, 0
      %v3798 = vsel %vm1173, %v3789, 0
      %v3801 = vsel %vm1173, %v3790, 0
      %v3804 = vsel %vm1173, %v3791, 0
      %3806 = vmatprep.subr.mxu0 0.0
      %3807 = vmatpush1.xpose.msra.mxu0 %v3801
      %3808 = vmatprep.subr.mxu0 0.0
      %3809 = vmatpush1.xpose.msra.mxu0 %v3804
      %3810 = vmatprep.subr.mxu0 0.0
      %3811 = vmatpush1.xpose.msra.mxu0 0.0
      %3812 = vmatprep.subr.mxu0 0.0
      %3813 = vmatpush1.xpose.msra.mxu0 0.0
      %3814 = vmatprep.subr.mxu0 0.0
      %3815 = vmatpush1.xpose.msra.mxu0 0.0
      %3816 = vmatprep.subr.mxu0 0.0
      %3817 = vmatpush1.xpose.msra.mxu0 0.0
      %3818 = vmatprep.subr.mxu0 0.0
      %3819 = vmatpush1.xpose.msra.mxu0 0.0
      %3820 = vmatprep.subr.mxu0 0.0
      %3821 = vmatpush1.xpose.msra.mxu0 0.0
      %3822 = vmatprep.subr.mxu0 0.0
      %3823 = vmatpush1.xpose.msra.mxu0 0.0
      %3824 = vmatprep.subr.mxu0 0.0
      %3825 = vmatpush1.xpose.msra.mxu0 0.0
      %3826 = vmatprep.subr.mxu0 0.0
      %3827 = vmatpush1.xpose.msra.mxu0 0.0
      %3828 = vmatprep.subr.mxu0 0.0
      %3829 = vmatpush1.xpose.msra.mxu0 0.0
      %3830 = vmatprep.subr.mxu0 0.0
      %3831 = vmatpush1.xpose.msra.mxu0 0.0
      %3832 = vmatprep.subr.mxu0 0.0
      %3833 = vmatpush1.xpose.msra.mxu0 0.0
      %3834 = vmatprep.subr.mxu0 0.0
      %3835 = vmatpush1.xpose.msra.mxu0 0.0
      %3836 = vmatprep.subr.mxu0 0.0
      %3837 = vmatpush1.xpose.msra.mxu0 0.0
      %3838 = vmatprep.subr.mxu0 0.0
      %3839 = vmatpush1.xpose.msra.mxu0 0.0
      %3840 = vmatprep.subr.mxu0 0.0
      %3841 = vmatpush1.xpose.msra.mxu0 0.0
      %3842 = vmatprep.subr.mxu0 0.0
      %3843 = vmatpush1.xpose.msra.mxu0 0.0
      %3844 = vmatprep.subr.mxu0 0.0
      %3845 = vmatpush1.xpose.msra.mxu0 0.0
      %3846 = vmatprep.subr.mxu0 0.0
      %3847 = vmatpush1.xpose.msra.mxu0 0.0
      %3848 = vmatprep.subr.mxu0 0.0
      %3849 = vmatpush1.xpose.msra.mxu0 0.0
      %3850 = vmatprep.subr.mxu0 0.0
      %3851 = vmatpush1.xpose.msra.mxu0 0.0
      %3852 = vmatprep.subr.mxu0 0.0
      %3853 = vmatpush1.xpose.msra.mxu0 0.0
      %3854 = vmatprep.subr.mxu0 0.0
      %3855 = vmatpush1.xpose.msra.mxu0 0.0
      %3856 = vmatprep.subr.mxu0 0.0
      %3857 = vmatpush1.xpose.msra.mxu0 0.0
      %3858 = vmatprep.subr.mxu0 0.0
      %3859 = vmatpush1.xpose.msra.mxu0 0.0
      %3860 = vmatprep.subr.mxu0 0.0
      %3861 = vmatpush1.xpose.msra.mxu0 0.0
      %3862 = vmatprep.subr.mxu0 0.0
      %3863 = vmatpush1.xpose.msra.mxu0 0.0
      %3864 = vmatprep.subr.mxu0 0.0
      %3865 = vmatpush1.xpose.msra.mxu0 0.0
      %3866 = vmatprep.subr.mxu0 0.0
      %3867 = vmatpush1.xpose.msra.mxu0 0.0
      %3868 = vmatprep.subr.mxu0 0.0
      %3869 = vmatpush1.xpose.msra.mxu0 0.0
      %3870 = vmatprep.mubr.f32.mxu0 0.0
      %3871 = vmatmul.mubr.f32.gmra.mrb[0].mxu0 %v3795
      %v3872 = vpop.f32.mrb[0].mxu0
      %v3873 = vadd.f32 0.0, %v3872
      %v3874 = vpop.f32.mrb[0].mxu0
      %3875 = vmatprep.mubr.f32.mxu0 0.0
      %3876 = vmatmul.mubr.f32.gmra.mrb[0].mxu0 %v3798
      %v3877 = vpop.f32.mrb[0].mxu0
      %v3878 = vadd.f32 0.0, %v3877
      %v3879 = vpop.f32.mrb[0].mxu0
      %3880 = vdwg.mxu0
      %v3881 = vsel %vm1261, %v3873, -inf
      %3882 = vmax.xlane.f32.xlu0 %v3881
      %v3883 = vpop.xlane.xlu0 %3882
      %v3884 = vsel %vm1261, %v3878, -inf
      %3885 = vmax.xlane.f32.xlu0 %v3884
      %v3886 = vpop.xlane.xlu0 %3885
      %v3887 = vsub.f32 %v3873, %v3883
      %v3888 = vsub.f32 %v3878, %v3886
      %v3889 = vmul.f32 %v3887, 1.442695
      %v3890 = vpow.pop %v3889
      %v3891 = vmul.f32 %v3888, 1.442695
      %v3892 = vpow.pop %v3891
      %v3893 = vsel %vm1261, %v3890, 0.0
      %3894 = vadd.xlane.f32.xlu0 %v3893
      %v3895 = vpop.xlane.xlu0 %3894
      %v3896 = vsel %vm1261, %v3892, 0.0
      %3897 = vadd.xlane.f32.xlu0 %v3896
      %v3898 = vpop.xlane.xlu0 %3897
      %v3899 = vrcp.pop %v3895
      %v3900 = vmul.f32 %v3890, %v3899
      %v3901 = vrcp.pop %v3898
      %v3902 = vmul.f32 %v3892, %v3901
      %v3904 = vsel %vm1261, %v3900, 0
      %v3907 = vsel %vm1261, %v3902, 0
      %3909 = vmatprep.subr.mxu0 0.0
      %3910 = vmatpush1.msra.mxu0 %v3792
      %3911 = vmatprep.subr.mxu0 0.0
      %3912 = vmatpush1.msra.mxu0 %v3793
      %3913 = vmatprep.subr.mxu0 0.0
      %3914 = vmatpush1.msra.mxu0 0.0
      %3915 = vmatprep.subr.mxu0 0.0
      %3916 = vmatpush1.msra.mxu0 0.0
      %3917 = vmatprep.subr.mxu0 0.0
      %3918 = vmatpush1.msra.mxu0 0.0
      %3919 = vmatprep.subr.mxu0 0.0
      %3920 = vmatpush1.msra.mxu0 0.0
      %3921 = vmatprep.subr.mxu0 0.0
      %3922 = vmatpush1.msra.mxu0 0.0
      %3923 = vmatprep.subr.mxu0 0.0
      %3924 = vmatpush1.msra.mxu0 0.0
      %3925 = vmatprep.subr.mxu0 0.0
      %3926 = vmatpush1.msra.mxu0 0.0
      %3927 = vmatprep.subr.mxu0 0.0
      %3928 = vmatpush1.msra.mxu0 0.0
      %3929 = vmatprep.subr.mxu0 0.0
      %3930 = vmatpush1.msra.mxu0 0.0
      %3931 = vmatprep.subr.mxu0 0.0
      %3932 = vmatpush1.msra.mxu0 0.0
      %3933 = vmatprep.subr.mxu0 0.0
      %3934 = vmatpush1.msra.mxu0 0.0
      %3935 = vmatprep.subr.mxu0 0.0
      %3936 = vmatpush1.msra.mxu0 0.0
      %3937 = vmatprep.subr.mxu0 0.0
      %3938 = vmatpush1.msra.mxu0 0.0
      %3939 = vmatprep.subr.mxu0 0.0
      %3940 = vmatpush1.msra.mxu0 0.0
      %3941 = vmatprep.subr.mxu0 0.0
      %3942 = vmatpush1.msra.mxu0 0.0
      %3943 = vmatprep.subr.mxu0 0.0
      %3944 = vmatpush1.msra.mxu0 0.0
      %3945 = vmatprep.subr.mxu0 0.0
      %3946 = vmatpush1.msra.mxu0 0.0
      %3947 = vmatprep.subr.mxu0 0.0
      %3948 = vmatpush1.msra.mxu0 0.0
      %3949 = vmatprep.subr.mxu0 0.0
      %3950 = vmatpush1.msra.mxu0 0.0
      %3951 = vmatprep.subr.mxu0 0.0
      %3952 = vmatpush1.msra.mxu0 0.0
      %3953 = vmatprep.subr.mxu0 0.0
      %3954 = vmatpush1.msra.mxu0 0.0
      %3955 = vmatprep.subr.mxu0 0.0
      %3956 = vmatpush1.msra.mxu0 0.0
      %3957 = vmatprep.subr.mxu0 0.0
      %3958 = vmatpush1.msra.mxu0 0.0
      %3959 = vmatprep.subr.mxu0 0.0
      %3960 = vmatpush1.msra.mxu0 0.0
      %3961 = vmatprep.subr.mxu0 0.0
      %3962 = vmatpush1.msra.mxu0 0.0
      %3963 = vmatprep.subr.mxu0 0.0
      %3964 = vmatpush1.msra.mxu0 0.0
      %3965 = vmatprep.subr.mxu0 0.0
      %3966 = vmatpush1.msra.mxu0 0.0
      %3967 = vmatprep.subr.mxu0 0.0
      %3968 = vmatpush1.msra.mxu0 0.0
      %3969 = vmatprep.subr.mxu0 0.0
      %3970 = vmatpush1.msra.mxu0 0.0
      %3971 = vmatprep.subr.mxu0 0.0
      %3972 = vmatpush1.msra.mxu0 0.0
      %3973 = vmatprep.mubr.f32.mxu0 0.0
      %3974 = vmatmul.mubr.f32.gmra.mrb[0].mxu0 %v3904
      %v3975 = vpop.f32.mrb[0].mxu0
      %v3976 = vadd.f32 0.0, %v3975
      %v3977 = vpop.f32.mrb[0].mxu0
      %3978 = vmatprep.mubr.f32.mxu0 0.0
      %3979 = vmatmul.mubr.f32.gmra.mrb[0].mxu0 %v3907
      %v3980 = vpop.f32.mrb[0].mxu0
      %v3981 = vadd.f32 0.0, %v3980
      %v3982 = vpop.f32.mrb[0].mxu0
      %3983 = vdwg.mxu0
      %3984 = vst.msk [vmem:[#allocation4 + $0x28] sm:$0xff] %vm1173, %v3976
      %3985 = vst.msk [vmem:[#allocation4 + $0x38] sm:$0xff] %vm1173, %v3981
      %v3986 = vld [vmem:[#allocation3 + $0x68] sm:$0xff]
      %v3987 = vld [vmem:[#allocation3 + $0x98] sm:$0xff]
      %v3988 = vmul.f32 %v3986, 0.17677669
      %v3989 = vmul.f32 %v3987, 0.17677669
      %v3990 = vld [vmem:[#allocation3 + $0x78] sm:$0xff]
      %v3991 = vld [vmem:[#allocation3 + $0xa8] sm:$0xff]
      %v3992 = vld [vmem:[#allocation3 + $0x88] sm:$0xff]
      %v3993 = vld [vmem:[#allocation3 + $0xb8] sm:$0xff]
      %3996 = vrot.lane.b32.xlu0 %v3988, 96
      %v3997 = vpop.permute.xlu0 %3996
      %3998 = vrot.lane.b32.xlu0 %v3989, 96
      %v3999 = vpop.permute.xlu0 %3998
      %4002 = vrot.lane.b32.xlu0 %v3990, 96
      %v4003 = vpop.permute.xlu0 %4002
      %4004 = vrot.lane.b32.xlu0 %v3991, 96
      %v4005 = vpop.permute.xlu0 %4004
      %v4006 = vsel %vm1173, %v3997, 0
      %v4008 = vsel %vm1173, %v3999, 0
      %v4010 = vsel %vm1173, %v4003, 0
      %v4012 = vsel %vm1173, %v4005, 0
      %4014 = vmatprep.subr.mxu0 0.0
      %4015 = vmatpush1.xpose.msra.mxu0 %v4010
      %4016 = vmatprep.subr.mxu0 0.0
      %4017 = vmatpush1.xpose.msra.mxu0 %v4012
      %4018 = vmatprep.subr.mxu0 0.0
      %4019 = vmatpush1.xpose.msra.mxu0 0.0
      %4020 = vmatprep.subr.mxu0 0.0
      %4021 = vmatpush1.xpose.msra.mxu0 0.0
      %4022 = vmatprep.subr.mxu0 0.0
      %4023 = vmatpush1.xpose.msra.mxu0 0.0
      %4024 = vmatprep.subr.mxu0 0.0
      %4025 = vmatpush1.xpose.msra.mxu0 0.0
      %4026 = vmatprep.subr.mxu0 0.0
      %4027 = vmatpush1.xpose.msra.mxu0 0.0
      %4028 = vmatprep.subr.mxu0 0.0
      %4029 = vmatpush1.xpose.msra.mxu0 0.0
      %4030 = vmatprep.subr.mxu0 0.0
      %4031 = vmatpush1.xpose.msra.mxu0 0.0
      %4032 = vmatprep.subr.mxu0 0.0
      %4033 = vmatpush1.xpose.msra.mxu0 0.0
      %4034 = vmatprep.subr.mxu0 0.0
      %4035 = vmatpush1.xpose.msra.mxu0 0.0
      %4036 = vmatprep.subr.mxu0 0.0
      %4037 = vmatpush1.xpose.msra.mxu0 0.0
      %4038 = vmatprep.subr.mxu0 0.0
      %4039 = vmatpush1.xpose.msra.mxu0 0.0
      %4040 = vmatprep.subr.mxu0 0.0
      %4041 = vmatpush1.xpose.msra.mxu0 0.0
      %4042 = vmatprep.subr.mxu0 0.0
      %4043 = vmatpush1.xpose.msra.mxu0 0.0
      %4044 = vmatprep.subr.mxu0 0.0
      %4045 = vmatpush1.xpose.msra.mxu0 0.0
      %4046 = vmatprep.subr.mxu0 0.0
      %4047 = vmatpush1.xpose.msra.mxu0 0.0
      %4048 = vmatprep.subr.mxu0 0.0
      %4049 = vmatpush1.xpose.msra.mxu0 0.0
      %4050 = vmatprep.subr.mxu0 0.0
      %4051 = vmatpush1.xpose.msra.mxu0 0.0
      %4052 = vmatprep.subr.mxu0 0.0
      %4053 = vmatpush1.xpose.msra.mxu0 0.0
      %4054 = vmatprep.subr.mxu0 0.0
      %4055 = vmatpush1.xpose.msra.mxu0 0.0
      %4056 = vmatprep.subr.mxu0 0.0
      %4057 = vmatpush1.xpose.msra.mxu0 0.0
      %4058 = vmatprep.subr.mxu0 0.0
      %4059 = vmatpush1.xpose.msra.mxu0 0.0
      %4060 = vmatprep.subr.mxu0 0.0
      %4061 = vmatpush1.xpose.msra.mxu0 0.0
      %4062 = vmatprep.subr.mxu0 0.0
      %4063 = vmatpush1.xpose.msra.mxu0 0.0
      %4064 = vmatprep.subr.mxu0 0.0
      %4065 = vmatpush1.xpose.msra.mxu0 0.0
      %4066 = vmatprep.subr.mxu0 0.0
      %4067 = vmatpush1.xpose.msra.mxu0 0.0
      %4068 = vmatprep.subr.mxu0 0.0
      %4069 = vmatpush1.xpose.msra.mxu0 0.0
      %4070 = vmatprep.subr.mxu0 0.0
      %4071 = vmatpush1.xpose.msra.mxu0 0.0
      %4072 = vmatprep.subr.mxu0 0.0
      %4073 = vmatpush1.xpose.msra.mxu0 0.0
      %4074 = vmatprep.subr.mxu0 0.0
      %4075 = vmatpush1.xpose.msra.mxu0 0.0
      %4076 = vmatprep.subr.mxu0 0.0
      %4077 = vmatpush1.xpose.msra.mxu0 0.0
      %4078 = vmatprep.mubr.f32.mxu0 0.0
      %4079 = vmatmul.mubr.f32.gmra.mrb[0].mxu0 %v4006
      %v4080 = vpop.f32.mrb[0].mxu0
      %v4081 = vadd.f32 0.0, %v4080
      %v4082 = vpop.f32.mrb[0].mxu0
      %4083 = vmatprep.mubr.f32.mxu0 0.0
      %4084 = vmatmul.mubr.f32.gmra.mrb[0].mxu0 %v4008
      %v4085 = vpop.f32.mrb[0].mxu0
      %v4086 = vadd.f32 0.0, %v4085
      %v4087 = vpop.f32.mrb[0].mxu0
      %4088 = vdwg.mxu0
      %v4089 = vsel %vm1261, %v4081, -inf
      %4090 = vmax.xlane.f32.xlu0 %v4089
      %v4091 = vpop.xlane.xlu0 %4090
      %v4092 = vsel %vm1261, %v4086, -inf
      %4093 = vmax.xlane.f32.xlu0 %v4092
      %v4094 = vpop.xlane.xlu0 %4093
      %v4095 = vsub.f32 %v4081, %v4091
      %v4096 = vsub.f32 %v4086, %v4094
      %v4097 = vmul.f32 %v4095, 1.442695
      %v4098 = vpow.pop %v4097
      %v4099 = vmul.f32 %v4096, 1.442695
      %v4100 = vpow.pop %v4099
      %v4101 = vsel %vm1261, %v4098, 0.0
      %4102 = vadd.xlane.f32.xlu0 %v4101
      %v4103 = vpop.xlane.xlu0 %4102
      %v4104 = vsel %vm1261, %v4100, 0.0
      %4105 = vadd.xlane.f32.xlu0 %v4104
      %v4106 = vpop.xlane.xlu0 %4105
      %v4107 = vrcp.pop %v4103
      %v4108 = vmul.f32 %v4098, %v4107
      %v4109 = vrcp.pop %v4106
      %v4110 = vmul.f32 %v4100, %v4109
      %4113 = vrot.lane.b32.xlu0 %v3992, 96
      %v4114 = vpop.permute.xlu0 %4113
      %4115 = vrot.lane.b32.xlu0 %v3993, 96
      %v4116 = vpop.permute.xlu0 %4115
      %v4120 = vsel %vm1261, %v4108, 0
      %v4123 = vsel %vm1261, %v4110, 0
      %4125 = vmatprep.subr.mxu0 0.0
      %4126 = vmatpush1.msra.mxu0 %v4114
      %4127 = vmatprep.subr.mxu0 0.0
      %4128 = vmatpush1.msra.mxu0 %v4116
      %4129 = vmatprep.subr.mxu0 0.0
      %4130 = vmatpush1.msra.mxu0 0.0
      %4131 = vmatprep.subr.mxu0 0.0
      %4132 = vmatpush1.msra.mxu0 0.0
      %4133 = vmatprep.subr.mxu0 0.0
      %4134 = vmatpush1.msra.mxu0 0.0
      %4135 = vmatprep.subr.mxu0 0.0
      %4136 = vmatpush1.msra.mxu0 0.0
      %4137 = vmatprep.subr.mxu0 0.0
      %4138 = vmatpush1.msra.mxu0 0.0
      %4139 = vmatprep.subr.mxu0 0.0
      %4140 = vmatpush1.msra.mxu0 0.0
      %4141 = vmatprep.subr.mxu0 0.0
      %4142 = vmatpush1.msra.mxu0 0.0
      %4143 = vmatprep.subr.mxu0 0.0
      %4144 = vmatpush1.msra.mxu0 0.0
      %4145 = vmatprep.subr.mxu0 0.0
      %4146 = vmatpush1.msra.mxu0 0.0
      %4147 = vmatprep.subr.mxu0 0.0
      %4148 = vmatpush1.msra.mxu0 0.0
      %4149 = vmatprep.subr.mxu0 0.0
      %4150 = vmatpush1.msra.mxu0 0.0
      %4151 = vmatprep.subr.mxu0 0.0
      %4152 = vmatpush1.msra.mxu0 0.0
      %4153 = vmatprep.subr.mxu0 0.0
      %4154 = vmatpush1.msra.mxu0 0.0
      %4155 = vmatprep.subr.mxu0 0.0
      %4156 = vmatpush1.msra.mxu0 0.0
      %4157 = vmatprep.subr.mxu0 0.0
      %4158 = vmatpush1.msra.mxu0 0.0
      %4159 = vmatprep.subr.mxu0 0.0
      %4160 = vmatpush1.msra.mxu0 0.0
      %4161 = vmatprep.subr.mxu0 0.0
      %4162 = vmatpush1.msra.mxu0 0.0
      %4163 = vmatprep.subr.mxu0 0.0
      %4164 = vmatpush1.msra.mxu0 0.0
      %4165 = vmatprep.subr.mxu0 0.0
      %4166 = vmatpush1.msra.mxu0 0.0
      %4167 = vmatprep.subr.mxu0 0.0
      %4168 = vmatpush1.msra.mxu0 0.0
      %4169 = vmatprep.subr.mxu0 0.0
      %4170 = vmatpush1.msra.mxu0 0.0
      %4171 = vmatprep.subr.mxu0 0.0
      %4172 = vmatpush1.msra.mxu0 0.0
      %4173 = vmatprep.subr.mxu0 0.0
      %4174 = vmatpush1.msra.mxu0 0.0
      %4175 = vmatprep.subr.mxu0 0.0
      %4176 = vmatpush1.msra.mxu0 0.0
      %4177 = vmatprep.subr.mxu0 0.0
      %4178 = vmatpush1.msra.mxu0 0.0
      %4179 = vmatprep.subr.mxu0 0.0
      %4180 = vmatpush1.msra.mxu0 0.0
      %4181 = vmatprep.subr.mxu0 0.0
      %4182 = vmatpush1.msra.mxu0 0.0
      %4183 = vmatprep.subr.mxu0 0.0
      %4184 = vmatpush1.msra.mxu0 0.0
      %4185 = vmatprep.subr.mxu0 0.0
      %4186 = vmatpush1.msra.mxu0 0.0
      %4187 = vmatprep.subr.mxu0 0.0
      %4188 = vmatpush1.msra.mxu0 0.0
      %4189 = vmatprep.mubr.f32.mxu0 0.0
      %4190 = vmatmul.mubr.f32.gmra.mrb[0].mxu0 %v4120
      %v4191 = vpop.f32.mrb[0].mxu0
      %v4192 = vadd.f32 0.0, %v4191
      %v4193 = vpop.f32.mrb[0].mxu0
      %4194 = vmatprep.mubr.f32.mxu0 0.0
      %4195 = vmatmul.mubr.f32.gmra.mrb[0].mxu0 %v4123
      %v4196 = vpop.f32.mrb[0].mxu0
      %v4197 = vadd.f32 0.0, %v4196
      %v4198 = vpop.f32.mrb[0].mxu0
      %4199 = vdwg.mxu0
      %4202 = vrot.lane.b32.xlu0 %v4192, 32
      %v4203 = vpop.permute.xlu0 %4202
      %4204 = vrot.lane.b32.xlu0 %v4197, 32
      %v4205 = vpop.permute.xlu0 %4204
      %4208 = vst.msk [vmem:[#allocation4 + $0x28] sm:$0xff] %vm1589, %v4203
      %4209 = vst.msk [vmem:[#allocation4 + $0x38] sm:$0xff] %vm1589, %v4205
      %v4210 = vld [vmem:[#allocation3 + $0x68] sm:$0xff]
      %v4211 = vld [vmem:[#allocation3 + $0x98] sm:$0xff]
      %v4212 = vmul.f32 %v4210, 0.17677669
      %v4213 = vmul.f32 %v4211, 0.17677669
      %v4214 = vld [vmem:[#allocation3 + $0x78] sm:$0xff]
      %v4215 = vld [vmem:[#allocation3 + $0xa8] sm:$0xff]
      %v4216 = vld [vmem:[#allocation3 + $0x88] sm:$0xff]
      %v4217 = vld [vmem:[#allocation3 + $0xb8] sm:$0xff]
      %4220 = vrot.lane.b32.xlu0 %v4212, 64
      %v4221 = vpop.permute.xlu0 %4220
      %4222 = vrot.lane.b32.xlu0 %v4213, 64
      %v4223 = vpop.permute.xlu0 %4222
      %4226 = vrot.lane.b32.xlu0 %v4214, 64
      %v4227 = vpop.permute.xlu0 %4226
      %4228 = vrot.lane.b32.xlu0 %v4215, 64
      %v4229 = vpop.permute.xlu0 %4228
      %v4230 = vsel %vm1173, %v4221, 0
      %v4232 = vsel %vm1173, %v4223, 0
      %v4234 = vsel %vm1173, %v4227, 0
      %v4236 = vsel %vm1173, %v4229, 0
      %4238 = vmatprep.subr.mxu0 0.0
      %4239 = vmatpush1.xpose.msra.mxu0 %v4234
      %4240 = vmatprep.subr.mxu0 0.0
      %4241 = vmatpush1.xpose.msra.mxu0 %v4236
      %4242 = vmatprep.subr.mxu0 0.0
      %4243 = vmatpush1.xpose.msra.mxu0 0.0
      %4244 = vmatprep.subr.mxu0 0.0
      %4245 = vmatpush1.xpose.msra.mxu0 0.0
      %4246 = vmatprep.subr.mxu0 0.0
      %4247 = vmatpush1.xpose.msra.mxu0 0.0
      %4248 = vmatprep.subr.mxu0 0.0
      %4249 = vmatpush1.xpose.msra.mxu0 0.0
      %4250 = vmatprep.subr.mxu0 0.0
      %4251 = vmatpush1.xpose.msra.mxu0 0.0
      %4252 = vmatprep.subr.mxu0 0.0
      %4253 = vmatpush1.xpose.msra.mxu0 0.0
      %4254 = vmatprep.subr.mxu0 0.0
      %4255 = vmatpush1.xpose.msra.mxu0 0.0
      %4256 = vmatprep.subr.mxu0 0.0
      %4257 = vmatpush1.xpose.msra.mxu0 0.0
      %4258 = vmatprep.subr.mxu0 0.0
      %4259 = vmatpush1.xpose.msra.mxu0 0.0
      %4260 = vmatprep.subr.mxu0 0.0
      %4261 = vmatpush1.xpose.msra.mxu0 0.0
      %4262 = vmatprep.subr.mxu0 0.0
      %4263 = vmatpush1.xpose.msra.mxu0 0.0
      %4264 = vmatprep.subr.mxu0 0.0
      %4265 = vmatpush1.xpose.msra.mxu0 0.0
      %4266 = vmatprep.subr.mxu0 0.0
      %4267 = vmatpush1.xpose.msra.mxu0 0.0
      %4268 = vmatprep.subr.mxu0 0.0
      %4269 = vmatpush1.xpose.msra.mxu0 0.0
      %4270 = vmatprep.subr.mxu0 0.0
      %4271 = vmatpush1.xpose.msra.mxu0 0.0
      %4272 = vmatprep.subr.mxu0 0.0
      %4273 = vmatpush1.xpose.msra.mxu0 0.0
      %4274 = vmatprep.subr.mxu0 0.0
      %4275 = vmatpush1.xpose.msra.mxu0 0.0
      %4276 = vmatprep.subr.mxu0 0.0
      %4277 = vmatpush1.xpose.msra.mxu0 0.0
      %4278 = vmatprep.subr.mxu0 0.0
      %4279 = vmatpush1.xpose.msra.mxu0 0.0
      %4280 = vmatprep.subr.mxu0 0.0
      %4281 = vmatpush1.xpose.msra.mxu0 0.0
      %4282 = vmatprep.subr.mxu0 0.0
      %4283 = vmatpush1.xpose.msra.mxu0 0.0
      %4284 = vmatprep.subr.mxu0 0.0
      %4285 = vmatpush1.xpose.msra.mxu0 0.0
      %4286 = vmatprep.subr.mxu0 0.0
      %4287 = vmatpush1.xpose.msra.mxu0 0.0
      %4288 = vmatprep.subr.mxu0 0.0
      %4289 = vmatpush1.xpose.msra.mxu0 0.0
      %4290 = vmatprep.subr.mxu0 0.0
      %4291 = vmatpush1.xpose.msra.mxu0 0.0
      %4292 = vmatprep.subr.mxu0 0.0
      %4293 = vmatpush1.xpose.msra.mxu0 0.0
      %4294 = vmatprep.subr.mxu0 0.0
      %4295 = vmatpush1.xpose.msra.mxu0 0.0
      %4296 = vmatprep.subr.mxu0 0.0
      %4297 = vmatpush1.xpose.msra.mxu0 0.0
      %4298 = vmatprep.subr.mxu0 0.0
      %4299 = vmatpush1.xpose.msra.mxu0 0.0
      %4300 = vmatprep.subr.mxu0 0.0
      %4301 = vmatpush1.xpose.msra.mxu0 0.0
      %4302 = vmatprep.mubr.f32.mxu0 0.0
      %4303 = vmatmul.mubr.f32.gmra.mrb[0].mxu0 %v4230
      %v4304 = vpop.f32.mrb[0].mxu0
      %v4305 = vadd.f32 0.0, %v4304
      %v4306 = vpop.f32.mrb[0].mxu0
      %4307 = vmatprep.mubr.f32.mxu0 0.0
      %4308 = vmatmul.mubr.f32.gmra.mrb[0].mxu0 %v4232
      %v4309 = vpop.f32.mrb[0].mxu0
      %v4310 = vadd.f32 0.0, %v4309
      %v4311 = vpop.f32.mrb[0].mxu0
      %4312 = vdwg.mxu0
      %v4313 = vsel %vm1261, %v4305, -inf
      %4314 = vmax.xlane.f32.xlu0 %v4313
      %v4315 = vpop.xlane.xlu0 %4314
      %v4316 = vsel %vm1261, %v4310, -inf
      %4317 = vmax.xlane.f32.xlu0 %v4316
      %v4318 = vpop.xlane.xlu0 %4317
      %v4319 = vsub.f32 %v4305, %v4315
      %v4320 = vsub.f32 %v4310, %v4318
      %v4321 = vmul.f32 %v4319, 1.442695
      %v4322 = vpow.pop %v4321
      %v4323 = vmul.f32 %v4320, 1.442695
      %v4324 = vpow.pop %v4323
      %v4325 = vsel %vm1261, %v4322, 0.0
      %4326 = vadd.xlane.f32.xlu0 %v4325
      %v4327 = vpop.xlane.xlu0 %4326
      %v4328 = vsel %vm1261, %v4324, 0.0
      %4329 = vadd.xlane.f32.xlu0 %v4328
      %v4330 = vpop.xlane.xlu0 %4329
      %v4331 = vrcp.pop %v4327
      %v4332 = vmul.f32 %v4322, %v4331
      %v4333 = vrcp.pop %v4330
      %v4334 = vmul.f32 %v4324, %v4333
      %4337 = vrot.lane.b32.xlu0 %v4216, 64
      %v4338 = vpop.permute.xlu0 %4337
      %4339 = vrot.lane.b32.xlu0 %v4217, 64
      %v4340 = vpop.permute.xlu0 %4339
      %v4344 = vsel %vm1261, %v4332, 0
      %v4347 = vsel %vm1261, %v4334, 0
      %4349 = vmatprep.subr.mxu0 0.0
      %4350 = vmatpush1.msra.mxu0 %v4338
      %4351 = vmatprep.subr.mxu0 0.0
      %4352 = vmatpush1.msra.mxu0 %v4340
      %4353 = vmatprep.subr.mxu0 0.0
      %4354 = vmatpush1.msra.mxu0 0.0
      %4355 = vmatprep.subr.mxu0 0.0
      %4356 = vmatpush1.msra.mxu0 0.0
      %4357 = vmatprep.subr.mxu0 0.0
      %4358 = vmatpush1.msra.mxu0 0.0
      %4359 = vmatprep.subr.mxu0 0.0
      %4360 = vmatpush1.msra.mxu0 0.0
      %4361 = vmatprep.subr.mxu0 0.0
      %4362 = vmatpush1.msra.mxu0 0.0
      %4363 = vmatprep.subr.mxu0 0.0
      %4364 = vmatpush1.msra.mxu0 0.0
      %4365 = vmatprep.subr.mxu0 0.0
      %4366 = vmatpush1.msra.mxu0 0.0
      %4367 = vmatprep.subr.mxu0 0.0
      %4368 = vmatpush1.msra.mxu0 0.0
      %4369 = vmatprep.subr.mxu0 0.0
      %4370 = vmatpush1.msra.mxu0 0.0
      %4371 = vmatprep.subr.mxu0 0.0
      %4372 = vmatpush1.msra.mxu0 0.0
      %4373 = vmatprep.subr.mxu0 0.0
      %4374 = vmatpush1.msra.mxu0 0.0
      %4375 = vmatprep.subr.mxu0 0.0
      %4376 = vmatpush1.msra.mxu0 0.0
      %4377 = vmatprep.subr.mxu0 0.0
      %4378 = vmatpush1.msra.mxu0 0.0
      %4379 = vmatprep.subr.mxu0 0.0
      %4380 = vmatpush1.msra.mxu0 0.0
      %4381 = vmatprep.subr.mxu0 0.0
      %4382 = vmatpush1.msra.mxu0 0.0
      %4383 = vmatprep.subr.mxu0 0.0
      %4384 = vmatpush1.msra.mxu0 0.0
      %4385 = vmatprep.subr.mxu0 0.0
      %4386 = vmatpush1.msra.mxu0 0.0
      %4387 = vmatprep.subr.mxu0 0.0
      %4388 = vmatpush1.msra.mxu0 0.0
      %4389 = vmatprep.subr.mxu0 0.0
      %4390 = vmatpush1.msra.mxu0 0.0
      %4391 = vmatprep.subr.mxu0 0.0
      %4392 = vmatpush1.msra.mxu0 0.0
      %4393 = vmatprep.subr.mxu0 0.0
      %4394 = vmatpush1.msra.mxu0 0.0
      %4395 = vmatprep.subr.mxu0 0.0
      %4396 = vmatpush1.msra.mxu0 0.0
      %4397 = vmatprep.subr.mxu0 0.0
      %4398 = vmatpush1.msra.mxu0 0.0
      %4399 = vmatprep.subr.mxu0 0.0
      %4400 = vmatpush1.msra.mxu0 0.0
      %4401 = vmatprep.subr.mxu0 0.0
      %4402 = vmatpush1.msra.mxu0 0.0
      %4403 = vmatprep.subr.mxu0 0.0
      %4404 = vmatpush1.msra.mxu0 0.0
      %4405 = vmatprep.subr.mxu0 0.0
      %4406 = vmatpush1.msra.mxu0 0.0
      %4407 = vmatprep.subr.mxu0 0.0
      %4408 = vmatpush1.msra.mxu0 0.0
      %4409 = vmatprep.subr.mxu0 0.0
      %4410 = vmatpush1.msra.mxu0 0.0
      %4411 = vmatprep.subr.mxu0 0.0
      %4412 = vmatpush1.msra.mxu0 0.0
      %4413 = vmatprep.mubr.f32.mxu0 0.0
      %4414 = vmatmul.mubr.f32.gmra.mrb[0].mxu0 %v4344
      %v4415 = vpop.f32.mrb[0].mxu0
      %v4416 = vadd.f32 0.0, %v4415
      %v4417 = vpop.f32.mrb[0].mxu0
      %4418 = vmatprep.mubr.f32.mxu0 0.0
      %4419 = vmatmul.mubr.f32.gmra.mrb[0].mxu0 %v4347
      %v4420 = vpop.f32.mrb[0].mxu0
      %v4421 = vadd.f32 0.0, %v4420
      %v4422 = vpop.f32.mrb[0].mxu0
      %4423 = vdwg.mxu0
      %4426 = vrot.lane.b32.xlu0 %v4416, 64
      %v4427 = vpop.permute.xlu0 %4426
      %4428 = vrot.lane.b32.xlu0 %v4421, 64
      %v4429 = vpop.permute.xlu0 %4428
      %4432 = vst.msk [vmem:[#allocation4 + $0x28] sm:$0xff] %vm1814, %v4427
      %4433 = vst.msk [vmem:[#allocation4 + $0x38] sm:$0xff] %vm1814, %v4429
      %v4434 = vld [vmem:[#allocation3 + $0x68] sm:$0xff]
      %v4435 = vld [vmem:[#allocation3 + $0x98] sm:$0xff]
      %v4436 = vmul.f32 %v4434, 0.17677669
      %v4437 = vmul.f32 %v4435, 0.17677669
      %v4438 = vld [vmem:[#allocation3 + $0x78] sm:$0xff]
      %v4439 = vld [vmem:[#allocation3 + $0xa8] sm:$0xff]
      %v4440 = vld [vmem:[#allocation3 + $0x88] sm:$0xff]
      %v4441 = vld [vmem:[#allocation3 + $0xb8] sm:$0xff]
      %4444 = vrot.lane.b32.xlu0 %v4436, 32
      %v4445 = vpop.permute.xlu0 %4444
      %4446 = vrot.lane.b32.xlu0 %v4437, 32
      %v4447 = vpop.permute.xlu0 %4446
      %4450 = vrot.lane.b32.xlu0 %v4438, 32
      %v4451 = vpop.permute.xlu0 %4450
      %4452 = vrot.lane.b32.xlu0 %v4439, 32
      %v4453 = vpop.permute.xlu0 %4452
      %v4454 = vsel %vm1173, %v4445, 0
      %v4456 = vsel %vm1173, %v4447, 0
      %v4458 = vsel %vm1173, %v4451, 0
      %v4460 = vsel %vm1173, %v4453, 0
      %4462 = vmatprep.subr.mxu0 0.0
      %4463 = vmatpush1.xpose.msra.mxu0 %v4458
      %4464 = vmatprep.subr.mxu0 0.0
      %4465 = vmatpush1.xpose.msra.mxu0 %v4460
      %4466 = vmatprep.subr.mxu0 0.0
      %4467 = vmatpush1.xpose.msra.mxu0 0.0
      %4468 = vmatprep.subr.mxu0 0.0
      %4469 = vmatpush1.xpose.msra.mxu0 0.0
      %4470 = vmatprep.subr.mxu0 0.0
      %4471 = vmatpush1.xpose.msra.mxu0 0.0
      %4472 = vmatprep.subr.mxu0 0.0
      %4473 = vmatpush1.xpose.msra.mxu0 0.0
      %4474 = vmatprep.subr.mxu0 0.0
      %4475 = vmatpush1.xpose.msra.mxu0 0.0
      %4476 = vmatprep.subr.mxu0 0.0
      %4477 = vmatpush1.xpose.msra.mxu0 0.0
      %4478 = vmatprep.subr.mxu0 0.0
      %4479 = vmatpush1.xpose.msra.mxu0 0.0
      %4480 = vmatprep.subr.mxu0 0.0
      %4481 = vmatpush1.xpose.msra.mxu0 0.0
      %4482 = vmatprep.subr.mxu0 0.0
      %4483 = vmatpush1.xpose.msra.mxu0 0.0
      %4484 = vmatprep.subr.mxu0 0.0
      %4485 = vmatpush1.xpose.msra.mxu0 0.0
      %4486 = vmatprep.subr.mxu0 0.0
      %4487 = vmatpush1.xpose.msra.mxu0 0.0
      %4488 = vmatprep.subr.mxu0 0.0
      %4489 = vmatpush1.xpose.msra.mxu0 0.0
      %4490 = vmatprep.subr.mxu0 0.0
      %4491 = vmatpush1.xpose.msra.mxu0 0.0
      %4492 = vmatprep.subr.mxu0 0.0
      %4493 = vmatpush1.xpose.msra.mxu0 0.0
      %4494 = vmatprep.subr.mxu0 0.0
      %4495 = vmatpush1.xpose.msra.mxu0 0.0
      %4496 = vmatprep.subr.mxu0 0.0
      %4497 = vmatpush1.xpose.msra.mxu0 0.0
      %4498 = vmatprep.subr.mxu0 0.0
      %4499 = vmatpush1.xpose.msra.mxu0 0.0
      %4500 = vmatprep.subr.mxu0 0.0
      %4501 = vmatpush1.xpose.msra.mxu0 0.0
      %4502 = vmatprep.subr.mxu0 0.0
      %4503 = vmatpush1.xpose.msra.mxu0 0.0
      %4504 = vmatprep.subr.mxu0 0.0
      %4505 = vmatpush1.xpose.msra.mxu0 0.0
      %4506 = vmatprep.subr.mxu0 0.0
      %4507 = vmatpush1.xpose.msra.mxu0 0.0
      %4508 = vmatprep.subr.mxu0 0.0
      %4509 = vmatpush1.xpose.msra.mxu0 0.0
      %4510 = vmatprep.subr.mxu0 0.0
      %4511 = vmatpush1.xpose.msra.mxu0 0.0
      %4512 = vmatprep.subr.mxu0 0.0
      %4513 = vmatpush1.xpose.msra.mxu0 0.0
      %4514 = vmatprep.subr.mxu0 0.0
      %4515 = vmatpush1.xpose.msra.mxu0 0.0
      %4516 = vmatprep.subr.mxu0 0.0
      %4517 = vmatpush1.xpose.msra.mxu0 0.0
      %4518 = vmatprep.subr.mxu0 0.0
      %4519 = vmatpush1.xpose.msra.mxu0 0.0
      %4520 = vmatprep.subr.mxu0 0.0
      %4521 = vmatpush1.xpose.msra.mxu0 0.0
      %4522 = vmatprep.subr.mxu0 0.0
      %4523 = vmatpush1.xpose.msra.mxu0 0.0
      %4524 = vmatprep.subr.mxu0 0.0
      %4525 = vmatpush1.xpose.msra.mxu0 0.0
      %4526 = vmatprep.mubr.f32.mxu0 0.0
      %4527 = vmatmul.mubr.f32.gmra.mrb[0].mxu0 %v4454
      %v4528 = vpop.f32.mrb[0].mxu0
      %v4529 = vadd.f32 0.0, %v4528
      %v4530 = vpop.f32.mrb[0].mxu0
      %4531 = vmatprep.mubr.f32.mxu0 0.0
      %4532 = vmatmul.mubr.f32.gmra.mrb[0].mxu0 %v4456
      %v4533 = vpop.f32.mrb[0].mxu0
      %v4534 = vadd.f32 0.0, %v4533
      %v4535 = vpop.f32.mrb[0].mxu0
      %4536 = vdwg.mxu0
      %v4537 = vsel %vm1261, %v4529, -inf
      %4538 = vmax.xlane.f32.xlu0 %v4537
      %v4539 = vpop.xlane.xlu0 %4538
      %v4540 = vsel %vm1261, %v4534, -inf
      %4541 = vmax.xlane.f32.xlu0 %v4540
      %v4542 = vpop.xlane.xlu0 %4541
      %v4543 = vsub.f32 %v4529, %v4539
      %v4544 = vsub.f32 %v4534, %v4542
      %v4545 = vmul.f32 %v4543, 1.442695
      %v4546 = vpow.pop %v4545
      %v4547 = vmul.f32 %v4544, 1.442695
      %v4548 = vpow.pop %v4547
      %v4549 = vsel %vm1261, %v4546, 0.0
      %4550 = vadd.xlane.f32.xlu0 %v4549
      %v4551 = vpop.xlane.xlu0 %4550
      %v4552 = vsel %vm1261, %v4548, 0.0
      %4553 = vadd.xlane.f32.xlu0 %v4552
      %v4554 = vpop.xlane.xlu0 %4553
      %v4555 = vrcp.pop %v4551
      %v4556 = vmul.f32 %v4546, %v4555
      %v4557 = vrcp.pop %v4554
      %v4558 = vmul.f32 %v4548, %v4557
      %4561 = vrot.lane.b32.xlu0 %v4440, 32
      %v4562 = vpop.permute.xlu0 %4561
      %4563 = vrot.lane.b32.xlu0 %v4441, 32
      %v4564 = vpop.permute.xlu0 %4563
      %v4568 = vsel %vm1261, %v4556, 0
      %v4571 = vsel %vm1261, %v4558, 0
      %4573 = vmatprep.subr.mxu0 0.0
      %4574 = vmatpush1.msra.mxu0 %v4562
      %4575 = vmatprep.subr.mxu0 0.0
      %4576 = vmatpush1.msra.mxu0 %v4564
      %4577 = vmatprep.subr.mxu0 0.0
      %4578 = vmatpush1.msra.mxu0 0.0
      %4579 = vmatprep.subr.mxu0 0.0
      %4580 = vmatpush1.msra.mxu0 0.0
      %4581 = vmatprep.subr.mxu0 0.0
      %4582 = vmatpush1.msra.mxu0 0.0
      %4583 = vmatprep.subr.mxu0 0.0
      %4584 = vmatpush1.msra.mxu0 0.0
      %4585 = vmatprep.subr.mxu0 0.0
      %4586 = vmatpush1.msra.mxu0 0.0
      %4587 = vmatprep.subr.mxu0 0.0
      %4588 = vmatpush1.msra.mxu0 0.0
      %4589 = vmatprep.subr.mxu0 0.0
      %4590 = vmatpush1.msra.mxu0 0.0
      %4591 = vmatprep.subr.mxu0 0.0
      %4592 = vmatpush1.msra.mxu0 0.0
      %4593 = vmatprep.subr.mxu0 0.0
      %4594 = vmatpush1.msra.mxu0 0.0
      %4595 = vmatprep.subr.mxu0 0.0
      %4596 = vmatpush1.msra.mxu0 0.0
      %4597 = vmatprep.subr.mxu0 0.0
      %4598 = vmatpush1.msra.mxu0 0.0
      %4599 = vmatprep.subr.mxu0 0.0
      %4600 = vmatpush1.msra.mxu0 0.0
      %4601 = vmatprep.subr.mxu0 0.0
      %4602 = vmatpush1.msra.mxu0 0.0
      %4603 = vmatprep.subr.mxu0 0.0
      %4604 = vmatpush1.msra.mxu0 0.0
      %4605 = vmatprep.subr.mxu0 0.0
      %4606 = vmatpush1.msra.mxu0 0.0
      %4607 = vmatprep.subr.mxu0 0.0
      %4608 = vmatpush1.msra.mxu0 0.0
      %4609 = vmatprep.subr.mxu0 0.0
      %4610 = vmatpush1.msra.mxu0 0.0
      %4611 = vmatprep.subr.mxu0 0.0
      %4612 = vmatpush1.msra.mxu0 0.0
      %4613 = vmatprep.subr.mxu0 0.0
      %4614 = vmatpush1.msra.mxu0 0.0
      %4615 = vmatprep.subr.mxu0 0.0
      %4616 = vmatpush1.msra.mxu0 0.0
      %4617 = vmatprep.subr.mxu0 0.0
      %4618 = vmatpush1.msra.mxu0 0.0
      %4619 = vmatprep.subr.mxu0 0.0
      %4620 = vmatpush1.msra.mxu0 0.0
      %4621 = vmatprep.subr.mxu0 0.0
      %4622 = vmatpush1.msra.mxu0 0.0
      %4623 = vmatprep.subr.mxu0 0.0
      %4624 = vmatpush1.msra.mxu0 0.0
      %4625 = vmatprep.subr.mxu0 0.0
      %4626 = vmatpush1.msra.mxu0 0.0
      %4627 = vmatprep.subr.mxu0 0.0
      %4628 = vmatpush1.msra.mxu0 0.0
      %4629 = vmatprep.subr.mxu0 0.0
      %4630 = vmatpush1.msra.mxu0 0.0
      %4631 = vmatprep.subr.mxu0 0.0
      %4632 = vmatpush1.msra.mxu0 0.0
      %4633 = vmatprep.subr.mxu0 0.0
      %4634 = vmatpush1.msra.mxu0 0.0
      %4635 = vmatprep.subr.mxu0 0.0
      %4636 = vmatpush1.msra.mxu0 0.0
      %4637 = vmatprep.mubr.f32.mxu0 0.0
      %4638 = vmatmul.mubr.f32.gmra.mrb[0].mxu0 %v4568
      %v4639 = vpop.f32.mrb[0].mxu0
      %v4640 = vadd.f32 0.0, %v4639
      %v4641 = vpop.f32.mrb[0].mxu0
      %4642 = vmatprep.mubr.f32.mxu0 0.0
      %4643 = vmatmul.mubr.f32.gmra.mrb[0].mxu0 %v4571
      %v4644 = vpop.f32.mrb[0].mxu0
      %v4645 = vadd.f32 0.0, %v4644
      %v4646 = vpop.f32.mrb[0].mxu0
      %4647 = vdwg.mxu0
      %4650 = vrot.lane.b32.xlu0 %v4640, 96
      %v4651 = vpop.permute.xlu0 %4650
      %4652 = vrot.lane.b32.xlu0 %v4645, 96
      %v4653 = vpop.permute.xlu0 %4652
      %4656 = vst.msk [vmem:[#allocation4 + $0x28] sm:$0xff] %vm2039, %v4651
      %4657 = vst.msk [vmem:[#allocation4 + $0x38] sm:$0xff] %vm2039, %v4653
      %v4658 = vld [vmem:[#allocation4] sm:$0xff]
      %v4659 = vld [vmem:[#allocation4 + $0x8] sm:$0xff]
      %v4660 = vld [vmem:[#allocation4 + $0x10] sm:$0xff]
      %v4661 = vld [vmem:[#allocation4 + $0x18] sm:$0xff]
      %v4662 = vld [vmem:[#allocation4 + $0x20] sm:$0xff]
      %v4663 = vld [vmem:[#allocation4 + $0x28] sm:$0xff]
      %v4664 = vld [vmem:[#allocation4 + $0x30] sm:$0xff]
      %v4665 = vld [vmem:[#allocation4 + $0x38] sm:$0xff]
      %v4666 = vld [vmem:[%s583] sm:$0xff]
      %v4667 = vld [vmem:[%s583 + $0x8] sm:$0xff]
      %v4668 = vld [vmem:[%s583 + $0x10] sm:$0xff]
      %v4669 = vld [vmem:[%s583 + $0x18] sm:$0xff]
      %v4670 = vld [vmem:[%s583 + $0x20] sm:$0xff]
      %v4671 = vld [vmem:[%s583 + $0x28] sm:$0xff]
      %v4672 = vld [vmem:[%s583 + $0x30] sm:$0xff]
      %v4673 = vld [vmem:[%s583 + $0x38] sm:$0xff]
      %v4674 = vld [vmem:[%s583 + $0x40] sm:$0xff]
      %v4675 = vld [vmem:[%s583 + $0x48] sm:$0xff]
      %v4676 = vld [vmem:[%s583 + $0x50] sm:$0xff]
      %v4677 = vld [vmem:[%s583 + $0x58] sm:$0xff]
      %v4678 = vld [vmem:[%s583 + $0x60] sm:$0xff]
      %v4679 = vld [vmem:[%s583 + $0x68] sm:$0xff]
      %v4680 = vld [vmem:[%s583 + $0x70] sm:$0xff]
      %v4681 = vld [vmem:[%s583 + $0x78] sm:$0xff]
      %v4682 = vld [vmem:[%s583 + $0x80] sm:$0xff]
      %v4683 = vld [vmem:[%s583 + $0x88] sm:$0xff]
      %v4684 = vld [vmem:[%s583 + $0x90] sm:$0xff]
      %v4685 = vld [vmem:[%s583 + $0x98] sm:$0xff]
      %v4686 = vld [vmem:[%s583 + $0xa0] sm:$0xff]
      %v4687 = vld [vmem:[%s583 + $0xa8] sm:$0xff]
      %v4688 = vld [vmem:[%s583 + $0xb0] sm:$0xff]
      %v4689 = vld [vmem:[%s583 + $0xb8] sm:$0xff]
      %v4690 = vld [vmem:[%s583 + $0xc0] sm:$0xff]
      %v4691 = vld [vmem:[%s583 + $0xc8] sm:$0xff]
      %v4692 = vld [vmem:[%s583 + $0xd0] sm:$0xff]
      %v4693 = vld [vmem:[%s583 + $0xd8] sm:$0xff]
      %v4694 = vld [vmem:[%s583 + $0xe0] sm:$0xff]
      %v4695 = vld [vmem:[%s583 + $0xe8] sm:$0xff]
      %v4696 = vld [vmem:[%s583 + $0xf0] sm:$0xff]
      %v4697 = vld [vmem:[%s583 + $0xf8] sm:$0xff]
      %v4698 = vld [vmem:[%s583 + $0x100] sm:$0xff]
      %v4699 = vld [vmem:[%s583 + $0x108] sm:$0xff]
      %v4700 = vld [vmem:[%s583 + $0x110] sm:$0xff]
      %v4701 = vld [vmem:[%s583 + $0x118] sm:$0xff]
      %v4702 = vld [vmem:[%s583 + $0x120] sm:$0xff]
      %v4703 = vld [vmem:[%s583 + $0x128] sm:$0xff]
      %v4704 = vld [vmem:[%s583 + $0x130] sm:$0xff]
      %v4705 = vld [vmem:[%s583 + $0x138] sm:$0xff]
      %v4706 = vld [vmem:[%s583 + $0x140] sm:$0xff]
      %v4707 = vld [vmem:[%s583 + $0x148] sm:$0xff]
      %v4708 = vld [vmem:[%s583 + $0x150] sm:$0xff]
      %v4709 = vld [vmem:[%s583 + $0x158] sm:$0xff]
      %v4710 = vld [vmem:[%s583 + $0x160] sm:$0xff]
      %v4711 = vld [vmem:[%s583 + $0x168] sm:$0xff]
      %v4712 = vld [vmem:[%s583 + $0x170] sm:$0xff]
      %v4713 = vld [vmem:[%s583 + $0x178] sm:$0xff]
      %v4714 = vld [vmem:[%s583 + $0x180] sm:$0xff]
      %v4715 = vld [vmem:[%s583 + $0x188] sm:$0xff]
      %v4716 = vld [vmem:[%s583 + $0x190] sm:$0xff]
      %v4717 = vld [vmem:[%s583 + $0x198] sm:$0xff]
      %v4718 = vld [vmem:[%s583 + $0x1a0] sm:$0xff]
      %v4719 = vld [vmem:[%s583 + $0x1a8] sm:$0xff]
      %v4720 = vld [vmem:[%s583 + $0x1b0] sm:$0xff]
      %v4721 = vld [vmem:[%s583 + $0x1b8] sm:$0xff]
      %v4722 = vld [vmem:[%s583 + $0x1c0] sm:$0xff]
      %v4723 = vld [vmem:[%s583 + $0x1c8] sm:$0xff]
      %v4724 = vld [vmem:[%s583 + $0x1d0] sm:$0xff]
      %v4725 = vld [vmem:[%s583 + $0x1d8] sm:$0xff]
      %v4726 = vld [vmem:[%s583 + $0x1e0] sm:$0xff]
      %v4727 = vld [vmem:[%s583 + $0x1e8] sm:$0xff]
      %v4728 = vld [vmem:[%s583 + $0x1f0] sm:$0xff]
      %v4729 = vld [vmem:[%s583 + $0x1f8] sm:$0xff]
      %v4730 = vld [vmem:[%s587] sm:$0x3]
      %v4732 = vlaneseq
      %v4733 = vshrl.u32 %v4732, 7
      %v4734 = vsub.s32 0, %v4733
      %v4735 = vrot.slane %v4730, %v4734
      %v4736 = vlaneseq
      %v4737 = vshrl.u32 %v4736, 7
      %v4738 = vsub.s32 1, %v4737
      %v4739 = vrot.slane %v4730, %v4738
      %4742 = vmatprep.subr.mxu0 %v4667
      %4743 = vmatpush1.msra.mxu0 %v4666
      %4744 = vmatprep.subr.mxu0 %v4669
      %4745 = vmatpush1.msra.mxu0 %v4668
      %4746 = vmatprep.subr.mxu0 %v4671
      %4747 = vmatpush1.msra.mxu0 %v4670
      %4748 = vmatprep.subr.mxu0 %v4673
      %4749 = vmatpush1.msra.mxu0 %v4672
      %4750 = vmatprep.subr.mxu0 %v4675
      %4751 = vmatpush1.msra.mxu0 %v4674
      %4752 = vmatprep.subr.mxu0 %v4677
      %4753 = vmatpush1.msra.mxu0 %v4676
      %4754 = vmatprep.subr.mxu0 %v4679
      %4755 = vmatpush1.msra.mxu0 %v4678
      %4756 = vmatprep.subr.mxu0 %v4681
      %4757 = vmatpush1.msra.mxu0 %v4680
      %4758 = vmatprep.subr.mxu0 %v4683
      %4759 = vmatpush1.msra.mxu0 %v4682
      %4760 = vmatprep.subr.mxu0 %v4685
      %4761 = vmatpush1.msra.mxu0 %v4684
      %4762 = vmatprep.subr.mxu0 %v4687
      %4763 = vmatpush1.msra.mxu0 %v4686
      %4764 = vmatprep.subr.mxu0 %v4689
      %4765 = vmatpush1.msra.mxu0 %v4688
      %4766 = vmatprep.subr.mxu0 %v4691
      %4767 = vmatpush1.msra.mxu0 %v4690
      %4768 = vmatprep.subr.mxu0 %v4693
      %4769 = vmatpush1.msra.mxu0 %v4692
      %4770 = vmatprep.subr.mxu0 %v4695
      %4771 = vmatpush1.msra.mxu0 %v4694
      %4772 = vmatprep.subr.mxu0 %v4697
      %4773 = vmatpush1.msra.mxu0 %v4696
      %4774 = vmatprep.subr.mxu0 %v4699
      %4775 = vmatpush1.msra.mxu0 %v4698
      %4776 = vmatprep.subr.mxu0 %v4701
      %4777 = vmatpush1.msra.mxu0 %v4700
      %4778 = vmatprep.subr.mxu0 %v4703
      %4779 = vmatpush1.msra.mxu0 %v4702
      %4780 = vmatprep.subr.mxu0 %v4705
      %4781 = vmatpush1.msra.mxu0 %v4704
      %4782 = vmatprep.subr.mxu0 %v4707
      %4783 = vmatpush1.msra.mxu0 %v4706
      %4784 = vmatprep.subr.mxu0 %v4709
      %4785 = vmatpush1.msra.mxu0 %v4708
      %4786 = vmatprep.subr.mxu0 %v4711
      %4787 = vmatpush1.msra.mxu0 %v4710
      %4788 = vmatprep.subr.mxu0 %v4713
      %4789 = vmatpush1.msra.mxu0 %v4712
      %4790 = vmatprep.subr.mxu0 %v4715
      %4791 = vmatpush1.msra.mxu0 %v4714
      %4792 = vmatprep.subr.mxu0 %v4717
      %4793 = vmatpush1.msra.mxu0 %v4716
      %4794 = vmatprep.subr.mxu0 %v4719
      %4795 = vmatpush1.msra.mxu0 %v4718
      %4796 = vmatprep.subr.mxu0 %v4721
      %4797 = vmatpush1.msra.mxu0 %v4720
      %4798 = vmatprep.subr.mxu0 %v4723
      %4799 = vmatpush1.msra.mxu0 %v4722
      %4800 = vmatprep.subr.mxu0 %v4725
      %4801 = vmatpush1.msra.mxu0 %v4724
      %4802 = vmatprep.subr.mxu0 %v4727
      %4803 = vmatpush1.msra.mxu0 %v4726
      %4804 = vmatprep.subr.mxu0 %v4729
      %4805 = vmatpush1.msra.mxu0 %v4728
      %4806 = vmatprep.mubr.f32.mxu0 %v4659
      %4807 = vmatmul.mubr.f32.gmra.mrb[0].mxu0 %v4658
      %v4808 = vpop.f32.mrb[0].mxu0
      %v4809 = vadd.f32 %v4735, %v4808
      %v4810 = vpop.f32.mrb[0].mxu0
      %v4811 = vadd.f32 %v4739, %v4810
      %4812 = vmatprep.mubr.f32.mxu0 %v4661
      %4813 = vmatmul.mubr.f32.gmra.mrb[0].mxu0 %v4660
      %v4814 = vpop.f32.mrb[0].mxu0
      %v4815 = vadd.f32 %v4735, %v4814
      %v4816 = vpop.f32.mrb[0].mxu0
      %v4817 = vadd.f32 %v4739, %v4816
      %4818 = vmatprep.mubr.f32.mxu0 %v4663
      %4819 = vmatmul.mubr.f32.gmra.mrb[0].mxu0 %v4662
      %v4820 = vpop.f32.mrb[0].mxu0
      %v4821 = vadd.f32 %v4735, %v4820
      %v4822 = vpop.f32.mrb[0].mxu0
      %v4823 = vadd.f32 %v4739, %v4822
      %4824 = vmatprep.mubr.f32.mxu0 %v4665
      %4825 = vmatmul.mubr.f32.gmra.mrb[0].mxu0 %v4664
      %v4826 = vpop.f32.mrb[0].mxu0
      %v4827 = vadd.f32 %v4735, %v4826
      %v4828 = vpop.f32.mrb[0].mxu0
      %v4829 = vadd.f32 %v4739, %v4828
      %4830 = vdwg.mxu0
      %v4831 = vadd.f32 %v642, %v4809
      %v4832 = vadd.f32 %v643, %v4811
      %v4833 = vadd.f32 %v644, %v4815
      %v4834 = vadd.f32 %v645, %v4817
      %v4835 = vadd.f32 %v646, %v4821
      %v4836 = vadd.f32 %v647, %v4823
      %v4837 = vadd.f32 %v648, %v4827
      %v4838 = vadd.f32 %v649, %v4829
      %v4839 = vld [vmem:[%s591] sm:$0x3]
      %v4840 = vld [vmem:[%s595] sm:$0x3]
      %v4841 = vadd.f32 %v4831, %v4832
      %4842 = vadd.xlane.f32.xlu0 %v4841
      %v4843 = vpop.xlane.xlu0 %4842
      %v4844 = vadd.f32 %v4833, %v4834
      %4845 = vadd.xlane.f32.xlu0 %v4844
      %v4846 = vpop.xlane.xlu0 %4845
      %v4847 = vadd.f32 %v4835, %v4836
      %4848 = vadd.xlane.f32.xlu0 %v4847
      %v4849 = vpop.xlane.xlu0 %4848
      %v4850 = vadd.f32 %v4837, %v4838
      %4851 = vadd.xlane.f32.xlu0 %v4850
      %v4852 = vpop.xlane.xlu0 %4851
      %v4853 = vrcp.pop 256.0
      %v4854 = vmul.f32 %v4843, %v4853
      %v4855 = vmul.f32 %v4846, %v4853
      %v4856 = vmul.f32 %v4849, %v4853
      %v4857 = vmul.f32 %v4852, %v4853
      %v4858 = vsub.f32 %v4831, %v4854
      %v4859 = vsub.f32 %v4832, %v4854
      %v4860 = vsub.f32 %v4833, %v4855
      %v4861 = vsub.f32 %v4834, %v4855
      %v4862 = vsub.f32 %v4835, %v4856
      %v4863 = vsub.f32 %v4836, %v4856
      %v4864 = vsub.f32 %v4837, %v4857
      %v4865 = vsub.f32 %v4838, %v4857
      %v4866 = vmul.f32 %v4858, %v4858
      %v4867 = vmul.f32 %v4859, %v4859
      %v4868 = vmul.f32 %v4860, %v4860
      %v4869 = vmul.f32 %v4861, %v4861
      %v4870 = vmul.f32 %v4862, %v4862
      %v4871 = vmul.f32 %v4863, %v4863
      %v4872 = vmul.f32 %v4864, %v4864
      %v4873 = vmul.f32 %v4865, %v4865
      %v4874 = vadd.f32 %v4866, %v4867
      %4875 = vadd.xlane.f32.xlu0 %v4874
      %v4876 = vpop.xlane.xlu0 %4875
      %v4877 = vadd.f32 %v4868, %v4869
      %4878 = vadd.xlane.f32.xlu0 %v4877
      %v4879 = vpop.xlane.xlu0 %4878
      %v4880 = vadd.f32 %v4870, %v4871
      %4881 = vadd.xlane.f32.xlu0 %v4880
      %v4882 = vpop.xlane.xlu0 %4881
      %v4883 = vadd.f32 %v4872, %v4873
      %4884 = vadd.xlane.f32.xlu0 %v4883
      %v4885 = vpop.xlane.xlu0 %4884
      %v4886 = vmul.f32 %v4876, %v4853
      %v4887 = vmul.f32 %v4879, %v4853
      %v4888 = vmul.f32 %v4882, %v4853
      %v4889 = vmul.f32 %v4885, %v4853
      %v4890 = vadd.f32 %v4886, 1e-05
      %v4891 = vadd.f32 %v4887, 1e-05
      %v4892 = vadd.f32 %v4888, 1e-05
      %v4893 = vadd.f32 %v4889, 1e-05
      %v4894 = vrsqrt.pop %v4890
      %v4895 = vrsqrt.pop %v4891
      %v4896 = vrsqrt.pop %v4892
      %v4897 = vrsqrt.pop %v4893
      %v4898 = vmul.f32 %v4858, %v4894
      %v4899 = vmul.f32 %v4859, %v4894
      %v4900 = vmul.f32 %v4860, %v4895
      %v4901 = vmul.f32 %v4861, %v4895
      %v4902 = vmul.f32 %v4862, %v4896
      %v4903 = vmul.f32 %v4863, %v4896
      %v4904 = vmul.f32 %v4864, %v4897
      %v4905 = vmul.f32 %v4865, %v4897
      %v4907 = vlaneseq
      %v4908 = vshrl.u32 %v4907, 7
      %v4909 = vsub.s32 0, %v4908
      %v4910 = vrot.slane %v4839, %v4909
      %v4911 = vlaneseq
      %v4912 = vshrl.u32 %v4911, 7
      %v4913 = vsub.s32 1, %v4912
      %v4914 = vrot.slane %v4839, %v4913
      %v4917 = vmul.f32 %v4898, %v4910
      %v4918 = vmul.f32 %v4899, %v4914
      %v4919 = vmul.f32 %v4900, %v4910
      %v4920 = vmul.f32 %v4901, %v4914
      %v4921 = vmul.f32 %v4902, %v4910
      %v4922 = vmul.f32 %v4903, %v4914
      %v4923 = vmul.f32 %v4904, %v4910
      %v4924 = vmul.f32 %v4905, %v4914
      %v4926 = vlaneseq
      %v4927 = vshrl.u32 %v4926, 7
      %v4928 = vsub.s32 0, %v4927
      %v4929 = vrot.slane %v4840, %v4928
      %v4930 = vlaneseq
      %v4931 = vshrl.u32 %v4930, 7
      %v4932 = vsub.s32 1, %v4931
      %v4933 = vrot.slane %v4840, %v4932
      %v4936 = vadd.f32 %v4917, %v4929
      %v4937 = vadd.f32 %v4918, %v4933
      %v4938 = vadd.f32 %v4919, %v4929
      %v4939 = vadd.f32 %v4920, %v4933
      %v4940 = vadd.f32 %v4921, %v4929
      %v4941 = vadd.f32 %v4922, %v4933
      %v4942 = vadd.f32 %v4923, %v4929
      %v4943 = vadd.f32 %v4924, %v4933
      %v4944 = vld [vmem:[%s600] sm:$0xff]
      %v4945 = vld [vmem:[%s600 + $0x8] sm:$0xff]
      %v4946 = vld [vmem:[%s600 + $0x10] sm:$0xff]
      %v4947 = vld [vmem:[%s600 + $0x18] sm:$0xff]
      %v4948 = vld [vmem:[%s600 + $0x20] sm:$0xff]
      %v4949 = vld [vmem:[%s600 + $0x28] sm:$0xff]
      %v4950 = vld [vmem:[%s600 + $0x30] sm:$0xff]
      %v4951 = vld [vmem:[%s600 + $0x38] sm:$0xff]
      %v4952 = vld [vmem:[%s600 + $0x40] sm:$0xff]
      %v4953 = vld [vmem:[%s600 + $0x48] sm:$0xff]
      %v4954 = vld [vmem:[%s600 + $0x50] sm:$0xff]
      %v4955 = vld [vmem:[%s600 + $0x58] sm:$0xff]
      %v4956 = vld [vmem:[%s600 + $0x60] sm:$0xff]
      %v4957 = vld [vmem:[%s600 + $0x68] sm:$0xff]
      %v4958 = vld [vmem:[%s600 + $0x70] sm:$0xff]
      %v4959 = vld [vmem:[%s600 + $0x78] sm:$0xff]
      %v4960 = vld [vmem:[%s600 + $0x80] sm:$0xff]
      %v4961 = vld [vmem:[%s600 + $0x88] sm:$0xff]
      %v4962 = vld [vmem:[%s600 + $0x90] sm:$0xff]
      %v4963 = vld [vmem:[%s600 + $0x98] sm:$0xff]
      %v4964 = vld [vmem:[%s600 + $0xa0] sm:$0xff]
      %v4965 = vld [vmem:[%s600 + $0xa8] sm:$0xff]
      %v4966 = vld [vmem:[%s600 + $0xb0] sm:$0xff]
      %v4967 = vld [vmem:[%s600 + $0xb8] sm:$0xff]
      %v4968 = vld [vmem:[%s600 + $0xc0] sm:$0xff]
      %v4969 = vld [vmem:[%s600 + $0xc8] sm:$0xff]
      %v4970 = vld [vmem:[%s600 + $0xd0] sm:$0xff]
      %v4971 = vld [vmem:[%s600 + $0xd8] sm:$0xff]
      %v4972 = vld [vmem:[%s600 + $0xe0] sm:$0xff]
      %v4973 = vld [vmem:[%s600 + $0xe8] sm:$0xff]
      %v4974 = vld [vmem:[%s600 + $0xf0] sm:$0xff]
      %v4975 = vld [vmem:[%s600 + $0xf8] sm:$0xff]
      %v4976 = vld [vmem:[%s600 + $0x100] sm:$0xff]
      %v4977 = vld [vmem:[%s600 + $0x108] sm:$0xff]
      %v4978 = vld [vmem:[%s600 + $0x110] sm:$0xff]
      %v4979 = vld [vmem:[%s600 + $0x118] sm:$0xff]
      %v4980 = vld [vmem:[%s600 + $0x120] sm:$0xff]
      %v4981 = vld [vmem:[%s600 + $0x128] sm:$0xff]
      %v4982 = vld [vmem:[%s600 + $0x130] sm:$0xff]
      %v4983 = vld [vmem:[%s600 + $0x138] sm:$0xff]
      %v4984 = vld [vmem:[%s600 + $0x140] sm:$0xff]
      %v4985 = vld [vmem:[%s600 + $0x148] sm:$0xff]
      %v4986 = vld [vmem:[%s600 + $0x150] sm:$0xff]
      %v4987 = vld [vmem:[%s600 + $0x158] sm:$0xff]
      %v4988 = vld [vmem:[%s600 + $0x160] sm:$0xff]
      %v4989 = vld [vmem:[%s600 + $0x168] sm:$0xff]
      %v4990 = vld [vmem:[%s600 + $0x170] sm:$0xff]
      %v4991 = vld [vmem:[%s600 + $0x178] sm:$0xff]
      %v4992 = vld [vmem:[%s600 + $0x180] sm:$0xff]
      %v4993 = vld [vmem:[%s600 + $0x188] sm:$0xff]
      %v4994 = vld [vmem:[%s600 + $0x190] sm:$0xff]
      %v4995 = vld [vmem:[%s600 + $0x198] sm:$0xff]
      %v4996 = vld [vmem:[%s600 + $0x1a0] sm:$0xff]
      %v4997 = vld [vmem:[%s600 + $0x1a8] sm:$0xff]
      %v4998 = vld [vmem:[%s600 + $0x1b0] sm:$0xff]
      %v4999 = vld [vmem:[%s600 + $0x1b8] sm:$0xff]
      %v5000 = vld [vmem:[%s600 + $0x1c0] sm:$0xff]
      %v5001 = vld [vmem:[%s600 + $0x1c8] sm:$0xff]
      %v5002 = vld [vmem:[%s600 + $0x1d0] sm:$0xff]
      %v5003 = vld [vmem:[%s600 + $0x1d8] sm:$0xff]
      %v5004 = vld [vmem:[%s600 + $0x1e0] sm:$0xff]
      %v5005 = vld [vmem:[%s600 + $0x1e8] sm:$0xff]
      %v5006 = vld [vmem:[%s600 + $0x1f0] sm:$0xff]
      %v5007 = vld [vmem:[%s600 + $0x1f8] sm:$0xff]
      %v5008 = vld [vmem:[%s600 + $0x200] sm:$0xff]
      %v5009 = vld [vmem:[%s600 + $0x208] sm:$0xff]
      %v5010 = vld [vmem:[%s600 + $0x210] sm:$0xff]
      %v5011 = vld [vmem:[%s600 + $0x218] sm:$0xff]
      %v5012 = vld [vmem:[%s600 + $0x220] sm:$0xff]
      %v5013 = vld [vmem:[%s600 + $0x228] sm:$0xff]
      %v5014 = vld [vmem:[%s600 + $0x230] sm:$0xff]
      %v5015 = vld [vmem:[%s600 + $0x238] sm:$0xff]
      %v5016 = vld [vmem:[%s600 + $0x240] sm:$0xff]
      %v5017 = vld [vmem:[%s600 + $0x248] sm:$0xff]
      %v5018 = vld [vmem:[%s600 + $0x250] sm:$0xff]
      %v5019 = vld [vmem:[%s600 + $0x258] sm:$0xff]
      %v5020 = vld [vmem:[%s600 + $0x260] sm:$0xff]
      %v5021 = vld [vmem:[%s600 + $0x268] sm:$0xff]
      %v5022 = vld [vmem:[%s600 + $0x270] sm:$0xff]
      %v5023 = vld [vmem:[%s600 + $0x278] sm:$0xff]
      %v5024 = vld [vmem:[%s600 + $0x280] sm:$0xff]
      %v5025 = vld [vmem:[%s600 + $0x288] sm:$0xff]
      %v5026 = vld [vmem:[%s600 + $0x290] sm:$0xff]
      %v5027 = vld [vmem:[%s600 + $0x298] sm:$0xff]
      %v5028 = vld [vmem:[%s600 + $0x2a0] sm:$0xff]
      %v5029 = vld [vmem:[%s600 + $0x2a8] sm:$0xff]
      %v5030 = vld [vmem:[%s600 + $0x2b0] sm:$0xff]
      %v5031 = vld [vmem:[%s600 + $0x2b8] sm:$0xff]
      %v5032 = vld [vmem:[%s600 + $0x2c0] sm:$0xff]
      %v5033 = vld [vmem:[%s600 + $0x2c8] sm:$0xff]
      %v5034 = vld [vmem:[%s600 + $0x2d0] sm:$0xff]
      %v5035 = vld [vmem:[%s600 + $0x2d8] sm:$0xff]
      %v5036 = vld [vmem:[%s600 + $0x2e0] sm:$0xff]
      %v5037 = vld [vmem:[%s600 + $0x2e8] sm:$0xff]
      %v5038 = vld [vmem:[%s600 + $0x2f0] sm:$0xff]
      %v5039 = vld [vmem:[%s600 + $0x2f8] sm:$0xff]
      %v5040 = vld [vmem:[%s600 + $0x300] sm:$0xff]
      %v5041 = vld [vmem:[%s600 + $0x308] sm:$0xff]
      %v5042 = vld [vmem:[%s600 + $0x310] sm:$0xff]
      %v5043 = vld [vmem:[%s600 + $0x318] sm:$0xff]
      %v5044 = vld [vmem:[%s600 + $0x320] sm:$0xff]
      %v5045 = vld [vmem:[%s600 + $0x328] sm:$0xff]
      %v5046 = vld [vmem:[%s600 + $0x330] sm:$0xff]
      %v5047 = vld [vmem:[%s600 + $0x338] sm:$0xff]
      %v5048 = vld [vmem:[%s600 + $0x340] sm:$0xff]
      %v5049 = vld [vmem:[%s600 + $0x348] sm:$0xff]
      %v5050 = vld [vmem:[%s600 + $0x350] sm:$0xff]
      %v5051 = vld [vmem:[%s600 + $0x358] sm:$0xff]
      %v5052 = vld [vmem:[%s600 + $0x360] sm:$0xff]
      %v5053 = vld [vmem:[%s600 + $0x368] sm:$0xff]
      %v5054 = vld [vmem:[%s600 + $0x370] sm:$0xff]
      %v5055 = vld [vmem:[%s600 + $0x378] sm:$0xff]
      %v5056 = vld [vmem:[%s600 + $0x380] sm:$0xff]
      %v5057 = vld [vmem:[%s600 + $0x388] sm:$0xff]
      %v5058 = vld [vmem:[%s600 + $0x390] sm:$0xff]
      %v5059 = vld [vmem:[%s600 + $0x398] sm:$0xff]
      %v5060 = vld [vmem:[%s600 + $0x3a0] sm:$0xff]
      %v5061 = vld [vmem:[%s600 + $0x3a8] sm:$0xff]
      %v5062 = vld [vmem:[%s600 + $0x3b0] sm:$0xff]
      %v5063 = vld [vmem:[%s600 + $0x3b8] sm:$0xff]
      %v5064 = vld [vmem:[%s600 + $0x3c0] sm:$0xff]
      %v5065 = vld [vmem:[%s600 + $0x3c8] sm:$0xff]
      %v5066 = vld [vmem:[%s600 + $0x3d0] sm:$0xff]
      %v5067 = vld [vmem:[%s600 + $0x3d8] sm:$0xff]
      %v5068 = vld [vmem:[%s600 + $0x3e0] sm:$0xff]
      %v5069 = vld [vmem:[%s600 + $0x3e8] sm:$0xff]
      %v5070 = vld [vmem:[%s600 + $0x3f0] sm:$0xff]
      %v5071 = vld [vmem:[%s600 + $0x3f8] sm:$0xff]
      %v5072 = vld [vmem:[%s604] sm:$0xf]
      %v5074 = vlaneseq
      %v5075 = vshrl.u32 %v5074, 7
      %v5076 = vsub.s32 0, %v5075
      %v5077 = vrot.slane %v5072, %v5076
      %v5078 = vlaneseq
      %v5079 = vshrl.u32 %v5078, 7
      %v5080 = vsub.s32 1, %v5079
      %v5081 = vrot.slane %v5072, %v5080
      %v5082 = vlaneseq
      %v5083 = vshrl.u32 %v5082, 7
      %v5084 = vsub.s32 2, %v5083
      %v5085 = vrot.slane %v5072, %v5084
      %v5086 = vlaneseq
      %v5087 = vshrl.u32 %v5086, 7
      %v5088 = vsub.s32 3, %v5087
      %v5089 = vrot.slane %v5072, %v5088
      %5094 = vmatprep.subr.mxu0 %v4945
      %5095 = vmatpush1.msra.mxu0 %v4944
      %5096 = vmatprep.subr.mxu0 %v4949
      %5097 = vmatpush1.msra.mxu0 %v4948
      %5098 = vmatprep.subr.mxu0 %v4953
      %5099 = vmatpush1.msra.mxu0 %v4952
      %5100 = vmatprep.subr.mxu0 %v4957
      %5101 = vmatpush1.msra.mxu0 %v4956
      %5102 = vmatprep.subr.mxu0 %v4961
      %5103 = vmatpush1.msra.mxu0 %v4960
      %5104 = vmatprep.subr.mxu0 %v4965
      %5105 = vmatpush1.msra.mxu0 %v4964
      %5106 = vmatprep.subr.mxu0 %v4969
      %5107 = vmatpush1.msra.mxu0 %v4968
      %5108 = vmatprep.subr.mxu0 %v4973
      %5109 = vmatpush1.msra.mxu0 %v4972
      %5110 = vmatprep.subr.mxu0 %v4977
      %5111 = vmatpush1.msra.mxu0 %v4976
      %5112 = vmatprep.subr.mxu0 %v4981
      %5113 = vmatpush1.msra.mxu0 %v4980
      %5114 = vmatprep.subr.mxu0 %v4985
      %5115 = vmatpush1.msra.mxu0 %v4984
      %5116 = vmatprep.subr.mxu0 %v4989
      %5117 = vmatpush1.msra.mxu0 %v4988
      %5118 = vmatprep.subr.mxu0 %v4993
      %5119 = vmatpush1.msra.mxu0 %v4992
      %5120 = vmatprep.subr.mxu0 %v4997
      %5121 = vmatpush1.msra.mxu0 %v4996
      %5122 = vmatprep.subr.mxu0 %v5001
      %5123 = vmatpush1.msra.mxu0 %v5000
      %5124 = vmatprep.subr.mxu0 %v5005
      %5125 = vmatpush1.msra.mxu0 %v5004
      %5126 = vmatprep.subr.mxu0 %v5009
      %5127 = vmatpush1.msra.mxu0 %v5008
      %5128 = vmatprep.subr.mxu0 %v5013
      %5129 = vmatpush1.msra.mxu0 %v5012
      %5130 = vmatprep.subr.mxu0 %v5017
      %5131 = vmatpush1.msra.mxu0 %v5016
      %5132 = vmatprep.subr.mxu0 %v5021
      %5133 = vmatpush1.msra.mxu0 %v5020
      %5134 = vmatprep.subr.mxu0 %v5025
      %5135 = vmatpush1.msra.mxu0 %v5024
      %5136 = vmatprep.subr.mxu0 %v5029
      %5137 = vmatpush1.msra.mxu0 %v5028
      %5138 = vmatprep.subr.mxu0 %v5033
      %5139 = vmatpush1.msra.mxu0 %v5032
      %5140 = vmatprep.subr.mxu0 %v5037
      %5141 = vmatpush1.msra.mxu0 %v5036
      %5142 = vmatprep.subr.mxu0 %v5041
      %5143 = vmatpush1.msra.mxu0 %v5040
      %5144 = vmatprep.subr.mxu0 %v5045
      %5145 = vmatpush1.msra.mxu0 %v5044
      %5146 = vmatprep.subr.mxu0 %v5049
      %5147 = vmatpush1.msra.mxu0 %v5048
      %5148 = vmatprep.subr.mxu0 %v5053
      %5149 = vmatpush1.msra.mxu0 %v5052
      %5150 = vmatprep.subr.mxu0 %v5057
      %5151 = vmatpush1.msra.mxu0 %v5056
      %5152 = vmatprep.subr.mxu0 %v5061
      %5153 = vmatpush1.msra.mxu0 %v5060
      %5154 = vmatprep.subr.mxu0 %v5065
      %5155 = vmatpush1.msra.mxu0 %v5064
      %5156 = vmatprep.subr.mxu0 %v5069
      %5157 = vmatpush1.msra.mxu0 %v5068
      %5158 = vmatprep.mubr.f32.mxu0 %v4937
      %5159 = vmatmul.mubr.f32.gmra.mrb[0].mxu0 %v4936
      %v5160 = vpop.f32.mrb[0].mxu0
      %v5161 = vadd.f32 %v5077, %v5160
      %v5162 = vpop.f32.mrb[0].mxu0
      %v5163 = vadd.f32 %v5081, %v5162
      %5164 = vmatprep.mubr.f32.mxu0 %v4939
      %5165 = vmatmul.mubr.f32.gmra.mrb[0].mxu0 %v4938
      %v5166 = vpop.f32.mrb[0].mxu0
      %v5167 = vadd.f32 %v5077, %v5166
      %v5168 = vpop.f32.mrb[0].mxu0
      %v5169 = vadd.f32 %v5081, %v5168
      %5170 = vmatprep.mubr.f32.mxu0 %v4941
      %5171 = vmatmul.mubr.f32.gmra.mrb[0].mxu0 %v4940
      %v5172 = vpop.f32.mrb[0].mxu0
      %v5173 = vadd.f32 %v5077, %v5172
      %v5174 = vpop.f32.mrb[0].mxu0
      %v5175 = vadd.f32 %v5081, %v5174
      %5176 = vmatprep.mubr.f32.mxu0 %v4943
      %5177 = vmatmul.mubr.f32.gmra.mrb[0].mxu0 %v4942
      %v5178 = vpop.f32.mrb[0].mxu0
      %v5179 = vadd.f32 %v5077, %v5178
      %v5180 = vpop.f32.mrb[0].mxu0
      %v5181 = vadd.f32 %v5081, %v5180
      %5182 = vdwg.mxu0
      %5183 = vmatprep.subr.mxu0 %v4947
      %5184 = vmatpush1.msra.mxu0 %v4946
      %5185 = vmatprep.subr.mxu0 %v4951
      %5186 = vmatpush1.msra.mxu0 %v4950
      %5187 = vmatprep.subr.mxu0 %v4955
      %5188 = vmatpush1.msra.mxu0 %v4954
      %5189 = vmatprep.subr.mxu0 %v4959
      %5190 = vmatpush1.msra.mxu0 %v4958
      %5191 = vmatprep.subr.mxu0 %v4963
      %5192 = vmatpush1.msra.mxu0 %v4962
      %5193 = vmatprep.subr.mxu0 %v4967
      %5194 = vmatpush1.msra.mxu0 %v4966
      %5195 = vmatprep.subr.mxu0 %v4971
      %5196 = vmatpush1.msra.mxu0 %v4970
      %5197 = vmatprep.subr.mxu0 %v4975
      %5198 = vmatpush1.msra.mxu0 %v4974
      %5199 = vmatprep.subr.mxu0 %v4979
      %5200 = vmatpush1.msra.mxu0 %v4978
      %5201 = vmatprep.subr.mxu0 %v4983
      %5202 = vmatpush1.msra.mxu0 %v4982
      %5203 = vmatprep.subr.mxu0 %v4987
      %5204 = vmatpush1.msra.mxu0 %v4986
      %5205 = vmatprep.subr.mxu0 %v4991
      %5206 = vmatpush1.msra.mxu0 %v4990
      %5207 = vmatprep.subr.mxu0 %v4995
      %5208 = vmatpush1.msra.mxu0 %v4994
      %5209 = vmatprep.subr.mxu0 %v4999
      %5210 = vmatpush1.msra.mxu0 %v4998
      %5211 = vmatprep.subr.mxu0 %v5003
      %5212 = vmatpush1.msra.mxu0 %v5002
      %5213 = vmatprep.subr.mxu0 %v5007
      %5214 = vmatpush1.msra.mxu0 %v5006
      %5215 = vmatprep.subr.mxu0 %v5011
      %5216 = vmatpush1.msra.mxu0 %v5010
      %5217 = vmatprep.subr.mxu0 %v5015
      %5218 = vmatpush1.msra.mxu0 %v5014
      %5219 = vmatprep.subr.mxu0 %v5019
      %5220 = vmatpush1.msra.mxu0 %v5018
      %5221 = vmatprep.subr.mxu0 %v5023
      %5222 = vmatpush1.msra.mxu0 %v5022
      %5223 = vmatprep.subr.mxu0 %v5027
      %5224 = vmatpush1.msra.mxu0 %v5026
      %5225 = vmatprep.subr.mxu0 %v5031
      %5226 = vmatpush1.msra.mxu0 %v5030
      %5227 = vmatprep.subr.mxu0 %v5035
      %5228 = vmatpush1.msra.mxu0 %v5034
      %5229 = vmatprep.subr.mxu0 %v5039
      %5230 = vmatpush1.msra.mxu0 %v5038
      %5231 = vmatprep.subr.mxu0 %v5043
      %5232 = vmatpush1.msra.mxu0 %v5042
      %5233 = vmatprep.subr.mxu0 %v5047
      %5234 = vmatpush1.msra.mxu0 %v5046
      %5235 = vmatprep.subr.mxu0 %v5051
      %5236 = vmatpush1.msra.mxu0 %v5050
      %5237 = vmatprep.subr.mxu0 %v5055
      %5238 = vmatpush1.msra.mxu0 %v5054
      %5239 = vmatprep.subr.mxu0 %v5059
      %5240 = vmatpush1.msra.mxu0 %v5058
      %5241 = vmatprep.subr.mxu0 %v5063
      %5242 = vmatpush1.msra.mxu0 %v5062
      %5243 = vmatprep.subr.mxu0 %v5067
      %5244 = vmatpush1.msra.mxu0 %v5066
      %5245 = vmatprep.subr.mxu0 %v5071
      %5246 = vmatpush1.msra.mxu0 %v5070
      %5247 = vmatprep.mubr.f32.mxu0 %v4937
      %5248 = vmatmul.mubr.f32.gmra.mrb[0].mxu0 %v4936
      %v5249 = vpop.f32.mrb[0].mxu0
      %v5250 = vadd.f32 %v5085, %v5249
      %v5251 = vpop.f32.mrb[0].mxu0
      %v5252 = vadd.f32 %v5089, %v5251
      %5253 = vmatprep.mubr.f32.mxu0 %v4939
      %5254 = vmatmul.mubr.f32.gmra.mrb[0].mxu0 %v4938
      %v5255 = vpop.f32.mrb[0].mxu0
      %v5256 = vadd.f32 %v5085, %v5255
      %v5257 = vpop.f32.mrb[0].mxu0
      %v5258 = vadd.f32 %v5089, %v5257
      %5259 = vmatprep.mubr.f32.mxu0 %v4941
      %5260 = vmatmul.mubr.f32.gmra.mrb[0].mxu0 %v4940
      %v5261 = vpop.f32.mrb[0].mxu0
      %v5262 = vadd.f32 %v5085, %v5261
      %v5263 = vpop.f32.mrb[0].mxu0
      %v5264 = vadd.f32 %v5089, %v5263
      %5265 = vmatprep.mubr.f32.mxu0 %v4943
      %5266 = vmatmul.mubr.f32.gmra.mrb[0].mxu0 %v4942
      %v5267 = vpop.f32.mrb[0].mxu0
      %v5268 = vadd.f32 %v5085, %v5267
      %v5269 = vpop.f32.mrb[0].mxu0
      %v5270 = vadd.f32 %v5089, %v5269
      %5271 = vdwg.mxu0
      %v5272 = vmax.f32 %v5161, 0.0
      %v5273 = vmax.f32 %v5163, 0.0
      %v5274 = vmax.f32 %v5250, 0.0
      %v5275 = vmax.f32 %v5252, 0.0
      %v5276 = vmax.f32 %v5167, 0.0
      %v5277 = vmax.f32 %v5169, 0.0
      %v5278 = vmax.f32 %v5256, 0.0
      %v5279 = vmax.f32 %v5258, 0.0
      %v5280 = vmax.f32 %v5173, 0.0
      %v5281 = vmax.f32 %v5175, 0.0
      %v5282 = vmax.f32 %v5262, 0.0
      %v5283 = vmax.f32 %v5264, 0.0
      %v5284 = vmax.f32 %v5179, 0.0
      %v5285 = vmax.f32 %v5181, 0.0
      %v5286 = vmax.f32 %v5268, 0.0
      %v5287 = vmax.f32 %v5270, 0.0
      %v5288 = vld [vmem:[%s609] sm:$0xff]
      %v5289 = vld [vmem:[%s609 + $0x8] sm:$0xff]
      %v5290 = vld [vmem:[%s609 + $0x10] sm:$0xff]
      %v5291 = vld [vmem:[%s609 + $0x18] sm:$0xff]
      %v5292 = vld [vmem:[%s609 + $0x20] sm:$0xff]
      %v5293 = vld [vmem:[%s609 + $0x28] sm:$0xff]
      %v5294 = vld [vmem:[%s609 + $0x30] sm:$0xff]
      %v5295 = vld [vmem:[%s609 + $0x38] sm:$0xff]
      %v5296 = vld [vmem:[%s609 + $0x40] sm:$0xff]
      %v5297 = vld [vmem:[%s609 + $0x48] sm:$0xff]
      %v5298 = vld [vmem:[%s609 + $0x50] sm:$0xff]
      %v5299 = vld [vmem:[%s609 + $0x58] sm:$0xff]
      %v5300 = vld [vmem:[%s609 + $0x60] sm:$0xff]
      %v5301 = vld [vmem:[%s609 + $0x68] sm:$0xff]
      %v5302 = vld [vmem:[%s609 + $0x70] sm:$0xff]
      %v5303 = vld [vmem:[%s609 + $0x78] sm:$0xff]
      %v5304 = vld [vmem:[%s609 + $0x80] sm:$0xff]
      %v5305 = vld [vmem:[%s609 + $0x88] sm:$0xff]
      %v5306 = vld [vmem:[%s609 + $0x90] sm:$0xff]
      %v5307 = vld [vmem:[%s609 + $0x98] sm:$0xff]
      %v5308 = vld [vmem:[%s609 + $0xa0] sm:$0xff]
      %v5309 = vld [vmem:[%s609 + $0xa8] sm:$0xff]
      %v5310 = vld [vmem:[%s609 + $0xb0] sm:$0xff]
      %v5311 = vld [vmem:[%s609 + $0xb8] sm:$0xff]
      %v5312 = vld [vmem:[%s609 + $0xc0] sm:$0xff]
      %v5313 = vld [vmem:[%s609 + $0xc8] sm:$0xff]
      %v5314 = vld [vmem:[%s609 + $0xd0] sm:$0xff]
      %v5315 = vld [vmem:[%s609 + $0xd8] sm:$0xff]
      %v5316 = vld [vmem:[%s609 + $0xe0] sm:$0xff]
      %v5317 = vld [vmem:[%s609 + $0xe8] sm:$0xff]
      %v5318 = vld [vmem:[%s609 + $0xf0] sm:$0xff]
      %v5319 = vld [vmem:[%s609 + $0xf8] sm:$0xff]
      %v5320 = vld [vmem:[%s609 + $0x100] sm:$0xff]
      %v5321 = vld [vmem:[%s609 + $0x108] sm:$0xff]
      %v5322 = vld [vmem:[%s609 + $0x110] sm:$0xff]
      %v5323 = vld [vmem:[%s609 + $0x118] sm:$0xff]
      %v5324 = vld [vmem:[%s609 + $0x120] sm:$0xff]
      %v5325 = vld [vmem:[%s609 + $0x128] sm:$0xff]
      %v5326 = vld [vmem:[%s609 + $0x130] sm:$0xff]
      %v5327 = vld [vmem:[%s609 + $0x138] sm:$0xff]
      %v5328 = vld [vmem:[%s609 + $0x140] sm:$0xff]
      %v5329 = vld [vmem:[%s609 + $0x148] sm:$0xff]
      %v5330 = vld [vmem:[%s609 + $0x150] sm:$0xff]
      %v5331 = vld [vmem:[%s609 + $0x158] sm:$0xff]
      %v5332 = vld [vmem:[%s609 + $0x160] sm:$0xff]
      %v5333 = vld [vmem:[%s609 + $0x168] sm:$0xff]
      %v5334 = vld [vmem:[%s609 + $0x170] sm:$0xff]
      %v5335 = vld [vmem:[%s609 + $0x178] sm:$0xff]
      %v5336 = vld [vmem:[%s609 + $0x180] sm:$0xff]
      %v5337 = vld [vmem:[%s609 + $0x188] sm:$0xff]
      %v5338 = vld [vmem:[%s609 + $0x190] sm:$0xff]
      %v5339 = vld [vmem:[%s609 + $0x198] sm:$0xff]
      %v5340 = vld [vmem:[%s609 + $0x1a0] sm:$0xff]
      %v5341 = vld [vmem:[%s609 + $0x1a8] sm:$0xff]
      %v5342 = vld [vmem:[%s609 + $0x1b0] sm:$0xff]
      %v5343 = vld [vmem:[%s609 + $0x1b8] sm:$0xff]
      %v5344 = vld [vmem:[%s609 + $0x1c0] sm:$0xff]
      %v5345 = vld [vmem:[%s609 + $0x1c8] sm:$0xff]
      %v5346 = vld [vmem:[%s609 + $0x1d0] sm:$0xff]
      %v5347 = vld [vmem:[%s609 + $0x1d8] sm:$0xff]
      %v5348 = vld [vmem:[%s609 + $0x1e0] sm:$0xff]
      %v5349 = vld [vmem:[%s609 + $0x1e8] sm:$0xff]
      %v5350 = vld [vmem:[%s609 + $0x1f0] sm:$0xff]
      %v5351 = vld [vmem:[%s609 + $0x1f8] sm:$0xff]
      %v5352 = vld [vmem:[%s609 + $0x200] sm:$0xff]
      %v5353 = vld [vmem:[%s609 + $0x208] sm:$0xff]
      %v5354 = vld [vmem:[%s609 + $0x210] sm:$0xff]
      %v5355 = vld [vmem:[%s609 + $0x218] sm:$0xff]
      %v5356 = vld [vmem:[%s609 + $0x220] sm:$0xff]
      %v5357 = vld [vmem:[%s609 + $0x228] sm:$0xff]
      %v5358 = vld [vmem:[%s609 + $0x230] sm:$0xff]
      %v5359 = vld [vmem:[%s609 + $0x238] sm:$0xff]
      %v5360 = vld [vmem:[%s609 + $0x240] sm:$0xff]
      %v5361 = vld [vmem:[%s609 + $0x248] sm:$0xff]
      %v5362 = vld [vmem:[%s609 + $0x250] sm:$0xff]
      %v5363 = vld [vmem:[%s609 + $0x258] sm:$0xff]
      %v5364 = vld [vmem:[%s609 + $0x260] sm:$0xff]
      %v5365 = vld [vmem:[%s609 + $0x268] sm:$0xff]
      %v5366 = vld [vmem:[%s609 + $0x270] sm:$0xff]
      %v5367 = vld [vmem:[%s609 + $0x278] sm:$0xff]
      %v5368 = vld [vmem:[%s609 + $0x280] sm:$0xff]
      %v5369 = vld [vmem:[%s609 + $0x288] sm:$0xff]
      %v5370 = vld [vmem:[%s609 + $0x290] sm:$0xff]
      %v5371 = vld [vmem:[%s609 + $0x298] sm:$0xff]
      %v5372 = vld [vmem:[%s609 + $0x2a0] sm:$0xff]
      %v5373 = vld [vmem:[%s609 + $0x2a8] sm:$0xff]
      %v5374 = vld [vmem:[%s609 + $0x2b0] sm:$0xff]
      %v5375 = vld [vmem:[%s609 + $0x2b8] sm:$0xff]
      %v5376 = vld [vmem:[%s609 + $0x2c0] sm:$0xff]
      %v5377 = vld [vmem:[%s609 + $0x2c8] sm:$0xff]
      %v5378 = vld [vmem:[%s609 + $0x2d0] sm:$0xff]
      %v5379 = vld [vmem:[%s609 + $0x2d8] sm:$0xff]
      %v5380 = vld [vmem:[%s609 + $0x2e0] sm:$0xff]
      %v5381 = vld [vmem:[%s609 + $0x2e8] sm:$0xff]
      %v5382 = vld [vmem:[%s609 + $0x2f0] sm:$0xff]
      %v5383 = vld [vmem:[%s609 + $0x2f8] sm:$0xff]
      %v5384 = vld [vmem:[%s609 + $0x300] sm:$0xff]
      %v5385 = vld [vmem:[%s609 + $0x308] sm:$0xff]
      %v5386 = vld [vmem:[%s609 + $0x310] sm:$0xff]
      %v5387 = vld [vmem:[%s609 + $0x318] sm:$0xff]
      %v5388 = vld [vmem:[%s609 + $0x320] sm:$0xff]
      %v5389 = vld [vmem:[%s609 + $0x328] sm:$0xff]
      %v5390 = vld [vmem:[%s609 + $0x330] sm:$0xff]
      %v5391 = vld [vmem:[%s609 + $0x338] sm:$0xff]
      %v5392 = vld [vmem:[%s609 + $0x340] sm:$0xff]
      %v5393 = vld [vmem:[%s609 + $0x348] sm:$0xff]
      %v5394 = vld [vmem:[%s609 + $0x350] sm:$0xff]
      %v5395 = vld [vmem:[%s609 + $0x358] sm:$0xff]
      %v5396 = vld [vmem:[%s609 + $0x360] sm:$0xff]
      %v5397 = vld [vmem:[%s609 + $0x368] sm:$0xff]
      %v5398 = vld [vmem:[%s609 + $0x370] sm:$0xff]
      %v5399 = vld [vmem:[%s609 + $0x378] sm:$0xff]
      %v5400 = vld [vmem:[%s609 + $0x380] sm:$0xff]
      %v5401 = vld [vmem:[%s609 + $0x388] sm:$0xff]
      %v5402 = vld [vmem:[%s609 + $0x390] sm:$0xff]
      %v5403 = vld [vmem:[%s609 + $0x398] sm:$0xff]
      %v5404 = vld [vmem:[%s609 + $0x3a0] sm:$0xff]
      %v5405 = vld [vmem:[%s609 + $0x3a8] sm:$0xff]
      %v5406 = vld [vmem:[%s609 + $0x3b0] sm:$0xff]
      %v5407 = vld [vmem:[%s609 + $0x3b8] sm:$0xff]
      %v5408 = vld [vmem:[%s609 + $0x3c0] sm:$0xff]
      %v5409 = vld [vmem:[%s609 + $0x3c8] sm:$0xff]
      %v5410 = vld [vmem:[%s609 + $0x3d0] sm:$0xff]
      %v5411 = vld [vmem:[%s609 + $0x3d8] sm:$0xff]
      %v5412 = vld [vmem:[%s609 + $0x3e0] sm:$0xff]
      %v5413 = vld [vmem:[%s609 + $0x3e8] sm:$0xff]
      %v5414 = vld [vmem:[%s609 + $0x3f0] sm:$0xff]
      %v5415 = vld [vmem:[%s609 + $0x3f8] sm:$0xff]
      %v5416 = vld [vmem:[%s613] sm:$0x3]
      %v5418 = vlaneseq
      %v5419 = vshrl.u32 %v5418, 7
      %v5420 = vsub.s32 0, %v5419
      %v5421 = vrot.slane %v5416, %v5420
      %v5422 = vlaneseq
      %v5423 = vshrl.u32 %v5422, 7
      %v5424 = vsub.s32 1, %v5423
      %v5425 = vrot.slane %v5416, %v5424
      %5428 = vmatprep.subr.mxu0 %v5289
      %5429 = vmatpush1.msra.mxu0 %v5288
      %5430 = vmatprep.subr.mxu0 %v5291
      %5431 = vmatpush1.msra.mxu0 %v5290
      %5432 = vmatprep.subr.mxu0 %v5293
      %5433 = vmatpush1.msra.mxu0 %v5292
      %5434 = vmatprep.subr.mxu0 %v5295
      %5435 = vmatpush1.msra.mxu0 %v5294
      %5436 = vmatprep.subr.mxu0 %v5297
      %5437 = vmatpush1.msra.mxu0 %v5296
      %5438 = vmatprep.subr.mxu0 %v5299
      %5439 = vmatpush1.msra.mxu0 %v5298
      %5440 = vmatprep.subr.mxu0 %v5301
      %5441 = vmatpush1.msra.mxu0 %v5300
      %5442 = vmatprep.subr.mxu0 %v5303
      %5443 = vmatpush1.msra.mxu0 %v5302
      %5444 = vmatprep.subr.mxu0 %v5305
      %5445 = vmatpush1.msra.mxu0 %v5304
      %5446 = vmatprep.subr.mxu0 %v5307
      %5447 = vmatpush1.msra.mxu0 %v5306
      %5448 = vmatprep.subr.mxu0 %v5309
      %5449 = vmatpush1.msra.mxu0 %v5308
      %5450 = vmatprep.subr.mxu0 %v5311
      %5451 = vmatpush1.msra.mxu0 %v5310
      %5452 = vmatprep.subr.mxu0 %v5313
      %5453 = vmatpush1.msra.mxu0 %v5312
      %5454 = vmatprep.subr.mxu0 %v5315
      %5455 = vmatpush1.msra.mxu0 %v5314
      %5456 = vmatprep.subr.mxu0 %v5317
      %5457 = vmatpush1.msra.mxu0 %v5316
      %5458 = vmatprep.subr.mxu0 %v5319
      %5459 = vmatpush1.msra.mxu0 %v5318
      %5460 = vmatprep.subr.mxu0 %v5321
      %5461 = vmatpush1.msra.mxu0 %v5320
      %5462 = vmatprep.subr.mxu0 %v5323
      %5463 = vmatpush1.msra.mxu0 %v5322
      %5464 = vmatprep.subr.mxu0 %v5325
      %5465 = vmatpush1.msra.mxu0 %v5324
      %5466 = vmatprep.subr.mxu0 %v5327
      %5467 = vmatpush1.msra.mxu0 %v5326
      %5468 = vmatprep.subr.mxu0 %v5329
      %5469 = vmatpush1.msra.mxu0 %v5328
      %5470 = vmatprep.subr.mxu0 %v5331
      %5471 = vmatpush1.msra.mxu0 %v5330
      %5472 = vmatprep.subr.mxu0 %v5333
      %5473 = vmatpush1.msra.mxu0 %v5332
      %5474 = vmatprep.subr.mxu0 %v5335
      %5475 = vmatpush1.msra.mxu0 %v5334
      %5476 = vmatprep.subr.mxu0 %v5337
      %5477 = vmatpush1.msra.mxu0 %v5336
      %5478 = vmatprep.subr.mxu0 %v5339
      %5479 = vmatpush1.msra.mxu0 %v5338
      %5480 = vmatprep.subr.mxu0 %v5341
      %5481 = vmatpush1.msra.mxu0 %v5340
      %5482 = vmatprep.subr.mxu0 %v5343
      %5483 = vmatpush1.msra.mxu0 %v5342
      %5484 = vmatprep.subr.mxu0 %v5345
      %5485 = vmatpush1.msra.mxu0 %v5344
      %5486 = vmatprep.subr.mxu0 %v5347
      %5487 = vmatpush1.msra.mxu0 %v5346
      %5488 = vmatprep.subr.mxu0 %v5349
      %5489 = vmatpush1.msra.mxu0 %v5348
      %5490 = vmatprep.subr.mxu0 %v5351
      %5491 = vmatpush1.msra.mxu0 %v5350
      %5492 = vmatprep.mubr.f32.mxu0 %v5273
      %5493 = vmatmul.mubr.f32.gmra.mrb[0].mxu0 %v5272
      %v5494 = vpop.f32.mrb[0].mxu0
      %v5495 = vadd.f32 %v5421, %v5494
      %v5496 = vpop.f32.mrb[0].mxu0
      %v5497 = vadd.f32 %v5425, %v5496
      %5498 = vmatprep.mubr.f32.mxu0 %v5277
      %5499 = vmatmul.mubr.f32.gmra.mrb[0].mxu0 %v5276
      %v5500 = vpop.f32.mrb[0].mxu0
      %v5501 = vadd.f32 %v5421, %v5500
      %v5502 = vpop.f32.mrb[0].mxu0
      %v5503 = vadd.f32 %v5425, %v5502
      %5504 = vmatprep.mubr.f32.mxu0 %v5281
      %5505 = vmatmul.mubr.f32.gmra.mrb[0].mxu0 %v5280
      %v5506 = vpop.f32.mrb[0].mxu0
      %v5507 = vadd.f32 %v5421, %v5506
      %v5508 = vpop.f32.mrb[0].mxu0
      %v5509 = vadd.f32 %v5425, %v5508
      %5510 = vmatprep.mubr.f32.mxu0 %v5285
      %5511 = vmatmul.mubr.f32.gmra.mrb[0].mxu0 %v5284
      %v5512 = vpop.f32.mrb[0].mxu0
      %v5513 = vadd.f32 %v5421, %v5512
      %v5514 = vpop.f32.mrb[0].mxu0
      %v5515 = vadd.f32 %v5425, %v5514
      %5516 = vdwg.mxu0
      %5517 = vmatprep.subr.mxu0 %v5353
      %5518 = vmatpush1.msra.mxu0 %v5352
      %5519 = vmatprep.subr.mxu0 %v5355
      %5520 = vmatpush1.msra.mxu0 %v5354
      %5521 = vmatprep.subr.mxu0 %v5357
      %5522 = vmatpush1.msra.mxu0 %v5356
      %5523 = vmatprep.subr.mxu0 %v5359
      %5524 = vmatpush1.msra.mxu0 %v5358
      %5525 = vmatprep.subr.mxu0 %v5361
      %5526 = vmatpush1.msra.mxu0 %v5360
      %5527 = vmatprep.subr.mxu0 %v5363
      %5528 = vmatpush1.msra.mxu0 %v5362
      %5529 = vmatprep.subr.mxu0 %v5365
      %5530 = vmatpush1.msra.mxu0 %v5364
      %5531 = vmatprep.subr.mxu0 %v5367
      %5532 = vmatpush1.msra.mxu0 %v5366
      %5533 = vmatprep.subr.mxu0 %v5369
      %5534 = vmatpush1.msra.mxu0 %v5368
      %5535 = vmatprep.subr.mxu0 %v5371
      %5536 = vmatpush1.msra.mxu0 %v5370
      %5537 = vmatprep.subr.mxu0 %v5373
      %5538 = vmatpush1.msra.mxu0 %v5372
      %5539 = vmatprep.subr.mxu0 %v5375
      %5540 = vmatpush1.msra.mxu0 %v5374
      %5541 = vmatprep.subr.mxu0 %v5377
      %5542 = vmatpush1.msra.mxu0 %v5376
      %5543 = vmatprep.subr.mxu0 %v5379
      %5544 = vmatpush1.msra.mxu0 %v5378
      %5545 = vmatprep.subr.mxu0 %v5381
      %5546 = vmatpush1.msra.mxu0 %v5380
      %5547 = vmatprep.subr.mxu0 %v5383
      %5548 = vmatpush1.msra.mxu0 %v5382
      %5549 = vmatprep.subr.mxu0 %v5385
      %5550 = vmatpush1.msra.mxu0 %v5384
      %5551 = vmatprep.subr.mxu0 %v5387
      %5552 = vmatpush1.msra.mxu0 %v5386
      %5553 = vmatprep.subr.mxu0 %v5389
      %5554 = vmatpush1.msra.mxu0 %v5388
      %5555 = vmatprep.subr.mxu0 %v5391
      %5556 = vmatpush1.msra.mxu0 %v5390
      %5557 = vmatprep.subr.mxu0 %v5393
      %5558 = vmatpush1.msra.mxu0 %v5392
      %5559 = vmatprep.subr.mxu0 %v5395
      %5560 = vmatpush1.msra.mxu0 %v5394
      %5561 = vmatprep.subr.mxu0 %v5397
      %5562 = vmatpush1.msra.mxu0 %v5396
      %5563 = vmatprep.subr.mxu0 %v5399
      %5564 = vmatpush1.msra.mxu0 %v5398
      %5565 = vmatprep.subr.mxu0 %v5401
      %5566 = vmatpush1.msra.mxu0 %v5400
      %5567 = vmatprep.subr.mxu0 %v5403
      %5568 = vmatpush1.msra.mxu0 %v5402
      %5569 = vmatprep.subr.mxu0 %v5405
      %5570 = vmatpush1.msra.mxu0 %v5404
      %5571 = vmatprep.subr.mxu0 %v5407
      %5572 = vmatpush1.msra.mxu0 %v5406
      %5573 = vmatprep.subr.mxu0 %v5409
      %5574 = vmatpush1.msra.mxu0 %v5408
      %5575 = vmatprep.subr.mxu0 %v5411
      %5576 = vmatpush1.msra.mxu0 %v5410
      %5577 = vmatprep.subr.mxu0 %v5413
      %5578 = vmatpush1.msra.mxu0 %v5412
      %5579 = vmatprep.subr.mxu0 %v5415
      %5580 = vmatpush1.msra.mxu0 %v5414
      %5581 = vmatprep.mubr.f32.mxu0 %v5275
      %5582 = vmatmul.mubr.f32.gmra.mrb[0].mxu0 %v5274
      %v5583 = vpop.f32.mrb[0].mxu0
      %v5584 = vadd.f32 %v5495, %v5583
      %v5585 = vpop.f32.mrb[0].mxu0
      %v5586 = vadd.f32 %v5497, %v5585
      %5587 = vmatprep.mubr.f32.mxu0 %v5279
      %5588 = vmatmul.mubr.f32.gmra.mrb[0].mxu0 %v5278
      %v5589 = vpop.f32.mrb[0].mxu0
      %v5590 = vadd.f32 %v5501, %v5589
      %v5591 = vpop.f32.mrb[0].mxu0
      %v5592 = vadd.f32 %v5503, %v5591
      %5593 = vmatprep.mubr.f32.mxu0 %v5283
      %5594 = vmatmul.mubr.f32.gmra.mrb[0].mxu0 %v5282
      %v5595 = vpop.f32.mrb[0].mxu0
      %v5596 = vadd.f32 %v5507, %v5595
      %v5597 = vpop.f32.mrb[0].mxu0
      %v5598 = vadd.f32 %v5509, %v5597
      %5599 = vmatprep.mubr.f32.mxu0 %v5287
      %5600 = vmatmul.mubr.f32.gmra.mrb[0].mxu0 %v5286
      %v5601 = vpop.f32.mrb[0].mxu0
      %v5602 = vadd.f32 %v5513, %v5601
      %v5603 = vpop.f32.mrb[0].mxu0
      %v5604 = vadd.f32 %v5515, %v5603
      %5605 = vdwg.mxu0
      %v5606 = vadd.f32 %v4936, %v5584
      %v5607 = vadd.f32 %v4937, %v5586
      %v5608 = vadd.f32 %v4938, %v5590
      %v5609 = vadd.f32 %v4939, %v5592
      %v5610 = vadd.f32 %v4940, %v5596
      %v5611 = vadd.f32 %v4941, %v5598
      %v5612 = vadd.f32 %v4942, %v5602
      %v5613 = vadd.f32 %v4943, %v5604
      %v5614 = vld [vmem:[%s617] sm:$0x3]
      %v5615 = vld [vmem:[%s621] sm:$0x3]
      %v5616 = vadd.f32 %v5606, %v5607
      %5617 = vadd.xlane.f32.xlu0 %v5616
      %v5618 = vpop.xlane.xlu0 %5617
      %v5619 = vadd.f32 %v5608, %v5609
      %5620 = vadd.xlane.f32.xlu0 %v5619
      %v5621 = vpop.xlane.xlu0 %5620
      %v5622 = vadd.f32 %v5610, %v5611
      %5623 = vadd.xlane.f32.xlu0 %v5622
      %v5624 = vpop.xlane.xlu0 %5623
      %v5625 = vadd.f32 %v5612, %v5613
      %5626 = vadd.xlane.f32.xlu0 %v5625
      %v5627 = vpop.xlane.xlu0 %5626
      %v5628 = vmul.f32 %v5618, %v4853
      %v5629 = vmul.f32 %v5621, %v4853
      %v5630 = vmul.f32 %v5624, %v4853
      %v5631 = vmul.f32 %v5627, %v4853
      %v5632 = vsub.f32 %v5606, %v5628
      %v5633 = vsub.f32 %v5607, %v5628
      %v5634 = vsub.f32 %v5608, %v5629
      %v5635 = vsub.f32 %v5609, %v5629
      %v5636 = vsub.f32 %v5610, %v5630
      %v5637 = vsub.f32 %v5611, %v5630
      %v5638 = vsub.f32 %v5612, %v5631
      %v5639 = vsub.f32 %v5613, %v5631
      %v5640 = vmul.f32 %v5632, %v5632
      %v5641 = vmul.f32 %v5633, %v5633
      %v5642 = vmul.f32 %v5634, %v5634
      %v5643 = vmul.f32 %v5635, %v5635
      %v5644 = vmul.f32 %v5636, %v5636
      %v5645 = vmul.f32 %v5637, %v5637
      %v5646 = vmul.f32 %v5638, %v5638
      %v5647 = vmul.f32 %v5639, %v5639
      %v5648 = vadd.f32 %v5640, %v5641
      %5649 = vadd.xlane.f32.xlu0 %v5648
      %v5650 = vpop.xlane.xlu0 %5649
      %v5651 = vadd.f32 %v5642, %v5643
      %5652 = vadd.xlane.f32.xlu0 %v5651
      %v5653 = vpop.xlane.xlu0 %5652
      %v5654 = vadd.f32 %v5644, %v5645
      %5655 = vadd.xlane.f32.xlu0 %v5654
      %v5656 = vpop.xlane.xlu0 %5655
      %v5657 = vadd.f32 %v5646, %v5647
      %5658 = vadd.xlane.f32.xlu0 %v5657
      %v5659 = vpop.xlane.xlu0 %5658
      %v5660 = vmul.f32 %v5650, %v4853
      %v5661 = vmul.f32 %v5653, %v4853
      %v5662 = vmul.f32 %v5656, %v4853
      %v5663 = vmul.f32 %v5659, %v4853
      %v5664 = vadd.f32 %v5660, 1e-05
      %v5665 = vadd.f32 %v5661, 1e-05
      %v5666 = vadd.f32 %v5662, 1e-05
      %v5667 = vadd.f32 %v5663, 1e-05
      %v5668 = vrsqrt.pop %v5664
      %v5669 = vrsqrt.pop %v5665
      %v5670 = vrsqrt.pop %v5666
      %v5671 = vrsqrt.pop %v5667
      %v5672 = vmul.f32 %v5632, %v5668
      %v5673 = vmul.f32 %v5633, %v5668
      %v5674 = vmul.f32 %v5634, %v5669
      %v5675 = vmul.f32 %v5635, %v5669
      %v5676 = vmul.f32 %v5636, %v5670
      %v5677 = vmul.f32 %v5637, %v5670
      %v5678 = vmul.f32 %v5638, %v5671
      %v5679 = vmul.f32 %v5639, %v5671
      %v5681 = vlaneseq
      %v5682 = vshrl.u32 %v5681, 7
      %v5683 = vsub.s32 0, %v5682
      %v5684 = vrot.slane %v5614, %v5683
      %v5685 = vlaneseq
      %v5686 = vshrl.u32 %v5685, 7
      %v5687 = vsub.s32 1, %v5686
      %v5688 = vrot.slane %v5614, %v5687
      %v5691 = vmul.f32 %v5672, %v5684
      %v5692 = vmul.f32 %v5673, %v5688
      %v5693 = vmul.f32 %v5674, %v5684
      %v5694 = vmul.f32 %v5675, %v5688
      %v5695 = vmul.f32 %v5676, %v5684
      %v5696 = vmul.f32 %v5677, %v5688
      %v5697 = vmul.f32 %v5678, %v5684
      %v5698 = vmul.f32 %v5679, %v5688
      %v5700 = vlaneseq
      %v5701 = vshrl.u32 %v5700, 7
      %v5702 = vsub.s32 0, %v5701
      %v5703 = vrot.slane %v5615, %v5702
      %v5704 = vlaneseq
      %v5705 = vshrl.u32 %v5704, 7
      %v5706 = vsub.s32 1, %v5705
      %v5707 = vrot.slane %v5615, %v5706
      %v5710 = vadd.f32 %v5691, %v5703
      %v5711 = vadd.f32 %v5692, %v5707
      %v5712 = vadd.f32 %v5693, %v5703
      %v5713 = vadd.f32 %v5694, %v5707
      %v5714 = vadd.f32 %v5695, %v5703
      %v5715 = vadd.f32 %v5696, %v5707
      %v5716 = vadd.f32 %v5697, %v5703
      %v5717 = vadd.f32 %v5698, %v5707
      %5718 = vst [vmem:[#allocation2] sm:$0xff] %v5710
      %5719 = vst [vmem:[#allocation2 + $0x8] sm:$0xff] %v5711
      %5720 = vst [vmem:[#allocation2 + $0x10] sm:$0xff] %v5712
      %5721 = vst [vmem:[#allocation2 + $0x18] sm:$0xff] %v5713
      %5722 = vst [vmem:[#allocation2 + $0x20] sm:$0xff] %v5714
      %5723 = vst [vmem:[#allocation2 + $0x28] sm:$0xff] %v5715
      %5724 = vst [vmem:[#allocation2 + $0x30] sm:$0xff] %v5716
      %5725 = vst [vmem:[#allocation2 + $0x38] sm:$0xff] %v5717
      %5726 = vst [vmem:[%s13] sm:$0xff] %v5710
      %5727 = vst [vmem:[%s13 + $0x8] sm:$0xff] %v5711
      %5728 = vst [vmem:[%s13 + $0x10] sm:$0xff] %v5712
      %5729 = vst [vmem:[%s13 + $0x18] sm:$0xff] %v5713
      %5730 = vst [vmem:[%s13 + $0x20] sm:$0xff] %v5714
      %5731 = vst [vmem:[%s13 + $0x28] sm:$0xff] %v5715
      %5732 = vst [vmem:[%s13 + $0x30] sm:$0xff] %v5716
      %5733 = vst [vmem:[%s13 + $0x38] sm:$0xff] %v5717
      // Predicated region
      $region77: #{prompt_encoder.10} parent=71 // pred_check
        %p5734 = pneg %p370
      $region78: #{prompt_encoder.10} parent=71 // pred_check_branch
        %5736 = sbr.rel (%p5734) target = $region80
      $region79: #{prompt_encoder.10} parent=71 // pred_region
        _
      $region80: #{prompt_encoder.10} parent=71 // pred_fallthru
        _
      // Predicated region
      $region81: #{prompt_encoder.10} parent=71 // pred_check
        %p5737 = pneg %p370
      $region82: #{prompt_encoder.10} parent=71 // pred_check_branch
        %5739 = sbr.rel (%p5737) target = $region84
      $region83: #{prompt_encoder.10} parent=71 // pred_region
        _
      $region84: #{prompt_encoder.10} parent=71 // pred_fallthru
        _
    $region72: #{prompt_encoder.10} parent=5 // pred_fallthru
      _
    %p5740 = scmp.le.s32.totalorder 2, %s19
    // Predicated region
    $region85: #{prompt_encoder.10} parent=5 // pred_check
      %p5741 = pneg %p5740
    $region86: #{prompt_encoder.10} parent=5 // pred_check_branch
      %5743 = sbr.rel (%p5741) target = $region88
    $region87: #{prompt_encoder.10} parent=5 // pred_region
      %s5744 = ssub.s32 %s19, 2
    $region88: #{prompt_encoder.10} parent=5 // pred_fallthru
      _
  $region6: #{prompt_encoder.10} parent=0 // loop_footer
    %s23 = sadd.s32 1, %s19
  $region7: #{prompt_encoder.10} parent=0 // loop_footer_branch
    %18 = sbr.rel target = $region3
  $region8: #{prompt_encoder.10} parent=0 // loop_exit
    _

// kernel: prompt_encoder.13
$region0: #{prompt_encoder.13}
  #allocation0 [shape = 'u32[]', space=smem, size = 0x4, offset = 0x4, fixed_abs, tag = 'smem constant byte address 0x4 - core index']
  #allocation1 [shape = 'u32[144,128]{1,0:T(1,128)}', space=vmem, size = 0x12000, scoped, tag = 'internal scratch']
  %s0 = inlined_call_operand.vmem [shape: f32[512,64], index: 0, kind: input, shape index: {}]
  %s1 = inlined_call_operand.vmem [shape: f32[64,256], index: 1, kind: input, shape index: {}]
  %s2 = inlined_call_operand.vmem [shape: f32[1,256], index: 2, kind: input, shape index: {}]
  %s3 = inlined_call_operand.vmem [shape: f32[256,256], index: 3, kind: input, shape index: {}]
  %s4 = inlined_call_operand.vmem [shape: f32[1,256], index: 4, kind: input, shape index: {}]
  %s5 = inlined_call_operand.hbm [shape: f32[512,256], index: 5, kind: output, shape index: {}]
  %s6 = sld [smem:[#allocation0]]
  $region30: #{prompt_encoder.13} parent=0
    _
  %s8 = ssub.s32 1, %s6
  %s9 = scalar_select 0, %s8, %s6
  $region1: #{prompt_encoder.13} parent=0
    #allocation2 [shape = 'u8[524288]{0}', space=vmem, size = 0x80000, scoped, tag = 'output window, operand 0, single buffered']
    #allocation3 [shape = 's32[1]{0}', space=sflag, size = 0x4, scoped, tag = 'scoped memory for prompt_encoder.13']
    %10 = vsyncpa [#allocation3], 0
    // Predicated region
    $region2: #{prompt_encoder.13} parent=1 // pred_check
      _
    $region3: #{prompt_encoder.13} parent=1 // pred_check_branch
      %12 = sbr.rel (0) target = $region5
    $region4: #{prompt_encoder.13} parent=1 // pred_region
      _
    $region5: #{prompt_encoder.13} parent=1 // pred_fallthru
      _
    // Predicated region
    $region6: #{prompt_encoder.13} parent=1 // pred_check
      _
    $region7: #{prompt_encoder.13} parent=1 // pred_check_branch
      %14 = sbr.rel (0) target = $region9
    $region8: #{prompt_encoder.13} parent=1 // pred_region
      _
    $region9: #{prompt_encoder.13} parent=1 // pred_fallthru
      _
    // Predicated region
    $region10: #{prompt_encoder.13} parent=1 // pred_check
      _
    $region11: #{prompt_encoder.13} parent=1 // pred_check_branch
      %16 = sbr.rel (0) target = $region13
    $region12: #{prompt_encoder.13} parent=1 // pred_region
      _
    $region13: #{prompt_encoder.13} parent=1 // pred_fallthru
      _
    // Predicated region
    $region14: #{prompt_encoder.13} parent=1 // pred_check
      _
    $region15: #{prompt_encoder.13} parent=1 // pred_check_branch
      %18 = sbr.rel (0) target = $region17
    $region16: #{prompt_encoder.13} parent=1 // pred_region
      _
    $region17: #{prompt_encoder.13} parent=1 // pred_fallthru
      _
    // Predicated region
    $region18: #{prompt_encoder.13} parent=1 // pred_check
      _
    $region19: #{prompt_encoder.13} parent=1 // pred_check_branch
      %20 = sbr.rel (0) target = $region21
    $region20: #{prompt_encoder.13} parent=1 // pred_region
      _
    $region21: #{prompt_encoder.13} parent=1 // pred_fallthru
      _
    %v21 = vld [vmem:[%s0] sm:$0xff]
    %v22 = vld [vmem:[%s0 + $0x8] sm:$0xff]
    %v23 = vld [vmem:[%s0 + $0x10] sm:$0xff]
    %v24 = vld [vmem:[%s0 + $0x18] sm:$0xff]
    %v25 = vld [vmem:[%s0 + $0x20] sm:$0xff]
    %v26 = vld [vmem:[%s0 + $0x28] sm:$0xff]
    %v27 = vld [vmem:[%s0 + $0x30] sm:$0xff]
    %v28 = vld [vmem:[%s0 + $0x38] sm:$0xff]
    %v29 = vld [vmem:[%s0 + $0x40] sm:$0xff]
    %v30 = vld [vmem:[%s0 + $0x48] sm:$0xff]
    %v31 = vld [vmem:[%s0 + $0x50] sm:$0xff]
    %v32 = vld [vmem:[%s0 + $0x58] sm:$0xff]
    %v33 = vld [vmem:[%s0 + $0x60] sm:$0xff]
    %v34 = vld [vmem:[%s0 + $0x68] sm:$0xff]
    %v35 = vld [vmem:[%s0 + $0x70] sm:$0xff]
    %v36 = vld [vmem:[%s0 + $0x78] sm:$0xff]
    %v37 = vld [vmem:[%s0 + $0x80] sm:$0xff]
    %v38 = vld [vmem:[%s0 + $0x88] sm:$0xff]
    %v39 = vld [vmem:[%s0 + $0x90] sm:$0xff]
    %v40 = vld [vmem:[%s0 + $0x98] sm:$0xff]
    %v41 = vld [vmem:[%s0 + $0xa0] sm:$0xff]
    %v42 = vld [vmem:[%s0 + $0xa8] sm:$0xff]
    %v43 = vld [vmem:[%s0 + $0xb0] sm:$0xff]
    %v44 = vld [vmem:[%s0 + $0xb8] sm:$0xff]
    %v45 = vld [vmem:[%s0 + $0xc0] sm:$0xff]
    %v46 = vld [vmem:[%s0 + $0xc8] sm:$0xff]
    %v47 = vld [vmem:[%s0 + $0xd0] sm:$0xff]
    %v48 = vld [vmem:[%s0 + $0xd8] sm:$0xff]
    %v49 = vld [vmem:[%s0 + $0xe0] sm:$0xff]
    %v50 = vld [vmem:[%s0 + $0xe8] sm:$0xff]
    %v51 = vld [vmem:[%s0 + $0xf0] sm:$0xff]
    %v52 = vld [vmem:[%s0 + $0xf8] sm:$0xff]
    %v53 = vld [vmem:[%s0 + $0x100] sm:$0xff]
    %v54 = vld [vmem:[%s0 + $0x108] sm:$0xff]
    %v55 = vld [vmem:[%s0 + $0x110] sm:$0xff]
    %v56 = vld [vmem:[%s0 + $0x118] sm:$0xff]
    %v57 = vld [vmem:[%s0 + $0x120] sm:$0xff]
    %v58 = vld [vmem:[%s0 + $0x128] sm:$0xff]
    %v59 = vld [vmem:[%s0 + $0x130] sm:$0xff]
    %v60 = vld [vmem:[%s0 + $0x138] sm:$0xff]
    %v61 = vld [vmem:[%s0 + $0x140] sm:$0xff]
    %v62 = vld [vmem:[%s0 + $0x148] sm:$0xff]
    %v63 = vld [vmem:[%s0 + $0x150] sm:$0xff]
    %v64 = vld [vmem:[%s0 + $0x158] sm:$0xff]
    %v65 = vld [vmem:[%s0 + $0x160] sm:$0xff]
    %v66 = vld [vmem:[%s0 + $0x168] sm:$0xff]
    %v67 = vld [vmem:[%s0 + $0x170] sm:$0xff]
    %v68 = vld [vmem:[%s0 + $0x178] sm:$0xff]
    %v69 = vld [vmem:[%s0 + $0x180] sm:$0xff]
    %v70 = vld [vmem:[%s0 + $0x188] sm:$0xff]
    %v71 = vld [vmem:[%s0 + $0x190] sm:$0xff]
    %v72 = vld [vmem:[%s0 + $0x198] sm:$0xff]
    %v73 = vld [vmem:[%s0 + $0x1a0] sm:$0xff]
    %v74 = vld [vmem:[%s0 + $0x1a8] sm:$0xff]
    %v75 = vld [vmem:[%s0 + $0x1b0] sm:$0xff]
    %v76 = vld [vmem:[%s0 + $0x1b8] sm:$0xff]
    %v77 = vld [vmem:[%s0 + $0x1c0] sm:$0xff]
    %v78 = vld [vmem:[%s0 + $0x1c8] sm:$0xff]
    %v79 = vld [vmem:[%s0 + $0x1d0] sm:$0xff]
    %v80 = vld [vmem:[%s0 + $0x1d8] sm:$0xff]
    %v81 = vld [vmem:[%s0 + $0x1e0] sm:$0xff]
    %v82 = vld [vmem:[%s0 + $0x1e8] sm:$0xff]
    %v83 = vld [vmem:[%s0 + $0x1f0] sm:$0xff]
    %v84 = vld [vmem:[%s0 + $0x1f8] sm:$0xff]
    %v85 = vld [vmem:[%s1] sm:$0xff]
    %v86 = vld [vmem:[%s1 + $0x8] sm:$0xff]
    %v87 = vld [vmem:[%s1 + $0x10] sm:$0xff]
    %v88 = vld [vmem:[%s1 + $0x18] sm:$0xff]
    %v89 = vld [vmem:[%s1 + $0x20] sm:$0xff]
    %v90 = vld [vmem:[%s1 + $0x28] sm:$0xff]
    %v91 = vld [vmem:[%s1 + $0x30] sm:$0xff]
    %v92 = vld [vmem:[%s1 + $0x38] sm:$0xff]
    %v93 = vld [vmem:[%s1 + $0x40] sm:$0xff]
    %v94 = vld [vmem:[%s1 + $0x48] sm:$0xff]
    %v95 = vld [vmem:[%s1 + $0x50] sm:$0xff]
    %v96 = vld [vmem:[%s1 + $0x58] sm:$0xff]
    %v97 = vld [vmem:[%s1 + $0x60] sm:$0xff]
    %v98 = vld [vmem:[%s1 + $0x68] sm:$0xff]
    %v99 = vld [vmem:[%s1 + $0x70] sm:$0xff]
    %v100 = vld [vmem:[%s1 + $0x78] sm:$0xff]
    %v101 = vld [vmem:[%s2] sm:$0x3]
    %v103 = vlaneseq
    %v104 = vshrl.u32 %v103, 7
    %v105 = vsub.s32 0, %v104
    %v106 = vrot.slane %v101, %v105
    %v107 = vlaneseq
    %v108 = vshrl.u32 %v107, 7
    %v109 = vsub.s32 1, %v108
    %v110 = vrot.slane %v101, %v109
    %vm113 = vcmask 523264
    %v115 = vsel %vm113, %v21, 0
    %v118 = vsel %vm113, %v22, 0
    %v121 = vsel %vm113, %v23, 0
    %v124 = vsel %vm113, %v24, 0
    %v127 = vsel %vm113, %v25, 0
    %v130 = vsel %vm113, %v26, 0
    %v133 = vsel %vm113, %v27, 0
    %v136 = vsel %vm113, %v28, 0
    %v139 = vsel %vm113, %v29, 0
    %v142 = vsel %vm113, %v30, 0
    %v145 = vsel %vm113, %v31, 0
    %v148 = vsel %vm113, %v32, 0
    %v151 = vsel %vm113, %v33, 0
    %v154 = vsel %vm113, %v34, 0
    %v157 = vsel %vm113, %v35, 0
    %v160 = vsel %vm113, %v36, 0
    %v163 = vsel %vm113, %v37, 0
    %v166 = vsel %vm113, %v38, 0
    %v169 = vsel %vm113, %v39, 0
    %v172 = vsel %vm113, %v40, 0
    %v175 = vsel %vm113, %v41, 0
    %v178 = vsel %vm113, %v42, 0
    %v181 = vsel %vm113, %v43, 0
    %v184 = vsel %vm113, %v44, 0
    %v187 = vsel %vm113, %v45, 0
    %v190 = vsel %vm113, %v46, 0
    %v193 = vsel %vm113, %v47, 0
    %v196 = vsel %vm113, %v48, 0
    %v199 = vsel %vm113, %v49, 0
    %v202 = vsel %vm113, %v50, 0
    %v205 = vsel %vm113, %v51, 0
    %v208 = vsel %vm113, %v52, 0
    %v211 = vsel %vm113, %v53, 0
    %v214 = vsel %vm113, %v54, 0
    %v217 = vsel %vm113, %v55, 0
    %v220 = vsel %vm113, %v56, 0
    %v223 = vsel %vm113, %v57, 0
    %v226 = vsel %vm113, %v58, 0
    %v229 = vsel %vm113, %v59, 0
    %v232 = vsel %vm113, %v60, 0
    %v235 = vsel %vm113, %v61, 0
    %v238 = vsel %vm113, %v62, 0
    %v241 = vsel %vm113, %v63, 0
    %v244 = vsel %vm113, %v64, 0
    %v247 = vsel %vm113, %v65, 0
    %v250 = vsel %vm113, %v66, 0
    %v253 = vsel %vm113, %v67, 0
    %v256 = vsel %vm113, %v68, 0
    %v259 = vsel %vm113, %v69, 0
    %v262 = vsel %vm113, %v70, 0
    %v265 = vsel %vm113, %v71, 0
    %v268 = vsel %vm113, %v72, 0
    %v271 = vsel %vm113, %v73, 0
    %v274 = vsel %vm113, %v74, 0
    %v277 = vsel %vm113, %v75, 0
    %v280 = vsel %vm113, %v76, 0
    %v283 = vsel %vm113, %v77, 0
    %v286 = vsel %vm113, %v78, 0
    %v289 = vsel %vm113, %v79, 0
    %v292 = vsel %vm113, %v80, 0
    %v295 = vsel %vm113, %v81, 0
    %v298 = vsel %vm113, %v82, 0
    %v301 = vsel %vm113, %v83, 0
    %v304 = vsel %vm113, %v84, 0
    %306 = vmatprep.subr.mxu0 %v86
    %307 = vmatpush1.msra.mxu0 %v85
    %308 = vmatprep.subr.mxu0 %v88
    %309 = vmatpush1.msra.mxu0 %v87
    %310 = vmatprep.subr.mxu0 %v90
    %311 = vmatpush1.msra.mxu0 %v89
    %312 = vmatprep.subr.mxu0 %v92
    %313 = vmatpush1.msra.mxu0 %v91
    %314 = vmatprep.subr.mxu0 %v94
    %315 = vmatpush1.msra.mxu0 %v93
    %316 = vmatprep.subr.mxu0 %v96
    %317 = vmatpush1.msra.mxu0 %v95
    %318 = vmatprep.subr.mxu0 %v98
    %319 = vmatpush1.msra.mxu0 %v97
    %320 = vmatprep.subr.mxu0 %v100
    %321 = vmatpush1.msra.mxu0 %v99
    %322 = vmatprep.subr.mxu0 0.0
    %323 = vmatpush1.msra.mxu0 0.0
    %324 = vmatprep.subr.mxu0 0.0
    %325 = vmatpush1.msra.mxu0 0.0
    %326 = vmatprep.subr.mxu0 0.0
    %327 = vmatpush1.msra.mxu0 0.0
    %328 = vmatprep.subr.mxu0 0.0
    %329 = vmatpush1.msra.mxu0 0.0
    %330 = vmatprep.subr.mxu0 0.0
    %331 = vmatpush1.msra.mxu0 0.0
    %332 = vmatprep.subr.mxu0 0.0
    %333 = vmatpush1.msra.mxu0 0.0
    %334 = vmatprep.subr.mxu0 0.0
    %335 = vmatpush1.msra.mxu0 0.0
    %336 = vmatprep.subr.mxu0 0.0
    %337 = vmatpush1.msra.mxu0 0.0
    %338 = vmatprep.subr.mxu0 0.0
    %339 = vmatpush1.msra.mxu0 0.0
    %340 = vmatprep.subr.mxu0 0.0
    %341 = vmatpush1.msra.mxu0 0.0
    %342 = vmatprep.subr.mxu0 0.0
    %343 = vmatpush1.msra.mxu0 0.0
    %344 = vmatprep.subr.mxu0 0.0
    %345 = vmatpush1.msra.mxu0 0.0
    %346 = vmatprep.subr.mxu0 0.0
    %347 = vmatpush1.msra.mxu0 0.0
    %348 = vmatprep.subr.mxu0 0.0
    %349 = vmatpush1.msra.mxu0 0.0
    %350 = vmatprep.subr.mxu0 0.0
    %351 = vmatpush1.msra.mxu0 0.0
    %352 = vmatprep.subr.mxu0 0.0
    %353 = vmatpush1.msra.mxu0 0.0
    %354 = vmatprep.subr.mxu0 0.0
    %355 = vmatpush1.msra.mxu0 0.0
    %356 = vmatprep.subr.mxu0 0.0
    %357 = vmatpush1.msra.mxu0 0.0
    %358 = vmatprep.subr.mxu0 0.0
    %359 = vmatpush1.msra.mxu0 0.0
    %360 = vmatprep.subr.mxu0 0.0
    %361 = vmatpush1.msra.mxu0 0.0
    %362 = vmatprep.subr.mxu0 0.0
    %363 = vmatpush1.msra.mxu0 0.0
    %364 = vmatprep.subr.mxu0 0.0
    %365 = vmatpush1.msra.mxu0 0.0
    %366 = vmatprep.subr.mxu0 0.0
    %367 = vmatpush1.msra.mxu0 0.0
    %368 = vmatprep.subr.mxu0 0.0
    %369 = vmatpush1.msra.mxu0 0.0
    %370 = vmatprep.mubr.f32.mxu0 0.0
    %371 = vmatmul.mubr.f32.gmra.mrb[0].mxu0 %v115
    %v372 = vpop.f32.mrb[0].mxu0
    %v373 = vadd.f32 %v106, %v372
    %v374 = vpop.f32.mrb[0].mxu0
    %v375 = vadd.f32 %v110, %v374
    %376 = vmatprep.mubr.f32.mxu0 0.0
    %377 = vmatmul.mubr.f32.gmra.mrb[0].mxu0 %v118
    %v378 = vpop.f32.mrb[0].mxu0
    %v379 = vadd.f32 %v106, %v378
    %v380 = vpop.f32.mrb[0].mxu0
    %v381 = vadd.f32 %v110, %v380
    %382 = vmatprep.mubr.f32.mxu0 0.0
    %383 = vmatmul.mubr.f32.gmra.mrb[0].mxu0 %v121
    %v384 = vpop.f32.mrb[0].mxu0
    %v385 = vadd.f32 %v106, %v384
    %v386 = vpop.f32.mrb[0].mxu0
    %v387 = vadd.f32 %v110, %v386
    %388 = vmatprep.mubr.f32.mxu0 0.0
    %389 = vmatmul.mubr.f32.gmra.mrb[0].mxu0 %v124
    %v390 = vpop.f32.mrb[0].mxu0
    %v391 = vadd.f32 %v106, %v390
    %v392 = vpop.f32.mrb[0].mxu0
    %v393 = vadd.f32 %v110, %v392
    %394 = vmatprep.mubr.f32.mxu0 0.0
    %395 = vmatmul.mubr.f32.gmra.mrb[0].mxu0 %v127
    %v396 = vpop.f32.mrb[0].mxu0
    %v397 = vadd.f32 %v106, %v396
    %v398 = vpop.f32.mrb[0].mxu0
    %v399 = vadd.f32 %v110, %v398
    %400 = vmatprep.mubr.f32.mxu0 0.0
    %401 = vmatmul.mubr.f32.gmra.mrb[0].mxu0 %v130
    %v402 = vpop.f32.mrb[0].mxu0
    %v403 = vadd.f32 %v106, %v402
    %v404 = vpop.f32.mrb[0].mxu0
    %v405 = vadd.f32 %v110, %v404
    %406 = vmatprep.mubr.f32.mxu0 0.0
    %407 = vmatmul.mubr.f32.gmra.mrb[0].mxu0 %v133
    %v408 = vpop.f32.mrb[0].mxu0
    %v409 = vadd.f32 %v106, %v408
    %v410 = vpop.f32.mrb[0].mxu0
    %v411 = vadd.f32 %v110, %v410
    %412 = vmatprep.mubr.f32.mxu0 0.0
    %413 = vmatmul.mubr.f32.gmra.mrb[0].mxu0 %v136
    %v414 = vpop.f32.mrb[0].mxu0
    %v415 = vadd.f32 %v106, %v414
    %v416 = vpop.f32.mrb[0].mxu0
    %v417 = vadd.f32 %v110, %v416
    %418 = vmatprep.mubr.f32.mxu0 0.0
    %419 = vmatmul.mubr.f32.gmra.mrb[0].mxu0 %v139
    %v420 = vpop.f32.mrb[0].mxu0
    %v421 = vadd.f32 %v106, %v420
    %v422 = vpop.f32.mrb[0].mxu0
    %v423 = vadd.f32 %v110, %v422
    %424 = vmatprep.mubr.f32.mxu0 0.0
    %425 = vmatmul.mubr.f32.gmra.mrb[0].mxu0 %v142
    %v426 = vpop.f32.mrb[0].mxu0
    %v427 = vadd.f32 %v106, %v426
    %v428 = vpop.f32.mrb[0].mxu0
    %v429 = vadd.f32 %v110, %v428
    %430 = vmatprep.mubr.f32.mxu0 0.0
    %431 = vmatmul.mubr.f32.gmra.mrb[0].mxu0 %v145
    %v432 = vpop.f32.mrb[0].mxu0
    %v433 = vadd.f32 %v106, %v432
    %v434 = vpop.f32.mrb[0].mxu0
    %v435 = vadd.f32 %v110, %v434
    %436 = vmatprep.mubr.f32.mxu0 0.0
    %437 = vmatmul.mubr.f32.gmra.mrb[0].mxu0 %v148
    %v438 = vpop.f32.mrb[0].mxu0
    %v439 = vadd.f32 %v106, %v438
    %v440 = vpop.f32.mrb[0].mxu0
    %v441 = vadd.f32 %v110, %v440
    %442 = vmatprep.mubr.f32.mxu0 0.0
    %443 = vmatmul.mubr.f32.gmra.mrb[0].mxu0 %v151
    %v444 = vpop.f32.mrb[0].mxu0
    %v445 = vadd.f32 %v106, %v444
    %v446 = vpop.f32.mrb[0].mxu0
    %v447 = vadd.f32 %v110, %v446
    %448 = vmatprep.mubr.f32.mxu0 0.0
    %449 = vmatmul.mubr.f32.gmra.mrb[0].mxu0 %v154
    %v450 = vpop.f32.mrb[0].mxu0
    %v451 = vadd.f32 %v106, %v450
    %v452 = vpop.f32.mrb[0].mxu0
    %v453 = vadd.f32 %v110, %v452
    %454 = vmatprep.mubr.f32.mxu0 0.0
    %455 = vmatmul.mubr.f32.gmra.mrb[0].mxu0 %v157
    %v456 = vpop.f32.mrb[0].mxu0
    %v457 = vadd.f32 %v106, %v456
    %v458 = vpop.f32.mrb[0].mxu0
    %v459 = vadd.f32 %v110, %v458
    %460 = vmatprep.mubr.f32.mxu0 0.0
    %461 = vmatmul.mubr.f32.gmra.mrb[0].mxu0 %v160
    %v462 = vpop.f32.mrb[0].mxu0
    %v463 = vadd.f32 %v106, %v462
    %v464 = vpop.f32.mrb[0].mxu0
    %v465 = vadd.f32 %v110, %v464
    %466 = vmatprep.mubr.f32.mxu0 0.0
    %467 = vmatmul.mubr.f32.gmra.mrb[0].mxu0 %v163
    %v468 = vpop.f32.mrb[0].mxu0
    %v469 = vadd.f32 %v106, %v468
    %v470 = vpop.f32.mrb[0].mxu0
    %v471 = vadd.f32 %v110, %v470
    %472 = vmatprep.mubr.f32.mxu0 0.0
    %473 = vmatmul.mubr.f32.gmra.mrb[0].mxu0 %v166
    %v474 = vpop.f32.mrb[0].mxu0
    %v475 = vadd.f32 %v106, %v474
    %v476 = vpop.f32.mrb[0].mxu0
    %v477 = vadd.f32 %v110, %v476
    %478 = vmatprep.mubr.f32.mxu0 0.0
    %479 = vmatmul.mubr.f32.gmra.mrb[0].mxu0 %v169
    %v480 = vpop.f32.mrb[0].mxu0
    %v481 = vadd.f32 %v106, %v480
    %v482 = vpop.f32.mrb[0].mxu0
    %v483 = vadd.f32 %v110, %v482
    %484 = vmatprep.mubr.f32.mxu0 0.0
    %485 = vmatmul.mubr.f32.gmra.mrb[0].mxu0 %v172
    %v486 = vpop.f32.mrb[0].mxu0
    %v487 = vadd.f32 %v106, %v486
    %v488 = vpop.f32.mrb[0].mxu0
    %v489 = vadd.f32 %v110, %v488
    %490 = vmatprep.mubr.f32.mxu0 0.0
    %491 = vmatmul.mubr.f32.gmra.mrb[0].mxu0 %v175
    %v492 = vpop.f32.mrb[0].mxu0
    %v493 = vadd.f32 %v106, %v492
    %v494 = vpop.f32.mrb[0].mxu0
    %v495 = vadd.f32 %v110, %v494
    %496 = vmatprep.mubr.f32.mxu0 0.0
    %497 = vmatmul.mubr.f32.gmra.mrb[0].mxu0 %v178
    %v498 = vpop.f32.mrb[0].mxu0
    %v499 = vadd.f32 %v106, %v498
    %v500 = vpop.f32.mrb[0].mxu0
    %v501 = vadd.f32 %v110, %v500
    %502 = vmatprep.mubr.f32.mxu0 0.0
    %503 = vmatmul.mubr.f32.gmra.mrb[0].mxu0 %v181
    %v504 = vpop.f32.mrb[0].mxu0
    %v505 = vadd.f32 %v106, %v504
    %v506 = vpop.f32.mrb[0].mxu0
    %v507 = vadd.f32 %v110, %v506
    %508 = vmatprep.mubr.f32.mxu0 0.0
    %509 = vmatmul.mubr.f32.gmra.mrb[0].mxu0 %v184
    %v510 = vpop.f32.mrb[0].mxu0
    %v511 = vadd.f32 %v106, %v510
    %v512 = vpop.f32.mrb[0].mxu0
    %v513 = vadd.f32 %v110, %v512
    %514 = vmatprep.mubr.f32.mxu0 0.0
    %515 = vmatmul.mubr.f32.gmra.mrb[0].mxu0 %v187
    %v516 = vpop.f32.mrb[0].mxu0
    %v517 = vadd.f32 %v106, %v516
    %v518 = vpop.f32.mrb[0].mxu0
    %v519 = vadd.f32 %v110, %v518
    %520 = vmatprep.mubr.f32.mxu0 0.0
    %521 = vmatmul.mubr.f32.gmra.mrb[0].mxu0 %v190
    %v522 = vpop.f32.mrb[0].mxu0
    %v523 = vadd.f32 %v106, %v522
    %v524 = vpop.f32.mrb[0].mxu0
    %v525 = vadd.f32 %v110, %v524
    %526 = vmatprep.mubr.f32.mxu0 0.0
    %527 = vmatmul.mubr.f32.gmra.mrb[0].mxu0 %v193
    %v528 = vpop.f32.mrb[0].mxu0
    %v529 = vadd.f32 %v106, %v528
    %v530 = vpop.f32.mrb[0].mxu0
    %v531 = vadd.f32 %v110, %v530
    %532 = vmatprep.mubr.f32.mxu0 0.0
    %533 = vmatmul.mubr.f32.gmra.mrb[0].mxu0 %v196
    %v534 = vpop.f32.mrb[0].mxu0
    %v535 = vadd.f32 %v106, %v534
    %v536 = vpop.f32.mrb[0].mxu0
    %v537 = vadd.f32 %v110, %v536
    %538 = vmatprep.mubr.f32.mxu0 0.0
    %539 = vmatmul.mubr.f32.gmra.mrb[0].mxu0 %v199
    %v540 = vpop.f32.mrb[0].mxu0
    %v541 = vadd.f32 %v106, %v540
    %v542 = vpop.f32.mrb[0].mxu0
    %v543 = vadd.f32 %v110, %v542
    %544 = vmatprep.mubr.f32.mxu0 0.0
    %545 = vmatmul.mubr.f32.gmra.mrb[0].mxu0 %v202
    %v546 = vpop.f32.mrb[0].mxu0
    %v547 = vadd.f32 %v106, %v546
    %v548 = vpop.f32.mrb[0].mxu0
    %v549 = vadd.f32 %v110, %v548
    %550 = vmatprep.mubr.f32.mxu0 0.0
    %551 = vmatmul.mubr.f32.gmra.mrb[0].mxu0 %v205
    %v552 = vpop.f32.mrb[0].mxu0
    %v553 = vadd.f32 %v106, %v552
    %v554 = vpop.f32.mrb[0].mxu0
    %v555 = vadd.f32 %v110, %v554
    %556 = vmatprep.mubr.f32.mxu0 0.0
    %557 = vmatmul.mubr.f32.gmra.mrb[0].mxu0 %v208
    %v558 = vpop.f32.mrb[0].mxu0
    %v559 = vadd.f32 %v106, %v558
    %v560 = vpop.f32.mrb[0].mxu0
    %v561 = vadd.f32 %v110, %v560
    %562 = vmatprep.mubr.f32.mxu0 0.0
    %563 = vmatmul.mubr.f32.gmra.mrb[0].mxu0 %v211
    %v564 = vpop.f32.mrb[0].mxu0
    %v565 = vadd.f32 %v106, %v564
    %v566 = vpop.f32.mrb[0].mxu0
    %v567 = vadd.f32 %v110, %v566
    %568 = vmatprep.mubr.f32.mxu0 0.0
    %569 = vmatmul.mubr.f32.gmra.mrb[0].mxu0 %v214
    %v570 = vpop.f32.mrb[0].mxu0
    %v571 = vadd.f32 %v106, %v570
    %v572 = vpop.f32.mrb[0].mxu0
    %v573 = vadd.f32 %v110, %v572
    %574 = vmatprep.mubr.f32.mxu0 0.0
    %575 = vmatmul.mubr.f32.gmra.mrb[0].mxu0 %v217
    %v576 = vpop.f32.mrb[0].mxu0
    %v577 = vadd.f32 %v106, %v576
    %v578 = vpop.f32.mrb[0].mxu0
    %v579 = vadd.f32 %v110, %v578
    %580 = vmatprep.mubr.f32.mxu0 0.0
    %581 = vmatmul.mubr.f32.gmra.mrb[0].mxu0 %v220
    %v582 = vpop.f32.mrb[0].mxu0
    %v583 = vadd.f32 %v106, %v582
    %v584 = vpop.f32.mrb[0].mxu0
    %v585 = vadd.f32 %v110, %v584
    %586 = vmatprep.mubr.f32.mxu0 0.0
    %587 = vmatmul.mubr.f32.gmra.mrb[0].mxu0 %v223
    %v588 = vpop.f32.mrb[0].mxu0
    %v589 = vadd.f32 %v106, %v588
    %v590 = vpop.f32.mrb[0].mxu0
    %v591 = vadd.f32 %v110, %v590
    %592 = vmatprep.mubr.f32.mxu0 0.0
    %593 = vmatmul.mubr.f32.gmra.mrb[0].mxu0 %v226
    %v594 = vpop.f32.mrb[0].mxu0
    %v595 = vadd.f32 %v106, %v594
    %v596 = vpop.f32.mrb[0].mxu0
    %v597 = vadd.f32 %v110, %v596
    %598 = vmatprep.mubr.f32.mxu0 0.0
    %599 = vmatmul.mubr.f32.gmra.mrb[0].mxu0 %v229
    %v600 = vpop.f32.mrb[0].mxu0
    %v601 = vadd.f32 %v106, %v600
    %v602 = vpop.f32.mrb[0].mxu0
    %v603 = vadd.f32 %v110, %v602
    %604 = vmatprep.mubr.f32.mxu0 0.0
    %605 = vmatmul.mubr.f32.gmra.mrb[0].mxu0 %v232
    %v606 = vpop.f32.mrb[0].mxu0
    %v607 = vadd.f32 %v106, %v606
    %v608 = vpop.f32.mrb[0].mxu0
    %v609 = vadd.f32 %v110, %v608
    %610 = vmatprep.mubr.f32.mxu0 0.0
    %611 = vmatmul.mubr.f32.gmra.mrb[0].mxu0 %v235
    %v612 = vpop.f32.mrb[0].mxu0
    %v613 = vadd.f32 %v106, %v612
    %v614 = vpop.f32.mrb[0].mxu0
    %v615 = vadd.f32 %v110, %v614
    %616 = vmatprep.mubr.f32.mxu0 0.0
    %617 = vmatmul.mubr.f32.gmra.mrb[0].mxu0 %v238
    %v618 = vpop.f32.mrb[0].mxu0
    %v619 = vadd.f32 %v106, %v618
    %v620 = vpop.f32.mrb[0].mxu0
    %v621 = vadd.f32 %v110, %v620
    %622 = vmatprep.mubr.f32.mxu0 0.0
    %623 = vmatmul.mubr.f32.gmra.mrb[0].mxu0 %v241
    %v624 = vpop.f32.mrb[0].mxu0
    %v625 = vadd.f32 %v106, %v624
    %v626 = vpop.f32.mrb[0].mxu0
    %v627 = vadd.f32 %v110, %v626
    %628 = vmatprep.mubr.f32.mxu0 0.0
    %629 = vmatmul.mubr.f32.gmra.mrb[0].mxu0 %v244
    %v630 = vpop.f32.mrb[0].mxu0
    %v631 = vadd.f32 %v106, %v630
    %v632 = vpop.f32.mrb[0].mxu0
    %v633 = vadd.f32 %v110, %v632
    %634 = vmatprep.mubr.f32.mxu0 0.0
    %635 = vmatmul.mubr.f32.gmra.mrb[0].mxu0 %v247
    %v636 = vpop.f32.mrb[0].mxu0
    %v637 = vadd.f32 %v106, %v636
    %v638 = vpop.f32.mrb[0].mxu0
    %v639 = vadd.f32 %v110, %v638
    %640 = vmatprep.mubr.f32.mxu0 0.0
    %641 = vmatmul.mubr.f32.gmra.mrb[0].mxu0 %v250
    %v642 = vpop.f32.mrb[0].mxu0
    %v643 = vadd.f32 %v106, %v642
    %v644 = vpop.f32.mrb[0].mxu0
    %v645 = vadd.f32 %v110, %v644
    %646 = vmatprep.mubr.f32.mxu0 0.0
    %647 = vmatmul.mubr.f32.gmra.mrb[0].mxu0 %v253
    %v648 = vpop.f32.mrb[0].mxu0
    %v649 = vadd.f32 %v106, %v648
    %v650 = vpop.f32.mrb[0].mxu0
    %v651 = vadd.f32 %v110, %v650
    %652 = vmatprep.mubr.f32.mxu0 0.0
    %653 = vmatmul.mubr.f32.gmra.mrb[0].mxu0 %v256
    %v654 = vpop.f32.mrb[0].mxu0
    %v655 = vadd.f32 %v106, %v654
    %v656 = vpop.f32.mrb[0].mxu0
    %v657 = vadd.f32 %v110, %v656
    %658 = vmatprep.mubr.f32.mxu0 0.0
    %659 = vmatmul.mubr.f32.gmra.mrb[0].mxu0 %v259
    %v660 = vpop.f32.mrb[0].mxu0
    %v661 = vadd.f32 %v106, %v660
    %v662 = vpop.f32.mrb[0].mxu0
    %v663 = vadd.f32 %v110, %v662
    %664 = vmatprep.mubr.f32.mxu0 0.0
    %665 = vmatmul.mubr.f32.gmra.mrb[0].mxu0 %v262
    %v666 = vpop.f32.mrb[0].mxu0
    %v667 = vadd.f32 %v106, %v666
    %v668 = vpop.f32.mrb[0].mxu0
    %v669 = vadd.f32 %v110, %v668
    %670 = vmatprep.mubr.f32.mxu0 0.0
    %671 = vmatmul.mubr.f32.gmra.mrb[0].mxu0 %v265
    %v672 = vpop.f32.mrb[0].mxu0
    %v673 = vadd.f32 %v106, %v672
    %v674 = vpop.f32.mrb[0].mxu0
    %v675 = vadd.f32 %v110, %v674
    %676 = vmatprep.mubr.f32.mxu0 0.0
    %677 = vmatmul.mubr.f32.gmra.mrb[0].mxu0 %v268
    %v678 = vpop.f32.mrb[0].mxu0
    %v679 = vadd.f32 %v106, %v678
    %v680 = vpop.f32.mrb[0].mxu0
    %v681 = vadd.f32 %v110, %v680
    %682 = vmatprep.mubr.f32.mxu0 0.0
    %683 = vmatmul.mubr.f32.gmra.mrb[0].mxu0 %v271
    %v684 = vpop.f32.mrb[0].mxu0
    %v685 = vadd.f32 %v106, %v684
    %v686 = vpop.f32.mrb[0].mxu0
    %v687 = vadd.f32 %v110, %v686
    %688 = vmatprep.mubr.f32.mxu0 0.0
    %689 = vmatmul.mubr.f32.gmra.mrb[0].mxu0 %v274
    %v690 = vpop.f32.mrb[0].mxu0
    %v691 = vadd.f32 %v106, %v690
    %v692 = vpop.f32.mrb[0].mxu0
    %v693 = vadd.f32 %v110, %v692
    %694 = vmatprep.mubr.f32.mxu0 0.0
    %695 = vmatmul.mubr.f32.gmra.mrb[0].mxu0 %v277
    %v696 = vpop.f32.mrb[0].mxu0
    %v697 = vadd.f32 %v106, %v696
    %v698 = vpop.f32.mrb[0].mxu0
    %v699 = vadd.f32 %v110, %v698
    %700 = vmatprep.mubr.f32.mxu0 0.0
    %701 = vmatmul.mubr.f32.gmra.mrb[0].mxu0 %v280
    %v702 = vpop.f32.mrb[0].mxu0
    %v703 = vadd.f32 %v106, %v702
    %v704 = vpop.f32.mrb[0].mxu0
    %v705 = vadd.f32 %v110, %v704
    %706 = vmatprep.mubr.f32.mxu0 0.0
    %707 = vmatmul.mubr.f32.gmra.mrb[0].mxu0 %v283
    %v708 = vpop.f32.mrb[0].mxu0
    %v709 = vadd.f32 %v106, %v708
    %v710 = vpop.f32.mrb[0].mxu0
    %v711 = vadd.f32 %v110, %v710
    %712 = vmatprep.mubr.f32.mxu0 0.0
    %713 = vmatmul.mubr.f32.gmra.mrb[0].mxu0 %v286
    %v714 = vpop.f32.mrb[0].mxu0
    %v715 = vadd.f32 %v106, %v714
    %v716 = vpop.f32.mrb[0].mxu0
    %v717 = vadd.f32 %v110, %v716
    %718 = vmatprep.mubr.f32.mxu0 0.0
    %719 = vmatmul.mubr.f32.gmra.mrb[0].mxu0 %v289
    %v720 = vpop.f32.mrb[0].mxu0
    %v721 = vadd.f32 %v106, %v720
    %v722 = vpop.f32.mrb[0].mxu0
    %v723 = vadd.f32 %v110, %v722
    %724 = vmatprep.mubr.f32.mxu0 0.0
    %725 = vmatmul.mubr.f32.gmra.mrb[0].mxu0 %v292
    %v726 = vpop.f32.mrb[0].mxu0
    %v727 = vadd.f32 %v106, %v726
    %v728 = vpop.f32.mrb[0].mxu0
    %v729 = vadd.f32 %v110, %v728
    %730 = vmatprep.mubr.f32.mxu0 0.0
    %731 = vmatmul.mubr.f32.gmra.mrb[0].mxu0 %v295
    %v732 = vpop.f32.mrb[0].mxu0
    %v733 = vadd.f32 %v106, %v732
    %v734 = vpop.f32.mrb[0].mxu0
    %v735 = vadd.f32 %v110, %v734
    %736 = vmatprep.mubr.f32.mxu0 0.0
    %737 = vmatmul.mubr.f32.gmra.mrb[0].mxu0 %v298
    %v738 = vpop.f32.mrb[0].mxu0
    %v739 = vadd.f32 %v106, %v738
    %v740 = vpop.f32.mrb[0].mxu0
    %v741 = vadd.f32 %v110, %v740
    %742 = vmatprep.mubr.f32.mxu0 0.0
    %743 = vmatmul.mubr.f32.gmra.mrb[0].mxu0 %v301
    %v744 = vpop.f32.mrb[0].mxu0
    %v745 = vadd.f32 %v106, %v744
    %v746 = vpop.f32.mrb[0].mxu0
    %v747 = vadd.f32 %v110, %v746
    %748 = vmatprep.mubr.f32.mxu0 0.0
    %749 = vmatmul.mubr.f32.gmra.mrb[0].mxu0 %v304
    %v750 = vpop.f32.mrb[0].mxu0
    %v751 = vadd.f32 %v106, %v750
    %v752 = vpop.f32.mrb[0].mxu0
    %v753 = vadd.f32 %v110, %v752
    %754 = vdwg.mxu0
    %v755 = vld [vmem:[%s3] sm:$0xff]
    %v756 = vld [vmem:[%s3 + $0x8] sm:$0xff]
    %v757 = vld [vmem:[%s3 + $0x10] sm:$0xff]
    %v758 = vld [vmem:[%s3 + $0x18] sm:$0xff]
    %v759 = vld [vmem:[%s3 + $0x20] sm:$0xff]
    %v760 = vld [vmem:[%s3 + $0x28] sm:$0xff]
    %v761 = vld [vmem:[%s3 + $0x30] sm:$0xff]
    %v762 = vld [vmem:[%s3 + $0x38] sm:$0xff]
    %v763 = vld [vmem:[%s3 + $0x40] sm:$0xff]
    %v764 = vld [vmem:[%s3 + $0x48] sm:$0xff]
    %v765 = vld [vmem:[%s3 + $0x50] sm:$0xff]
    %v766 = vld [vmem:[%s3 + $0x58] sm:$0xff]
    %v767 = vld [vmem:[%s3 + $0x60] sm:$0xff]
    %v768 = vld [vmem:[%s3 + $0x68] sm:$0xff]
    %v769 = vld [vmem:[%s3 + $0x70] sm:$0xff]
    %v770 = vld [vmem:[%s3 + $0x78] sm:$0xff]
    %v771 = vld [vmem:[%s3 + $0x80] sm:$0xff]
    %v772 = vld [vmem:[%s3 + $0x88] sm:$0xff]
    %v773 = vld [vmem:[%s3 + $0x90] sm:$0xff]
    %v774 = vld [vmem:[%s3 + $0x98] sm:$0xff]
    %v775 = vld [vmem:[%s3 + $0xa0] sm:$0xff]
    %v776 = vld [vmem:[%s3 + $0xa8] sm:$0xff]
    %v777 = vld [vmem:[%s3 + $0xb0] sm:$0xff]
    %v778 = vld [vmem:[%s3 + $0xb8] sm:$0xff]
    %v779 = vld [vmem:[%s3 + $0xc0] sm:$0xff]
    %v780 = vld [vmem:[%s3 + $0xc8] sm:$0xff]
    %v781 = vld [vmem:[%s3 + $0xd0] sm:$0xff]
    %v782 = vld [vmem:[%s3 + $0xd8] sm:$0xff]
    %v783 = vld [vmem:[%s3 + $0xe0] sm:$0xff]
    %v784 = vld [vmem:[%s3 + $0xe8] sm:$0xff]
    %v785 = vld [vmem:[%s3 + $0xf0] sm:$0xff]
    %v786 = vld [vmem:[%s3 + $0xf8] sm:$0xff]
    %v787 = vld [vmem:[%s3 + $0x100] sm:$0xff]
    %v788 = vld [vmem:[%s3 + $0x108] sm:$0xff]
    %v789 = vld [vmem:[%s3 + $0x110] sm:$0xff]
    %v790 = vld [vmem:[%s3 + $0x118] sm:$0xff]
    %v791 = vld [vmem:[%s3 + $0x120] sm:$0xff]
    %v792 = vld [vmem:[%s3 + $0x128] sm:$0xff]
    %v793 = vld [vmem:[%s3 + $0x130] sm:$0xff]
    %v794 = vld [vmem:[%s3 + $0x138] sm:$0xff]
    %v795 = vld [vmem:[%s3 + $0x140] sm:$0xff]
    %v796 = vld [vmem:[%s3 + $0x148] sm:$0xff]
    %v797 = vld [vmem:[%s3 + $0x150] sm:$0xff]
    %v798 = vld [vmem:[%s3 + $0x158] sm:$0xff]
    %v799 = vld [vmem:[%s3 + $0x160] sm:$0xff]
    %v800 = vld [vmem:[%s3 + $0x168] sm:$0xff]
    %v801 = vld [vmem:[%s3 + $0x170] sm:$0xff]
    %v802 = vld [vmem:[%s3 + $0x178] sm:$0xff]
    %v803 = vld [vmem:[%s3 + $0x180] sm:$0xff]
    %v804 = vld [vmem:[%s3 + $0x188] sm:$0xff]
    %v805 = vld [vmem:[%s3 + $0x190] sm:$0xff]
    %v806 = vld [vmem:[%s3 + $0x198] sm:$0xff]
    %v807 = vld [vmem:[%s3 + $0x1a0] sm:$0xff]
    %v808 = vld [vmem:[%s3 + $0x1a8] sm:$0xff]
    %v809 = vld [vmem:[%s3 + $0x1b0] sm:$0xff]
    %v810 = vld [vmem:[%s3 + $0x1b8] sm:$0xff]
    %v811 = vld [vmem:[%s3 + $0x1c0] sm:$0xff]
    %v812 = vld [vmem:[%s3 + $0x1c8] sm:$0xff]
    %v813 = vld [vmem:[%s3 + $0x1d0] sm:$0xff]
    %v814 = vld [vmem:[%s3 + $0x1d8] sm:$0xff]
    %v815 = vld [vmem:[%s3 + $0x1e0] sm:$0xff]
    %v816 = vld [vmem:[%s3 + $0x1e8] sm:$0xff]
    %v817 = vld [vmem:[%s3 + $0x1f0] sm:$0xff]
    %v818 = vld [vmem:[%s3 + $0x1f8] sm:$0xff]
    %v819 = vld [vmem:[%s4] sm:$0x3]
    %v821 = vlaneseq
    %v822 = vshrl.u32 %v821, 7
    %v823 = vsub.s32 0, %v822
    %v824 = vrot.slane %v819, %v823
    %v825 = vlaneseq
    %v826 = vshrl.u32 %v825, 7
    %v827 = vsub.s32 1, %v826
    %v828 = vrot.slane %v819, %v827
    %831 = vmatprep.subr.mxu0 %v756
    %832 = vmatpush1.msra.mxu0 %v755
    %833 = vmatprep.subr.mxu0 %v758
    %834 = vmatpush1.msra.mxu0 %v757
    %835 = vmatprep.subr.mxu0 %v760
    %836 = vmatpush1.msra.mxu0 %v759
    %837 = vmatprep.subr.mxu0 %v762
    %838 = vmatpush1.msra.mxu0 %v761
    %839 = vmatprep.subr.mxu0 %v764
    %840 = vmatpush1.msra.mxu0 %v763
    %841 = vmatprep.subr.mxu0 %v766
    %842 = vmatpush1.msra.mxu0 %v765
    %843 = vmatprep.subr.mxu0 %v768
    %844 = vmatpush1.msra.mxu0 %v767
    %845 = vmatprep.subr.mxu0 %v770
    %846 = vmatpush1.msra.mxu0 %v769
    %847 = vmatprep.subr.mxu0 %v772
    %848 = vmatpush1.msra.mxu0 %v771
    %849 = vmatprep.subr.mxu0 %v774
    %850 = vmatpush1.msra.mxu0 %v773
    %851 = vmatprep.subr.mxu0 %v776
    %852 = vmatpush1.msra.mxu0 %v775
    %853 = vmatprep.subr.mxu0 %v778
    %854 = vmatpush1.msra.mxu0 %v777
    %855 = vmatprep.subr.mxu0 %v780
    %856 = vmatpush1.msra.mxu0 %v779
    %857 = vmatprep.subr.mxu0 %v782
    %858 = vmatpush1.msra.mxu0 %v781
    %859 = vmatprep.subr.mxu0 %v784
    %860 = vmatpush1.msra.mxu0 %v783
    %861 = vmatprep.subr.mxu0 %v786
    %862 = vmatpush1.msra.mxu0 %v785
    %863 = vmatprep.subr.mxu0 %v788
    %864 = vmatpush1.msra.mxu0 %v787
    %865 = vmatprep.subr.mxu0 %v790
    %866 = vmatpush1.msra.mxu0 %v789
    %867 = vmatprep.subr.mxu0 %v792
    %868 = vmatpush1.msra.mxu0 %v791
    %869 = vmatprep.subr.mxu0 %v794
    %870 = vmatpush1.msra.mxu0 %v793
    %871 = vmatprep.subr.mxu0 %v796
    %872 = vmatpush1.msra.mxu0 %v795
    %873 = vmatprep.subr.mxu0 %v798
    %874 = vmatpush1.msra.mxu0 %v797
    %875 = vmatprep.subr.mxu0 %v800
    %876 = vmatpush1.msra.mxu0 %v799
    %877 = vmatprep.subr.mxu0 %v802
    %878 = vmatpush1.msra.mxu0 %v801
    %879 = vmatprep.subr.mxu0 %v804
    %880 = vmatpush1.msra.mxu0 %v803
    %881 = vmatprep.subr.mxu0 %v806
    %882 = vmatpush1.msra.mxu0 %v805
    %883 = vmatprep.subr.mxu0 %v808
    %884 = vmatpush1.msra.mxu0 %v807
    %885 = vmatprep.subr.mxu0 %v810
    %886 = vmatpush1.msra.mxu0 %v809
    %887 = vmatprep.subr.mxu0 %v812
    %888 = vmatpush1.msra.mxu0 %v811
    %889 = vmatprep.subr.mxu0 %v814
    %890 = vmatpush1.msra.mxu0 %v813
    %891 = vmatprep.subr.mxu0 %v816
    %892 = vmatpush1.msra.mxu0 %v815
    %893 = vmatprep.subr.mxu0 %v818
    %894 = vmatpush1.msra.mxu0 %v817
    %895 = vmatprep.mubr.f32.mxu0 %v375
    %896 = vmatmul.mubr.f32.gmra.mrb[0].mxu0 %v373
    %v897 = vpop.f32.mrb[0].mxu0
    %v898 = vadd.f32 %v824, %v897
    %v899 = vpop.f32.mrb[0].mxu0
    %v900 = vadd.f32 %v828, %v899
    %901 = vmatprep.mubr.f32.mxu0 %v381
    %902 = vmatmul.mubr.f32.gmra.mrb[0].mxu0 %v379
    %v903 = vpop.f32.mrb[0].mxu0
    %v904 = vadd.f32 %v824, %v903
    %v905 = vpop.f32.mrb[0].mxu0
    %v906 = vadd.f32 %v828, %v905
    %907 = vmatprep.mubr.f32.mxu0 %v387
    %908 = vmatmul.mubr.f32.gmra.mrb[0].mxu0 %v385
    %v909 = vpop.f32.mrb[0].mxu0
    %v910 = vadd.f32 %v824, %v909
    %v911 = vpop.f32.mrb[0].mxu0
    %v912 = vadd.f32 %v828, %v911
    %913 = vmatprep.mubr.f32.mxu0 %v393
    %914 = vmatmul.mubr.f32.gmra.mrb[0].mxu0 %v391
    %v915 = vpop.f32.mrb[0].mxu0
    %v916 = vadd.f32 %v824, %v915
    %v917 = vpop.f32.mrb[0].mxu0
    %v918 = vadd.f32 %v828, %v917
    %919 = vmatprep.mubr.f32.mxu0 %v399
    %920 = vmatmul.mubr.f32.gmra.mrb[0].mxu0 %v397
    %v921 = vpop.f32.mrb[0].mxu0
    %v922 = vadd.f32 %v824, %v921
    %v923 = vpop.f32.mrb[0].mxu0
    %v924 = vadd.f32 %v828, %v923
    %925 = vmatprep.mubr.f32.mxu0 %v405
    %926 = vmatmul.mubr.f32.gmra.mrb[0].mxu0 %v403
    %v927 = vpop.f32.mrb[0].mxu0
    %v928 = vadd.f32 %v824, %v927
    %v929 = vpop.f32.mrb[0].mxu0
    %v930 = vadd.f32 %v828, %v929
    %931 = vmatprep.mubr.f32.mxu0 %v411
    %932 = vmatmul.mubr.f32.gmra.mrb[0].mxu0 %v409
    %v933 = vpop.f32.mrb[0].mxu0
    %v934 = vadd.f32 %v824, %v933
    %v935 = vpop.f32.mrb[0].mxu0
    %v936 = vadd.f32 %v828, %v935
    %937 = vmatprep.mubr.f32.mxu0 %v417
    %938 = vmatmul.mubr.f32.gmra.mrb[0].mxu0 %v415
    %v939 = vpop.f32.mrb[0].mxu0
    %v940 = vadd.f32 %v824, %v939
    %v941 = vpop.f32.mrb[0].mxu0
    %v942 = vadd.f32 %v828, %v941
    %943 = vmatprep.mubr.f32.mxu0 %v423
    %944 = vmatmul.mubr.f32.gmra.mrb[0].mxu0 %v421
    %v945 = vpop.f32.mrb[0].mxu0
    %v946 = vadd.f32 %v824, %v945
    %v947 = vpop.f32.mrb[0].mxu0
    %v948 = vadd.f32 %v828, %v947
    %949 = vmatprep.mubr.f32.mxu0 %v429
    %950 = vmatmul.mubr.f32.gmra.mrb[0].mxu0 %v427
    %v951 = vpop.f32.mrb[0].mxu0
    %v952 = vadd.f32 %v824, %v951
    %v953 = vpop.f32.mrb[0].mxu0
    %v954 = vadd.f32 %v828, %v953
    %955 = vmatprep.mubr.f32.mxu0 %v435
    %956 = vmatmul.mubr.f32.gmra.mrb[0].mxu0 %v433
    %v957 = vpop.f32.mrb[0].mxu0
    %v958 = vadd.f32 %v824, %v957
    %v959 = vpop.f32.mrb[0].mxu0
    %v960 = vadd.f32 %v828, %v959
    %961 = vmatprep.mubr.f32.mxu0 %v441
    %962 = vmatmul.mubr.f32.gmra.mrb[0].mxu0 %v439
    %v963 = vpop.f32.mrb[0].mxu0
    %v964 = vadd.f32 %v824, %v963
    %v965 = vpop.f32.mrb[0].mxu0
    %v966 = vadd.f32 %v828, %v965
    %967 = vmatprep.mubr.f32.mxu0 %v447
    %968 = vmatmul.mubr.f32.gmra.mrb[0].mxu0 %v445
    %v969 = vpop.f32.mrb[0].mxu0
    %v970 = vadd.f32 %v824, %v969
    %v971 = vpop.f32.mrb[0].mxu0
    %v972 = vadd.f32 %v828, %v971
    %973 = vmatprep.mubr.f32.mxu0 %v453
    %974 = vmatmul.mubr.f32.gmra.mrb[0].mxu0 %v451
    %v975 = vpop.f32.mrb[0].mxu0
    %v976 = vadd.f32 %v824, %v975
    %v977 = vpop.f32.mrb[0].mxu0
    %v978 = vadd.f32 %v828, %v977
    %979 = vmatprep.mubr.f32.mxu0 %v459
    %980 = vmatmul.mubr.f32.gmra.mrb[0].mxu0 %v457
    %v981 = vpop.f32.mrb[0].mxu0
    %v982 = vadd.f32 %v824, %v981
    %v983 = vpop.f32.mrb[0].mxu0
    %v984 = vadd.f32 %v828, %v983
    %985 = vmatprep.mubr.f32.mxu0 %v465
    %986 = vmatmul.mubr.f32.gmra.mrb[0].mxu0 %v463
    %v987 = vpop.f32.mrb[0].mxu0
    %v988 = vadd.f32 %v824, %v987
    %v989 = vpop.f32.mrb[0].mxu0
    %v990 = vadd.f32 %v828, %v989
    %991 = vmatprep.mubr.f32.mxu0 %v471
    %992 = vmatmul.mubr.f32.gmra.mrb[0].mxu0 %v469
    %v993 = vpop.f32.mrb[0].mxu0
    %v994 = vadd.f32 %v824, %v993
    %v995 = vpop.f32.mrb[0].mxu0
    %v996 = vadd.f32 %v828, %v995
    %997 = vmatprep.mubr.f32.mxu0 %v477
    %998 = vmatmul.mubr.f32.gmra.mrb[0].mxu0 %v475
    %v999 = vpop.f32.mrb[0].mxu0
    %v1000 = vadd.f32 %v824, %v999
    %v1001 = vpop.f32.mrb[0].mxu0
    %v1002 = vadd.f32 %v828, %v1001
    %1003 = vmatprep.mubr.f32.mxu0 %v483
    %1004 = vmatmul.mubr.f32.gmra.mrb[0].mxu0 %v481
    %v1005 = vpop.f32.mrb[0].mxu0
    %v1006 = vadd.f32 %v824, %v1005
    %v1007 = vpop.f32.mrb[0].mxu0
    %v1008 = vadd.f32 %v828, %v1007
    %1009 = vmatprep.mubr.f32.mxu0 %v489
    %1010 = vmatmul.mubr.f32.gmra.mrb[0].mxu0 %v487
    %v1011 = vpop.f32.mrb[0].mxu0
    %v1012 = vadd.f32 %v824, %v1011
    %v1013 = vpop.f32.mrb[0].mxu0
    %v1014 = vadd.f32 %v828, %v1013
    %1015 = vmatprep.mubr.f32.mxu0 %v495
    %1016 = vmatmul.mubr.f32.gmra.mrb[0].mxu0 %v493
    %v1017 = vpop.f32.mrb[0].mxu0
    %v1018 = vadd.f32 %v824, %v1017
    %v1019 = vpop.f32.mrb[0].mxu0
    %v1020 = vadd.f32 %v828, %v1019
    %1021 = vmatprep.mubr.f32.mxu0 %v501
    %1022 = vmatmul.mubr.f32.gmra.mrb[0].mxu0 %v499
    %v1023 = vpop.f32.mrb[0].mxu0
    %v1024 = vadd.f32 %v824, %v1023
    %v1025 = vpop.f32.mrb[0].mxu0
    %v1026 = vadd.f32 %v828, %v1025
    %1027 = vmatprep.mubr.f32.mxu0 %v507
    %1028 = vmatmul.mubr.f32.gmra.mrb[0].mxu0 %v505
    %v1029 = vpop.f32.mrb[0].mxu0
    %v1030 = vadd.f32 %v824, %v1029
    %v1031 = vpop.f32.mrb[0].mxu0
    %v1032 = vadd.f32 %v828, %v1031
    %1033 = vmatprep.mubr.f32.mxu0 %v513
    %1034 = vmatmul.mubr.f32.gmra.mrb[0].mxu0 %v511
    %v1035 = vpop.f32.mrb[0].mxu0
    %v1036 = vadd.f32 %v824, %v1035
    %v1037 = vpop.f32.mrb[0].mxu0
    %v1038 = vadd.f32 %v828, %v1037
    %1039 = vmatprep.mubr.f32.mxu0 %v519
    %1040 = vmatmul.mubr.f32.gmra.mrb[0].mxu0 %v517
    %v1041 = vpop.f32.mrb[0].mxu0
    %v1042 = vadd.f32 %v824, %v1041
    %v1043 = vpop.f32.mrb[0].mxu0
    %v1044 = vadd.f32 %v828, %v1043
    %1045 = vmatprep.mubr.f32.mxu0 %v525
    %1046 = vmatmul.mubr.f32.gmra.mrb[0].mxu0 %v523
    %v1047 = vpop.f32.mrb[0].mxu0
    %v1048 = vadd.f32 %v824, %v1047
    %v1049 = vpop.f32.mrb[0].mxu0
    %v1050 = vadd.f32 %v828, %v1049
    %1051 = vmatprep.mubr.f32.mxu0 %v531
    %1052 = vmatmul.mubr.f32.gmra.mrb[0].mxu0 %v529
    %v1053 = vpop.f32.mrb[0].mxu0
    %v1054 = vadd.f32 %v824, %v1053
    %v1055 = vpop.f32.mrb[0].mxu0
    %v1056 = vadd.f32 %v828, %v1055
    %1057 = vmatprep.mubr.f32.mxu0 %v537
    %1058 = vmatmul.mubr.f32.gmra.mrb[0].mxu0 %v535
    %v1059 = vpop.f32.mrb[0].mxu0
    %v1060 = vadd.f32 %v824, %v1059
    %v1061 = vpop.f32.mrb[0].mxu0
    %v1062 = vadd.f32 %v828, %v1061
    %1063 = vmatprep.mubr.f32.mxu0 %v543
    %1064 = vmatmul.mubr.f32.gmra.mrb[0].mxu0 %v541
    %v1065 = vpop.f32.mrb[0].mxu0
    %v1066 = vadd.f32 %v824, %v1065
    %v1067 = vpop.f32.mrb[0].mxu0
    %v1068 = vadd.f32 %v828, %v1067
    %1069 = vmatprep.mubr.f32.mxu0 %v549
    %1070 = vmatmul.mubr.f32.gmra.mrb[0].mxu0 %v547
    %v1071 = vpop.f32.mrb[0].mxu0
    %v1072 = vadd.f32 %v824, %v1071
    %v1073 = vpop.f32.mrb[0].mxu0
    %v1074 = vadd.f32 %v828, %v1073
    %1075 = vmatprep.mubr.f32.mxu0 %v555
    %1076 = vmatmul.mubr.f32.gmra.mrb[0].mxu0 %v553
    %v1077 = vpop.f32.mrb[0].mxu0
    %v1078 = vadd.f32 %v824, %v1077
    %v1079 = vpop.f32.mrb[0].mxu0
    %v1080 = vadd.f32 %v828, %v1079
    %1081 = vmatprep.mubr.f32.mxu0 %v561
    %1082 = vmatmul.mubr.f32.gmra.mrb[0].mxu0 %v559
    %v1083 = vpop.f32.mrb[0].mxu0
    %v1084 = vadd.f32 %v824, %v1083
    %v1085 = vpop.f32.mrb[0].mxu0
    %v1086 = vadd.f32 %v828, %v1085
    %1087 = vmatprep.mubr.f32.mxu0 %v567
    %1088 = vmatmul.mubr.f32.gmra.mrb[0].mxu0 %v565
    %v1089 = vpop.f32.mrb[0].mxu0
    %v1090 = vadd.f32 %v824, %v1089
    %v1091 = vpop.f32.mrb[0].mxu0
    %v1092 = vadd.f32 %v828, %v1091
    %1093 = vmatprep.mubr.f32.mxu0 %v573
    %1094 = vmatmul.mubr.f32.gmra.mrb[0].mxu0 %v571
    %v1095 = vpop.f32.mrb[0].mxu0
    %v1096 = vadd.f32 %v824, %v1095
    %v1097 = vpop.f32.mrb[0].mxu0
    %v1098 = vadd.f32 %v828, %v1097
    %1099 = vmatprep.mubr.f32.mxu0 %v579
    %1100 = vmatmul.mubr.f32.gmra.mrb[0].mxu0 %v577
    %v1101 = vpop.f32.mrb[0].mxu0
    %v1102 = vadd.f32 %v824, %v1101
    %v1103 = vpop.f32.mrb[0].mxu0
    %v1104 = vadd.f32 %v828, %v1103
    %1105 = vmatprep.mubr.f32.mxu0 %v585
    %1106 = vmatmul.mubr.f32.gmra.mrb[0].mxu0 %v583
    %v1107 = vpop.f32.mrb[0].mxu0
    %v1108 = vadd.f32 %v824, %v1107
    %v1109 = vpop.f32.mrb[0].mxu0
    %v1110 = vadd.f32 %v828, %v1109
    %1111 = vmatprep.mubr.f32.mxu0 %v591
    %1112 = vmatmul.mubr.f32.gmra.mrb[0].mxu0 %v589
    %v1113 = vpop.f32.mrb[0].mxu0
    %v1114 = vadd.f32 %v824, %v1113
    %v1115 = vpop.f32.mrb[0].mxu0
    %v1116 = vadd.f32 %v828, %v1115
    %1117 = vmatprep.mubr.f32.mxu0 %v597
    %1118 = vmatmul.mubr.f32.gmra.mrb[0].mxu0 %v595
    %v1119 = vpop.f32.mrb[0].mxu0
    %v1120 = vadd.f32 %v824, %v1119
    %v1121 = vpop.f32.mrb[0].mxu0
    %v1122 = vadd.f32 %v828, %v1121
    %1123 = vmatprep.mubr.f32.mxu0 %v603
    %1124 = vmatmul.mubr.f32.gmra.mrb[0].mxu0 %v601
    %v1125 = vpop.f32.mrb[0].mxu0
    %v1126 = vadd.f32 %v824, %v1125
    %v1127 = vpop.f32.mrb[0].mxu0
    %v1128 = vadd.f32 %v828, %v1127
    %1129 = vmatprep.mubr.f32.mxu0 %v609
    %1130 = vmatmul.mubr.f32.gmra.mrb[0].mxu0 %v607
    %v1131 = vpop.f32.mrb[0].mxu0
    %v1132 = vadd.f32 %v824, %v1131
    %v1133 = vpop.f32.mrb[0].mxu0
    %v1134 = vadd.f32 %v828, %v1133
    %1135 = vmatprep.mubr.f32.mxu0 %v615
    %1136 = vmatmul.mubr.f32.gmra.mrb[0].mxu0 %v613
    %v1137 = vpop.f32.mrb[0].mxu0
    %v1138 = vadd.f32 %v824, %v1137
    %v1139 = vpop.f32.mrb[0].mxu0
    %v1140 = vadd.f32 %v828, %v1139
    %1141 = vmatprep.mubr.f32.mxu0 %v621
    %1142 = vmatmul.mubr.f32.gmra.mrb[0].mxu0 %v619
    %v1143 = vpop.f32.mrb[0].mxu0
    %v1144 = vadd.f32 %v824, %v1143
    %v1145 = vpop.f32.mrb[0].mxu0
    %v1146 = vadd.f32 %v828, %v1145
    %1147 = vmatprep.mubr.f32.mxu0 %v627
    %1148 = vmatmul.mubr.f32.gmra.mrb[0].mxu0 %v625
    %v1149 = vpop.f32.mrb[0].mxu0
    %v1150 = vadd.f32 %v824, %v1149
    %v1151 = vpop.f32.mrb[0].mxu0
    %v1152 = vadd.f32 %v828, %v1151
    %1153 = vmatprep.mubr.f32.mxu0 %v633
    %1154 = vmatmul.mubr.f32.gmra.mrb[0].mxu0 %v631
    %v1155 = vpop.f32.mrb[0].mxu0
    %v1156 = vadd.f32 %v824, %v1155
    %v1157 = vpop.f32.mrb[0].mxu0
    %v1158 = vadd.f32 %v828, %v1157
    %1159 = vmatprep.mubr.f32.mxu0 %v639
    %1160 = vmatmul.mubr.f32.gmra.mrb[0].mxu0 %v637
    %v1161 = vpop.f32.mrb[0].mxu0
    %v1162 = vadd.f32 %v824, %v1161
    %v1163 = vpop.f32.mrb[0].mxu0
    %v1164 = vadd.f32 %v828, %v1163
    %1165 = vmatprep.mubr.f32.mxu0 %v645
    %1166 = vmatmul.mubr.f32.gmra.mrb[0].mxu0 %v643
    %v1167 = vpop.f32.mrb[0].mxu0
    %v1168 = vadd.f32 %v824, %v1167
    %v1169 = vpop.f32.mrb[0].mxu0
    %v1170 = vadd.f32 %v828, %v1169
    %1171 = vmatprep.mubr.f32.mxu0 %v651
    %1172 = vmatmul.mubr.f32.gmra.mrb[0].mxu0 %v649
    %v1173 = vpop.f32.mrb[0].mxu0
    %v1174 = vadd.f32 %v824, %v1173
    %v1175 = vpop.f32.mrb[0].mxu0
    %v1176 = vadd.f32 %v828, %v1175
    %1177 = vmatprep.mubr.f32.mxu0 %v657
    %1178 = vmatmul.mubr.f32.gmra.mrb[0].mxu0 %v655
    %v1179 = vpop.f32.mrb[0].mxu0
    %v1180 = vadd.f32 %v824, %v1179
    %v1181 = vpop.f32.mrb[0].mxu0
    %v1182 = vadd.f32 %v828, %v1181
    %1183 = vmatprep.mubr.f32.mxu0 %v663
    %1184 = vmatmul.mubr.f32.gmra.mrb[0].mxu0 %v661
    %v1185 = vpop.f32.mrb[0].mxu0
    %v1186 = vadd.f32 %v824, %v1185
    %v1187 = vpop.f32.mrb[0].mxu0
    %v1188 = vadd.f32 %v828, %v1187
    %1189 = vmatprep.mubr.f32.mxu0 %v669
    %1190 = vmatmul.mubr.f32.gmra.mrb[0].mxu0 %v667
    %v1191 = vpop.f32.mrb[0].mxu0
    %v1192 = vadd.f32 %v824, %v1191
    %v1193 = vpop.f32.mrb[0].mxu0
    %v1194 = vadd.f32 %v828, %v1193
    %1195 = vmatprep.mubr.f32.mxu0 %v675
    %1196 = vmatmul.mubr.f32.gmra.mrb[0].mxu0 %v673
    %v1197 = vpop.f32.mrb[0].mxu0
    %v1198 = vadd.f32 %v824, %v1197
    %v1199 = vpop.f32.mrb[0].mxu0
    %v1200 = vadd.f32 %v828, %v1199
    %1201 = vmatprep.mubr.f32.mxu0 %v681
    %1202 = vmatmul.mubr.f32.gmra.mrb[0].mxu0 %v679
    %v1203 = vpop.f32.mrb[0].mxu0
    %v1204 = vadd.f32 %v824, %v1203
    %v1205 = vpop.f32.mrb[0].mxu0
    %v1206 = vadd.f32 %v828, %v1205
    %1207 = vmatprep.mubr.f32.mxu0 %v687
    %1208 = vmatmul.mubr.f32.gmra.mrb[0].mxu0 %v685
    %v1209 = vpop.f32.mrb[0].mxu0
    %v1210 = vadd.f32 %v824, %v1209
    %v1211 = vpop.f32.mrb[0].mxu0
    %v1212 = vadd.f32 %v828, %v1211
    %1213 = vmatprep.mubr.f32.mxu0 %v693
    %1214 = vmatmul.mubr.f32.gmra.mrb[0].mxu0 %v691
    %v1215 = vpop.f32.mrb[0].mxu0
    %v1216 = vadd.f32 %v824, %v1215
    %v1217 = vpop.f32.mrb[0].mxu0
    %v1218 = vadd.f32 %v828, %v1217
    %1219 = vmatprep.mubr.f32.mxu0 %v699
    %1220 = vmatmul.mubr.f32.gmra.mrb[0].mxu0 %v697
    %v1221 = vpop.f32.mrb[0].mxu0
    %v1222 = vadd.f32 %v824, %v1221
    %v1223 = vpop.f32.mrb[0].mxu0
    %v1224 = vadd.f32 %v828, %v1223
    %1225 = vmatprep.mubr.f32.mxu0 %v705
    %1226 = vmatmul.mubr.f32.gmra.mrb[0].mxu0 %v703
    %v1227 = vpop.f32.mrb[0].mxu0
    %v1228 = vadd.f32 %v824, %v1227
    %v1229 = vpop.f32.mrb[0].mxu0
    %v1230 = vadd.f32 %v828, %v1229
    %1231 = vmatprep.mubr.f32.mxu0 %v711
    %1232 = vmatmul.mubr.f32.gmra.mrb[0].mxu0 %v709
    %v1233 = vpop.f32.mrb[0].mxu0
    %v1234 = vadd.f32 %v824, %v1233
    %v1235 = vpop.f32.mrb[0].mxu0
    %v1236 = vadd.f32 %v828, %v1235
    %1237 = vmatprep.mubr.f32.mxu0 %v717
    %1238 = vmatmul.mubr.f32.gmra.mrb[0].mxu0 %v715
    %v1239 = vpop.f32.mrb[0].mxu0
    %v1240 = vadd.f32 %v824, %v1239
    %v1241 = vpop.f32.mrb[0].mxu0
    %v1242 = vadd.f32 %v828, %v1241
    %1243 = vmatprep.mubr.f32.mxu0 %v723
    %1244 = vmatmul.mubr.f32.gmra.mrb[0].mxu0 %v721
    %v1245 = vpop.f32.mrb[0].mxu0
    %v1246 = vadd.f32 %v824, %v1245
    %v1247 = vpop.f32.mrb[0].mxu0
    %v1248 = vadd.f32 %v828, %v1247
    %1249 = vmatprep.mubr.f32.mxu0 %v729
    %1250 = vmatmul.mubr.f32.gmra.mrb[0].mxu0 %v727
    %v1251 = vpop.f32.mrb[0].mxu0
    %v1252 = vadd.f32 %v824, %v1251
    %v1253 = vpop.f32.mrb[0].mxu0
    %v1254 = vadd.f32 %v828, %v1253
    %1255 = vmatprep.mubr.f32.mxu0 %v735
    %1256 = vmatmul.mubr.f32.gmra.mrb[0].mxu0 %v733
    %v1257 = vpop.f32.mrb[0].mxu0
    %v1258 = vadd.f32 %v824, %v1257
    %v1259 = vpop.f32.mrb[0].mxu0
    %v1260 = vadd.f32 %v828, %v1259
    %1261 = vmatprep.mubr.f32.mxu0 %v741
    %1262 = vmatmul.mubr.f32.gmra.mrb[0].mxu0 %v739
    %v1263 = vpop.f32.mrb[0].mxu0
    %v1264 = vadd.f32 %v824, %v1263
    %v1265 = vpop.f32.mrb[0].mxu0
    %v1266 = vadd.f32 %v828, %v1265
    %1267 = vmatprep.mubr.f32.mxu0 %v747
    %1268 = vmatmul.mubr.f32.gmra.mrb[0].mxu0 %v745
    %v1269 = vpop.f32.mrb[0].mxu0
    %v1270 = vadd.f32 %v824, %v1269
    %v1271 = vpop.f32.mrb[0].mxu0
    %v1272 = vadd.f32 %v828, %v1271
    %1273 = vmatprep.mubr.f32.mxu0 %v753
    %1274 = vmatmul.mubr.f32.gmra.mrb[0].mxu0 %v751
    %v1275 = vpop.f32.mrb[0].mxu0
    %v1276 = vadd.f32 %v824, %v1275
    %v1277 = vpop.f32.mrb[0].mxu0
    %v1278 = vadd.f32 %v828, %v1277
    %1279 = vdwg.mxu0
    %1280 = vst [vmem:[#allocation2] sm:$0xff] %v898
    %1281 = vst [vmem:[#allocation2 + $0x8] sm:$0xff] %v900
    %1282 = vst [vmem:[#allocation2 + $0x10] sm:$0xff] %v904
    %1283 = vst [vmem:[#allocation2 + $0x18] sm:$0xff] %v906
    %1284 = vst [vmem:[#allocation2 + $0x20] sm:$0xff] %v910
    %1285 = vst [vmem:[#allocation2 + $0x28] sm:$0xff] %v912
    %1286 = vst [vmem:[#allocation2 + $0x30] sm:$0xff] %v916
    %1287 = vst [vmem:[#allocation2 + $0x38] sm:$0xff] %v918
    %1288 = vst [vmem:[#allocation2 + $0x40] sm:$0xff] %v922
    %1289 = vst [vmem:[#allocation2 + $0x48] sm:$0xff] %v924
    %1290 = vst [vmem:[#allocation2 + $0x50] sm:$0xff] %v928
    %1291 = vst [vmem:[#allocation2 + $0x58] sm:$0xff] %v930
    %1292 = vst [vmem:[#allocation2 + $0x60] sm:$0xff] %v934
    %1293 = vst [vmem:[#allocation2 + $0x68] sm:$0xff] %v936
    %1294 = vst [vmem:[#allocation2 + $0x70] sm:$0xff] %v940
    %1295 = vst [vmem:[#allocation2 + $0x78] sm:$0xff] %v942
    %1296 = vst [vmem:[#allocation2 + $0x80] sm:$0xff] %v946
    %1297 = vst [vmem:[#allocation2 + $0x88] sm:$0xff] %v948
    %1298 = vst [vmem:[#allocation2 + $0x90] sm:$0xff] %v952
    %1299 = vst [vmem:[#allocation2 + $0x98] sm:$0xff] %v954
    %1300 = vst [vmem:[#allocation2 + $0xa0] sm:$0xff] %v958
    %1301 = vst [vmem:[#allocation2 + $0xa8] sm:$0xff] %v960
    %1302 = vst [vmem:[#allocation2 + $0xb0] sm:$0xff] %v964
    %1303 = vst [vmem:[#allocation2 + $0xb8] sm:$0xff] %v966
    %1304 = vst [vmem:[#allocation2 + $0xc0] sm:$0xff] %v970
    %1305 = vst [vmem:[#allocation2 + $0xc8] sm:$0xff] %v972
    %1306 = vst [vmem:[#allocation2 + $0xd0] sm:$0xff] %v976
    %1307 = vst [vmem:[#allocation2 + $0xd8] sm:$0xff] %v978
    %1308 = vst [vmem:[#allocation2 + $0xe0] sm:$0xff] %v982
    %1309 = vst [vmem:[#allocation2 + $0xe8] sm:$0xff] %v984
    %1310 = vst [vmem:[#allocation2 + $0xf0] sm:$0xff] %v988
    %1311 = vst [vmem:[#allocation2 + $0xf8] sm:$0xff] %v990
    %1312 = vst [vmem:[#allocation2 + $0x100] sm:$0xff] %v994
    %1313 = vst [vmem:[#allocation2 + $0x108] sm:$0xff] %v996
    %1314 = vst [vmem:[#allocation2 + $0x110] sm:$0xff] %v1000
    %1315 = vst [vmem:[#allocation2 + $0x118] sm:$0xff] %v1002
    %1316 = vst [vmem:[#allocation2 + $0x120] sm:$0xff] %v1006
    %1317 = vst [vmem:[#allocation2 + $0x128] sm:$0xff] %v1008
    %1318 = vst [vmem:[#allocation2 + $0x130] sm:$0xff] %v1012
    %1319 = vst [vmem:[#allocation2 + $0x138] sm:$0xff] %v1014
    %1320 = vst [vmem:[#allocation2 + $0x140] sm:$0xff] %v1018
    %1321 = vst [vmem:[#allocation2 + $0x148] sm:$0xff] %v1020
    %1322 = vst [vmem:[#allocation2 + $0x150] sm:$0xff] %v1024
    %1323 = vst [vmem:[#allocation2 + $0x158] sm:$0xff] %v1026
    %1324 = vst [vmem:[#allocation2 + $0x160] sm:$0xff] %v1030
    %1325 = vst [vmem:[#allocation2 + $0x168] sm:$0xff] %v1032
    %1326 = vst [vmem:[#allocation2 + $0x170] sm:$0xff] %v1036
    %1327 = vst [vmem:[#allocation2 + $0x178] sm:$0xff] %v1038
    %1328 = vst [vmem:[#allocation2 + $0x180] sm:$0xff] %v1042
    %1329 = vst [vmem:[#allocation2 + $0x188] sm:$0xff] %v1044
    %1330 = vst [vmem:[#allocation2 + $0x190] sm:$0xff] %v1048
    %1331 = vst [vmem:[#allocation2 + $0x198] sm:$0xff] %v1050
    %1332 = vst [vmem:[#allocation2 + $0x1a0] sm:$0xff] %v1054
    %1333 = vst [vmem:[#allocation2 + $0x1a8] sm:$0xff] %v1056
    %1334 = vst [vmem:[#allocation2 + $0x1b0] sm:$0xff] %v1060
    %1335 = vst [vmem:[#allocation2 + $0x1b8] sm:$0xff] %v1062
    %1336 = vst [vmem:[#allocation2 + $0x1c0] sm:$0xff] %v1066
    %1337 = vst [vmem:[#allocation2 + $0x1c8] sm:$0xff] %v1068
    %1338 = vst [vmem:[#allocation2 + $0x1d0] sm:$0xff] %v1072
    %1339 = vst [vmem:[#allocation2 + $0x1d8] sm:$0xff] %v1074
    %1340 = vst [vmem:[#allocation2 + $0x1e0] sm:$0xff] %v1078
    %1341 = vst [vmem:[#allocation2 + $0x1e8] sm:$0xff] %v1080
    %1342 = vst [vmem:[#allocation2 + $0x1f0] sm:$0xff] %v1084
    %1343 = vst [vmem:[#allocation2 + $0x1f8] sm:$0xff] %v1086
    %1344 = vst [vmem:[#allocation2 + $0x200] sm:$0xff] %v1090
    %1345 = vst [vmem:[#allocation2 + $0x208] sm:$0xff] %v1092
    %1346 = vst [vmem:[#allocation2 + $0x210] sm:$0xff] %v1096
    %1347 = vst [vmem:[#allocation2 + $0x218] sm:$0xff] %v1098
    %1348 = vst [vmem:[#allocation2 + $0x220] sm:$0xff] %v1102
    %1349 = vst [vmem:[#allocation2 + $0x228] sm:$0xff] %v1104
    %1350 = vst [vmem:[#allocation2 + $0x230] sm:$0xff] %v1108
    %1351 = vst [vmem:[#allocation2 + $0x238] sm:$0xff] %v1110
    %1352 = vst [vmem:[#allocation2 + $0x240] sm:$0xff] %v1114
    %1353 = vst [vmem:[#allocation2 + $0x248] sm:$0xff] %v1116
    %1354 = vst [vmem:[#allocation2 + $0x250] sm:$0xff] %v1120
    %1355 = vst [vmem:[#allocation2 + $0x258] sm:$0xff] %v1122
    %1356 = vst [vmem:[#allocation2 + $0x260] sm:$0xff] %v1126
    %1357 = vst [vmem:[#allocation2 + $0x268] sm:$0xff] %v1128
    %1358 = vst [vmem:[#allocation2 + $0x270] sm:$0xff] %v1132
    %1359 = vst [vmem:[#allocation2 + $0x278] sm:$0xff] %v1134
    %1360 = vst [vmem:[#allocation2 + $0x280] sm:$0xff] %v1138
    %1361 = vst [vmem:[#allocation2 + $0x288] sm:$0xff] %v1140
    %1362 = vst [vmem:[#allocation2 + $0x290] sm:$0xff] %v1144
    %1363 = vst [vmem:[#allocation2 + $0x298] sm:$0xff] %v1146
    %1364 = vst [vmem:[#allocation2 + $0x2a0] sm:$0xff] %v1150
    %1365 = vst [vmem:[#allocation2 + $0x2a8] sm:$0xff] %v1152
    %1366 = vst [vmem:[#allocation2 + $0x2b0] sm:$0xff] %v1156
    %1367 = vst [vmem:[#allocation2 + $0x2b8] sm:$0xff] %v1158
    %1368 = vst [vmem:[#allocation2 + $0x2c0] sm:$0xff] %v1162
    %1369 = vst [vmem:[#allocation2 + $0x2c8] sm:$0xff] %v1164
    %1370 = vst [vmem:[#allocation2 + $0x2d0] sm:$0xff] %v1168
    %1371 = vst [vmem:[#allocation2 + $0x2d8] sm:$0xff] %v1170
    %1372 = vst [vmem:[#allocation2 + $0x2e0] sm:$0xff] %v1174
    %1373 = vst [vmem:[#allocation2 + $0x2e8] sm:$0xff] %v1176
    %1374 = vst [vmem:[#allocation2 + $0x2f0] sm:$0xff] %v1180
    %1375 = vst [vmem:[#allocation2 + $0x2f8] sm:$0xff] %v1182
    %1376 = vst [vmem:[#allocation2 + $0x300] sm:$0xff] %v1186
    %1377 = vst [vmem:[#allocation2 + $0x308] sm:$0xff] %v1188
    %1378 = vst [vmem:[#allocation2 + $0x310] sm:$0xff] %v1192
    %1379 = vst [vmem:[#allocation2 + $0x318] sm:$0xff] %v1194
    %1380 = vst [vmem:[#allocation2 + $0x320] sm:$0xff] %v1198
    %1381 = vst [vmem:[#allocation2 + $0x328] sm:$0xff] %v1200
    %1382 = vst [vmem:[#allocation2 + $0x330] sm:$0xff] %v1204
    %1383 = vst [vmem:[#allocation2 + $0x338] sm:$0xff] %v1206
    %1384 = vst [vmem:[#allocation2 + $0x340] sm:$0xff] %v1210
    %1385 = vst [vmem:[#allocation2 + $0x348] sm:$0xff] %v1212
    %1386 = vst [vmem:[#allocation2 + $0x350] sm:$0xff] %v1216
    %1387 = vst [vmem:[#allocation2 + $0x358] sm:$0xff] %v1218
    %1388 = vst [vmem:[#allocation2 + $0x360] sm:$0xff] %v1222
    %1389 = vst [vmem:[#allocation2 + $0x368] sm:$0xff] %v1224
    %1390 = vst [vmem:[#allocation2 + $0x370] sm:$0xff] %v1228
    %1391 = vst [vmem:[#allocation2 + $0x378] sm:$0xff] %v1230
    %1392 = vst [vmem:[#allocation2 + $0x380] sm:$0xff] %v1234
    %1393 = vst [vmem:[#allocation2 + $0x388] sm:$0xff] %v1236
    %1394 = vst [vmem:[#allocation2 + $0x390] sm:$0xff] %v1240
    %1395 = vst [vmem:[#allocation2 + $0x398] sm:$0xff] %v1242
    %1396 = vst [vmem:[#allocation2 + $0x3a0] sm:$0xff] %v1246
    %1397 = vst [vmem:[#allocation2 + $0x3a8] sm:$0xff] %v1248
    %1398 = vst [vmem:[#allocation2 + $0x3b0] sm:$0xff] %v1252
    %1399 = vst [vmem:[#allocation2 + $0x3b8] sm:$0xff] %v1254
    %1400 = vst [vmem:[#allocation2 + $0x3c0] sm:$0xff] %v1258
    %1401 = vst [vmem:[#allocation2 + $0x3c8] sm:$0xff] %v1260
    %1402 = vst [vmem:[#allocation2 + $0x3d0] sm:$0xff] %v1264
    %1403 = vst [vmem:[#allocation2 + $0x3d8] sm:$0xff] %v1266
    %1404 = vst [vmem:[#allocation2 + $0x3e0] sm:$0xff] %v1270
    %1405 = vst [vmem:[#allocation2 + $0x3e8] sm:$0xff] %v1272
    %1406 = vst [vmem:[#allocation2 + $0x3f0] sm:$0xff] %v1276
    %1407 = vst [vmem:[#allocation2 + $0x3f8] sm:$0xff] %v1278
    // Predicated region
    $region22: #{prompt_encoder.13} parent=1 // pred_check
      _
    $region23: #{prompt_encoder.13} parent=1 // pred_check_branch
      %1409 = sbr.rel (0) target = $region25
    $region24: #{prompt_encoder.13} parent=1 // pred_region
      %s1411 = ssub.s32 16384, 16384
      %1412 = vsyncadd [#allocation3], %s1411
      %s1413 = sshll.u32 [#allocation2], 4
      %s1414 = int_to_ptr.vmem [resolvable:$true] %s1413
      %1419 = dma.vmem_to_hbm [thread:$0]  %s1414, 16384, %s5, [#allocation3], 256, 256, 16
    $region25: #{prompt_encoder.13} parent=1 // pred_fallthru
      _
    // Predicated region
    $region26: #{prompt_encoder.13} parent=1 // pred_check
      _
    $region27: #{prompt_encoder.13} parent=1 // pred_check_branch
      %1421 = sbr.rel (0) target = $region29
    $region28: #{prompt_encoder.13} parent=1 // pred_region
      %1422 = dma.done [#allocation3], 16384
    $region29: #{prompt_encoder.13} parent=1 // pred_fallthru
      _
    %1423 = vsyncpa [#allocation3], 1

</llo_original>
